<compile_context>
chip_gen: v7x
topology: tpu7x:2x2x1
jax: 0.10.0
libtpu: 0.0.40
codegen_flags: <defaults>
</compile_context>

<pallas_src>
import functools

import jax
import jax.numpy as jnp
import numpy as np
from jax.experimental import pallas as pl
from jax.experimental.pallas import tpu as pltpu

EPS = 1e-5        # PyTorch nn.LayerNorm default eps
NEG_INF = -1e30


def _round_up(x, m):
    return (x + m - 1) // m * m


def _layernorm(h, g, b):
    mu = jnp.mean(h, axis=-1, keepdims=True)
    var = jnp.mean((h - mu) ** 2, axis=-1, keepdims=True)
    return (h - mu) * jax.lax.rsqrt(var + EPS) * g + b


# --------------------------------------------------------------------------------------
# Fused kernel: all ResidualAttentionBlocks + final LayerNorm + cls pooling
# --------------------------------------------------------------------------------------
def fused_transformer_kernel(
    x_ref,                       # (B, Tp, E)  f32   fused input sequence (resident per batch tile)
    ln1_g_ref, ln1_b_ref,        # (1, 1, E)   f32
    w_in_ref, b_in_ref,          # (1, E, 3E) bf16 / (1, 1, 3E) f32   (q cols pre-scaled by 1/sqrt(dh))
    w_out_ref, b_out_ref,        # (1, E, E)  bf16 / (1, 1, E)  f32
    ln2_g_ref, ln2_b_ref,        # (1, 1, E)   f32
    w_fc_ref, b_fc_ref,          # (1, E, 4E) bf16 / (1, 1, 4E) f32
    w_pr_ref, b_pr_ref,          # (1, 4E, E) bf16 / (1, 1, E)  f32
    nf_g_ref, nf_b_ref,          # (1, E)      f32   final LayerNorm params
    o_ref,                       # (B, E)      f32   pooled cls output
    h_ref,                       # scratch (B, Tp, E) f32 : activation carry across layers
    *, n_heads: int, t_valid: int, mlp_chunk: int,
):
    layer = pl.program_id(1)
    n_layers = pl.num_programs(1)
    B, Tp, E = h_ref.shape
    M = B * Tp
    dh = E // n_heads
    bf16 = jnp.bfloat16

    # Load the fused sequence into the VMEM carry at the first layer of each batch tile.
    @pl.when(layer == 0)
    def _():
        h_ref[...] = x_ref[...]

    h2 = h_ref[...].reshape(M, E)                      # sublane-dense (M, E) slab

    # ------------- self-attention branch: x + out_proj(MHA(LN1(x))) -------------
    y = _layernorm(h2, ln1_g_ref[0], ln1_b_ref[0])
    qkv = (jnp.dot(y.astype(bf16), w_in_ref[0],
                   preferred_element_type=jnp.float32) + b_in_ref[0]).astype(bf16)   # (M, 3E) bf16
    qkv3 = qkv.reshape(B, Tp, 3 * E)

    # Mask padded key positions (t >= t_valid).
    # TODO(synk): user key_padding_mask would be merged in here as an additive bias.
    key_valid = jax.lax.broadcasted_iota(jnp.int32, (1, 1, Tp), 2) < t_valid

    # Per-head loop (static unroll).  Each head's contribution to the output projection is
    # accumulated directly (no f32 head-output scratch, no partial lane stores, no concat).
    attn = jnp.zeros((M, E), jnp.float32)
    for hd in range(n_heads):
        q = qkv3[:, :, hd * dh:(hd + 1) * dh]                           # (B, Tp, dh) bf16 (pre-scaled)
        k = qkv3[:, :, E + hd * dh:E + (hd + 1) * dh]
        v = qkv3[:, :, 2 * E + hd * dh:2 * E + (hd + 1) * dh]
        s = jnp.einsum("btd,bsd->bts", q, k,
                       preferred_element_type=jnp.float32)              # (B, Tp, Tp) f32
        s = jnp.where(key_valid, s, NEG_INF)
        s = s - jnp.max(s, axis=-1, keepdims=True)
        p = jnp.exp(s)
        p = p * pl.reciprocal(jnp.sum(p, axis=-1, keepdims=True), approx=True)
        ho = jnp.einsum("bts,bsd->btd", p.astype(bf16), v,
                        preferred_element_type=jnp.float32)             # (B, Tp, dh)
        attn = attn + jnp.dot(ho.reshape(M, dh).astype(bf16),
                              w_out_ref[0][hd * dh:(hd + 1) * dh, :],
                              preferred_element_type=jnp.float32)       # (M, E) f32 accumulator
    x1 = h2 + attn + b_out_ref[0]

    # ------------- MLP branch: x + c_proj(QuickGELU(c_fc(LN2(x)))) -------------
    # Hidden dim (4E) processed in static chunks to cap live u/g temporaries (bf16 MXU operands).
    y2 = _layernorm(x1, ln2_g_ref[0], ln2_b_ref[0]).astype(bf16)
    m = jnp.zeros((M, E), jnp.float32)
    hidden = 4 * E
    for c0 in range(0, hidden, mlp_chunk):
        c1 = min(c0 + mlp_chunk, hidden)
        u = jnp.dot(y2, w_fc_ref[0][:, c0:c1],
                    preferred_element_type=jnp.float32) + b_fc_ref[0][:, c0:c1]
        g = u * jax.nn.sigmoid(1.702 * u)                               # QuickGELU in f32
        m = m + jnp.dot(g.astype(bf16), w_pr_ref[0][c0:c1, :],
                        preferred_element_type=jnp.float32)
    x2 = x1 + m + b_pr_ref[0]

    h_ref[...] = x2.reshape(B, Tp, E)                   # carry to next layer (stays in VMEM)

    # After the last layer: final LayerNorm of the cls token only -> (B, E).
    @pl.when(layer == n_layers - 1)
    def _():
        cls = x2.reshape(B, Tp, E)[:, 0, :]             # (B, E)
        o_ref[...] = _layernorm(cls, nf_g_ref[...], nf_b_ref[...])


# --------------------------------------------------------------------------------------
# Wrapper
# --------------------------------------------------------------------------------------
def fusion_transformer_forward(params, xs, n_heads, *, b_tile=32, mlp_chunk=2048):
    """fusion='concat', pool='cls', batch_first=True, key_padding_mask=None.

    b_tile: rows of the batch processed per weight fetch.  Roofline targets (M = b_tile*Tp):
      v5e ~16-32, v6e ~32-64, v7x ~32-64 per TC (keep Np//b_tile >= 2 so both TCs get work).
    It is clamped to round_up(N, 8) so small batches don't run padded garbage rows.
    """
    x = jnp.concatenate(xs, axis=1)                                     # (N, L1+L2, E)
    N, _, E = x.shape
    cls = jnp.broadcast_to(params["cls_token"], (N, 1, E)).astype(x.dtype)
    x = jnp.concatenate([cls, x], axis=1)                               # (N, T, E)
    T = x.shape[1]
    n_heads = int(n_heads)
    dh = E // n_heads

    # Pad tokens to a sublane multiple and batch to the batch tile.  Padded keys are masked
    # inside the kernel; padded batch rows are dropped after the call.
    Tp = _round_up(T, 8)
    b_tile = max(8, min(_round_up(N, 8), _round_up(b_tile, 8)))
    Np = _round_up(N, b_tile)
    x = jnp.pad(x, ((0, Np - N), (0, Tp - T), (0, 0)))

    n_layers = params["w_in"].shape[0]
    wdt = jnp.bfloat16   # MXU operands; accumulation stays f32

    # Fold the 1/sqrt(dh) attention scale into the q-columns of in_proj (weights + bias).
    q_scale = jnp.concatenate(
        [jnp.full((E,), 1.0 / (dh ** 0.5), jnp.float32), jnp.ones((2 * E,), jnp.float32)])
    w_in = (params["w_in"] * q_scale).astype(wdt)
    b_in = params["b_in"] * q_scale

    # Hidden-dim chunk for the MLP (multiple of 128 lanes where possible).
    hidden = 4 * E
    mlp_chunk = int(min(hidden, max(128, (mlp_chunk // 128) * 128 if mlp_chunk >= 128 else 128)))

    inputs = [
        params["ln1_g"], params["ln1_b"],
        w_in, b_in,
        params["w_out"].astype(wdt), params["b_out"],
        params["ln2_g"], params["ln2_b"],
        params["w_fc"].astype(wdt), params["b_fc"],
        params["w_pr"].astype(wdt), params["b_pr"],
    ]

    def per_layer_spec(shape):
        n_rest = len(shape) - 1

        def imap(b, l):
            return (l,) + (0,) * n_rest

        return pl.BlockSpec((1,) + tuple(shape[1:]), imap)

    in_specs = [pl.BlockSpec((b_tile, Tp, E), lambda b, l: (b, 0, 0))]
    in_specs += [per_layer_spec(w.shape) for w in inputs]
    in_specs += [pl.BlockSpec((1, E), lambda b, l: (0, 0)),
                 pl.BlockSpec((1, E), lambda b, l: (0, 0))]

    # ----- VMEM budget (explicit, clamped to the device's physical VMEM) -----
    weight_bytes = 2 * (12 * E * E) * 2                     # per-layer bf16 weights, double-buffered
    act_bytes = 3 * b_tile * Tp * E * 4                     # x input (2 bufs) + h scratch, f32
    tmp_bytes = (b_tile * Tp * 3 * E * 4                    # qkv (f32 before the bf16 cast)
                 + b_tile * Tp * mlp_chunk * 4              # u/g chunk
                 + 4 * b_tile * Tp * E * 4)                 # attn/m accumulators, LN temporaries
    need = weight_bytes + act_bytes + tmp_bytes
    try:
        cap = int(getattr(pltpu.get_tpu_info(), "vmem_capacity_bytes", 64 << 20))
    except Exception:   # noqa: BLE001 - fall back to the most conservative generation (v7x)
        cap = 64 << 20
    vmem_limit = int(min(int(0.9 * cap), max(32 << 20, int(1.5 * need))))

    # ----- Cost estimate (helps XLA schedule the surrounding concat/pad/slice ops) -----
    M_total = Np * Tp
    flops = (2 * M_total * 12 * E * E                       # linear layers
             + 4 * Np * n_heads * Tp * Tp * dh) * n_layers  # QK^T + PV
    transcendentals = n_layers * (M_total * 4 * E + Np * n_heads * Tp * Tp)
    bytes_accessed = ((Np // b_tile) * n_layers * 12 * E * E * 2   # streamed bf16 weights
                      + Np * Tp * E * 4 + Np * E * 4)              # activations in / out
    cost = pl.CostEstimate(flops=int(flops), transcendentals=int(transcendentals),
                           bytes_accessed=int(bytes_accessed))

    out = pl.pallas_call(
        functools.partial(fused_transformer_kernel, n_heads=n_heads, t_valid=T,
                          mlp_chunk=mlp_chunk),
        out_shape=jax.ShapeDtypeStruct((Np, E), x.dtype),
        grid=(Np // b_tile, n_layers),
        in_specs=in_specs,
        out_specs=pl.BlockSpec((b_tile, E), lambda b, l: (b, 0)),
        scratch_shapes=[pltpu.VMEM((b_tile, Tp, E), jnp.float32)],  # activation carry
        compiler_params=pltpu.CompilerParams(
            dimension_semantics=("parallel", "arbitrary"),
            vmem_limit_bytes=vmem_limit),
        cost_estimate=cost,
    )(x, *inputs, params["norm_g"], params["norm_b"])
    return out[:N]                                                      # (N, E)


# --------------------------------------------------------------------------------------
# Deterministic parameter init (mirrors FusionTransformer.initialize()), stacked per layer
# --------------------------------------------------------------------------------------
def init_params(key, width, n_layers):
    E = width
    proj_std = E ** (-0.5) * (2 * n_layers) ** (-0.5)
    attn_std = E ** (-0.5)
    fc_std = (2 * E) ** (-0.5)

    keys = jax.random.split(key, n_layers + 1)
    w_in, w_out, w_fc, w_pr = [], [], [], []
    for l in range(n_layers):
        k_in, k_out, k_fc, k_pr = jax.random.split(keys[l + 1], 4)
        in_proj = attn_std * jax.random.normal(k_in, (3 * E, E), jnp.float32)
        w_in.append(in_proj.T)                                                    # (E, 3E)
        w_out.append((proj_std * jax.random.normal(k_out, (E, E), jnp.float32)).T)
        w_fc.append((fc_std * jax.random.normal(k_fc, (4 * E, E), jnp.float32)).T)   # (E, 4E)
        w_pr.append((proj_std * jax.random.normal(k_pr, (E, 4 * E), jnp.float32)).T)  # (4E, E)

    return dict(
        cls_token=jax.random.normal(keys[0], (1, 1, E), jnp.float32),
        w_in=jnp.stack(w_in), b_in=jnp.zeros((n_layers, 1, 3 * E), jnp.float32),
        w_out=jnp.stack(w_out), b_out=jnp.zeros((n_layers, 1, E), jnp.float32),
        w_fc=jnp.stack(w_fc), b_fc=jnp.zeros((n_layers, 1, 4 * E), jnp.float32),
        w_pr=jnp.stack(w_pr), b_pr=jnp.zeros((n_layers, 1, E), jnp.float32),
        ln1_g=jnp.ones((n_layers, 1, E), jnp.float32),
        ln1_b=jnp.zeros((n_layers, 1, E), jnp.float32),
        ln2_g=jnp.ones((n_layers, 1, E), jnp.float32),
        ln2_b=jnp.zeros((n_layers, 1, E), jnp.float32),
        norm_g=jnp.ones((1, E), jnp.float32),
        norm_b=jnp.zeros((1, E), jnp.float32),
    )


# --------------------------------------------------------------------------------------
# Pure-JAX f32 reference (PyTorch-faithful math) for correctness checking
# --------------------------------------------------------------------------------------
def reference_forward(params, xs, n_heads):
    x = jnp.concatenate(xs, axis=1)
    N, _, E = x.shape
    cls = jnp.broadcast_to(params["cls_token"], (N, 1, E))
    x = jnp.concatenate([cls, x], axis=1)
    T = x.shape[1]
    dh = E // n_heads

    def ln(h, g, b):
        mu = h.mean(-1, keepdims=True)
        var = ((h - mu) ** 2).mean(-1, keepdims=True)
        return (h - mu) / jnp.sqrt(var + EPS) * g + b

    n_layers = params["w_in"].shape[0]
    for l in range(n_layers):
        y = ln(x, params["ln1_g"][l, 0], params["ln1_b"][l, 0])
        qkv = y @ params["w_in"][l] + params["b_in"][l, 0]
        q, k, v = qkv[..., :E], qkv[..., E:2 * E], qkv[..., 2 * E:]
        qh = q.reshape(N, T, n_heads, dh).transpose(0, 2, 1, 3)
        kh = k.reshape(N, T, n_heads, dh).transpose(0, 2, 1, 3)
        vh = v.reshape(N, T, n_heads, dh).transpose(0, 2, 1, 3)
        s = jnp.einsum("bhtd,bhsd->bhts", qh, kh) / jnp.sqrt(dh)
        p = jax.nn.softmax(s, axis=-1)
        ao = jnp.einsum("bhts,bhsd->bhtd", p, vh).transpose(0, 2, 1, 3).reshape(N, T, E)
        x = x + (ao @ params["w_out"][l] + params["b_out"][l, 0])
        y2 = ln(x, params["ln2_g"][l, 0], params["ln2_b"][l, 0])
        u = y2 @ params["w_fc"][l] + params["b_fc"][l, 0]
        g = u * jax.nn.sigmoid(1.702 * u)
        x = x + (g @ params["w_pr"][l] + params["b_pr"][l, 0])
    x = ln(x, params["norm_g"][0], params["norm_b"][0])
    return x[:, 0, :]


# --------------------------------------------------------------------------------------
if __name__ == "__main__":
    N, L1, L2, WIDTH, N_HEADS, N_LAYERS = 2, 8, 8, 32, 4, 2

    key = jax.random.PRNGKey(0)
    k_params, k_x1, k_x2 = jax.random.split(key, 3)
    params = init_params(k_params, WIDTH, N_LAYERS)

    x1 = jax.random.normal(k_x1, (N, L1, WIDTH), jnp.float32)
    x2 = jax.random.normal(k_x2, (N, L2, WIDTH), jnp.float32)

    out = fusion_transformer_forward(params, [x1, x2], N_HEADS)
    out = jax.block_until_ready(out)

    ref = reference_forward(params, [x1, x2], N_HEADS)
    # Tolerance reflects bf16 MXU operands (f32 accumulation) and the approximate softmax
    # reciprocal vs. the pure-f32 reference; structural bugs would produce O(1) errors.
    np.testing.assert_allclose(np.asarray(out), np.asarray(ref), rtol=5e-2, atol=5e-2)

    assert out.shape == (N, WIDTH)
    print("KERNEL_OK")
</pallas_src>

<mosaic_0001>
module attributes {stable_mosaic.version = 11 : i64} {
  func.func @fused_transformer_kernel(%arg0: i32, %arg1: i32, %arg2: memref<8x24x32xf32, #tpu.memory_space<vmem>>, %arg3: memref<1x1x32xf32, #tpu.memory_space<vmem>>, %arg4: memref<1x1x32xf32, #tpu.memory_space<vmem>>, %arg5: memref<1x32x96xbf16, #tpu.memory_space<vmem>>, %arg6: memref<1x1x96xf32, #tpu.memory_space<vmem>>, %arg7: memref<1x32x32xbf16, #tpu.memory_space<vmem>>, %arg8: memref<1x1x32xf32, #tpu.memory_space<vmem>>, %arg9: memref<1x1x32xf32, #tpu.memory_space<vmem>>, %arg10: memref<1x1x32xf32, #tpu.memory_space<vmem>>, %arg11: memref<1x32x128xbf16, #tpu.memory_space<vmem>>, %arg12: memref<1x1x128xf32, #tpu.memory_space<vmem>>, %arg13: memref<1x128x32xbf16, #tpu.memory_space<vmem>>, %arg14: memref<1x1x32xf32, #tpu.memory_space<vmem>>, %arg15: memref<1x32xf32, #tpu.memory_space<vmem>>, %arg16: memref<1x32xf32, #tpu.memory_space<vmem>>, %arg17: memref<8x32xf32, #tpu.memory_space<vmem>>, %arg18: memref<8x24x32xf32, #tpu.memory_space<vmem>>) attributes {dimension_semantics = [#tpu.dimension_semantics<parallel>, #tpu.dimension_semantics<arbitrary>], iteration_bounds = array<i64: 1, 2>, scalar_prefetch = 0 : i64, scratch_operands = 1 : i64, tpu.core_type = #tpu.core_type<tc>, window_params = [{transform_indices = @transform_0, window_bounds = array<i64: 8, 24, 32>}, {transform_indices = @transform_1, window_bounds = array<i64: 1, 1, 32>}, {transform_indices = @transform_2, window_bounds = array<i64: 1, 1, 32>}, {transform_indices = @transform_3, window_bounds = array<i64: 1, 32, 96>}, {transform_indices = @transform_4, window_bounds = array<i64: 1, 1, 96>}, {transform_indices = @transform_5, window_bounds = array<i64: 1, 32, 32>}, {transform_indices = @transform_6, window_bounds = array<i64: 1, 1, 32>}, {transform_indices = @transform_7, window_bounds = array<i64: 1, 1, 32>}, {transform_indices = @transform_8, window_bounds = array<i64: 1, 1, 32>}, {transform_indices = @transform_9, window_bounds = array<i64: 1, 32, 128>}, {transform_indices = @transform_10, window_bounds = array<i64: 1, 1, 128>}, {transform_indices = @transform_11, window_bounds = array<i64: 1, 128, 32>}, {transform_indices = @transform_12, window_bounds = array<i64: 1, 1, 32>}, {pipeline_mode = #tpu.pipeline_mode<synchronous>, transform_indices = @transform_13, window_bounds = array<i64: 1, 32>}, {pipeline_mode = #tpu.pipeline_mode<synchronous>, transform_indices = @transform_14, window_bounds = array<i64: 1, 32>}, {transform_indices = @transform_15, window_bounds = array<i64: 8, 32>}]} {
    %c0_i32 = arith.constant 0 : i32
    %0 = arith.cmpi eq, %arg1, %c0_i32 : i32
    %1 = arith.extui %0 : i1 to i32
    %c0_i32_0 = arith.constant 0 : i32
    %2 = arith.cmpi ne, %1, %c0_i32_0 : i32
    scf.if %2 {
      %c0_92 = arith.constant 0 : index
      %c0_93 = arith.constant 0 : index
      %c0_94 = arith.constant 0 : index
      %216 = vector.load %arg2[%c0_92, %c0_93, %c0_94] : memref<8x24x32xf32, #tpu.memory_space<vmem>>, vector<8x24x32xf32>
      %c0_95 = arith.constant 0 : index
      %c0_96 = arith.constant 0 : index
      %c0_97 = arith.constant 0 : index
      %217 = vector.load %arg18[%c0_95, %c0_96, %c0_97] : memref<8x24x32xf32, #tpu.memory_space<vmem>>, vector<8x24x32xf32>
      tpu.vector_store %arg18[%c0_95, %c0_96, %c0_97], %216 {strides = array<i32>} : memref<8x24x32xf32, #tpu.memory_space<vmem>>, vector<8x24x32xf32>,
    } else {
    }
    %c0 = arith.constant 0 : index
    %c0_1 = arith.constant 0 : index
    %c0_2 = arith.constant 0 : index
    %3 = vector.load %arg18[%c0, %c0_1, %c0_2] : memref<8x24x32xf32, #tpu.memory_space<vmem>>, vector<8x24x32xf32>
    %4 = vector.shape_cast %3 : vector<8x24x32xf32> to vector<192x32xf32>
    %c0_3 = arith.constant 0 : index
    %c0_4 = arith.constant 0 : index
    %c0_5 = arith.constant 0 : index
    %5 = vector.load %arg3[%c0_3, %c0_4, %c0_5] : memref<1x1x32xf32, #tpu.memory_space<vmem>>, vector<1x1x32xf32>
    %6 = vector.shape_cast %5 : vector<1x1x32xf32> to vector<1x32xf32>
    %c0_6 = arith.constant 0 : index
    %c0_7 = arith.constant 0 : index
    %c0_8 = arith.constant 0 : index
    %7 = vector.load %arg4[%c0_6, %c0_7, %c0_8] : memref<1x1x32xf32, #tpu.memory_space<vmem>>, vector<1x1x32xf32>
    %8 = vector.shape_cast %7 : vector<1x1x32xf32> to vector<1x32xf32>
    %cst = arith.constant dense<0.000000e+00> : vector<192xf32>
    %9 = vector.multi_reduction <add>, %4, %cst [1] : vector<192x32xf32> to vector<192xf32>
    %10 = vector.shape_cast %9 : vector<192xf32> to vector<192x1xf32>
    %cst_9 = arith.constant 3.200000e+01 : f32
    %11 = vector.broadcast %cst_9 : f32 to vector<192x1xf32>
    %12 = arith.divf %10, %11 : vector<192x1xf32>
    %13 = vector.broadcast %12 : vector<192x1xf32> to vector<192x32xf32>
    %14 = arith.subf %4, %13 : vector<192x32xf32>
    %15 = arith.mulf %14, %14 : vector<192x32xf32>
    %cst_10 = arith.constant dense<0.000000e+00> : vector<192xf32>
    %16 = vector.multi_reduction <add>, %15, %cst_10 [1] : vector<192x32xf32> to vector<192xf32>
    %17 = vector.shape_cast %16 : vector<192xf32> to vector<192x1xf32>
    %cst_11 = arith.constant 3.200000e+01 : f32
    %18 = vector.broadcast %cst_11 : f32 to vector<192x1xf32>
    %19 = arith.divf %17, %18 : vector<192x1xf32>
    %20 = vector.broadcast %12 : vector<192x1xf32> to vector<192x32xf32>
    %21 = arith.subf %4, %20 : vector<192x32xf32>
    %cst_12 = arith.constant 9.99999974E-6 : f32
    %22 = vector.broadcast %cst_12 : f32 to vector<192x1xf32>
    %23 = arith.addf %19, %22 : vector<192x1xf32>
    %24 = math.rsqrt %23 : vector<192x1xf32>
    %25 = vector.broadcast %24 : vector<192x1xf32> to vector<192x32xf32>
    %26 = arith.mulf %21, %25 : vector<192x32xf32>
    %27 = vector.broadcast %6 : vector<1x32xf32> to vector<192x32xf32>
    %28 = arith.mulf %26, %27 : vector<192x32xf32>
    %29 = vector.broadcast %8 : vector<1x32xf32> to vector<192x32xf32>
    %30 = arith.addf %28, %29 : vector<192x32xf32>
    %31 = arith.truncf %30 : vector<192x32xf32> to vector<192x32xbf16>
    %c0_13 = arith.constant 0 : index
    %c0_14 = arith.constant 0 : index
    %c0_15 = arith.constant 0 : index
    %32 = vector.load %arg5[%c0_13, %c0_14, %c0_15] : memref<1x32x96xbf16, #tpu.memory_space<vmem>>, vector<1x32x96xbf16>
    %33 = vector.shape_cast %32 : vector<1x32x96xbf16> to vector<32x96xbf16>
    %cst_16 = arith.constant dense<0.000000e+00> : vector<192x96xf32>
    %34 = tpu.matmul %31, %33, %cst_16 {dimension_numbers = #tpu.dot_dimension_numbers<[1], [0], [0], [1], [0, 0, 1, 1], [], []>} : vector<192x32xbf16>, vector<32x96xbf16>, vector<192x96xf32> -> vector<192x96xf32>
    %c0_17 = arith.constant 0 : index
    %c0_18 = arith.constant 0 : index
    %c0_19 = arith.constant 0 : index
    %35 = vector.load %arg6[%c0_17, %c0_18, %c0_19] : memref<1x1x96xf32, #tpu.memory_space<vmem>>, vector<1x1x96xf32>
    %36 = vector.shape_cast %35 : vector<1x1x96xf32> to vector<1x96xf32>
    %37 = vector.broadcast %36 : vector<1x96xf32> to vector<192x96xf32>
    %38 = arith.addf %34, %37 : vector<192x96xf32>
    %39 = arith.truncf %38 : vector<192x96xf32> to vector<192x96xbf16>
    %40 = vector.shape_cast %39 : vector<192x96xbf16> to vector<8x24x96xbf16>
    %41 = tpu.iota {dimensions = array<i32: 2>} : vector<1x1x24xi32>
    %c17_i32 = arith.constant 17 : i32
    %42 = vector.broadcast %c17_i32 : i32 to vector<1x1x24xi32>
    %43 = arith.cmpi slt, %41, %42 : vector<1x1x24xi32>
    %cst_20 = arith.constant 0.000000e+00 : f32
    %44 = vector.broadcast %cst_20 : f32 to vector<192x32xf32>
    %45 = vector.extract_strided_slice %40 {offsets = [0, 0, 0], sizes = [8, 24, 8], strides = [1, 1, 1]} : vector<8x24x96xbf16> to vector<8x24x8xbf16>
    %46 = vector.extract_strided_slice %40 {offsets = [0, 0, 32], sizes = [8, 24, 8], strides = [1, 1, 1]} : vector<8x24x96xbf16> to vector<8x24x8xbf16>
    %47 = vector.extract_strided_slice %40 {offsets = [0, 0, 64], sizes = [8, 24, 8], strides = [1, 1, 1]} : vector<8x24x96xbf16> to vector<8x24x8xbf16>
    "tpu.trace_start"() <{level = 10 : i32, message = "btd,bsd->bts"}> : () -> ()
    %cst_21 = arith.constant dense<0.000000e+00> : vector<8x24x24xf32>
    %48 = tpu.matmul %45, %46, %cst_21 {dimension_numbers = #tpu.dot_dimension_numbers<[2], [2], [1], [1], [0, 0, 0, 1, 1, 1], [0], [0]>} : vector<8x24x8xbf16>, vector<8x24x8xbf16>, vector<8x24x24xf32> -> vector<8x24x24xf32>
    %cst_22 = arith.constant -1.000000e+30 : f32
    "tpu.trace_stop"() : () -> ()
    %49 = vector.shape_cast %43 : vector<1x1x24xi1> to vector<1x1x24xi1>
    %50 = vector.broadcast %49 : vector<1x1x24xi1> to vector<8x24x24xi1>
    %51 = vector.broadcast %cst_22 : f32 to vector<8x24x24xf32>
    %52 = arith.select %50, %48, %51 : vector<8x24x24xi1>, vector<8x24x24xf32>
    %cst_23 = arith.constant dense<0xFF800000> : vector<8x24xf32>
    %53 = vector.multi_reduction <maximumf>, %52, %cst_23 [2] : vector<8x24x24xf32> to vector<8x24xf32>
    %54 = vector.shape_cast %53 : vector<8x24xf32> to vector<8x24x1xf32>
    %55 = vector.broadcast %54 : vector<8x24x1xf32> to vector<8x24x24xf32>
    %56 = arith.subf %52, %55 : vector<8x24x24xf32>
    %57 = math.exp %56 : vector<8x24x24xf32>
    %cst_24 = arith.constant dense<0.000000e+00> : vector<8x24xf32>
    %58 = vector.multi_reduction <add>, %57, %cst_24 [2] : vector<8x24x24xf32> to vector<8x24xf32>
    %59 = vector.shape_cast %58 : vector<8x24xf32> to vector<8x24x1xf32>
    %60 = tpu.reciprocal %59 {approx = true} : vector<8x24x1xf32> -> vector<8x24x1xf32>
    %61 = vector.broadcast %60 : vector<8x24x1xf32> to vector<8x24x24xf32>
    %62 = arith.mulf %57, %61 : vector<8x24x24xf32>
    %63 = arith.truncf %62 : vector<8x24x24xf32> to vector<8x24x24xbf16>
    "tpu.trace_start"() <{level = 10 : i32, message = "bts,bsd->btd"}> : () -> ()
    %cst_25 = arith.constant dense<0.000000e+00> : vector<8x24x8xf32>
    %64 = tpu.matmul %63, %47, %cst_25 {dimension_numbers = #tpu.dot_dimension_numbers<[2], [1], [1], [2], [0, 0, 0, 1, 1, 2], [0], [0]>} : vector<8x24x24xbf16>, vector<8x24x8xbf16>, vector<8x24x8xf32> -> vector<8x24x8xf32>
    "tpu.trace_stop"() : () -> ()
    %65 = vector.shape_cast %64 : vector<8x24x8xf32> to vector<192x8xf32>
    %66 = arith.truncf %65 : vector<192x8xf32> to vector<192x8xbf16>
    %c0_26 = arith.constant 0 : index
    %c0_27 = arith.constant 0 : index
    %c0_28 = arith.constant 0 : index
    %67 = vector.load %arg7[%c0_26, %c0_27, %c0_28] : memref<1x32x32xbf16, #tpu.memory_space<vmem>>, vector<1x32x32xbf16>
    %68 = vector.shape_cast %67 : vector<1x32x32xbf16> to vector<32x32xbf16>
    %69 = vector.extract_strided_slice %68 {offsets = [0, 0], sizes = [8, 32], strides = [1, 1]} : vector<32x32xbf16> to vector<8x32xbf16>
    %cst_29 = arith.constant dense<0.000000e+00> : vector<192x32xf32>
    %70 = tpu.matmul %66, %69, %cst_29 {dimension_numbers = #tpu.dot_dimension_numbers<[1], [0], [0], [1], [0, 0, 1, 1], [], []>} : vector<192x8xbf16>, vector<8x32xbf16>, vector<192x32xf32> -> vector<192x32xf32>
    %71 = arith.addf %44, %70 : vector<192x32xf32>
    %72 = vector.extract_strided_slice %40 {offsets = [0, 0, 8], sizes = [8, 24, 8], strides = [1, 1, 1]} : vector<8x24x96xbf16> to vector<8x24x8xbf16>
    %73 = vector.extract_strided_slice %40 {offsets = [0, 0, 40], sizes = [8, 24, 8], strides = [1, 1, 1]} : vector<8x24x96xbf16> to vector<8x24x8xbf16>
    %74 = vector.extract_strided_slice %40 {offsets = [0, 0, 72], sizes = [8, 24, 8], strides = [1, 1, 1]} : vector<8x24x96xbf16> to vector<8x24x8xbf16>
    "tpu.trace_start"() <{level = 10 : i32, message = "btd,bsd->bts"}> : () -> ()
    %cst_30 = arith.constant dense<0.000000e+00> : vector<8x24x24xf32>
    %75 = tpu.matmul %72, %73, %cst_30 {dimension_numbers = #tpu.dot_dimension_numbers<[2], [2], [1], [1], [0, 0, 0, 1, 1, 1], [0], [0]>} : vector<8x24x8xbf16>, vector<8x24x8xbf16>, vector<8x24x24xf32> -> vector<8x24x24xf32>
    %cst_31 = arith.constant -1.000000e+30 : f32
    "tpu.trace_stop"() : () -> ()
    %76 = vector.shape_cast %43 : vector<1x1x24xi1> to vector<1x1x24xi1>
    %77 = vector.broadcast %76 : vector<1x1x24xi1> to vector<8x24x24xi1>
    %78 = vector.broadcast %cst_31 : f32 to vector<8x24x24xf32>
    %79 = arith.select %77, %75, %78 : vector<8x24x24xi1>, vector<8x24x24xf32>
    %cst_32 = arith.constant dense<0xFF800000> : vector<8x24xf32>
    %80 = vector.multi_reduction <maximumf>, %79, %cst_32 [2] : vector<8x24x24xf32> to vector<8x24xf32>
    %81 = vector.shape_cast %80 : vector<8x24xf32> to vector<8x24x1xf32>
    %82 = vector.broadcast %81 : vector<8x24x1xf32> to vector<8x24x24xf32>
    %83 = arith.subf %79, %82 : vector<8x24x24xf32>
    %84 = math.exp %83 : vector<8x24x24xf32>
    %cst_33 = arith.constant dense<0.000000e+00> : vector<8x24xf32>
    %85 = vector.multi_reduction <add>, %84, %cst_33 [2] : vector<8x24x24xf32> to vector<8x24xf32>
    %86 = vector.shape_cast %85 : vector<8x24xf32> to vector<8x24x1xf32>
    %87 = tpu.reciprocal %86 {approx = true} : vector<8x24x1xf32> -> vector<8x24x1xf32>
    %88 = vector.broadcast %87 : vector<8x24x1xf32> to vector<8x24x24xf32>
    %89 = arith.mulf %84, %88 : vector<8x24x24xf32>
    %90 = arith.truncf %89 : vector<8x24x24xf32> to vector<8x24x24xbf16>
    "tpu.trace_start"() <{level = 10 : i32, message = "bts,bsd->btd"}> : () -> ()
    %cst_34 = arith.constant dense<0.000000e+00> : vector<8x24x8xf32>
    %91 = tpu.matmul %90, %74, %cst_34 {dimension_numbers = #tpu.dot_dimension_numbers<[2], [1], [1], [2], [0, 0, 0, 1, 1, 2], [0], [0]>} : vector<8x24x24xbf16>, vector<8x24x8xbf16>, vector<8x24x8xf32> -> vector<8x24x8xf32>
    "tpu.trace_stop"() : () -> ()
    %92 = vector.shape_cast %91 : vector<8x24x8xf32> to vector<192x8xf32>
    %93 = arith.truncf %92 : vector<192x8xf32> to vector<192x8xbf16>
    %c0_35 = arith.constant 0 : index
    %c0_36 = arith.constant 0 : index
    %c0_37 = arith.constant 0 : index
    %94 = vector.load %arg7[%c0_35, %c0_36, %c0_37] : memref<1x32x32xbf16, #tpu.memory_space<vmem>>, vector<1x32x32xbf16>
    %95 = vector.shape_cast %94 : vector<1x32x32xbf16> to vector<32x32xbf16>
    %96 = vector.extract_strided_slice %95 {offsets = [8, 0], sizes = [8, 32], strides = [1, 1]} : vector<32x32xbf16> to vector<8x32xbf16>
    %cst_38 = arith.constant dense<0.000000e+00> : vector<192x32xf32>
    %97 = tpu.matmul %93, %96, %cst_38 {dimension_numbers = #tpu.dot_dimension_numbers<[1], [0], [0], [1], [0, 0, 1, 1], [], []>} : vector<192x8xbf16>, vector<8x32xbf16>, vector<192x32xf32> -> vector<192x32xf32>
    %98 = arith.addf %71, %97 : vector<192x32xf32>
    %99 = vector.extract_strided_slice %40 {offsets = [0, 0, 16], sizes = [8, 24, 8], strides = [1, 1, 1]} : vector<8x24x96xbf16> to vector<8x24x8xbf16>
    %100 = vector.extract_strided_slice %40 {offsets = [0, 0, 48], sizes = [8, 24, 8], strides = [1, 1, 1]} : vector<8x24x96xbf16> to vector<8x24x8xbf16>
    %101 = vector.extract_strided_slice %40 {offsets = [0, 0, 80], sizes = [8, 24, 8], strides = [1, 1, 1]} : vector<8x24x96xbf16> to vector<8x24x8xbf16>
    "tpu.trace_start"() <{level = 10 : i32, message = "btd,bsd->bts"}> : () -> ()
    %cst_39 = arith.constant dense<0.000000e+00> : vector<8x24x24xf32>
    %102 = tpu.matmul %99, %100, %cst_39 {dimension_numbers = #tpu.dot_dimension_numbers<[2], [2], [1], [1], [0, 0, 0, 1, 1, 1], [0], [0]>} : vector<8x24x8xbf16>, vector<8x24x8xbf16>, vector<8x24x24xf32> -> vector<8x24x24xf32>
    %cst_40 = arith.constant -1.000000e+30 : f32
    "tpu.trace_stop"() : () -> ()
    %103 = vector.shape_cast %43 : vector<1x1x24xi1> to vector<1x1x24xi1>
    %104 = vector.broadcast %103 : vector<1x1x24xi1> to vector<8x24x24xi1>
    %105 = vector.broadcast %cst_40 : f32 to vector<8x24x24xf32>
    %106 = arith.select %104, %102, %105 : vector<8x24x24xi1>, vector<8x24x24xf32>
    %cst_41 = arith.constant dense<0xFF800000> : vector<8x24xf32>
    %107 = vector.multi_reduction <maximumf>, %106, %cst_41 [2] : vector<8x24x24xf32> to vector<8x24xf32>
    %108 = vector.shape_cast %107 : vector<8x24xf32> to vector<8x24x1xf32>
    %109 = vector.broadcast %108 : vector<8x24x1xf32> to vector<8x24x24xf32>
    %110 = arith.subf %106, %109 : vector<8x24x24xf32>
    %111 = math.exp %110 : vector<8x24x24xf32>
    %cst_42 = arith.constant dense<0.000000e+00> : vector<8x24xf32>
    %112 = vector.multi_reduction <add>, %111, %cst_42 [2] : vector<8x24x24xf32> to vector<8x24xf32>
    %113 = vector.shape_cast %112 : vector<8x24xf32> to vector<8x24x1xf32>
    %114 = tpu.reciprocal %113 {approx = true} : vector<8x24x1xf32> -> vector<8x24x1xf32>
    %115 = vector.broadcast %114 : vector<8x24x1xf32> to vector<8x24x24xf32>
    %116 = arith.mulf %111, %115 : vector<8x24x24xf32>
    %117 = arith.truncf %116 : vector<8x24x24xf32> to vector<8x24x24xbf16>
    "tpu.trace_start"() <{level = 10 : i32, message = "bts,bsd->btd"}> : () -> ()
    %cst_43 = arith.constant dense<0.000000e+00> : vector<8x24x8xf32>
    %118 = tpu.matmul %117, %101, %cst_43 {dimension_numbers = #tpu.dot_dimension_numbers<[2], [1], [1], [2], [0, 0, 0, 1, 1, 2], [0], [0]>} : vector<8x24x24xbf16>, vector<8x24x8xbf16>, vector<8x24x8xf32> -> vector<8x24x8xf32>
    "tpu.trace_stop"() : () -> ()
    %119 = vector.shape_cast %118 : vector<8x24x8xf32> to vector<192x8xf32>
    %120 = arith.truncf %119 : vector<192x8xf32> to vector<192x8xbf16>
    %c0_44 = arith.constant 0 : index
    %c0_45 = arith.constant 0 : index
    %c0_46 = arith.constant 0 : index
    %121 = vector.load %arg7[%c0_44, %c0_45, %c0_46] : memref<1x32x32xbf16, #tpu.memory_space<vmem>>, vector<1x32x32xbf16>
    %122 = vector.shape_cast %121 : vector<1x32x32xbf16> to vector<32x32xbf16>
    %123 = vector.extract_strided_slice %122 {offsets = [16, 0], sizes = [8, 32], strides = [1, 1]} : vector<32x32xbf16> to vector<8x32xbf16>
    %cst_47 = arith.constant dense<0.000000e+00> : vector<192x32xf32>
    %124 = tpu.matmul %120, %123, %cst_47 {dimension_numbers = #tpu.dot_dimension_numbers<[1], [0], [0], [1], [0, 0, 1, 1], [], []>} : vector<192x8xbf16>, vector<8x32xbf16>, vector<192x32xf32> -> vector<192x32xf32>
    %125 = arith.addf %98, %124 : vector<192x32xf32>
    %126 = vector.extract_strided_slice %40 {offsets = [0, 0, 24], sizes = [8, 24, 8], strides = [1, 1, 1]} : vector<8x24x96xbf16> to vector<8x24x8xbf16>
    %127 = vector.extract_strided_slice %40 {offsets = [0, 0, 56], sizes = [8, 24, 8], strides = [1, 1, 1]} : vector<8x24x96xbf16> to vector<8x24x8xbf16>
    %128 = vector.extract_strided_slice %40 {offsets = [0, 0, 88], sizes = [8, 24, 8], strides = [1, 1, 1]} : vector<8x24x96xbf16> to vector<8x24x8xbf16>
    "tpu.trace_start"() <{level = 10 : i32, message = "btd,bsd->bts"}> : () -> ()
    %cst_48 = arith.constant dense<0.000000e+00> : vector<8x24x24xf32>
    %129 = tpu.matmul %126, %127, %cst_48 {dimension_numbers = #tpu.dot_dimension_numbers<[2], [2], [1], [1], [0, 0, 0, 1, 1, 1], [0], [0]>} : vector<8x24x8xbf16>, vector<8x24x8xbf16>, vector<8x24x24xf32> -> vector<8x24x24xf32>
    %cst_49 = arith.constant -1.000000e+30 : f32
    "tpu.trace_stop"() : () -> ()
    %130 = vector.shape_cast %43 : vector<1x1x24xi1> to vector<1x1x24xi1>
    %131 = vector.broadcast %130 : vector<1x1x24xi1> to vector<8x24x24xi1>
    %132 = vector.broadcast %cst_49 : f32 to vector<8x24x24xf32>
    %133 = arith.select %131, %129, %132 : vector<8x24x24xi1>, vector<8x24x24xf32>
    %cst_50 = arith.constant dense<0xFF800000> : vector<8x24xf32>
    %134 = vector.multi_reduction <maximumf>, %133, %cst_50 [2] : vector<8x24x24xf32> to vector<8x24xf32>
    %135 = vector.shape_cast %134 : vector<8x24xf32> to vector<8x24x1xf32>
    %136 = vector.broadcast %135 : vector<8x24x1xf32> to vector<8x24x24xf32>
    %137 = arith.subf %133, %136 : vector<8x24x24xf32>
    %138 = math.exp %137 : vector<8x24x24xf32>
    %cst_51 = arith.constant dense<0.000000e+00> : vector<8x24xf32>
    %139 = vector.multi_reduction <add>, %138, %cst_51 [2] : vector<8x24x24xf32> to vector<8x24xf32>
    %140 = vector.shape_cast %139 : vector<8x24xf32> to vector<8x24x1xf32>
    %141 = tpu.reciprocal %140 {approx = true} : vector<8x24x1xf32> -> vector<8x24x1xf32>
    %142 = vector.broadcast %141 : vector<8x24x1xf32> to vector<8x24x24xf32>
    %143 = arith.mulf %138, %142 : vector<8x24x24xf32>
    %144 = arith.truncf %143 : vector<8x24x24xf32> to vector<8x24x24xbf16>
    "tpu.trace_start"() <{level = 10 : i32, message = "bts,bsd->btd"}> : () -> ()
    %cst_52 = arith.constant dense<0.000000e+00> : vector<8x24x8xf32>
    %145 = tpu.matmul %144, %128, %cst_52 {dimension_numbers = #tpu.dot_dimension_numbers<[2], [1], [1], [2], [0, 0, 0, 1, 1, 2], [0], [0]>} : vector<8x24x24xbf16>, vector<8x24x8xbf16>, vector<8x24x8xf32> -> vector<8x24x8xf32>
    "tpu.trace_stop"() : () -> ()
    %146 = vector.shape_cast %145 : vector<8x24x8xf32> to vector<192x8xf32>
    %147 = arith.truncf %146 : vector<192x8xf32> to vector<192x8xbf16>
    %c0_53 = arith.constant 0 : index
    %c0_54 = arith.constant 0 : index
    %c0_55 = arith.constant 0 : index
    %148 = vector.load %arg7[%c0_53, %c0_54, %c0_55] : memref<1x32x32xbf16, #tpu.memory_space<vmem>>, vector<1x32x32xbf16>
    %149 = vector.shape_cast %148 : vector<1x32x32xbf16> to vector<32x32xbf16>
    %150 = vector.extract_strided_slice %149 {offsets = [24, 0], sizes = [8, 32], strides = [1, 1]} : vector<32x32xbf16> to vector<8x32xbf16>
    %cst_56 = arith.constant dense<0.000000e+00> : vector<192x32xf32>
    %151 = tpu.matmul %147, %150, %cst_56 {dimension_numbers = #tpu.dot_dimension_numbers<[1], [0], [0], [1], [0, 0, 1, 1], [], []>} : vector<192x8xbf16>, vector<8x32xbf16>, vector<192x32xf32> -> vector<192x32xf32>
    %152 = arith.addf %125, %151 : vector<192x32xf32>
    %153 = arith.addf %4, %152 : vector<192x32xf32>
    %c0_57 = arith.constant 0 : index
    %c0_58 = arith.constant 0 : index
    %c0_59 = arith.constant 0 : index
    %154 = vector.load %arg8[%c0_57, %c0_58, %c0_59] : memref<1x1x32xf32, #tpu.memory_space<vmem>>, vector<1x1x32xf32>
    %155 = vector.shape_cast %154 : vector<1x1x32xf32> to vector<1x32xf32>
    %156 = vector.broadcast %155 : vector<1x32xf32> to vector<192x32xf32>
    %157 = arith.addf %153, %156 : vector<192x32xf32>
    %c0_60 = arith.constant 0 : index
    %c0_61 = arith.constant 0 : index
    %c0_62 = arith.constant 0 : index
    %158 = vector.load %arg9[%c0_60, %c0_61, %c0_62] : memref<1x1x32xf32, #tpu.memory_space<vmem>>, vector<1x1x32xf32>
    %159 = vector.shape_cast %158 : vector<1x1x32xf32> to vector<1x32xf32>
    %c0_63 = arith.constant 0 : index
    %c0_64 = arith.constant 0 : index
    %c0_65 = arith.constant 0 : index
    %160 = vector.load %arg10[%c0_63, %c0_64, %c0_65] : memref<1x1x32xf32, #tpu.memory_space<vmem>>, vector<1x1x32xf32>
    %161 = vector.shape_cast %160 : vector<1x1x32xf32> to vector<1x32xf32>
    %cst_66 = arith.constant dense<0.000000e+00> : vector<192xf32>
    %162 = vector.multi_reduction <add>, %157, %cst_66 [1] : vector<192x32xf32> to vector<192xf32>
    %163 = vector.shape_cast %162 : vector<192xf32> to vector<192x1xf32>
    %cst_67 = arith.constant 3.200000e+01 : f32
    %164 = vector.broadcast %cst_67 : f32 to vector<192x1xf32>
    %165 = arith.divf %163, %164 : vector<192x1xf32>
    %166 = vector.broadcast %165 : vector<192x1xf32> to vector<192x32xf32>
    %167 = arith.subf %157, %166 : vector<192x32xf32>
    %168 = arith.mulf %167, %167 : vector<192x32xf32>
    %cst_68 = arith.constant dense<0.000000e+00> : vector<192xf32>
    %169 = vector.multi_reduction <add>, %168, %cst_68 [1] : vector<192x32xf32> to vector<192xf32>
    %170 = vector.shape_cast %169 : vector<192xf32> to vector<192x1xf32>
    %cst_69 = arith.constant 3.200000e+01 : f32
    %171 = vector.broadcast %cst_69 : f32 to vector<192x1xf32>
    %172 = arith.divf %170, %171 : vector<192x1xf32>
    %173 = vector.broadcast %165 : vector<192x1xf32> to vector<192x32xf32>
    %174 = arith.subf %157, %173 : vector<192x32xf32>
    %cst_70 = arith.constant 9.99999974E-6 : f32
    %175 = vector.broadcast %cst_70 : f32 to vector<192x1xf32>
    %176 = arith.addf %172, %175 : vector<192x1xf32>
    %177 = math.rsqrt %176 : vector<192x1xf32>
    %178 = vector.broadcast %177 : vector<192x1xf32> to vector<192x32xf32>
    %179 = arith.mulf %174, %178 : vector<192x32xf32>
    %180 = vector.broadcast %159 : vector<1x32xf32> to vector<192x32xf32>
    %181 = arith.mulf %179, %180 : vector<192x32xf32>
    %182 = vector.broadcast %161 : vector<1x32xf32> to vector<192x32xf32>
    %183 = arith.addf %181, %182 : vector<192x32xf32>
    %184 = arith.truncf %183 : vector<192x32xf32> to vector<192x32xbf16>
    %cst_71 = arith.constant 0.000000e+00 : f32
    %185 = vector.broadcast %cst_71 : f32 to vector<192x32xf32>
    %c0_72 = arith.constant 0 : index
    %c0_73 = arith.constant 0 : index
    %c0_74 = arith.constant 0 : index
    %186 = vector.load %arg11[%c0_72, %c0_73, %c0_74] : memref<1x32x128xbf16, #tpu.memory_space<vmem>>, vector<1x32x128xbf16>
    %187 = vector.shape_cast %186 : vector<1x32x128xbf16> to vector<32x128xbf16>
    %cst_75 = arith.constant dense<0.000000e+00> : vector<192x128xf32>
    %188 = tpu.matmul %184, %187, %cst_75 {dimension_numbers = #tpu.dot_dimension_numbers<[1], [0], [0], [1], [0, 0, 1, 1], [], []>} : vector<192x32xbf16>, vector<32x128xbf16>, vector<192x128xf32> -> vector<192x128xf32>
    %c0_76 = arith.constant 0 : index
    %c0_77 = arith.constant 0 : index
    %c0_78 = arith.constant 0 : index
    %189 = vector.load %arg12[%c0_76, %c0_77, %c0_78] : memref<1x1x128xf32, #tpu.memory_space<vmem>>, vector<1x1x128xf32>
    %190 = vector.shape_cast %189 : vector<1x1x128xf32> to vector<1x128xf32>
    %191 = vector.broadcast %190 : vector<1x128xf32> to vector<192x128xf32>
    %192 = arith.addf %188, %191 : vector<192x128xf32>
    %cst_79 = arith.constant 1.702000e+00 : f32
    %193 = vector.broadcast %cst_79 : f32 to vector<192x128xf32>
    %194 = arith.mulf %193, %192 : vector<192x128xf32>
    %195 = arith.negf %194 : vector<192x128xf32>
    %196 = math.exp %195 : vector<192x128xf32>
    %cst_80 = arith.constant 1.000000e+00 : f32
    %197 = vector.broadcast %cst_80 : f32 to vector<192x128xf32>
    %198 = arith.addf %197, %196 : vector<192x128xf32>
    %199 = arith.divf %197, %198 : vector<192x128xf32>
    %200 = arith.mulf %192, %199 : vector<192x128xf32>
    %201 = arith.truncf %200 : vector<192x128xf32> to vector<192x128xbf16>
    %c0_81 = arith.constant 0 : index
    %c0_82 = arith.constant 0 : index
    %c0_83 = arith.constant 0 : index
    %202 = vector.load %arg13[%c0_81, %c0_82, %c0_83] : memref<1x128x32xbf16, #tpu.memory_space<vmem>>, vector<1x128x32xbf16>
    %203 = vector.shape_cast %202 : vector<1x128x32xbf16> to vector<128x32xbf16>
    %cst_84 = arith.constant dense<0.000000e+00> : vector<192x32xf32>
    %204 = tpu.matmul %201, %203, %cst_84 {dimension_numbers = #tpu.dot_dimension_numbers<[1], [0], [0], [1], [0, 0, 1, 1], [], []>} : vector<192x128xbf16>, vector<128x32xbf16>, vector<192x32xf32> -> vector<192x32xf32>
    %205 = arith.addf %185, %204 : vector<192x32xf32>
    %206 = arith.addf %157, %205 : vector<192x32xf32>
    %c0_85 = arith.constant 0 : index
    %c0_86 = arith.constant 0 : index
    %c0_87 = arith.constant 0 : index
    %207 = vector.load %arg14[%c0_85, %c0_86, %c0_87] : memref<1x1x32xf32, #tpu.memory_space<vmem>>, vector<1x1x32xf32>
    %208 = vector.shape_cast %207 : vector<1x1x32xf32> to vector<1x32xf32>
    %209 = vector.broadcast %208 : vector<1x32xf32> to vector<192x32xf32>
    %210 = arith.addf %206, %209 : vector<192x32xf32>
    %211 = vector.shape_cast %210 : vector<192x32xf32> to vector<8x24x32xf32>
    %c0_88 = arith.constant 0 : index
    %c0_89 = arith.constant 0 : index
    %c0_90 = arith.constant 0 : index
    %212 = vector.load %arg18[%c0_88, %c0_89, %c0_90] : memref<8x24x32xf32, #tpu.memory_space<vmem>>, vector<8x24x32xf32>
    tpu.vector_store %arg18[%c0_88, %c0_89, %c0_90], %211 {strides = array<i32>} : memref<8x24x32xf32, #tpu.memory_space<vmem>>, vector<8x24x32xf32>,
    %c1_i32 = arith.constant 1 : i32
    %213 = arith.cmpi eq, %arg1, %c1_i32 : i32
    %214 = arith.extui %213 : i1 to i32
    %c0_i32_91 = arith.constant 0 : i32
    %215 = arith.cmpi ne, %214, %c0_i32_91 : i32
    scf.if %215 {
      %216 = vector.shape_cast %210 : vector<192x32xf32> to vector<8x24x32xf32>
      %217 = vector.extract_strided_slice %216 {offsets = [0, 0, 0], sizes = [8, 1, 32], strides = [1, 1, 1]} : vector<8x24x32xf32> to vector<8x1x32xf32>
      %218 = vector.shape_cast %217 : vector<8x1x32xf32> to vector<8x32xf32>
      %c0_92 = arith.constant 0 : index
      %c0_93 = arith.constant 0 : index
      %219 = vector.load %arg15[%c0_92, %c0_93] : memref<1x32xf32, #tpu.memory_space<vmem>>, vector<1x32xf32>
      %c0_94 = arith.constant 0 : index
      %c0_95 = arith.constant 0 : index
      %220 = vector.load %arg16[%c0_94, %c0_95] : memref<1x32xf32, #tpu.memory_space<vmem>>, vector<1x32xf32>
      %cst_96 = arith.constant dense<0.000000e+00> : vector<8xf32>
      %221 = vector.multi_reduction <add>, %218, %cst_96 [1] : vector<8x32xf32> to vector<8xf32>
      %222 = vector.shape_cast %221 : vector<8xf32> to vector<8x1xf32>
      %cst_97 = arith.constant 3.200000e+01 : f32
      %223 = vector.broadcast %cst_97 : f32 to vector<8x1xf32>
      %224 = arith.divf %222, %223 : vector<8x1xf32>
      %225 = vector.broadcast %224 : vector<8x1xf32> to vector<8x32xf32>
      %226 = arith.subf %218, %225 : vector<8x32xf32>
      %227 = arith.mulf %226, %226 : vector<8x32xf32>
      %cst_98 = arith.constant dense<0.000000e+00> : vector<8xf32>
      %228 = vector.multi_reduction <add>, %227, %cst_98 [1] : vector<8x32xf32> to vector<8xf32>
      %229 = vector.shape_cast %228 : vector<8xf32> to vector<8x1xf32>
      %cst_99 = arith.constant 3.200000e+01 : f32
      %230 = vector.broadcast %cst_99 : f32 to vector<8x1xf32>
      %231 = arith.divf %229, %230 : vector<8x1xf32>
      %232 = vector.broadcast %224 : vector<8x1xf32> to vector<8x32xf32>
      %233 = arith.subf %218, %232 : vector<8x32xf32>
      %cst_100 = arith.constant 9.99999974E-6 : f32
      %234 = vector.broadcast %cst_100 : f32 to vector<8x1xf32>
      %235 = arith.addf %231, %234 : vector<8x1xf32>
      %236 = math.rsqrt %235 : vector<8x1xf32>
      %237 = vector.broadcast %236 : vector<8x1xf32> to vector<8x32xf32>
      %238 = arith.mulf %233, %237 : vector<8x32xf32>
      %239 = vector.broadcast %219 : vector<1x32xf32> to vector<8x32xf32>
      %240 = arith.mulf %238, %239 : vector<8x32xf32>
      %241 = vector.broadcast %220 : vector<1x32xf32> to vector<8x32xf32>
      %242 = arith.addf %240, %241 : vector<8x32xf32>
      %c0_101 = arith.constant 0 : index
      %c0_102 = arith.constant 0 : index
      %243 = vector.load %arg17[%c0_101, %c0_102] : memref<8x32xf32, #tpu.memory_space<vmem>>, vector<8x32xf32>
      tpu.vector_store %arg17[%c0_101, %c0_102], %242 {strides = array<i32>} : memref<8x32xf32, #tpu.memory_space<vmem>>, vector<8x32xf32>,
    } else {
    }
    return
  }
  func.func @transform_0(%arg0: i32, %arg1: i32) -> (i32, i32, i32) {
    %c0_i32 = arith.constant 0 : i32
    %c0_i32_0 = arith.constant 0 : i32
    %c0_i32_1 = arith.constant 0 : i32
    return %arg0, %c0_i32, %c0_i32_0 : i32, i32, i32
  }
  func.func @transform_1(%arg0: i32, %arg1: i32) -> (i32, i32, i32) {
    %c0_i32 = arith.constant 0 : i32
    %c0_i32_0 = arith.constant 0 : i32
    %c0_i32_1 = arith.constant 0 : i32
    return %arg1, %c0_i32, %c0_i32_0 : i32, i32, i32
  }
  func.func @transform_2(%arg0: i32, %arg1: i32) -> (i32, i32, i32) {
    %c0_i32 = arith.constant 0 : i32
    %c0_i32_0 = arith.constant 0 : i32
    %c0_i32_1 = arith.constant 0 : i32
    return %arg1, %c0_i32, %c0_i32_0 : i32, i32, i32
  }
  func.func @transform_3(%arg0: i32, %arg1: i32) -> (i32, i32, i32) {
    %c0_i32 = arith.constant 0 : i32
    %c0_i32_0 = arith.constant 0 : i32
    %c0_i32_1 = arith.constant 0 : i32
    return %arg1, %c0_i32, %c0_i32_0 : i32, i32, i32
  }
  func.func @transform_4(%arg0: i32, %arg1: i32) -> (i32, i32, i32) {
    %c0_i32 = arith.constant 0 : i32
    %c0_i32_0 = arith.constant 0 : i32
    %c0_i32_1 = arith.constant 0 : i32
    return %arg1, %c0_i32, %c0_i32_0 : i32, i32, i32
  }
  func.func @transform_5(%arg0: i32, %arg1: i32) -> (i32, i32, i32) {
    %c0_i32 = arith.constant 0 : i32
    %c0_i32_0 = arith.constant 0 : i32
    %c0_i32_1 = arith.constant 0 : i32
    return %arg1, %c0_i32, %c0_i32_0 : i32, i32, i32
  }
  func.func @transform_6(%arg0: i32, %arg1: i32) -> (i32, i32, i32) {
    %c0_i32 = arith.constant 0 : i32
    %c0_i32_0 = arith.constant 0 : i32
    %c0_i32_1 = arith.constant 0 : i32
    return %arg1, %c0_i32, %c0_i32_0 : i32, i32, i32
  }
  func.func @transform_7(%arg0: i32, %arg1: i32) -> (i32, i32, i32) {
    %c0_i32 = arith.constant 0 : i32
    %c0_i32_0 = arith.constant 0 : i32
    %c0_i32_1 = arith.constant 0 : i32
    return %arg1, %c0_i32, %c0_i32_0 : i32, i32, i32
  }
  func.func @transform_8(%arg0: i32, %arg1: i32) -> (i32, i32, i32) {
    %c0_i32 = arith.constant 0 : i32
    %c0_i32_0 = arith.constant 0 : i32
    %c0_i32_1 = arith.constant 0 : i32
    return %arg1, %c0_i32, %c0_i32_0 : i32, i32, i32
  }
  func.func @transform_9(%arg0: i32, %arg1: i32) -> (i32, i32, i32) {
    %c0_i32 = arith.constant 0 : i32
    %c0_i32_0 = arith.constant 0 : i32
    %c0_i32_1 = arith.constant 0 : i32
    return %arg1, %c0_i32, %c0_i32_0 : i32, i32, i32
  }
  func.func @transform_10(%arg0: i32, %arg1: i32) -> (i32, i32, i32) {
    %c0_i32 = arith.constant 0 : i32
    %c0_i32_0 = arith.constant 0 : i32
    %c0_i32_1 = arith.constant 0 : i32
    return %arg1, %c0_i32, %c0_i32_0 : i32, i32, i32
  }
  func.func @transform_11(%arg0: i32, %arg1: i32) -> (i32, i32, i32) {
    %c0_i32 = arith.constant 0 : i32
    %c0_i32_0 = arith.constant 0 : i32
    %c0_i32_1 = arith.constant 0 : i32
    return %arg1, %c0_i32, %c0_i32_0 : i32, i32, i32
  }
  func.func @transform_12(%arg0: i32, %arg1: i32) -> (i32, i32, i32) {
    %c0_i32 = arith.constant 0 : i32
    %c0_i32_0 = arith.constant 0 : i32
    %c0_i32_1 = arith.constant 0 : i32
    return %arg1, %c0_i32, %c0_i32_0 : i32, i32, i32
  }
  func.func @transform_13(%arg0: i32, %arg1: i32) -> (i32, i32) {
    %c0_i32 = arith.constant 0 : i32
    %c0_i32_0 = arith.constant 0 : i32
    %c0_i32_1 = arith.constant 0 : i32
    return %c0_i32, %c0_i32_0 : i32, i32
  }
  func.func @transform_14(%arg0: i32, %arg1: i32) -> (i32, i32) {
    %c0_i32 = arith.constant 0 : i32
    %c0_i32_0 = arith.constant 0 : i32
    %c0_i32_1 = arith.constant 0 : i32
    return %c0_i32, %c0_i32_0 : i32, i32
  }
  func.func @transform_15(%arg0: i32, %arg1: i32) -> (i32, i32) {
    %c0_i32 = arith.constant 0 : i32
    %c0_i32_0 = arith.constant 0 : i32
    return %arg0, %c0_i32 : i32, i32
  }
}

</mosaic_0001>

<llo_original>
// kernel: tpu_custom_call.1
$region0: #{tpu_custom_call.1}
  #allocation0 [shape = 'u32[]', space=smem, size = 0x4, offset = 0x4, fixed_abs, tag = 'smem constant byte address 0x4 - core index']
  #allocation1 [shape = 'u32[144,128]{1,0:T(1,128)}', space=vmem, size = 0x12000, scoped, tag = 'internal scratch']
  #allocation2 [shape = 'f32[8,24,32]{2,1,0:T(8,128)}', space=vmem, size = 0x18000, scoped, tag = 'scratch operand']
  %s0 = inlined_call_operand.hbm [shape: f32[8,24,32], index: 0, kind: input, shape index: {}]
  %s1 = inlined_call_operand.vmem [shape: f32[2,1,32], index: 1, kind: input, shape index: {}]
  %s2 = inlined_call_operand.vmem [shape: f32[2,1,32], index: 2, kind: input, shape index: {}]
  %s3 = inlined_call_operand.vmem [shape: bf16[2,32,96], index: 3, kind: input, shape index: {}]
  %s4 = inlined_call_operand.vmem [shape: f32[2,1,96], index: 4, kind: input, shape index: {}]
  %s5 = inlined_call_operand.vmem [shape: bf16[2,32,32], index: 5, kind: input, shape index: {}]
  %s6 = inlined_call_operand.vmem [shape: f32[2,1,32], index: 6, kind: input, shape index: {}]
  %s7 = inlined_call_operand.vmem [shape: f32[2,1,32], index: 7, kind: input, shape index: {}]
  %s8 = inlined_call_operand.vmem [shape: f32[2,1,32], index: 8, kind: input, shape index: {}]
  %s9 = inlined_call_operand.vmem [shape: bf16[2,32,128], index: 9, kind: input, shape index: {}]
  %s10 = inlined_call_operand.vmem [shape: f32[2,1,128], index: 10, kind: input, shape index: {}]
  %s11 = inlined_call_operand.vmem [shape: bf16[2,128,32], index: 11, kind: input, shape index: {}]
  %s12 = inlined_call_operand.vmem [shape: f32[2,1,32], index: 12, kind: input, shape index: {}]
  %s13 = inlined_call_operand.vmem [shape: f32[1,32], index: 13, kind: input, shape index: {}]
  %s14 = inlined_call_operand.vmem [shape: f32[1,32], index: 14, kind: input, shape index: {}]
  %s15 = inlined_call_operand.hbm [shape: f32[8,32], index: 15, kind: output, shape index: {}]
  %s16 = sld [smem:[#allocation0]]
  $region105: #{tpu_custom_call.1} parent=0
    _
  %s18 = ssub.s32 1, %s16
  %s19 = scalar_select 0, %s18, %s16
  $region1: #{tpu_custom_call.1} parent=0
    #allocation3 [shape = 'u8[98304]{0}', space=vmem, size = 0x18000, scoped, tag = 'input window, operand 0, single buffered']
    #allocation4 [shape = 's32[2]{0}', space=sflag, size = 0x8, scoped, tag = 'scoped memory for tpu_custom_call.1']
    #allocation5 [shape = 's32[2]{0}', space=sflag, size = 0x8, scoped, tag = 'scoped memory for tpu_custom_call.1']
    #allocation6 [shape = 'u8[4096]{0}', space=vmem, size = 0x1000, scoped, tag = 'output window, operand 0, single buffered']
    %20 = vsyncpa [#allocation4], 0
    %21 = vsyncpa [#allocation5], 0
    loop: start=0, step=1, limit=4
    $region2: #{tpu_custom_call.1} parent=1 // loop_pre_header
      _
    $region3: #{tpu_custom_call.1} parent=1 // loop_header
      %s23 = sphi 0, %s27
      %p24 = scmp.ge.s32.totalorder %s23, 4
      %s30 = sphi 0, %s42
      %s31 = sphi 0, %s38
      %s32 = sphi 0, %s30
      %s33 = sphi 0, %s31
      %s34 = sphi 0, %s32
      %s35 = sphi 0, %s33
      %s45 = sphi 0, %s47
      %s48 = sphi 0, %s45
      %s49 = sphi 0, %s48
      %s65 = sphi 0, %s49
      %s71 = sphi 0, %s73
      %s74 = sphi 0, %s71
      %s75 = sphi 0, %s74
      %s91 = sphi 0, %s75
      %s97 = sphi 0, %s99
      %s100 = sphi 0, %s97
      %s101 = sphi 0, %s100
      %s117 = sphi 0, %s101
      %s123 = sphi 0, %s125
      %s126 = sphi 0, %s123
      %s127 = sphi 0, %s126
      %s143 = sphi 0, %s127
      %s149 = sphi 0, %s151
      %s152 = sphi 0, %s149
      %s153 = sphi 0, %s152
      %s169 = sphi 0, %s153
      %s175 = sphi 0, %s177
      %s178 = sphi 0, %s175
      %s179 = sphi 0, %s178
      %s195 = sphi 0, %s179
      %s201 = sphi 0, %s203
      %s204 = sphi 0, %s201
      %s205 = sphi 0, %s204
      %s221 = sphi 0, %s205
      %s227 = sphi 0, %s229
      %s230 = sphi 0, %s227
      %s231 = sphi 0, %s230
      %s247 = sphi 0, %s231
      %s253 = sphi 0, %s255
      %s256 = sphi 0, %s253
      %s257 = sphi 0, %s256
      %s273 = sphi 0, %s257
      %s279 = sphi 0, %s281
      %s282 = sphi 0, %s279
      %s283 = sphi 0, %s282
      %s299 = sphi 0, %s283
      %s305 = sphi 0, %s307
      %s308 = sphi 0, %s305
      %s309 = sphi 0, %s308
      %s325 = sphi 0, %s309
      %s331 = sphi 0, %s333
      %s334 = sphi 0, %s331
      %s335 = sphi 0, %s334
      %s351 = sphi 0, %s335
      %s357 = sphi 0, %s359
      %s360 = sphi 0, %s357
      %s361 = sphi 0, %s360
      %s377 = sphi 0, %s361
      %s381 = sphi 0, %s381
      %s383 = sphi 0, %s381
      %s384 = sphi 0, %s383
      %s398 = sphi 0, %s384
      %s402 = sphi 0, %s402
      %s404 = sphi 0, %s402
      %s405 = sphi 0, %s404
      %s419 = sphi 0, %s405
      %s425 = sphi 0, %s427
      %s428 = sphi 0, %s425
      %s429 = sphi 0, %s428
      %s445 = sphi 0, %s429
    $region4: #{tpu_custom_call.1} parent=1 // loop_header_branch
      %26 = sbr.rel (%p24) target = $region8
    $region5: #{tpu_custom_call.1} parent=1 // loop_body
      %s28 = ssub.s32 %s23, 1
      %s29 = ssub.s32 %s23, 2
      %s36 = sadd.s32 1, %s31
      %p37 = scmp.ge.s32.totalorder %s36, 2
      %s38 = scalar_select %p37, 0, %s36
      %s39 = sadd.s32 1, %s30
      %s40 = scalar_select %p37, %s39, %s30
      %p41 = scmp.ge.s32.totalorder %s40, 1
      %s42 = scalar_select %p41, 0, %s40
      %s43 = ssub.s32 %s30, %s42
      %p44 = scmp.eq.s32.totalorder %s43, 0
      %s46 = sadd.s32 %s45, 1
      %s47 = scalar_select %p44, %s45, %s46
      %p50 = pneg %p44
      %p51 = scmp.eq.s32.totalorder %s23, 1
      %p52 = por %p50, %p51
      %p53 = scmp.ne.s32.totalorder %s45, %s48
      %p54 = scmp.eq.s32.totalorder %s23, 0
      %p55 = por %p53, %p54
      %p56 = scmp.ne.s32.totalorder %s45, %s48
      %p57 = scmp.eq.s32.totalorder %s28, 1
      %p58 = por %p56, %p57
      %p59 = scmp.ne.s32.totalorder %s48, %s49
      %p60 = scmp.eq.s32.totalorder %s28, 0
      %p61 = por %p59, %p60
      %p62 = scmp.ne.s32.totalorder %s48, %s49
      %p63 = scmp.eq.s32.totalorder %s29, 1
      %p64 = por %p62, %p63
      %p66 = scmp.ne.s32.totalorder %s49, %s65
      %p67 = scmp.eq.s32.totalorder %s29, 0
      %p68 = por %p66, %p67
      %s69 = ssub.s32 %s31, %s38
      %p70 = scmp.eq.s32.totalorder %s69, 0
      %s72 = sadd.s32 %s71, 1
      %s73 = scalar_select %p70, %s71, %s72
      %p76 = pneg %p70
      %p77 = scmp.eq.s32.totalorder %s23, 1
      %p78 = por %p76, %p77
      %p79 = scmp.ne.s32.totalorder %s71, %s74
      %p80 = scmp.eq.s32.totalorder %s23, 0
      %p81 = por %p79, %p80
      %p82 = scmp.ne.s32.totalorder %s71, %s74
      %p83 = scmp.eq.s32.totalorder %s28, 1
      %p84 = por %p82, %p83
      %p85 = scmp.ne.s32.totalorder %s74, %s75
      %p86 = scmp.eq.s32.totalorder %s28, 0
      %p87 = por %p85, %p86
      %p88 = scmp.ne.s32.totalorder %s74, %s75
      %p89 = scmp.eq.s32.totalorder %s29, 1
      %p90 = por %p88, %p89
      %p92 = scmp.ne.s32.totalorder %s75, %s91
      %p93 = scmp.eq.s32.totalorder %s29, 0
      %p94 = por %p92, %p93
      %s95 = ssub.s32 %s31, %s38
      %p96 = scmp.eq.s32.totalorder %s95, 0
      %s98 = sadd.s32 %s97, 1
      %s99 = scalar_select %p96, %s97, %s98
      %p102 = pneg %p96
      %p103 = scmp.eq.s32.totalorder %s23, 1
      %p104 = por %p102, %p103
      %p105 = scmp.ne.s32.totalorder %s97, %s100
      %p106 = scmp.eq.s32.totalorder %s23, 0
      %p107 = por %p105, %p106
      %p108 = scmp.ne.s32.totalorder %s97, %s100
      %p109 = scmp.eq.s32.totalorder %s28, 1
      %p110 = por %p108, %p109
      %p111 = scmp.ne.s32.totalorder %s100, %s101
      %p112 = scmp.eq.s32.totalorder %s28, 0
      %p113 = por %p111, %p112
      %p114 = scmp.ne.s32.totalorder %s100, %s101
      %p115 = scmp.eq.s32.totalorder %s29, 1
      %p116 = por %p114, %p115
      %p118 = scmp.ne.s32.totalorder %s101, %s117
      %p119 = scmp.eq.s32.totalorder %s29, 0
      %p120 = por %p118, %p119
      %s121 = ssub.s32 %s31, %s38
      %p122 = scmp.eq.s32.totalorder %s121, 0
      %s124 = sadd.s32 %s123, 1
      %s125 = scalar_select %p122, %s123, %s124
      %p128 = pneg %p122
      %p129 = scmp.eq.s32.totalorder %s23, 1
      %p130 = por %p128, %p129
      %p131 = scmp.ne.s32.totalorder %s123, %s126
      %p132 = scmp.eq.s32.totalorder %s23, 0
      %p133 = por %p131, %p132
      %p134 = scmp.ne.s32.totalorder %s123, %s126
      %p135 = scmp.eq.s32.totalorder %s28, 1
      %p136 = por %p134, %p135
      %p137 = scmp.ne.s32.totalorder %s126, %s127
      %p138 = scmp.eq.s32.totalorder %s28, 0
      %p139 = por %p137, %p138
      %p140 = scmp.ne.s32.totalorder %s126, %s127
      %p141 = scmp.eq.s32.totalorder %s29, 1
      %p142 = por %p140, %p141
      %p144 = scmp.ne.s32.totalorder %s127, %s143
      %p145 = scmp.eq.s32.totalorder %s29, 0
      %p146 = por %p144, %p145
      %s147 = ssub.s32 %s31, %s38
      %p148 = scmp.eq.s32.totalorder %s147, 0
      %s150 = sadd.s32 %s149, 1
      %s151 = scalar_select %p148, %s149, %s150
      %p154 = pneg %p148
      %p155 = scmp.eq.s32.totalorder %s23, 1
      %p156 = por %p154, %p155
      %p157 = scmp.ne.s32.totalorder %s149, %s152
      %p158 = scmp.eq.s32.totalorder %s23, 0
      %p159 = por %p157, %p158
      %p160 = scmp.ne.s32.totalorder %s149, %s152
      %p161 = scmp.eq.s32.totalorder %s28, 1
      %p162 = por %p160, %p161
      %p163 = scmp.ne.s32.totalorder %s152, %s153
      %p164 = scmp.eq.s32.totalorder %s28, 0
      %p165 = por %p163, %p164
      %p166 = scmp.ne.s32.totalorder %s152, %s153
      %p167 = scmp.eq.s32.totalorder %s29, 1
      %p168 = por %p166, %p167
      %p170 = scmp.ne.s32.totalorder %s153, %s169
      %p171 = scmp.eq.s32.totalorder %s29, 0
      %p172 = por %p170, %p171
      %s173 = ssub.s32 %s31, %s38
      %p174 = scmp.eq.s32.totalorder %s173, 0
      %s176 = sadd.s32 %s175, 1
      %s177 = scalar_select %p174, %s175, %s176
      %p180 = pneg %p174
      %p181 = scmp.eq.s32.totalorder %s23, 1
      %p182 = por %p180, %p181
      %p183 = scmp.ne.s32.totalorder %s175, %s178
      %p184 = scmp.eq.s32.totalorder %s23, 0
      %p185 = por %p183, %p184
      %p186 = scmp.ne.s32.totalorder %s175, %s178
      %p187 = scmp.eq.s32.totalorder %s28, 1
      %p188 = por %p186, %p187
      %p189 = scmp.ne.s32.totalorder %s178, %s179
      %p190 = scmp.eq.s32.totalorder %s28, 0
      %p191 = por %p189, %p190
      %p192 = scmp.ne.s32.totalorder %s178, %s179
      %p193 = scmp.eq.s32.totalorder %s29, 1
      %p194 = por %p192, %p193
      %p196 = scmp.ne.s32.totalorder %s179, %s195
      %p197 = scmp.eq.s32.totalorder %s29, 0
      %p198 = por %p196, %p197
      %s199 = ssub.s32 %s31, %s38
      %p200 = scmp.eq.s32.totalorder %s199, 0
      %s202 = sadd.s32 %s201, 1
      %s203 = scalar_select %p200, %s201, %s202
      %p206 = pneg %p200
      %p207 = scmp.eq.s32.totalorder %s23, 1
      %p208 = por %p206, %p207
      %p209 = scmp.ne.s32.totalorder %s201, %s204
      %p210 = scmp.eq.s32.totalorder %s23, 0
      %p211 = por %p209, %p210
      %p212 = scmp.ne.s32.totalorder %s201, %s204
      %p213 = scmp.eq.s32.totalorder %s28, 1
      %p214 = por %p212, %p213
      %p215 = scmp.ne.s32.totalorder %s204, %s205
      %p216 = scmp.eq.s32.totalorder %s28, 0
      %p217 = por %p215, %p216
      %p218 = scmp.ne.s32.totalorder %s204, %s205
      %p219 = scmp.eq.s32.totalorder %s29, 1
      %p220 = por %p218, %p219
      %p222 = scmp.ne.s32.totalorder %s205, %s221
      %p223 = scmp.eq.s32.totalorder %s29, 0
      %p224 = por %p222, %p223
      %s225 = ssub.s32 %s31, %s38
      %p226 = scmp.eq.s32.totalorder %s225, 0
      %s228 = sadd.s32 %s227, 1
      %s229 = scalar_select %p226, %s227, %s228
      %p232 = pneg %p226
      %p233 = scmp.eq.s32.totalorder %s23, 1
      %p234 = por %p232, %p233
      %p235 = scmp.ne.s32.totalorder %s227, %s230
      %p236 = scmp.eq.s32.totalorder %s23, 0
      %p237 = por %p235, %p236
      %p238 = scmp.ne.s32.totalorder %s227, %s230
      %p239 = scmp.eq.s32.totalorder %s28, 1
      %p240 = por %p238, %p239
      %p241 = scmp.ne.s32.totalorder %s230, %s231
      %p242 = scmp.eq.s32.totalorder %s28, 0
      %p243 = por %p241, %p242
      %p244 = scmp.ne.s32.totalorder %s230, %s231
      %p245 = scmp.eq.s32.totalorder %s29, 1
      %p246 = por %p244, %p245
      %p248 = scmp.ne.s32.totalorder %s231, %s247
      %p249 = scmp.eq.s32.totalorder %s29, 0
      %p250 = por %p248, %p249
      %s251 = ssub.s32 %s31, %s38
      %p252 = scmp.eq.s32.totalorder %s251, 0
      %s254 = sadd.s32 %s253, 1
      %s255 = scalar_select %p252, %s253, %s254
      %p258 = pneg %p252
      %p259 = scmp.eq.s32.totalorder %s23, 1
      %p260 = por %p258, %p259
      %p261 = scmp.ne.s32.totalorder %s253, %s256
      %p262 = scmp.eq.s32.totalorder %s23, 0
      %p263 = por %p261, %p262
      %p264 = scmp.ne.s32.totalorder %s253, %s256
      %p265 = scmp.eq.s32.totalorder %s28, 1
      %p266 = por %p264, %p265
      %p267 = scmp.ne.s32.totalorder %s256, %s257
      %p268 = scmp.eq.s32.totalorder %s28, 0
      %p269 = por %p267, %p268
      %p270 = scmp.ne.s32.totalorder %s256, %s257
      %p271 = scmp.eq.s32.totalorder %s29, 1
      %p272 = por %p270, %p271
      %p274 = scmp.ne.s32.totalorder %s257, %s273
      %p275 = scmp.eq.s32.totalorder %s29, 0
      %p276 = por %p274, %p275
      %s277 = ssub.s32 %s31, %s38
      %p278 = scmp.eq.s32.totalorder %s277, 0
      %s280 = sadd.s32 %s279, 1
      %s281 = scalar_select %p278, %s279, %s280
      %p284 = pneg %p278
      %p285 = scmp.eq.s32.totalorder %s23, 1
      %p286 = por %p284, %p285
      %p287 = scmp.ne.s32.totalorder %s279, %s282
      %p288 = scmp.eq.s32.totalorder %s23, 0
      %p289 = por %p287, %p288
      %p290 = scmp.ne.s32.totalorder %s279, %s282
      %p291 = scmp.eq.s32.totalorder %s28, 1
      %p292 = por %p290, %p291
      %p293 = scmp.ne.s32.totalorder %s282, %s283
      %p294 = scmp.eq.s32.totalorder %s28, 0
      %p295 = por %p293, %p294
      %p296 = scmp.ne.s32.totalorder %s282, %s283
      %p297 = scmp.eq.s32.totalorder %s29, 1
      %p298 = por %p296, %p297
      %p300 = scmp.ne.s32.totalorder %s283, %s299
      %p301 = scmp.eq.s32.totalorder %s29, 0
      %p302 = por %p300, %p301
      %s303 = ssub.s32 %s31, %s38
      %p304 = scmp.eq.s32.totalorder %s303, 0
      %s306 = sadd.s32 %s305, 1
      %s307 = scalar_select %p304, %s305, %s306
      %p310 = pneg %p304
      %p311 = scmp.eq.s32.totalorder %s23, 1
      %p312 = por %p310, %p311
      %p313 = scmp.ne.s32.totalorder %s305, %s308
      %p314 = scmp.eq.s32.totalorder %s23, 0
      %p315 = por %p313, %p314
      %p316 = scmp.ne.s32.totalorder %s305, %s308
      %p317 = scmp.eq.s32.totalorder %s28, 1
      %p318 = por %p316, %p317
      %p319 = scmp.ne.s32.totalorder %s308, %s309
      %p320 = scmp.eq.s32.totalorder %s28, 0
      %p321 = por %p319, %p320
      %p322 = scmp.ne.s32.totalorder %s308, %s309
      %p323 = scmp.eq.s32.totalorder %s29, 1
      %p324 = por %p322, %p323
      %p326 = scmp.ne.s32.totalorder %s309, %s325
      %p327 = scmp.eq.s32.totalorder %s29, 0
      %p328 = por %p326, %p327
      %s329 = ssub.s32 %s31, %s38
      %p330 = scmp.eq.s32.totalorder %s329, 0
      %s332 = sadd.s32 %s331, 1
      %s333 = scalar_select %p330, %s331, %s332
      %p336 = pneg %p330
      %p337 = scmp.eq.s32.totalorder %s23, 1
      %p338 = por %p336, %p337
      %p339 = scmp.ne.s32.totalorder %s331, %s334
      %p340 = scmp.eq.s32.totalorder %s23, 0
      %p341 = por %p339, %p340
      %p342 = scmp.ne.s32.totalorder %s331, %s334
      %p343 = scmp.eq.s32.totalorder %s28, 1
      %p344 = por %p342, %p343
      %p345 = scmp.ne.s32.totalorder %s334, %s335
      %p346 = scmp.eq.s32.totalorder %s28, 0
      %p347 = por %p345, %p346
      %p348 = scmp.ne.s32.totalorder %s334, %s335
      %p349 = scmp.eq.s32.totalorder %s29, 1
      %p350 = por %p348, %p349
      %p352 = scmp.ne.s32.totalorder %s335, %s351
      %p353 = scmp.eq.s32.totalorder %s29, 0
      %p354 = por %p352, %p353
      %s355 = ssub.s32 %s31, %s38
      %p356 = scmp.eq.s32.totalorder %s355, 0
      %s358 = sadd.s32 %s357, 1
      %s359 = scalar_select %p356, %s357, %s358
      %p362 = pneg %p356
      %p363 = scmp.eq.s32.totalorder %s23, 1
      %p364 = por %p362, %p363
      %p365 = scmp.ne.s32.totalorder %s357, %s360
      %p366 = scmp.eq.s32.totalorder %s23, 0
      %p367 = por %p365, %p366
      %p368 = scmp.ne.s32.totalorder %s357, %s360
      %p369 = scmp.eq.s32.totalorder %s28, 1
      %p370 = por %p368, %p369
      %p371 = scmp.ne.s32.totalorder %s360, %s361
      %p372 = scmp.eq.s32.totalorder %s28, 0
      %p373 = por %p371, %p372
      %p374 = scmp.ne.s32.totalorder %s360, %s361
      %p375 = scmp.eq.s32.totalorder %s29, 1
      %p376 = por %p374, %p375
      %p378 = scmp.ne.s32.totalorder %s361, %s377
      %p379 = scmp.eq.s32.totalorder %s29, 0
      %p380 = por %p378, %p379
      %s382 = sadd.s32 %s381, 1
      %p385 = scmp.eq.s32.totalorder %s23, 1
      %p386 = scmp.ne.s32.totalorder %s381, %s383
      %p387 = scmp.eq.s32.totalorder %s23, 0
      %p388 = por %p386, %p387
      %p389 = scmp.ne.s32.totalorder %s381, %s383
      %p390 = scmp.eq.s32.totalorder %s28, 1
      %p391 = por %p389, %p390
      %p392 = scmp.ne.s32.totalorder %s383, %s384
      %p393 = scmp.eq.s32.totalorder %s28, 0
      %p394 = por %p392, %p393
      %p395 = scmp.ne.s32.totalorder %s383, %s384
      %p396 = scmp.eq.s32.totalorder %s29, 1
      %p397 = por %p395, %p396
      %p399 = scmp.ne.s32.totalorder %s384, %s398
      %p400 = scmp.eq.s32.totalorder %s29, 0
      %p401 = por %p399, %p400
      %s403 = sadd.s32 %s402, 1
      %p406 = scmp.eq.s32.totalorder %s23, 1
      %p407 = scmp.ne.s32.totalorder %s402, %s404
      %p408 = scmp.eq.s32.totalorder %s23, 0
      %p409 = por %p407, %p408
      %p410 = scmp.ne.s32.totalorder %s402, %s404
      %p411 = scmp.eq.s32.totalorder %s28, 1
      %p412 = por %p410, %p411
      %p413 = scmp.ne.s32.totalorder %s404, %s405
      %p414 = scmp.eq.s32.totalorder %s28, 0
      %p415 = por %p413, %p414
      %p416 = scmp.ne.s32.totalorder %s404, %s405
      %p417 = scmp.eq.s32.totalorder %s29, 1
      %p418 = por %p416, %p417
      %p420 = scmp.ne.s32.totalorder %s405, %s419
      %p421 = scmp.eq.s32.totalorder %s29, 0
      %p422 = por %p420, %p421
      %s423 = ssub.s32 %s30, %s42
      %p424 = scmp.eq.s32.totalorder %s423, 0
      %s426 = sadd.s32 %s425, 1
      %s427 = scalar_select %p424, %s425, %s426
      %p430 = pneg %p424
      %p431 = scmp.eq.s32.totalorder %s23, 1
      %p432 = por %p430, %p431
      %p433 = scmp.ne.s32.totalorder %s425, %s428
      %p434 = scmp.eq.s32.totalorder %s23, 0
      %p435 = por %p433, %p434
      %p436 = scmp.ne.s32.totalorder %s425, %s428
      %p437 = scmp.eq.s32.totalorder %s28, 1
      %p438 = por %p436, %p437
      %p439 = scmp.ne.s32.totalorder %s428, %s429
      %p440 = scmp.eq.s32.totalorder %s28, 0
      %p441 = por %p439, %p440
      %p442 = scmp.ne.s32.totalorder %s428, %s429
      %p443 = scmp.eq.s32.totalorder %s29, 1
      %p444 = por %p442, %p443
      %p446 = scmp.ne.s32.totalorder %s429, %s445
      %p447 = scmp.eq.s32.totalorder %s29, 0
      %p448 = por %p446, %p447
      %p449 = scmp.le.s32.totalorder 1, %s23
      %p450 = scmp.lt.s32.totalorder %s23, 3
      %p451 = pnand %p449, %p450
      %p452 = pneg %p451
      // Predicated region
      $region9: #{tpu_custom_call.1} parent=5 // pred_check
        _
      $region10: #{tpu_custom_call.1} parent=5 // pred_check_branch
        %454 = sbr.rel (%p451) target = $region12
      $region11: #{tpu_custom_call.1} parent=5 // pred_region
        %s455 = ssub.s32 %s23, 1
        // Predicated region
        $region13: #{tpu_custom_call.1} parent=11 // pred_check
          %p456 = pneg %p61
        $region14: #{tpu_custom_call.1} parent=11 // pred_check_branch
          %458 = sbr.rel (%p456) target = $region16
        $region15: #{tpu_custom_call.1} parent=11 // pred_region
          %s459 = smul.u32 8, %s32
          %s461 = ssub.s32 3072, 3072
          %462 = vsyncadd [#allocation4], %s461
          %s463 = smul.addr %s459, 3
          %s464 = smul.addr %s463, 128
          %s465 = scalar_lea.hbm %s0, %s464
          %s466 = sshll.u32 [#allocation3], 4
          %s467 = int_to_ptr.vmem [resolvable:$true] %s466
          %472 = dma.hbm_to_vmem [thread:$0]  %s465, 3072, %s467, [#allocation4], 128, 128, 8
        $region16: #{tpu_custom_call.1} parent=11 // pred_fallthru
          _
        // Predicated region
        $region17: #{tpu_custom_call.1} parent=11 // pred_check
          %p473 = pneg %p394
        $region18: #{tpu_custom_call.1} parent=11 // pred_check_branch
          %475 = sbr.rel (%p473) target = $region20
        $region19: #{tpu_custom_call.1} parent=11 // pred_region
          _
        $region20: #{tpu_custom_call.1} parent=11 // pred_fallthru
          _
        // Predicated region
        $region21: #{tpu_custom_call.1} parent=11 // pred_check
          %p476 = pneg %p415
        $region22: #{tpu_custom_call.1} parent=11 // pred_check_branch
          %478 = sbr.rel (%p476) target = $region24
        $region23: #{tpu_custom_call.1} parent=11 // pred_region
          _
        $region24: #{tpu_custom_call.1} parent=11 // pred_fallthru
          _
      $region12: #{tpu_custom_call.1} parent=5 // pred_fallthru
        _
      %p479 = scmp.lt.s32.totalorder %s23, 2
      // Predicated region
      $region25: #{tpu_custom_call.1} parent=5 // pred_check
        %p480 = pneg %p479
      $region26: #{tpu_custom_call.1} parent=5 // pred_check_branch
        %482 = sbr.rel (%p480) target = $region28
      $region27: #{tpu_custom_call.1} parent=5 // pred_region
        // Predicated region
        $region29: #{tpu_custom_call.1} parent=27 // pred_check
          %p483 = pneg %p81
        $region30: #{tpu_custom_call.1} parent=27 // pred_check_branch
          %485 = sbr.rel (%p483) target = $region32
        $region31: #{tpu_custom_call.1} parent=27 // pred_region
          %p486 = scmp.lt.s32.totalorder %s31, 1
          %s487 = scalar_select %p486, %s31, 1
          %s488 = scalar_lea.vmem %s1, %s487
        $region32: #{tpu_custom_call.1} parent=27 // pred_fallthru
          _
        // Predicated region
        $region33: #{tpu_custom_call.1} parent=27 // pred_check
          %p489 = pneg %p107
        $region34: #{tpu_custom_call.1} parent=27 // pred_check_branch
          %491 = sbr.rel (%p489) target = $region36
        $region35: #{tpu_custom_call.1} parent=27 // pred_region
          %p492 = scmp.lt.s32.totalorder %s31, 1
          %s493 = scalar_select %p492, %s31, 1
          %s494 = scalar_lea.vmem %s2, %s493
        $region36: #{tpu_custom_call.1} parent=27 // pred_fallthru
          _
        // Predicated region
        $region37: #{tpu_custom_call.1} parent=27 // pred_check
          %p495 = pneg %p133
        $region38: #{tpu_custom_call.1} parent=27 // pred_check_branch
          %497 = sbr.rel (%p495) target = $region40
        $region39: #{tpu_custom_call.1} parent=27 // pred_region
          %p498 = scmp.lt.s32.totalorder %s31, 1
          %s499 = scalar_select %p498, %s31, 1
          %s500 = smul.addr %s499, 4
          %s501 = smul.addr %s500, 4
          %s502 = scalar_lea.vmem %s3, %s501
        $region40: #{tpu_custom_call.1} parent=27 // pred_fallthru
          _
        // Predicated region
        $region41: #{tpu_custom_call.1} parent=27 // pred_check
          %p503 = pneg %p159
        $region42: #{tpu_custom_call.1} parent=27 // pred_check_branch
          %505 = sbr.rel (%p503) target = $region44
        $region43: #{tpu_custom_call.1} parent=27 // pred_region
          %p506 = scmp.lt.s32.totalorder %s31, 1
          %s507 = scalar_select %p506, %s31, 1
          %s508 = scalar_lea.vmem %s4, %s507
        $region44: #{tpu_custom_call.1} parent=27 // pred_fallthru
          _
        // Predicated region
        $region45: #{tpu_custom_call.1} parent=27 // pred_check
          %p509 = pneg %p185
        $region46: #{tpu_custom_call.1} parent=27 // pred_check_branch
          %511 = sbr.rel (%p509) target = $region48
        $region47: #{tpu_custom_call.1} parent=27 // pred_region
          %p512 = scmp.lt.s32.totalorder %s31, 1
          %s513 = scalar_select %p512, %s31, 1
          %s514 = smul.addr %s513, 4
          %s515 = smul.addr %s514, 4
          %s516 = scalar_lea.vmem %s5, %s515
        $region48: #{tpu_custom_call.1} parent=27 // pred_fallthru
          _
        // Predicated region
        $region49: #{tpu_custom_call.1} parent=27 // pred_check
          %p517 = pneg %p211
        $region50: #{tpu_custom_call.1} parent=27 // pred_check_branch
          %519 = sbr.rel (%p517) target = $region52
        $region51: #{tpu_custom_call.1} parent=27 // pred_region
          %p520 = scmp.lt.s32.totalorder %s31, 1
          %s521 = scalar_select %p520, %s31, 1
          %s522 = scalar_lea.vmem %s6, %s521
        $region52: #{tpu_custom_call.1} parent=27 // pred_fallthru
          _
        // Predicated region
        $region53: #{tpu_custom_call.1} parent=27 // pred_check
          %p523 = pneg %p237
        $region54: #{tpu_custom_call.1} parent=27 // pred_check_branch
          %525 = sbr.rel (%p523) target = $region56
        $region55: #{tpu_custom_call.1} parent=27 // pred_region
          %p526 = scmp.lt.s32.totalorder %s31, 1
          %s527 = scalar_select %p526, %s31, 1
          %s528 = scalar_lea.vmem %s7, %s527
        $region56: #{tpu_custom_call.1} parent=27 // pred_fallthru
          _
        // Predicated region
        $region57: #{tpu_custom_call.1} parent=27 // pred_check
          %p529 = pneg %p263
        $region58: #{tpu_custom_call.1} parent=27 // pred_check_branch
          %531 = sbr.rel (%p529) target = $region60
        $region59: #{tpu_custom_call.1} parent=27 // pred_region
          %p532 = scmp.lt.s32.totalorder %s31, 1
          %s533 = scalar_select %p532, %s31, 1
          %s534 = scalar_lea.vmem %s8, %s533
        $region60: #{tpu_custom_call.1} parent=27 // pred_fallthru
          _
        // Predicated region
        $region61: #{tpu_custom_call.1} parent=27 // pred_check
          %p535 = pneg %p289
        $region62: #{tpu_custom_call.1} parent=27 // pred_check_branch
          %537 = sbr.rel (%p535) target = $region64
        $region63: #{tpu_custom_call.1} parent=27 // pred_region
          %p538 = scmp.lt.s32.totalorder %s31, 1
          %s539 = scalar_select %p538, %s31, 1
          %s540 = smul.addr %s539, 4
          %s541 = smul.addr %s540, 4
          %s542 = scalar_lea.vmem %s9, %s541
        $region64: #{tpu_custom_call.1} parent=27 // pred_fallthru
          _
        // Predicated region
        $region65: #{tpu_custom_call.1} parent=27 // pred_check
          %p543 = pneg %p315
        $region66: #{tpu_custom_call.1} parent=27 // pred_check_branch
          %545 = sbr.rel (%p543) target = $region68
        $region67: #{tpu_custom_call.1} parent=27 // pred_region
          %p546 = scmp.lt.s32.totalorder %s31, 1
          %s547 = scalar_select %p546, %s31, 1
          %s548 = scalar_lea.vmem %s10, %s547
        $region68: #{tpu_custom_call.1} parent=27 // pred_fallthru
          _
        // Predicated region
        $region69: #{tpu_custom_call.1} parent=27 // pred_check
          %p549 = pneg %p341
        $region70: #{tpu_custom_call.1} parent=27 // pred_check_branch
          %551 = sbr.rel (%p549) target = $region72
        $region71: #{tpu_custom_call.1} parent=27 // pred_region
          %p552 = scmp.lt.s32.totalorder %s31, 1
          %s553 = scalar_select %p552, %s31, 1
          %s554 = smul.addr %s553, 16
          %s555 = smul.addr %s554, 4
          %s556 = scalar_lea.vmem %s11, %s555
        $region72: #{tpu_custom_call.1} parent=27 // pred_fallthru
          _
        // Predicated region
        $region73: #{tpu_custom_call.1} parent=27 // pred_check
          %p557 = pneg %p367
        $region74: #{tpu_custom_call.1} parent=27 // pred_check_branch
          %559 = sbr.rel (%p557) target = $region76
        $region75: #{tpu_custom_call.1} parent=27 // pred_region
          %p560 = scmp.lt.s32.totalorder %s31, 1
          %s561 = scalar_select %p560, %s31, 1
          %s562 = scalar_lea.vmem %s12, %s561
        $region76: #{tpu_custom_call.1} parent=27 // pred_fallthru
          _
      $region28: #{tpu_custom_call.1} parent=5 // pred_fallthru
        _
      %p563 = scmp.le.s32.totalorder 1, %s23
      %p564 = scmp.lt.s32.totalorder %s23, 3
      %p565 = pnand %p563, %p564
      %p566 = pneg %p565
      // Predicated region
      $region77: #{tpu_custom_call.1} parent=5 // pred_check
        _
      $region78: #{tpu_custom_call.1} parent=5 // pred_check_branch
        %568 = sbr.rel (%p565) target = $region80
      $region79: #{tpu_custom_call.1} parent=5 // pred_region
        %s569 = ssub.s32 %s23, 1
        // Predicated region
        $region81: #{tpu_custom_call.1} parent=79 // pred_check
          %p570 = pneg %p61
        $region82: #{tpu_custom_call.1} parent=79 // pred_check_branch
          %572 = sbr.rel (%p570) target = $region84
        $region83: #{tpu_custom_call.1} parent=79 // pred_region
          %573 = dma.done [#allocation4], 3072
        $region84: #{tpu_custom_call.1} parent=79 // pred_fallthru
          _
        %p574 = pneg %p61
        %p575 = pneg %p58
        %p576 = scmp.lt.s32.totalorder %s33, 1
        %s577 = scalar_select %p576, %s33, 1
        %s578 = scalar_lea.vmem %s1, %s577
        %p579 = pneg %p87
        %p580 = pneg %p84
        %p581 = scmp.lt.s32.totalorder %s33, 1
        %s582 = scalar_select %p581, %s33, 1
        %s583 = scalar_lea.vmem %s2, %s582
        %p584 = pneg %p113
        %p585 = pneg %p110
        %p586 = scmp.lt.s32.totalorder %s33, 1
        %s587 = scalar_select %p586, %s33, 1
        %s588 = smul.addr %s587, 4
        %s589 = smul.addr %s588, 4
        %s590 = scalar_lea.vmem %s3, %s589
        %p591 = pneg %p139
        %p592 = pneg %p136
        %p593 = scmp.lt.s32.totalorder %s33, 1
        %s594 = scalar_select %p593, %s33, 1
        %s595 = scalar_lea.vmem %s4, %s594
        %p596 = pneg %p165
        %p597 = pneg %p162
        %p598 = scmp.lt.s32.totalorder %s33, 1
        %s599 = scalar_select %p598, %s33, 1
        %s600 = smul.addr %s599, 4
        %s601 = smul.addr %s600, 4
        %s602 = scalar_lea.vmem %s5, %s601
        %p603 = pneg %p191
        %p604 = pneg %p188
        %p605 = scmp.lt.s32.totalorder %s33, 1
        %s606 = scalar_select %p605, %s33, 1
        %s607 = scalar_lea.vmem %s6, %s606
        %p608 = pneg %p217
        %p609 = pneg %p214
        %p610 = scmp.lt.s32.totalorder %s33, 1
        %s611 = scalar_select %p610, %s33, 1
        %s612 = scalar_lea.vmem %s7, %s611
        %p613 = pneg %p243
        %p614 = pneg %p240
        %p615 = scmp.lt.s32.totalorder %s33, 1
        %s616 = scalar_select %p615, %s33, 1
        %s617 = scalar_lea.vmem %s8, %s616
        %p618 = pneg %p269
        %p619 = pneg %p266
        %p620 = scmp.lt.s32.totalorder %s33, 1
        %s621 = scalar_select %p620, %s33, 1
        %s622 = smul.addr %s621, 4
        %s623 = smul.addr %s622, 4
        %s624 = scalar_lea.vmem %s9, %s623
        %p625 = pneg %p295
        %p626 = pneg %p292
        %p627 = scmp.lt.s32.totalorder %s33, 1
        %s628 = scalar_select %p627, %s33, 1
        %s629 = scalar_lea.vmem %s10, %s628
        %p630 = pneg %p321
        %p631 = pneg %p318
        %p632 = scmp.lt.s32.totalorder %s33, 1
        %s633 = scalar_select %p632, %s33, 1
        %s634 = smul.addr %s633, 16
        %s635 = smul.addr %s634, 4
        %s636 = scalar_lea.vmem %s11, %s635
        %p637 = pneg %p347
        %p638 = pneg %p344
        %p639 = scmp.lt.s32.totalorder %s33, 1
        %s640 = scalar_select %p639, %s33, 1
        %s641 = scalar_lea.vmem %s12, %s640
        %p642 = pneg %p373
        %p643 = pneg %p370
        %p644 = pneg %p394
        %p645 = pneg %p391
        %p646 = pneg %p415
        %p647 = pneg %p412
        %p648 = pneg %p441
        %p649 = pneg %p438
        %s650 = smul.u32 8, %s32
        %p651 = scmp.lt.s32.totalorder %s33, 1
        %s652 = scalar_select %p651, %s33, 1
        %s653 = scalar_lea.vmem %s1, %s652
        %p654 = scmp.lt.s32.totalorder %s33, 1
        %s655 = scalar_select %p654, %s33, 1
        %s656 = scalar_lea.vmem %s2, %s655
        %p657 = scmp.lt.s32.totalorder %s33, 1
        %s658 = scalar_select %p657, %s33, 1
        %s659 = smul.addr %s658, 4
        %s660 = smul.addr %s659, 4
        %s661 = scalar_lea.vmem %s3, %s660
        %p662 = scmp.lt.s32.totalorder %s33, 1
        %s663 = scalar_select %p662, %s33, 1
        %s664 = scalar_lea.vmem %s4, %s663
        %p665 = scmp.lt.s32.totalorder %s33, 1
        %s666 = scalar_select %p665, %s33, 1
        %s667 = smul.addr %s666, 4
        %s668 = smul.addr %s667, 4
        %s669 = scalar_lea.vmem %s5, %s668
        %p670 = scmp.lt.s32.totalorder %s33, 1
        %s671 = scalar_select %p670, %s33, 1
        %s672 = scalar_lea.vmem %s6, %s671
        %p673 = scmp.lt.s32.totalorder %s33, 1
        %s674 = scalar_select %p673, %s33, 1
        %s675 = scalar_lea.vmem %s7, %s674
        %p676 = scmp.lt.s32.totalorder %s33, 1
        %s677 = scalar_select %p676, %s33, 1
        %s678 = scalar_lea.vmem %s8, %s677
        %p679 = scmp.lt.s32.totalorder %s33, 1
        %s680 = scalar_select %p679, %s33, 1
        %s681 = smul.addr %s680, 4
        %s682 = smul.addr %s681, 4
        %s683 = scalar_lea.vmem %s9, %s682
        %p684 = scmp.lt.s32.totalorder %s33, 1
        %s685 = scalar_select %p684, %s33, 1
        %s686 = scalar_lea.vmem %s10, %s685
        %p687 = scmp.lt.s32.totalorder %s33, 1
        %s688 = scalar_select %p687, %s33, 1
        %s689 = smul.addr %s688, 16
        %s690 = smul.addr %s689, 4
        %s691 = scalar_lea.vmem %s11, %s690
        %p692 = scmp.lt.s32.totalorder %s33, 1
        %s693 = scalar_select %p692, %s33, 1
        %s694 = scalar_lea.vmem %s12, %s693
        %p696 = scmp.eq.s32.totalorder %s33, 0
        // Predicated region
        $region85: #{tpu_custom_call.1} parent=79 // pred_check
          %p697 = pneg %p696
        $region86: #{tpu_custom_call.1} parent=79 // pred_check_branch
          %699 = sbr.rel (%p697) target = $region88
        $region87: #{tpu_custom_call.1} parent=79 // pred_region
          %v700 = vld [vmem:[#allocation3] sm:$0xff]
          %v701 = vld [vmem:[#allocation3 + $0x8] sm:$0xff]
          %v702 = vld [vmem:[#allocation3 + $0x10] sm:$0xff]
          %v703 = vld [vmem:[#allocation3 + $0x18] sm:$0xff]
          %v704 = vld [vmem:[#allocation3 + $0x20] sm:$0xff]
          %v705 = vld [vmem:[#allocation3 + $0x28] sm:$0xff]
          %v706 = vld [vmem:[#allocation3 + $0x30] sm:$0xff]
          %v707 = vld [vmem:[#allocation3 + $0x38] sm:$0xff]
          %v708 = vld [vmem:[#allocation3 + $0x40] sm:$0xff]
          %v709 = vld [vmem:[#allocation3 + $0x48] sm:$0xff]
          %v710 = vld [vmem:[#allocation3 + $0x50] sm:$0xff]
          %v711 = vld [vmem:[#allocation3 + $0x58] sm:$0xff]
          %v712 = vld [vmem:[#allocation3 + $0x60] sm:$0xff]
          %v713 = vld [vmem:[#allocation3 + $0x68] sm:$0xff]
          %v714 = vld [vmem:[#allocation3 + $0x70] sm:$0xff]
          %v715 = vld [vmem:[#allocation3 + $0x78] sm:$0xff]
          %v716 = vld [vmem:[#allocation3 + $0x80] sm:$0xff]
          %v717 = vld [vmem:[#allocation3 + $0x88] sm:$0xff]
          %v718 = vld [vmem:[#allocation3 + $0x90] sm:$0xff]
          %v719 = vld [vmem:[#allocation3 + $0x98] sm:$0xff]
          %v720 = vld [vmem:[#allocation3 + $0xa0] sm:$0xff]
          %v721 = vld [vmem:[#allocation3 + $0xa8] sm:$0xff]
          %v722 = vld [vmem:[#allocation3 + $0xb0] sm:$0xff]
          %v723 = vld [vmem:[#allocation3 + $0xb8] sm:$0xff]
          %vm724 = vcmask 261120
          %725 = vst.msk [vmem:[#allocation2] sm:$0xff] %vm724, %v700
          %726 = vst.msk [vmem:[#allocation2 + $0x8] sm:$0xff] %vm724, %v701
          %727 = vst.msk [vmem:[#allocation2 + $0x10] sm:$0xff] %vm724, %v702
          %728 = vst.msk [vmem:[#allocation2 + $0x18] sm:$0xff] %vm724, %v703
          %729 = vst.msk [vmem:[#allocation2 + $0x20] sm:$0xff] %vm724, %v704
          %730 = vst.msk [vmem:[#allocation2 + $0x28] sm:$0xff] %vm724, %v705
          %731 = vst.msk [vmem:[#allocation2 + $0x30] sm:$0xff] %vm724, %v706
          %732 = vst.msk [vmem:[#allocation2 + $0x38] sm:$0xff] %vm724, %v707
          %733 = vst.msk [vmem:[#allocation2 + $0x40] sm:$0xff] %vm724, %v708
          %734 = vst.msk [vmem:[#allocation2 + $0x48] sm:$0xff] %vm724, %v709
          %735 = vst.msk [vmem:[#allocation2 + $0x50] sm:$0xff] %vm724, %v710
          %736 = vst.msk [vmem:[#allocation2 + $0x58] sm:$0xff] %vm724, %v711
          %737 = vst.msk [vmem:[#allocation2 + $0x60] sm:$0xff] %vm724, %v712
          %738 = vst.msk [vmem:[#allocation2 + $0x68] sm:$0xff] %vm724, %v713
          %739 = vst.msk [vmem:[#allocation2 + $0x70] sm:$0xff] %vm724, %v714
          %740 = vst.msk [vmem:[#allocation2 + $0x78] sm:$0xff] %vm724, %v715
          %741 = vst.msk [vmem:[#allocation2 + $0x80] sm:$0xff] %vm724, %v716
          %742 = vst.msk [vmem:[#allocation2 + $0x88] sm:$0xff] %vm724, %v717
          %743 = vst.msk [vmem:[#allocation2 + $0x90] sm:$0xff] %vm724, %v718
          %744 = vst.msk [vmem:[#allocation2 + $0x98] sm:$0xff] %vm724, %v719
          %745 = vst.msk [vmem:[#allocation2 + $0xa0] sm:$0xff] %vm724, %v720
          %746 = vst.msk [vmem:[#allocation2 + $0xa8] sm:$0xff] %vm724, %v721
          %747 = vst.msk [vmem:[#allocation2 + $0xb0] sm:$0xff] %vm724, %v722
          %748 = vst.msk [vmem:[#allocation2 + $0xb8] sm:$0xff] %vm724, %v723
        $region88: #{tpu_custom_call.1} parent=79 // pred_fallthru
          _
        %v749 = vld [vmem:[#allocation2] sm:$0xff]
        %v750 = vld [vmem:[#allocation2 + $0x8] sm:$0xff]
        %v751 = vld [vmem:[#allocation2 + $0x10] sm:$0xff]
        %v752 = vld [vmem:[#allocation2 + $0x18] sm:$0xff]
        %v753 = vld [vmem:[#allocation2 + $0x20] sm:$0xff]
        %v754 = vld [vmem:[#allocation2 + $0x28] sm:$0xff]
        %v755 = vld [vmem:[#allocation2 + $0x30] sm:$0xff]
        %v756 = vld [vmem:[#allocation2 + $0x38] sm:$0xff]
        %v757 = vld [vmem:[#allocation2 + $0x40] sm:$0xff]
        %v758 = vld [vmem:[#allocation2 + $0x48] sm:$0xff]
        %v759 = vld [vmem:[#allocation2 + $0x50] sm:$0xff]
        %v760 = vld [vmem:[#allocation2 + $0x58] sm:$0xff]
        %v761 = vld [vmem:[#allocation2 + $0x60] sm:$0xff]
        %v762 = vld [vmem:[#allocation2 + $0x68] sm:$0xff]
        %v763 = vld [vmem:[#allocation2 + $0x70] sm:$0xff]
        %v764 = vld [vmem:[#allocation2 + $0x78] sm:$0xff]
        %v765 = vld [vmem:[#allocation2 + $0x80] sm:$0xff]
        %v766 = vld [vmem:[#allocation2 + $0x88] sm:$0xff]
        %v767 = vld [vmem:[#allocation2 + $0x90] sm:$0xff]
        %v768 = vld [vmem:[#allocation2 + $0x98] sm:$0xff]
        %v769 = vld [vmem:[#allocation2 + $0xa0] sm:$0xff]
        %v770 = vld [vmem:[#allocation2 + $0xa8] sm:$0xff]
        %v771 = vld [vmem:[#allocation2 + $0xb0] sm:$0xff]
        %v772 = vld [vmem:[#allocation2 + $0xb8] sm:$0xff]
        %v773 = vld [vmem:[%s653] sm:$0x1]
        %v774 = vld [vmem:[%s656] sm:$0x1]
        %vm775 = vcmask 261120
        %v776 = vsel %vm775, %v749, 0.0
        %777 = vadd.xlane.f32.xlu0 %v776
        %v778 = vpop.xlane.xlu0 %777
        %v779 = vsel %vm775, %v750, 0.0
        %780 = vadd.xlane.f32.xlu0 %v779
        %v781 = vpop.xlane.xlu0 %780
        %v782 = vsel %vm775, %v751, 0.0
        %783 = vadd.xlane.f32.xlu0 %v782
        %v784 = vpop.xlane.xlu0 %783
        %v785 = vsel %vm775, %v752, 0.0
        %786 = vadd.xlane.f32.xlu0 %v785
        %v787 = vpop.xlane.xlu0 %786
        %v788 = vsel %vm775, %v753, 0.0
        %789 = vadd.xlane.f32.xlu0 %v788
        %v790 = vpop.xlane.xlu0 %789
        %v791 = vsel %vm775, %v754, 0.0
        %792 = vadd.xlane.f32.xlu0 %v791
        %v793 = vpop.xlane.xlu0 %792
        %v794 = vsel %vm775, %v755, 0.0
        %795 = vadd.xlane.f32.xlu0 %v794
        %v796 = vpop.xlane.xlu0 %795
        %v797 = vsel %vm775, %v756, 0.0
        %798 = vadd.xlane.f32.xlu0 %v797
        %v799 = vpop.xlane.xlu0 %798
        %v800 = vsel %vm775, %v757, 0.0
        %801 = vadd.xlane.f32.xlu0 %v800
        %v802 = vpop.xlane.xlu0 %801
        %v803 = vsel %vm775, %v758, 0.0
        %804 = vadd.xlane.f32.xlu0 %v803
        %v805 = vpop.xlane.xlu0 %804
        %v806 = vsel %vm775, %v759, 0.0
        %807 = vadd.xlane.f32.xlu0 %v806
        %v808 = vpop.xlane.xlu0 %807
        %v809 = vsel %vm775, %v760, 0.0
        %810 = vadd.xlane.f32.xlu0 %v809
        %v811 = vpop.xlane.xlu0 %810
        %v812 = vsel %vm775, %v761, 0.0
        %813 = vadd.xlane.f32.xlu0 %v812
        %v814 = vpop.xlane.xlu0 %813
        %v815 = vsel %vm775, %v762, 0.0
        %816 = vadd.xlane.f32.xlu0 %v815
        %v817 = vpop.xlane.xlu0 %816
        %v818 = vsel %vm775, %v763, 0.0
        %819 = vadd.xlane.f32.xlu0 %v818
        %v820 = vpop.xlane.xlu0 %819
        %v821 = vsel %vm775, %v764, 0.0
        %822 = vadd.xlane.f32.xlu0 %v821
        %v823 = vpop.xlane.xlu0 %822
        %v824 = vsel %vm775, %v765, 0.0
        %825 = vadd.xlane.f32.xlu0 %v824
        %v826 = vpop.xlane.xlu0 %825
        %v827 = vsel %vm775, %v766, 0.0
        %828 = vadd.xlane.f32.xlu0 %v827
        %v829 = vpop.xlane.xlu0 %828
        %v830 = vsel %vm775, %v767, 0.0
        %831 = vadd.xlane.f32.xlu0 %v830
        %v832 = vpop.xlane.xlu0 %831
        %v833 = vsel %vm775, %v768, 0.0
        %834 = vadd.xlane.f32.xlu0 %v833
        %v835 = vpop.xlane.xlu0 %834
        %v836 = vsel %vm775, %v769, 0.0
        %837 = vadd.xlane.f32.xlu0 %v836
        %v838 = vpop.xlane.xlu0 %837
        %v839 = vsel %vm775, %v770, 0.0
        %840 = vadd.xlane.f32.xlu0 %v839
        %v841 = vpop.xlane.xlu0 %840
        %v842 = vsel %vm775, %v771, 0.0
        %843 = vadd.xlane.f32.xlu0 %v842
        %v844 = vpop.xlane.xlu0 %843
        %v845 = vsel %vm775, %v772, 0.0
        %846 = vadd.xlane.f32.xlu0 %v845
        %v847 = vpop.xlane.xlu0 %846
        %v848 = vrcp.pop 32.0
        %v849 = vmul.f32 %v778, %v848
        %v850 = vmul.f32 %v781, %v848
        %v851 = vmul.f32 %v784, %v848
        %v852 = vmul.f32 %v787, %v848
        %v853 = vmul.f32 %v790, %v848
        %v854 = vmul.f32 %v793, %v848
        %v855 = vmul.f32 %v796, %v848
        %v856 = vmul.f32 %v799, %v848
        %v857 = vmul.f32 %v802, %v848
        %v858 = vmul.f32 %v805, %v848
        %v859 = vmul.f32 %v808, %v848
        %v860 = vmul.f32 %v811, %v848
        %v861 = vmul.f32 %v814, %v848
        %v862 = vmul.f32 %v817, %v848
        %v863 = vmul.f32 %v820, %v848
        %v864 = vmul.f32 %v823, %v848
        %v865 = vmul.f32 %v826, %v848
        %v866 = vmul.f32 %v829, %v848
        %v867 = vmul.f32 %v832, %v848
        %v868 = vmul.f32 %v835, %v848
        %v869 = vmul.f32 %v838, %v848
        %v870 = vmul.f32 %v841, %v848
        %v871 = vmul.f32 %v844, %v848
        %v872 = vmul.f32 %v847, %v848
        %v873 = vsub.f32 %v749, %v849
        %v874 = vsub.f32 %v750, %v850
        %v875 = vsub.f32 %v751, %v851
        %v876 = vsub.f32 %v752, %v852
        %v877 = vsub.f32 %v753, %v853
        %v878 = vsub.f32 %v754, %v854
        %v879 = vsub.f32 %v755, %v855
        %v880 = vsub.f32 %v756, %v856
        %v881 = vsub.f32 %v757, %v857
        %v882 = vsub.f32 %v758, %v858
        %v883 = vsub.f32 %v759, %v859
        %v884 = vsub.f32 %v760, %v860
        %v885 = vsub.f32 %v761, %v861
        %v886 = vsub.f32 %v762, %v862
        %v887 = vsub.f32 %v763, %v863
        %v888 = vsub.f32 %v764, %v864
        %v889 = vsub.f32 %v765, %v865
        %v890 = vsub.f32 %v766, %v866
        %v891 = vsub.f32 %v767, %v867
        %v892 = vsub.f32 %v768, %v868
        %v893 = vsub.f32 %v769, %v869
        %v894 = vsub.f32 %v770, %v870
        %v895 = vsub.f32 %v771, %v871
        %v896 = vsub.f32 %v772, %v872
        %v897 = vmul.f32 %v873, %v873
        %v898 = vmul.f32 %v874, %v874
        %v899 = vmul.f32 %v875, %v875
        %v900 = vmul.f32 %v876, %v876
        %v901 = vmul.f32 %v877, %v877
        %v902 = vmul.f32 %v878, %v878
        %v903 = vmul.f32 %v879, %v879
        %v904 = vmul.f32 %v880, %v880
        %v905 = vmul.f32 %v881, %v881
        %v906 = vmul.f32 %v882, %v882
        %v907 = vmul.f32 %v883, %v883
        %v908 = vmul.f32 %v884, %v884
        %v909 = vmul.f32 %v885, %v885
        %v910 = vmul.f32 %v886, %v886
        %v911 = vmul.f32 %v887, %v887
        %v912 = vmul.f32 %v888, %v888
        %v913 = vmul.f32 %v889, %v889
        %v914 = vmul.f32 %v890, %v890
        %v915 = vmul.f32 %v891, %v891
        %v916 = vmul.f32 %v892, %v892
        %v917 = vmul.f32 %v893, %v893
        %v918 = vmul.f32 %v894, %v894
        %v919 = vmul.f32 %v895, %v895
        %v920 = vmul.f32 %v896, %v896
        %v921 = vsel %vm775, %v897, 0.0
        %922 = vadd.xlane.f32.xlu0 %v921
        %v923 = vpop.xlane.xlu0 %922
        %v924 = vsel %vm775, %v898, 0.0
        %925 = vadd.xlane.f32.xlu0 %v924
        %v926 = vpop.xlane.xlu0 %925
        %v927 = vsel %vm775, %v899, 0.0
        %928 = vadd.xlane.f32.xlu0 %v927
        %v929 = vpop.xlane.xlu0 %928
        %v930 = vsel %vm775, %v900, 0.0
        %931 = vadd.xlane.f32.xlu0 %v930
        %v932 = vpop.xlane.xlu0 %931
        %v933 = vsel %vm775, %v901, 0.0
        %934 = vadd.xlane.f32.xlu0 %v933
        %v935 = vpop.xlane.xlu0 %934
        %v936 = vsel %vm775, %v902, 0.0
        %937 = vadd.xlane.f32.xlu0 %v936
        %v938 = vpop.xlane.xlu0 %937
        %v939 = vsel %vm775, %v903, 0.0
        %940 = vadd.xlane.f32.xlu0 %v939
        %v941 = vpop.xlane.xlu0 %940
        %v942 = vsel %vm775, %v904, 0.0
        %943 = vadd.xlane.f32.xlu0 %v942
        %v944 = vpop.xlane.xlu0 %943
        %v945 = vsel %vm775, %v905, 0.0
        %946 = vadd.xlane.f32.xlu0 %v945
        %v947 = vpop.xlane.xlu0 %946
        %v948 = vsel %vm775, %v906, 0.0
        %949 = vadd.xlane.f32.xlu0 %v948
        %v950 = vpop.xlane.xlu0 %949
        %v951 = vsel %vm775, %v907, 0.0
        %952 = vadd.xlane.f32.xlu0 %v951
        %v953 = vpop.xlane.xlu0 %952
        %v954 = vsel %vm775, %v908, 0.0
        %955 = vadd.xlane.f32.xlu0 %v954
        %v956 = vpop.xlane.xlu0 %955
        %v957 = vsel %vm775, %v909, 0.0
        %958 = vadd.xlane.f32.xlu0 %v957
        %v959 = vpop.xlane.xlu0 %958
        %v960 = vsel %vm775, %v910, 0.0
        %961 = vadd.xlane.f32.xlu0 %v960
        %v962 = vpop.xlane.xlu0 %961
        %v963 = vsel %vm775, %v911, 0.0
        %964 = vadd.xlane.f32.xlu0 %v963
        %v965 = vpop.xlane.xlu0 %964
        %v966 = vsel %vm775, %v912, 0.0
        %967 = vadd.xlane.f32.xlu0 %v966
        %v968 = vpop.xlane.xlu0 %967
        %v969 = vsel %vm775, %v913, 0.0
        %970 = vadd.xlane.f32.xlu0 %v969
        %v971 = vpop.xlane.xlu0 %970
        %v972 = vsel %vm775, %v914, 0.0
        %973 = vadd.xlane.f32.xlu0 %v972
        %v974 = vpop.xlane.xlu0 %973
        %v975 = vsel %vm775, %v915, 0.0
        %976 = vadd.xlane.f32.xlu0 %v975
        %v977 = vpop.xlane.xlu0 %976
        %v978 = vsel %vm775, %v916, 0.0
        %979 = vadd.xlane.f32.xlu0 %v978
        %v980 = vpop.xlane.xlu0 %979
        %v981 = vsel %vm775, %v917, 0.0
        %982 = vadd.xlane.f32.xlu0 %v981
        %v983 = vpop.xlane.xlu0 %982
        %v984 = vsel %vm775, %v918, 0.0
        %985 = vadd.xlane.f32.xlu0 %v984
        %v986 = vpop.xlane.xlu0 %985
        %v987 = vsel %vm775, %v919, 0.0
        %988 = vadd.xlane.f32.xlu0 %v987
        %v989 = vpop.xlane.xlu0 %988
        %v990 = vsel %vm775, %v920, 0.0
        %991 = vadd.xlane.f32.xlu0 %v990
        %v992 = vpop.xlane.xlu0 %991
        %v993 = vmul.f32 %v923, %v848
        %v994 = vmul.f32 %v926, %v848
        %v995 = vmul.f32 %v929, %v848
        %v996 = vmul.f32 %v932, %v848
        %v997 = vmul.f32 %v935, %v848
        %v998 = vmul.f32 %v938, %v848
        %v999 = vmul.f32 %v941, %v848
        %v1000 = vmul.f32 %v944, %v848
        %v1001 = vmul.f32 %v947, %v848
        %v1002 = vmul.f32 %v950, %v848
        %v1003 = vmul.f32 %v953, %v848
        %v1004 = vmul.f32 %v956, %v848
        %v1005 = vmul.f32 %v959, %v848
        %v1006 = vmul.f32 %v962, %v848
        %v1007 = vmul.f32 %v965, %v848
        %v1008 = vmul.f32 %v968, %v848
        %v1009 = vmul.f32 %v971, %v848
        %v1010 = vmul.f32 %v974, %v848
        %v1011 = vmul.f32 %v977, %v848
        %v1012 = vmul.f32 %v980, %v848
        %v1013 = vmul.f32 %v983, %v848
        %v1014 = vmul.f32 %v986, %v848
        %v1015 = vmul.f32 %v989, %v848
        %v1016 = vmul.f32 %v992, %v848
        %v1017 = vadd.f32 %v993, 1e-05
        %v1018 = vadd.f32 %v994, 1e-05
        %v1019 = vadd.f32 %v995, 1e-05
        %v1020 = vadd.f32 %v996, 1e-05
        %v1021 = vadd.f32 %v997, 1e-05
        %v1022 = vadd.f32 %v998, 1e-05
        %v1023 = vadd.f32 %v999, 1e-05
        %v1024 = vadd.f32 %v1000, 1e-05
        %v1025 = vadd.f32 %v1001, 1e-05
        %v1026 = vadd.f32 %v1002, 1e-05
        %v1027 = vadd.f32 %v1003, 1e-05
        %v1028 = vadd.f32 %v1004, 1e-05
        %v1029 = vadd.f32 %v1005, 1e-05
        %v1030 = vadd.f32 %v1006, 1e-05
        %v1031 = vadd.f32 %v1007, 1e-05
        %v1032 = vadd.f32 %v1008, 1e-05
        %v1033 = vadd.f32 %v1009, 1e-05
        %v1034 = vadd.f32 %v1010, 1e-05
        %v1035 = vadd.f32 %v1011, 1e-05
        %v1036 = vadd.f32 %v1012, 1e-05
        %v1037 = vadd.f32 %v1013, 1e-05
        %v1038 = vadd.f32 %v1014, 1e-05
        %v1039 = vadd.f32 %v1015, 1e-05
        %v1040 = vadd.f32 %v1016, 1e-05
        %v1041 = vrsqrt.pop %v1017
        %v1042 = vrsqrt.pop %v1018
        %v1043 = vrsqrt.pop %v1019
        %v1044 = vrsqrt.pop %v1020
        %v1045 = vrsqrt.pop %v1021
        %v1046 = vrsqrt.pop %v1022
        %v1047 = vrsqrt.pop %v1023
        %v1048 = vrsqrt.pop %v1024
        %v1049 = vrsqrt.pop %v1025
        %v1050 = vrsqrt.pop %v1026
        %v1051 = vrsqrt.pop %v1027
        %v1052 = vrsqrt.pop %v1028
        %v1053 = vrsqrt.pop %v1029
        %v1054 = vrsqrt.pop %v1030
        %v1055 = vrsqrt.pop %v1031
        %v1056 = vrsqrt.pop %v1032
        %v1057 = vrsqrt.pop %v1033
        %v1058 = vrsqrt.pop %v1034
        %v1059 = vrsqrt.pop %v1035
        %v1060 = vrsqrt.pop %v1036
        %v1061 = vrsqrt.pop %v1037
        %v1062 = vrsqrt.pop %v1038
        %v1063 = vrsqrt.pop %v1039
        %v1064 = vrsqrt.pop %v1040
        %v1065 = vmul.f32 %v873, %v1041
        %v1066 = vmul.f32 %v874, %v1042
        %v1067 = vmul.f32 %v875, %v1043
        %v1068 = vmul.f32 %v876, %v1044
        %v1069 = vmul.f32 %v877, %v1045
        %v1070 = vmul.f32 %v878, %v1046
        %v1071 = vmul.f32 %v879, %v1047
        %v1072 = vmul.f32 %v880, %v1048
        %v1073 = vmul.f32 %v881, %v1049
        %v1074 = vmul.f32 %v882, %v1050
        %v1075 = vmul.f32 %v883, %v1051
        %v1076 = vmul.f32 %v884, %v1052
        %v1077 = vmul.f32 %v885, %v1053
        %v1078 = vmul.f32 %v886, %v1054
        %v1079 = vmul.f32 %v887, %v1055
        %v1080 = vmul.f32 %v888, %v1056
        %v1081 = vmul.f32 %v889, %v1057
        %v1082 = vmul.f32 %v890, %v1058
        %v1083 = vmul.f32 %v891, %v1059
        %v1084 = vmul.f32 %v892, %v1060
        %v1085 = vmul.f32 %v893, %v1061
        %v1086 = vmul.f32 %v894, %v1062
        %v1087 = vmul.f32 %v895, %v1063
        %v1088 = vmul.f32 %v896, %v1064
        %v1090 = vlaneseq
        %v1091 = vshrl.u32 %v1090, 7
        %v1092 = vsub.s32 0, %v1091
        %v1093 = vrot.slane %v773, %v1092
        %v1095 = vmul.f32 %v1065, %v1093
        %v1096 = vmul.f32 %v1066, %v1093
        %v1097 = vmul.f32 %v1067, %v1093
        %v1098 = vmul.f32 %v1068, %v1093
        %v1099 = vmul.f32 %v1069, %v1093
        %v1100 = vmul.f32 %v1070, %v1093
        %v1101 = vmul.f32 %v1071, %v1093
        %v1102 = vmul.f32 %v1072, %v1093
        %v1103 = vmul.f32 %v1073, %v1093
        %v1104 = vmul.f32 %v1074, %v1093
        %v1105 = vmul.f32 %v1075, %v1093
        %v1106 = vmul.f32 %v1076, %v1093
        %v1107 = vmul.f32 %v1077, %v1093
        %v1108 = vmul.f32 %v1078, %v1093
        %v1109 = vmul.f32 %v1079, %v1093
        %v1110 = vmul.f32 %v1080, %v1093
        %v1111 = vmul.f32 %v1081, %v1093
        %v1112 = vmul.f32 %v1082, %v1093
        %v1113 = vmul.f32 %v1083, %v1093
        %v1114 = vmul.f32 %v1084, %v1093
        %v1115 = vmul.f32 %v1085, %v1093
        %v1116 = vmul.f32 %v1086, %v1093
        %v1117 = vmul.f32 %v1087, %v1093
        %v1118 = vmul.f32 %v1088, %v1093
        %v1120 = vlaneseq
        %v1121 = vshrl.u32 %v1120, 7
        %v1122 = vsub.s32 0, %v1121
        %v1123 = vrot.slane %v774, %v1122
        %v1125 = vadd.f32 %v1095, %v1123
        %v1126 = vadd.f32 %v1096, %v1123
        %v1127 = vadd.f32 %v1097, %v1123
        %v1128 = vadd.f32 %v1098, %v1123
        %v1129 = vadd.f32 %v1099, %v1123
        %v1130 = vadd.f32 %v1100, %v1123
        %v1131 = vadd.f32 %v1101, %v1123
        %v1132 = vadd.f32 %v1102, %v1123
        %v1133 = vadd.f32 %v1103, %v1123
        %v1134 = vadd.f32 %v1104, %v1123
        %v1135 = vadd.f32 %v1105, %v1123
        %v1136 = vadd.f32 %v1106, %v1123
        %v1137 = vadd.f32 %v1107, %v1123
        %v1138 = vadd.f32 %v1108, %v1123
        %v1139 = vadd.f32 %v1109, %v1123
        %v1140 = vadd.f32 %v1110, %v1123
        %v1141 = vadd.f32 %v1111, %v1123
        %v1142 = vadd.f32 %v1112, %v1123
        %v1143 = vadd.f32 %v1113, %v1123
        %v1144 = vadd.f32 %v1114, %v1123
        %v1145 = vadd.f32 %v1115, %v1123
        %v1146 = vadd.f32 %v1116, %v1123
        %v1147 = vadd.f32 %v1117, %v1123
        %v1148 = vadd.f32 %v1118, %v1123
        %v1149 = vpack.c.bf16 %v1126, %v1125
        %v1150 = vpack.c.bf16 %v1128, %v1127
        %v1151 = vpack.c.bf16 %v1130, %v1129
        %v1152 = vpack.c.bf16 %v1132, %v1131
        %v1153 = vpack.c.bf16 %v1134, %v1133
        %v1154 = vpack.c.bf16 %v1136, %v1135
        %v1155 = vpack.c.bf16 %v1138, %v1137
        %v1156 = vpack.c.bf16 %v1140, %v1139
        %v1157 = vpack.c.bf16 %v1142, %v1141
        %v1158 = vpack.c.bf16 %v1144, %v1143
        %v1159 = vpack.c.bf16 %v1146, %v1145
        %v1160 = vpack.c.bf16 %v1148, %v1147
        %v1161 = vld [vmem:[%s661] sm:$0xf]
        %v1162 = vld [vmem:[%s661 + $0x4] sm:$0xf]
        %v1163 = vld [vmem:[%s661 + $0x8] sm:$0xf]
        %v1164 = vld [vmem:[%s661 + $0xc] sm:$0xf]
        %v1165 = vld [vmem:[%s664] sm:$0x1]
        %v1167 = vlaneseq
        %v1168 = vshrl.u32 %v1167, 7
        %v1169 = vsub.s32 0, %v1168
        %v1170 = vrot.slane %v1165, %v1169
        %v1176 = vunpack.c.l.b16 %v1161
        %v1177 = vunpack.c.l.b16 %v1162
        %v1178 = vunpack.c.l.b16 %v1163
        %v1179 = vunpack.c.l.b16 %v1164
        %v1180 = vpack.c.b16 %v1177, %v1176
        %v1181 = vpack.c.b16 %v1179, %v1178
        %v1185 = vsel %vm775, %v1149, 0
        %v1188 = vsel %vm775, %v1150, 0
        %v1191 = vsel %vm775, %v1151, 0
        %v1194 = vsel %vm775, %v1152, 0
        %v1197 = vsel %vm775, %v1153, 0
        %v1200 = vsel %vm775, %v1154, 0
        %v1203 = vsel %vm775, %v1155, 0
        %v1206 = vsel %vm775, %v1156, 0
        %v1209 = vsel %vm775, %v1157, 0
        %v1212 = vsel %vm775, %v1158, 0
        %v1215 = vsel %vm775, %v1159, 0
        %v1218 = vsel %vm775, %v1160, 0
        %1220 = vmatprep.subr.bf16.mxu0 0
        %1221 = vmatpush1.bf16.msra.mxu0 %v1180
        %1222 = vmatprep.subr.bf16.mxu0 0
        %1223 = vmatpush1.bf16.msra.mxu0 %v1181
        %1224 = vmatprep.subr.bf16.mxu0 0
        %1225 = vmatpush1.bf16.msra.mxu0 0
        %1226 = vmatprep.subr.bf16.mxu0 0
        %1227 = vmatpush1.bf16.msra.mxu0 0
        %1228 = vmatprep.subr.bf16.mxu0 0
        %1229 = vmatpush1.bf16.msra.mxu0 0
        %1230 = vmatprep.subr.bf16.mxu0 0
        %1231 = vmatpush1.bf16.msra.mxu0 0
        %1232 = vmatprep.subr.bf16.mxu0 0
        %1233 = vmatpush1.bf16.msra.mxu0 0
        %1234 = vmatprep.subr.bf16.mxu0 0
        %1235 = vmatpush1.bf16.msra.mxu0 0
        %1236 = vmatprep.subr.bf16.mxu0 0
        %1237 = vmatpush1.bf16.msra.mxu0 0
        %1238 = vmatprep.subr.bf16.mxu0 0
        %1239 = vmatpush1.bf16.msra.mxu0 0
        %1240 = vmatprep.subr.bf16.mxu0 0
        %1241 = vmatpush1.bf16.msra.mxu0 0
        %1242 = vmatprep.subr.bf16.mxu0 0
        %1243 = vmatpush1.bf16.msra.mxu0 0
        %1244 = vmatprep.subr.bf16.mxu0 0
        %1245 = vmatpush1.bf16.msra.mxu0 0
        %1246 = vmatprep.subr.bf16.mxu0 0
        %1247 = vmatpush1.bf16.msra.mxu0 0
        %1248 = vmatprep.subr.bf16.mxu0 0
        %1249 = vmatpush1.bf16.msra.mxu0 0
        %1250 = vmatprep.subr.bf16.mxu0 0
        %1251 = vmatpush1.bf16.msra.mxu0 0
        %1252 = vmatprep.mubr.bf16.mxu0 0
        %1253 = vmatmul.mubr.bf16.gmra.mrb[0].mxu0 %v1185
        %v1254 = vpop.f32.mrb[0].mxu0
        %v1255 = vadd.f32 %v1170, %v1254
        %v1256 = vpop.f32.mrb[0].mxu0
        %v1257 = vpop.f32.mrb[0].mxu0
        %v1258 = vadd.f32 %v1170, %v1257
        %v1259 = vpop.f32.mrb[0].mxu0
        %1260 = vmatprep.mubr.bf16.mxu0 0
        %1261 = vmatmul.mubr.bf16.gmra.mrb[0].mxu0 %v1188
        %v1262 = vpop.f32.mrb[0].mxu0
        %v1263 = vadd.f32 %v1170, %v1262
        %v1264 = vpop.f32.mrb[0].mxu0
        %v1265 = vpop.f32.mrb[0].mxu0
        %v1266 = vadd.f32 %v1170, %v1265
        %v1267 = vpop.f32.mrb[0].mxu0
        %1268 = vmatprep.mubr.bf16.mxu0 0
        %1269 = vmatmul.mubr.bf16.gmra.mrb[0].mxu0 %v1191
        %v1270 = vpop.f32.mrb[0].mxu0
        %v1271 = vadd.f32 %v1170, %v1270
        %v1272 = vpop.f32.mrb[0].mxu0
        %v1273 = vpop.f32.mrb[0].mxu0
        %v1274 = vadd.f32 %v1170, %v1273
        %v1275 = vpop.f32.mrb[0].mxu0
        %1276 = vmatprep.mubr.bf16.mxu0 0
        %1277 = vmatmul.mubr.bf16.gmra.mrb[0].mxu0 %v1194
        %v1278 = vpop.f32.mrb[0].mxu0
        %v1279 = vadd.f32 %v1170, %v1278
        %v1280 = vpop.f32.mrb[0].mxu0
        %v1281 = vpop.f32.mrb[0].mxu0
        %v1282 = vadd.f32 %v1170, %v1281
        %v1283 = vpop.f32.mrb[0].mxu0
        %1284 = vmatprep.mubr.bf16.mxu0 0
        %1285 = vmatmul.mubr.bf16.gmra.mrb[0].mxu0 %v1197
        %v1286 = vpop.f32.mrb[0].mxu0
        %v1287 = vadd.f32 %v1170, %v1286
        %v1288 = vpop.f32.mrb[0].mxu0
        %v1289 = vpop.f32.mrb[0].mxu0
        %v1290 = vadd.f32 %v1170, %v1289
        %v1291 = vpop.f32.mrb[0].mxu0
        %1292 = vmatprep.mubr.bf16.mxu0 0
        %1293 = vmatmul.mubr.bf16.gmra.mrb[0].mxu0 %v1200
        %v1294 = vpop.f32.mrb[0].mxu0
        %v1295 = vadd.f32 %v1170, %v1294
        %v1296 = vpop.f32.mrb[0].mxu0
        %v1297 = vpop.f32.mrb[0].mxu0
        %v1298 = vadd.f32 %v1170, %v1297
        %v1299 = vpop.f32.mrb[0].mxu0
        %1300 = vmatprep.mubr.bf16.mxu0 0
        %1301 = vmatmul.mubr.bf16.gmra.mrb[0].mxu0 %v1203
        %v1302 = vpop.f32.mrb[0].mxu0
        %v1303 = vadd.f32 %v1170, %v1302
        %v1304 = vpop.f32.mrb[0].mxu0
        %v1305 = vpop.f32.mrb[0].mxu0
        %v1306 = vadd.f32 %v1170, %v1305
        %v1307 = vpop.f32.mrb[0].mxu0
        %1308 = vmatprep.mubr.bf16.mxu0 0
        %1309 = vmatmul.mubr.bf16.gmra.mrb[0].mxu0 %v1206
        %v1310 = vpop.f32.mrb[0].mxu0
        %v1311 = vadd.f32 %v1170, %v1310
        %v1312 = vpop.f32.mrb[0].mxu0
        %v1313 = vpop.f32.mrb[0].mxu0
        %v1314 = vadd.f32 %v1170, %v1313
        %v1315 = vpop.f32.mrb[0].mxu0
        %1316 = vmatprep.mubr.bf16.mxu0 0
        %1317 = vmatmul.mubr.bf16.gmra.mrb[0].mxu0 %v1209
        %v1318 = vpop.f32.mrb[0].mxu0
        %v1319 = vadd.f32 %v1170, %v1318
        %v1320 = vpop.f32.mrb[0].mxu0
        %v1321 = vpop.f32.mrb[0].mxu0
        %v1322 = vadd.f32 %v1170, %v1321
        %v1323 = vpop.f32.mrb[0].mxu0
        %1324 = vmatprep.mubr.bf16.mxu0 0
        %1325 = vmatmul.mubr.bf16.gmra.mrb[0].mxu0 %v1212
        %v1326 = vpop.f32.mrb[0].mxu0
        %v1327 = vadd.f32 %v1170, %v1326
        %v1328 = vpop.f32.mrb[0].mxu0
        %v1329 = vpop.f32.mrb[0].mxu0
        %v1330 = vadd.f32 %v1170, %v1329
        %v1331 = vpop.f32.mrb[0].mxu0
        %1332 = vmatprep.mubr.bf16.mxu0 0
        %1333 = vmatmul.mubr.bf16.gmra.mrb[0].mxu0 %v1215
        %v1334 = vpop.f32.mrb[0].mxu0
        %v1335 = vadd.f32 %v1170, %v1334
        %v1336 = vpop.f32.mrb[0].mxu0
        %v1337 = vpop.f32.mrb[0].mxu0
        %v1338 = vadd.f32 %v1170, %v1337
        %v1339 = vpop.f32.mrb[0].mxu0
        %1340 = vmatprep.mubr.bf16.mxu0 0
        %1341 = vmatmul.mubr.bf16.gmra.mrb[0].mxu0 %v1218
        %v1342 = vpop.f32.mrb[0].mxu0
        %v1343 = vadd.f32 %v1170, %v1342
        %v1344 = vpop.f32.mrb[0].mxu0
        %v1345 = vpop.f32.mrb[0].mxu0
        %v1346 = vadd.f32 %v1170, %v1345
        %v1347 = vpop.f32.mrb[0].mxu0
        %1348 = vdwg.mxu0
        %v1349 = vpack.c.bf16 %v1258, %v1255
        %v1350 = vpack.c.bf16 %v1266, %v1263
        %v1351 = vpack.c.bf16 %v1274, %v1271
        %v1352 = vpack.c.bf16 %v1282, %v1279
        %v1353 = vpack.c.bf16 %v1290, %v1287
        %v1354 = vpack.c.bf16 %v1298, %v1295
        %v1355 = vpack.c.bf16 %v1306, %v1303
        %v1356 = vpack.c.bf16 %v1314, %v1311
        %v1357 = vpack.c.bf16 %v1322, %v1319
        %v1358 = vpack.c.bf16 %v1330, %v1327
        %v1359 = vpack.c.bf16 %v1338, %v1335
        %v1360 = vpack.c.bf16 %v1346, %v1343
        %v1373 = vunpack.c.l.b16 %v1349
        %v1374 = vunpack.c.h.b16 %v1349
        %v1375 = vunpack.c.l.b16 %v1350
        %v1376 = vunpack.c.h.b16 %v1350
        %v1377 = vunpack.c.l.b16 %v1351
        %v1378 = vunpack.c.h.b16 %v1351
        %v1379 = vunpack.c.l.b16 %v1352
        %v1380 = vunpack.c.h.b16 %v1352
        %v1381 = vunpack.c.l.b16 %v1353
        %v1382 = vunpack.c.h.b16 %v1353
        %v1383 = vunpack.c.l.b16 %v1354
        %v1384 = vunpack.c.h.b16 %v1354
        %v1385 = vunpack.c.l.b16 %v1355
        %v1386 = vunpack.c.h.b16 %v1355
        %v1387 = vunpack.c.l.b16 %v1356
        %v1388 = vunpack.c.h.b16 %v1356
        %v1389 = vunpack.c.l.b16 %v1357
        %v1390 = vunpack.c.h.b16 %v1357
        %v1391 = vunpack.c.l.b16 %v1358
        %v1392 = vunpack.c.h.b16 %v1358
        %v1393 = vunpack.c.l.b16 %v1359
        %v1394 = vunpack.c.h.b16 %v1359
        %v1395 = vunpack.c.l.b16 %v1360
        %v1396 = vunpack.c.h.b16 %v1360
        %v1397 = vlaneseq
        %v1398 = vand.u32 %v1397, 127
        %vm1399 = vcmp.lt.s32.totalorder %v1398, 17
        %v1400 = vpack.c.b16 %v1374, %v1373
        %v1401 = vpack.c.b16 %v1375, %v1375
        %1402 = vrot.lane.b32.xlu0 %v1400, 96
        %v1403 = vpop.permute.xlu0 %1402
        %1404 = vrot.lane.b32.xlu0 %v1401, 96
        %v1405 = vpop.permute.xlu0 %1404
        %vm1406 = vcmask 64512
        %v1408 = vsel %vm1406, %v1400, 0
        %v1411 = vsel %vm1406, %v1401, 0
        %v1414 = vsel %vm1406, %v1403, 0
        %v1417 = vsel %vm1406, %v1405, 0
        %1419 = vmatprep.subr.bf16.mxu0 0
        %1420 = vmatpush1.bf16.xpose.msra.mxu0 %v1414
        %1421 = vmatprep.subr.bf16.mxu0 0
        %1422 = vmatpush1.bf16.xpose.msra.mxu0 %v1417
        %1423 = vmatprep.subr.bf16.mxu0 0
        %1424 = vmatpush1.bf16.xpose.msra.mxu0 0
        %1425 = vmatprep.subr.bf16.mxu0 0
        %1426 = vmatpush1.bf16.xpose.msra.mxu0 0
        %1427 = vmatprep.subr.bf16.mxu0 0
        %1428 = vmatpush1.bf16.xpose.msra.mxu0 0
        %1429 = vmatprep.subr.bf16.mxu0 0
        %1430 = vmatpush1.bf16.xpose.msra.mxu0 0
        %1431 = vmatprep.subr.bf16.mxu0 0
        %1432 = vmatpush1.bf16.xpose.msra.mxu0 0
        %1433 = vmatprep.subr.bf16.mxu0 0
        %1434 = vmatpush1.bf16.xpose.msra.mxu0 0
        %1435 = vmatprep.subr.bf16.mxu0 0
        %1436 = vmatpush1.bf16.xpose.msra.mxu0 0
        %1437 = vmatprep.subr.bf16.mxu0 0
        %1438 = vmatpush1.bf16.xpose.msra.mxu0 0
        %1439 = vmatprep.subr.bf16.mxu0 0
        %1440 = vmatpush1.bf16.xpose.msra.mxu0 0
        %1441 = vmatprep.subr.bf16.mxu0 0
        %1442 = vmatpush1.bf16.xpose.msra.mxu0 0
        %1443 = vmatprep.subr.bf16.mxu0 0
        %1444 = vmatpush1.bf16.xpose.msra.mxu0 0
        %1445 = vmatprep.subr.bf16.mxu0 0
        %1446 = vmatpush1.bf16.xpose.msra.mxu0 0
        %1447 = vmatprep.subr.bf16.mxu0 0
        %1448 = vmatpush1.bf16.xpose.msra.mxu0 0
        %1449 = vmatprep.subr.bf16.mxu0 0
        %1450 = vmatpush1.bf16.xpose.msra.mxu0 0
        %1451 = vmatprep.mubr.bf16.mxu0 0
        %1452 = vmatmul.mubr.bf16.gmra.mrb[0].mxu0 %v1408
        %v1453 = vpop.f32.mrb[0].mxu0
        %v1454 = vadd.f32 0.0, %v1453
        %v1455 = vpop.f32.mrb[0].mxu0
        %v1456 = vpop.f32.mrb[0].mxu0
        %v1457 = vadd.f32 0.0, %v1456
        %v1458 = vpop.f32.mrb[0].mxu0
        %1459 = vmatprep.mubr.bf16.mxu0 0
        %1460 = vmatmul.mubr.bf16.gmra.mrb[0].mxu0 %v1411
        %v1461 = vpop.f32.mrb[0].mxu0
        %v1462 = vadd.f32 0.0, %v1461
        %v1463 = vpop.f32.mrb[0].mxu0
        %v1464 = vpop.f32.mrb[0].mxu0
        %v1465 = vpop.f32.mrb[0].mxu0
        %1466 = vdwg.mxu0
        %v1467 = vpack.c.b16 %v1377, %v1376
        %v1468 = vpack.c.b16 %v1378, %v1378
        %1469 = vrot.lane.b32.xlu0 %v1467, 96
        %v1470 = vpop.permute.xlu0 %1469
        %1471 = vrot.lane.b32.xlu0 %v1468, 96
        %v1472 = vpop.permute.xlu0 %1471
        %v1474 = vsel %vm1406, %v1467, 0
        %v1477 = vsel %vm1406, %v1468, 0
        %v1480 = vsel %vm1406, %v1470, 0
        %v1483 = vsel %vm1406, %v1472, 0
        %1485 = vmatprep.subr.bf16.mxu0 0
        %1486 = vmatpush1.bf16.xpose.msra.mxu0 %v1480
        %1487 = vmatprep.subr.bf16.mxu0 0
        %1488 = vmatpush1.bf16.xpose.msra.mxu0 %v1483
        %1489 = vmatprep.subr.bf16.mxu0 0
        %1490 = vmatpush1.bf16.xpose.msra.mxu0 0
        %1491 = vmatprep.subr.bf16.mxu0 0
        %1492 = vmatpush1.bf16.xpose.msra.mxu0 0
        %1493 = vmatprep.subr.bf16.mxu0 0
        %1494 = vmatpush1.bf16.xpose.msra.mxu0 0
        %1495 = vmatprep.subr.bf16.mxu0 0
        %1496 = vmatpush1.bf16.xpose.msra.mxu0 0
        %1497 = vmatprep.subr.bf16.mxu0 0
        %1498 = vmatpush1.bf16.xpose.msra.mxu0 0
        %1499 = vmatprep.subr.bf16.mxu0 0
        %1500 = vmatpush1.bf16.xpose.msra.mxu0 0
        %1501 = vmatprep.subr.bf16.mxu0 0
        %1502 = vmatpush1.bf16.xpose.msra.mxu0 0
        %1503 = vmatprep.subr.bf16.mxu0 0
        %1504 = vmatpush1.bf16.xpose.msra.mxu0 0
        %1505 = vmatprep.subr.bf16.mxu0 0
        %1506 = vmatpush1.bf16.xpose.msra.mxu0 0
        %1507 = vmatprep.subr.bf16.mxu0 0
        %1508 = vmatpush1.bf16.xpose.msra.mxu0 0
        %1509 = vmatprep.subr.bf16.mxu0 0
        %1510 = vmatpush1.bf16.xpose.msra.mxu0 0
        %1511 = vmatprep.subr.bf16.mxu0 0
        %1512 = vmatpush1.bf16.xpose.msra.mxu0 0
        %1513 = vmatprep.subr.bf16.mxu0 0
        %1514 = vmatpush1.bf16.xpose.msra.mxu0 0
        %1515 = vmatprep.subr.bf16.mxu0 0
        %1516 = vmatpush1.bf16.xpose.msra.mxu0 0
        %1517 = vmatprep.mubr.bf16.mxu0 0
        %1518 = vmatmul.mubr.bf16.gmra.mrb[0].mxu0 %v1474
        %v1519 = vpop.f32.mrb[0].mxu0
        %v1520 = vadd.f32 0.0, %v1519
        %v1521 = vpop.f32.mrb[0].mxu0
        %v1522 = vpop.f32.mrb[0].mxu0
        %v1523 = vadd.f32 0.0, %v1522
        %v1524 = vpop.f32.mrb[0].mxu0
        %1525 = vmatprep.mubr.bf16.mxu0 0
        %1526 = vmatmul.mubr.bf16.gmra.mrb[0].mxu0 %v1477
        %v1527 = vpop.f32.mrb[0].mxu0
        %v1528 = vadd.f32 0.0, %v1527
        %v1529 = vpop.f32.mrb[0].mxu0
        %v1530 = vpop.f32.mrb[0].mxu0
        %v1531 = vpop.f32.mrb[0].mxu0
        %1532 = vdwg.mxu0
        %v1533 = vpack.c.b16 %v1380, %v1379
        %v1534 = vpack.c.b16 %v1381, %v1381
        %1535 = vrot.lane.b32.xlu0 %v1533, 96
        %v1536 = vpop.permute.xlu0 %1535
        %1537 = vrot.lane.b32.xlu0 %v1534, 96
        %v1538 = vpop.permute.xlu0 %1537
        %v1540 = vsel %vm1406, %v1533, 0
        %v1543 = vsel %vm1406, %v1534, 0
        %v1546 = vsel %vm1406, %v1536, 0
        %v1549 = vsel %vm1406, %v1538, 0
        %1551 = vmatprep.subr.bf16.mxu0 0
        %1552 = vmatpush1.bf16.xpose.msra.mxu0 %v1546
        %1553 = vmatprep.subr.bf16.mxu0 0
        %1554 = vmatpush1.bf16.xpose.msra.mxu0 %v1549
        %1555 = vmatprep.subr.bf16.mxu0 0
        %1556 = vmatpush1.bf16.xpose.msra.mxu0 0
        %1557 = vmatprep.subr.bf16.mxu0 0
        %1558 = vmatpush1.bf16.xpose.msra.mxu0 0
        %1559 = vmatprep.subr.bf16.mxu0 0
        %1560 = vmatpush1.bf16.xpose.msra.mxu0 0
        %1561 = vmatprep.subr.bf16.mxu0 0
        %1562 = vmatpush1.bf16.xpose.msra.mxu0 0
        %1563 = vmatprep.subr.bf16.mxu0 0
        %1564 = vmatpush1.bf16.xpose.msra.mxu0 0
        %1565 = vmatprep.subr.bf16.mxu0 0
        %1566 = vmatpush1.bf16.xpose.msra.mxu0 0
        %1567 = vmatprep.subr.bf16.mxu0 0
        %1568 = vmatpush1.bf16.xpose.msra.mxu0 0
        %1569 = vmatprep.subr.bf16.mxu0 0
        %1570 = vmatpush1.bf16.xpose.msra.mxu0 0
        %1571 = vmatprep.subr.bf16.mxu0 0
        %1572 = vmatpush1.bf16.xpose.msra.mxu0 0
        %1573 = vmatprep.subr.bf16.mxu0 0
        %1574 = vmatpush1.bf16.xpose.msra.mxu0 0
        %1575 = vmatprep.subr.bf16.mxu0 0
        %1576 = vmatpush1.bf16.xpose.msra.mxu0 0
        %1577 = vmatprep.subr.bf16.mxu0 0
        %1578 = vmatpush1.bf16.xpose.msra.mxu0 0
        %1579 = vmatprep.subr.bf16.mxu0 0
        %1580 = vmatpush1.bf16.xpose.msra.mxu0 0
        %1581 = vmatprep.subr.bf16.mxu0 0
        %1582 = vmatpush1.bf16.xpose.msra.mxu0 0
        %1583 = vmatprep.mubr.bf16.mxu0 0
        %1584 = vmatmul.mubr.bf16.gmra.mrb[0].mxu0 %v1540
        %v1585 = vpop.f32.mrb[0].mxu0
        %v1586 = vadd.f32 0.0, %v1585
        %v1587 = vpop.f32.mrb[0].mxu0
        %v1588 = vpop.f32.mrb[0].mxu0
        %v1589 = vadd.f32 0.0, %v1588
        %v1590 = vpop.f32.mrb[0].mxu0
        %1591 = vmatprep.mubr.bf16.mxu0 0
        %1592 = vmatmul.mubr.bf16.gmra.mrb[0].mxu0 %v1543
        %v1593 = vpop.f32.mrb[0].mxu0
        %v1594 = vadd.f32 0.0, %v1593
        %v1595 = vpop.f32.mrb[0].mxu0
        %v1596 = vpop.f32.mrb[0].mxu0
        %v1597 = vpop.f32.mrb[0].mxu0
        %1598 = vdwg.mxu0
        %v1599 = vpack.c.b16 %v1383, %v1382
        %v1600 = vpack.c.b16 %v1384, %v1384
        %1601 = vrot.lane.b32.xlu0 %v1599, 96
        %v1602 = vpop.permute.xlu0 %1601
        %1603 = vrot.lane.b32.xlu0 %v1600, 96
        %v1604 = vpop.permute.xlu0 %1603
        %v1606 = vsel %vm1406, %v1599, 0
        %v1609 = vsel %vm1406, %v1600, 0
        %v1612 = vsel %vm1406, %v1602, 0
        %v1615 = vsel %vm1406, %v1604, 0
        %1617 = vmatprep.subr.bf16.mxu0 0
        %1618 = vmatpush1.bf16.xpose.msra.mxu0 %v1612
        %1619 = vmatprep.subr.bf16.mxu0 0
        %1620 = vmatpush1.bf16.xpose.msra.mxu0 %v1615
        %1621 = vmatprep.subr.bf16.mxu0 0
        %1622 = vmatpush1.bf16.xpose.msra.mxu0 0
        %1623 = vmatprep.subr.bf16.mxu0 0
        %1624 = vmatpush1.bf16.xpose.msra.mxu0 0
        %1625 = vmatprep.subr.bf16.mxu0 0
        %1626 = vmatpush1.bf16.xpose.msra.mxu0 0
        %1627 = vmatprep.subr.bf16.mxu0 0
        %1628 = vmatpush1.bf16.xpose.msra.mxu0 0
        %1629 = vmatprep.subr.bf16.mxu0 0
        %1630 = vmatpush1.bf16.xpose.msra.mxu0 0
        %1631 = vmatprep.subr.bf16.mxu0 0
        %1632 = vmatpush1.bf16.xpose.msra.mxu0 0
        %1633 = vmatprep.subr.bf16.mxu0 0
        %1634 = vmatpush1.bf16.xpose.msra.mxu0 0
        %1635 = vmatprep.subr.bf16.mxu0 0
        %1636 = vmatpush1.bf16.xpose.msra.mxu0 0
        %1637 = vmatprep.subr.bf16.mxu0 0
        %1638 = vmatpush1.bf16.xpose.msra.mxu0 0
        %1639 = vmatprep.subr.bf16.mxu0 0
        %1640 = vmatpush1.bf16.xpose.msra.mxu0 0
        %1641 = vmatprep.subr.bf16.mxu0 0
        %1642 = vmatpush1.bf16.xpose.msra.mxu0 0
        %1643 = vmatprep.subr.bf16.mxu0 0
        %1644 = vmatpush1.bf16.xpose.msra.mxu0 0
        %1645 = vmatprep.subr.bf16.mxu0 0
        %1646 = vmatpush1.bf16.xpose.msra.mxu0 0
        %1647 = vmatprep.subr.bf16.mxu0 0
        %1648 = vmatpush1.bf16.xpose.msra.mxu0 0
        %1649 = vmatprep.mubr.bf16.mxu0 0
        %1650 = vmatmul.mubr.bf16.gmra.mrb[0].mxu0 %v1606
        %v1651 = vpop.f32.mrb[0].mxu0
        %v1652 = vadd.f32 0.0, %v1651
        %v1653 = vpop.f32.mrb[0].mxu0
        %v1654 = vpop.f32.mrb[0].mxu0
        %v1655 = vadd.f32 0.0, %v1654
        %v1656 = vpop.f32.mrb[0].mxu0
        %1657 = vmatprep.mubr.bf16.mxu0 0
        %1658 = vmatmul.mubr.bf16.gmra.mrb[0].mxu0 %v1609
        %v1659 = vpop.f32.mrb[0].mxu0
        %v1660 = vadd.f32 0.0, %v1659
        %v1661 = vpop.f32.mrb[0].mxu0
        %v1662 = vpop.f32.mrb[0].mxu0
        %v1663 = vpop.f32.mrb[0].mxu0
        %1664 = vdwg.mxu0
        %v1665 = vpack.c.b16 %v1386, %v1385
        %v1666 = vpack.c.b16 %v1387, %v1387
        %1667 = vrot.lane.b32.xlu0 %v1665, 96
        %v1668 = vpop.permute.xlu0 %1667
        %1669 = vrot.lane.b32.xlu0 %v1666, 96
        %v1670 = vpop.permute.xlu0 %1669
        %v1672 = vsel %vm1406, %v1665, 0
        %v1675 = vsel %vm1406, %v1666, 0
        %v1678 = vsel %vm1406, %v1668, 0
        %v1681 = vsel %vm1406, %v1670, 0
        %1683 = vmatprep.subr.bf16.mxu0 0
        %1684 = vmatpush1.bf16.xpose.msra.mxu0 %v1678
        %1685 = vmatprep.subr.bf16.mxu0 0
        %1686 = vmatpush1.bf16.xpose.msra.mxu0 %v1681
        %1687 = vmatprep.subr.bf16.mxu0 0
        %1688 = vmatpush1.bf16.xpose.msra.mxu0 0
        %1689 = vmatprep.subr.bf16.mxu0 0
        %1690 = vmatpush1.bf16.xpose.msra.mxu0 0
        %1691 = vmatprep.subr.bf16.mxu0 0
        %1692 = vmatpush1.bf16.xpose.msra.mxu0 0
        %1693 = vmatprep.subr.bf16.mxu0 0
        %1694 = vmatpush1.bf16.xpose.msra.mxu0 0
        %1695 = vmatprep.subr.bf16.mxu0 0
        %1696 = vmatpush1.bf16.xpose.msra.mxu0 0
        %1697 = vmatprep.subr.bf16.mxu0 0
        %1698 = vmatpush1.bf16.xpose.msra.mxu0 0
        %1699 = vmatprep.subr.bf16.mxu0 0
        %1700 = vmatpush1.bf16.xpose.msra.mxu0 0
        %1701 = vmatprep.subr.bf16.mxu0 0
        %1702 = vmatpush1.bf16.xpose.msra.mxu0 0
        %1703 = vmatprep.subr.bf16.mxu0 0
        %1704 = vmatpush1.bf16.xpose.msra.mxu0 0
        %1705 = vmatprep.subr.bf16.mxu0 0
        %1706 = vmatpush1.bf16.xpose.msra.mxu0 0
        %1707 = vmatprep.subr.bf16.mxu0 0
        %1708 = vmatpush1.bf16.xpose.msra.mxu0 0
        %1709 = vmatprep.subr.bf16.mxu0 0
        %1710 = vmatpush1.bf16.xpose.msra.mxu0 0
        %1711 = vmatprep.subr.bf16.mxu0 0
        %1712 = vmatpush1.bf16.xpose.msra.mxu0 0
        %1713 = vmatprep.subr.bf16.mxu0 0
        %1714 = vmatpush1.bf16.xpose.msra.mxu0 0
        %1715 = vmatprep.mubr.bf16.mxu0 0
        %1716 = vmatmul.mubr.bf16.gmra.mrb[0].mxu0 %v1672
        %v1717 = vpop.f32.mrb[0].mxu0
        %v1718 = vadd.f32 0.0, %v1717
        %v1719 = vpop.f32.mrb[0].mxu0
        %v1720 = vpop.f32.mrb[0].mxu0
        %v1721 = vadd.f32 0.0, %v1720
        %v1722 = vpop.f32.mrb[0].mxu0
        %1723 = vmatprep.mubr.bf16.mxu0 0
        %1724 = vmatmul.mubr.bf16.gmra.mrb[0].mxu0 %v1675
        %v1725 = vpop.f32.mrb[0].mxu0
        %v1726 = vadd.f32 0.0, %v1725
        %v1727 = vpop.f32.mrb[0].mxu0
        %v1728 = vpop.f32.mrb[0].mxu0
        %v1729 = vpop.f32.mrb[0].mxu0
        %1730 = vdwg.mxu0
        %v1731 = vpack.c.b16 %v1389, %v1388
        %v1732 = vpack.c.b16 %v1390, %v1390
        %1733 = vrot.lane.b32.xlu0 %v1731, 96
        %v1734 = vpop.permute.xlu0 %1733
        %1735 = vrot.lane.b32.xlu0 %v1732, 96
        %v1736 = vpop.permute.xlu0 %1735
        %v1738 = vsel %vm1406, %v1731, 0
        %v1741 = vsel %vm1406, %v1732, 0
        %v1744 = vsel %vm1406, %v1734, 0
        %v1747 = vsel %vm1406, %v1736, 0
        %1749 = vmatprep.subr.bf16.mxu0 0
        %1750 = vmatpush1.bf16.xpose.msra.mxu0 %v1744
        %1751 = vmatprep.subr.bf16.mxu0 0
        %1752 = vmatpush1.bf16.xpose.msra.mxu0 %v1747
        %1753 = vmatprep.subr.bf16.mxu0 0
        %1754 = vmatpush1.bf16.xpose.msra.mxu0 0
        %1755 = vmatprep.subr.bf16.mxu0 0
        %1756 = vmatpush1.bf16.xpose.msra.mxu0 0
        %1757 = vmatprep.subr.bf16.mxu0 0
        %1758 = vmatpush1.bf16.xpose.msra.mxu0 0
        %1759 = vmatprep.subr.bf16.mxu0 0
        %1760 = vmatpush1.bf16.xpose.msra.mxu0 0
        %1761 = vmatprep.subr.bf16.mxu0 0
        %1762 = vmatpush1.bf16.xpose.msra.mxu0 0
        %1763 = vmatprep.subr.bf16.mxu0 0
        %1764 = vmatpush1.bf16.xpose.msra.mxu0 0
        %1765 = vmatprep.subr.bf16.mxu0 0
        %1766 = vmatpush1.bf16.xpose.msra.mxu0 0
        %1767 = vmatprep.subr.bf16.mxu0 0
        %1768 = vmatpush1.bf16.xpose.msra.mxu0 0
        %1769 = vmatprep.subr.bf16.mxu0 0
        %1770 = vmatpush1.bf16.xpose.msra.mxu0 0
        %1771 = vmatprep.subr.bf16.mxu0 0
        %1772 = vmatpush1.bf16.xpose.msra.mxu0 0
        %1773 = vmatprep.subr.bf16.mxu0 0
        %1774 = vmatpush1.bf16.xpose.msra.mxu0 0
        %1775 = vmatprep.subr.bf16.mxu0 0
        %1776 = vmatpush1.bf16.xpose.msra.mxu0 0
        %1777 = vmatprep.subr.bf16.mxu0 0
        %1778 = vmatpush1.bf16.xpose.msra.mxu0 0
        %1779 = vmatprep.subr.bf16.mxu0 0
        %1780 = vmatpush1.bf16.xpose.msra.mxu0 0
        %1781 = vmatprep.mubr.bf16.mxu0 0
        %1782 = vmatmul.mubr.bf16.gmra.mrb[0].mxu0 %v1738
        %v1783 = vpop.f32.mrb[0].mxu0
        %v1784 = vadd.f32 0.0, %v1783
        %v1785 = vpop.f32.mrb[0].mxu0
        %v1786 = vpop.f32.mrb[0].mxu0
        %v1787 = vadd.f32 0.0, %v1786
        %v1788 = vpop.f32.mrb[0].mxu0
        %1789 = vmatprep.mubr.bf16.mxu0 0
        %1790 = vmatmul.mubr.bf16.gmra.mrb[0].mxu0 %v1741
        %v1791 = vpop.f32.mrb[0].mxu0
        %v1792 = vadd.f32 0.0, %v1791
        %v1793 = vpop.f32.mrb[0].mxu0
        %v1794 = vpop.f32.mrb[0].mxu0
        %v1795 = vpop.f32.mrb[0].mxu0
        %1796 = vdwg.mxu0
        %v1797 = vpack.c.b16 %v1392, %v1391
        %v1798 = vpack.c.b16 %v1393, %v1393
        %1799 = vrot.lane.b32.xlu0 %v1797, 96
        %v1800 = vpop.permute.xlu0 %1799
        %1801 = vrot.lane.b32.xlu0 %v1798, 96
        %v1802 = vpop.permute.xlu0 %1801
        %v1804 = vsel %vm1406, %v1797, 0
        %v1807 = vsel %vm1406, %v1798, 0
        %v1810 = vsel %vm1406, %v1800, 0
        %v1813 = vsel %vm1406, %v1802, 0
        %1815 = vmatprep.subr.bf16.mxu0 0
        %1816 = vmatpush1.bf16.xpose.msra.mxu0 %v1810
        %1817 = vmatprep.subr.bf16.mxu0 0
        %1818 = vmatpush1.bf16.xpose.msra.mxu0 %v1813
        %1819 = vmatprep.subr.bf16.mxu0 0
        %1820 = vmatpush1.bf16.xpose.msra.mxu0 0
        %1821 = vmatprep.subr.bf16.mxu0 0
        %1822 = vmatpush1.bf16.xpose.msra.mxu0 0
        %1823 = vmatprep.subr.bf16.mxu0 0
        %1824 = vmatpush1.bf16.xpose.msra.mxu0 0
        %1825 = vmatprep.subr.bf16.mxu0 0
        %1826 = vmatpush1.bf16.xpose.msra.mxu0 0
        %1827 = vmatprep.subr.bf16.mxu0 0
        %1828 = vmatpush1.bf16.xpose.msra.mxu0 0
        %1829 = vmatprep.subr.bf16.mxu0 0
        %1830 = vmatpush1.bf16.xpose.msra.mxu0 0
        %1831 = vmatprep.subr.bf16.mxu0 0
        %1832 = vmatpush1.bf16.xpose.msra.mxu0 0
        %1833 = vmatprep.subr.bf16.mxu0 0
        %1834 = vmatpush1.bf16.xpose.msra.mxu0 0
        %1835 = vmatprep.subr.bf16.mxu0 0
        %1836 = vmatpush1.bf16.xpose.msra.mxu0 0
        %1837 = vmatprep.subr.bf16.mxu0 0
        %1838 = vmatpush1.bf16.xpose.msra.mxu0 0
        %1839 = vmatprep.subr.bf16.mxu0 0
        %1840 = vmatpush1.bf16.xpose.msra.mxu0 0
        %1841 = vmatprep.subr.bf16.mxu0 0
        %1842 = vmatpush1.bf16.xpose.msra.mxu0 0
        %1843 = vmatprep.subr.bf16.mxu0 0
        %1844 = vmatpush1.bf16.xpose.msra.mxu0 0
        %1845 = vmatprep.subr.bf16.mxu0 0
        %1846 = vmatpush1.bf16.xpose.msra.mxu0 0
        %1847 = vmatprep.mubr.bf16.mxu0 0
        %1848 = vmatmul.mubr.bf16.gmra.mrb[0].mxu0 %v1804
        %v1849 = vpop.f32.mrb[0].mxu0
        %v1850 = vadd.f32 0.0, %v1849
        %v1851 = vpop.f32.mrb[0].mxu0
        %v1852 = vpop.f32.mrb[0].mxu0
        %v1853 = vadd.f32 0.0, %v1852
        %v1854 = vpop.f32.mrb[0].mxu0
        %1855 = vmatprep.mubr.bf16.mxu0 0
        %1856 = vmatmul.mubr.bf16.gmra.mrb[0].mxu0 %v1807
        %v1857 = vpop.f32.mrb[0].mxu0
        %v1858 = vadd.f32 0.0, %v1857
        %v1859 = vpop.f32.mrb[0].mxu0
        %v1860 = vpop.f32.mrb[0].mxu0
        %v1861 = vpop.f32.mrb[0].mxu0
        %1862 = vdwg.mxu0
        %v1863 = vpack.c.b16 %v1395, %v1394
        %v1864 = vpack.c.b16 %v1396, %v1396
        %1865 = vrot.lane.b32.xlu0 %v1863, 96
        %v1866 = vpop.permute.xlu0 %1865
        %1867 = vrot.lane.b32.xlu0 %v1864, 96
        %v1868 = vpop.permute.xlu0 %1867
        %v1870 = vsel %vm1406, %v1863, 0
        %v1873 = vsel %vm1406, %v1864, 0
        %v1876 = vsel %vm1406, %v1866, 0
        %v1879 = vsel %vm1406, %v1868, 0
        %1881 = vmatprep.subr.bf16.mxu0 0
        %1882 = vmatpush1.bf16.xpose.msra.mxu0 %v1876
        %1883 = vmatprep.subr.bf16.mxu0 0
        %1884 = vmatpush1.bf16.xpose.msra.mxu0 %v1879
        %1885 = vmatprep.subr.bf16.mxu0 0
        %1886 = vmatpush1.bf16.xpose.msra.mxu0 0
        %1887 = vmatprep.subr.bf16.mxu0 0
        %1888 = vmatpush1.bf16.xpose.msra.mxu0 0
        %1889 = vmatprep.subr.bf16.mxu0 0
        %1890 = vmatpush1.bf16.xpose.msra.mxu0 0
        %1891 = vmatprep.subr.bf16.mxu0 0
        %1892 = vmatpush1.bf16.xpose.msra.mxu0 0
        %1893 = vmatprep.subr.bf16.mxu0 0
        %1894 = vmatpush1.bf16.xpose.msra.mxu0 0
        %1895 = vmatprep.subr.bf16.mxu0 0
        %1896 = vmatpush1.bf16.xpose.msra.mxu0 0
        %1897 = vmatprep.subr.bf16.mxu0 0
        %1898 = vmatpush1.bf16.xpose.msra.mxu0 0
        %1899 = vmatprep.subr.bf16.mxu0 0
        %1900 = vmatpush1.bf16.xpose.msra.mxu0 0
        %1901 = vmatprep.subr.bf16.mxu0 0
        %1902 = vmatpush1.bf16.xpose.msra.mxu0 0
        %1903 = vmatprep.subr.bf16.mxu0 0
        %1904 = vmatpush1.bf16.xpose.msra.mxu0 0
        %1905 = vmatprep.subr.bf16.mxu0 0
        %1906 = vmatpush1.bf16.xpose.msra.mxu0 0
        %1907 = vmatprep.subr.bf16.mxu0 0
        %1908 = vmatpush1.bf16.xpose.msra.mxu0 0
        %1909 = vmatprep.subr.bf16.mxu0 0
        %1910 = vmatpush1.bf16.xpose.msra.mxu0 0
        %1911 = vmatprep.subr.bf16.mxu0 0
        %1912 = vmatpush1.bf16.xpose.msra.mxu0 0
        %1913 = vmatprep.mubr.bf16.mxu0 0
        %1914 = vmatmul.mubr.bf16.gmra.mrb[0].mxu0 %v1870
        %v1915 = vpop.f32.mrb[0].mxu0
        %v1916 = vadd.f32 0.0, %v1915
        %v1917 = vpop.f32.mrb[0].mxu0
        %v1918 = vpop.f32.mrb[0].mxu0
        %v1919 = vadd.f32 0.0, %v1918
        %v1920 = vpop.f32.mrb[0].mxu0
        %1921 = vmatprep.mubr.bf16.mxu0 0
        %1922 = vmatmul.mubr.bf16.gmra.mrb[0].mxu0 %v1873
        %v1923 = vpop.f32.mrb[0].mxu0
        %v1924 = vadd.f32 0.0, %v1923
        %v1925 = vpop.f32.mrb[0].mxu0
        %v1926 = vpop.f32.mrb[0].mxu0
        %v1927 = vpop.f32.mrb[0].mxu0
        %1928 = vdwg.mxu0
        %v1929 = vsel %vm1399, 1, 0
        %vm1930 = vcmp.eq.s32.totalorder %v1929, 1
        %v1931 = vsel %vm1930, %v1454, -1e+30
        %v1932 = vsel %vm1930, %v1457, -1e+30
        %v1933 = vsel %vm1930, %v1462, -1e+30
        %v1934 = vsel %vm1930, %v1520, -1e+30
        %v1935 = vsel %vm1930, %v1523, -1e+30
        %v1936 = vsel %vm1930, %v1528, -1e+30
        %v1937 = vsel %vm1930, %v1586, -1e+30
        %v1938 = vsel %vm1930, %v1589, -1e+30
        %v1939 = vsel %vm1930, %v1594, -1e+30
        %v1940 = vsel %vm1930, %v1652, -1e+30
        %v1941 = vsel %vm1930, %v1655, -1e+30
        %v1942 = vsel %vm1930, %v1660, -1e+30
        %v1943 = vsel %vm1930, %v1718, -1e+30
        %v1944 = vsel %vm1930, %v1721, -1e+30
        %v1945 = vsel %vm1930, %v1726, -1e+30
        %v1946 = vsel %vm1930, %v1784, -1e+30
        %v1947 = vsel %vm1930, %v1787, -1e+30
        %v1948 = vsel %vm1930, %v1792, -1e+30
        %v1949 = vsel %vm1930, %v1850, -1e+30
        %v1950 = vsel %vm1930, %v1853, -1e+30
        %v1951 = vsel %vm1930, %v1858, -1e+30
        %v1952 = vsel %vm1930, %v1916, -1e+30
        %v1953 = vsel %vm1930, %v1919, -1e+30
        %v1954 = vsel %vm1930, %v1924, -1e+30
        %vm1955 = vcmask 195584
        %v1956 = vsel %vm1955, %v1931, -inf
        %1957 = vmax.xlane.f32.xlu0 %v1956
        %v1958 = vpop.xlane.xlu0 %1957
        %v1959 = vsel %vm1955, %v1932, -inf
        %1960 = vmax.xlane.f32.xlu0 %v1959
        %v1961 = vpop.xlane.xlu0 %1960
        %v1962 = vsel %vm1955, %v1933, -inf
        %1963 = vmax.xlane.f32.xlu0 %v1962
        %v1964 = vpop.xlane.xlu0 %1963
        %v1965 = vsel %vm1955, %v1934, -inf
        %1966 = vmax.xlane.f32.xlu0 %v1965
        %v1967 = vpop.xlane.xlu0 %1966
        %v1968 = vsel %vm1955, %v1935, -inf
        %1969 = vmax.xlane.f32.xlu0 %v1968
        %v1970 = vpop.xlane.xlu0 %1969
        %v1971 = vsel %vm1955, %v1936, -inf
        %1972 = vmax.xlane.f32.xlu0 %v1971
        %v1973 = vpop.xlane.xlu0 %1972
        %v1974 = vsel %vm1955, %v1937, -inf
        %1975 = vmax.xlane.f32.xlu0 %v1974
        %v1976 = vpop.xlane.xlu0 %1975
        %v1977 = vsel %vm1955, %v1938, -inf
        %1978 = vmax.xlane.f32.xlu0 %v1977
        %v1979 = vpop.xlane.xlu0 %1978
        %v1980 = vsel %vm1955, %v1939, -inf
        %1981 = vmax.xlane.f32.xlu0 %v1980
        %v1982 = vpop.xlane.xlu0 %1981
        %v1983 = vsel %vm1955, %v1940, -inf
        %1984 = vmax.xlane.f32.xlu0 %v1983
        %v1985 = vpop.xlane.xlu0 %1984
        %v1986 = vsel %vm1955, %v1941, -inf
        %1987 = vmax.xlane.f32.xlu0 %v1986
        %v1988 = vpop.xlane.xlu0 %1987
        %v1989 = vsel %vm1955, %v1942, -inf
        %1990 = vmax.xlane.f32.xlu0 %v1989
        %v1991 = vpop.xlane.xlu0 %1990
        %v1992 = vsel %vm1955, %v1943, -inf
        %1993 = vmax.xlane.f32.xlu0 %v1992
        %v1994 = vpop.xlane.xlu0 %1993
        %v1995 = vsel %vm1955, %v1944, -inf
        %1996 = vmax.xlane.f32.xlu0 %v1995
        %v1997 = vpop.xlane.xlu0 %1996
        %v1998 = vsel %vm1955, %v1945, -inf
        %1999 = vmax.xlane.f32.xlu0 %v1998
        %v2000 = vpop.xlane.xlu0 %1999
        %v2001 = vsel %vm1955, %v1946, -inf
        %2002 = vmax.xlane.f32.xlu0 %v2001
        %v2003 = vpop.xlane.xlu0 %2002
        %v2004 = vsel %vm1955, %v1947, -inf
        %2005 = vmax.xlane.f32.xlu0 %v2004
        %v2006 = vpop.xlane.xlu0 %2005
        %v2007 = vsel %vm1955, %v1948, -inf
        %2008 = vmax.xlane.f32.xlu0 %v2007
        %v2009 = vpop.xlane.xlu0 %2008
        %v2010 = vsel %vm1955, %v1949, -inf
        %2011 = vmax.xlane.f32.xlu0 %v2010
        %v2012 = vpop.xlane.xlu0 %2011
        %v2013 = vsel %vm1955, %v1950, -inf
        %2014 = vmax.xlane.f32.xlu0 %v2013
        %v2015 = vpop.xlane.xlu0 %2014
        %v2016 = vsel %vm1955, %v1951, -inf
        %2017 = vmax.xlane.f32.xlu0 %v2016
        %v2018 = vpop.xlane.xlu0 %2017
        %v2019 = vsel %vm1955, %v1952, -inf
        %2020 = vmax.xlane.f32.xlu0 %v2019
        %v2021 = vpop.xlane.xlu0 %2020
        %v2022 = vsel %vm1955, %v1953, -inf
        %2023 = vmax.xlane.f32.xlu0 %v2022
        %v2024 = vpop.xlane.xlu0 %2023
        %v2025 = vsel %vm1955, %v1954, -inf
        %2026 = vmax.xlane.f32.xlu0 %v2025
        %v2027 = vpop.xlane.xlu0 %2026
        %v2028 = vsub.f32 %v1931, %v1958
        %v2029 = vsub.f32 %v1932, %v1961
        %v2030 = vsub.f32 %v1933, %v1964
        %v2031 = vsub.f32 %v1934, %v1967
        %v2032 = vsub.f32 %v1935, %v1970
        %v2033 = vsub.f32 %v1936, %v1973
        %v2034 = vsub.f32 %v1937, %v1976
        %v2035 = vsub.f32 %v1938, %v1979
        %v2036 = vsub.f32 %v1939, %v1982
        %v2037 = vsub.f32 %v1940, %v1985
        %v2038 = vsub.f32 %v1941, %v1988
        %v2039 = vsub.f32 %v1942, %v1991
        %v2040 = vsub.f32 %v1943, %v1994
        %v2041 = vsub.f32 %v1944, %v1997
        %v2042 = vsub.f32 %v1945, %v2000
        %v2043 = vsub.f32 %v1946, %v2003
        %v2044 = vsub.f32 %v1947, %v2006
        %v2045 = vsub.f32 %v1948, %v2009
        %v2046 = vsub.f32 %v1949, %v2012
        %v2047 = vsub.f32 %v1950, %v2015
        %v2048 = vsub.f32 %v1951, %v2018
        %v2049 = vsub.f32 %v1952, %v2021
        %v2050 = vsub.f32 %v1953, %v2024
        %v2051 = vsub.f32 %v1954, %v2027
        %v2052 = vmul.f32 %v2028, 1.442695
        %v2053 = vpow.pop %v2052
        %v2054 = vmul.f32 %v2029, 1.442695
        %v2055 = vpow.pop %v2054
        %v2056 = vmul.f32 %v2030, 1.442695
        %v2057 = vpow.pop %v2056
        %v2058 = vmul.f32 %v2031, 1.442695
        %v2059 = vpow.pop %v2058
        %v2060 = vmul.f32 %v2032, 1.442695
        %v2061 = vpow.pop %v2060
        %v2062 = vmul.f32 %v2033, 1.442695
        %v2063 = vpow.pop %v2062
        %v2064 = vmul.f32 %v2034, 1.442695
        %v2065 = vpow.pop %v2064
        %v2066 = vmul.f32 %v2035, 1.442695
        %v2067 = vpow.pop %v2066
        %v2068 = vmul.f32 %v2036, 1.442695
        %v2069 = vpow.pop %v2068
        %v2070 = vmul.f32 %v2037, 1.442695
        %v2071 = vpow.pop %v2070
        %v2072 = vmul.f32 %v2038, 1.442695
        %v2073 = vpow.pop %v2072
        %v2074 = vmul.f32 %v2039, 1.442695
        %v2075 = vpow.pop %v2074
        %v2076 = vmul.f32 %v2040, 1.442695
        %v2077 = vpow.pop %v2076
        %v2078 = vmul.f32 %v2041, 1.442695
        %v2079 = vpow.pop %v2078
        %v2080 = vmul.f32 %v2042, 1.442695
        %v2081 = vpow.pop %v2080
        %v2082 = vmul.f32 %v2043, 1.442695
        %v2083 = vpow.pop %v2082
        %v2084 = vmul.f32 %v2044, 1.442695
        %v2085 = vpow.pop %v2084
        %v2086 = vmul.f32 %v2045, 1.442695
        %v2087 = vpow.pop %v2086
        %v2088 = vmul.f32 %v2046, 1.442695
        %v2089 = vpow.pop %v2088
        %v2090 = vmul.f32 %v2047, 1.442695
        %v2091 = vpow.pop %v2090
        %v2092 = vmul.f32 %v2048, 1.442695
        %v2093 = vpow.pop %v2092
        %v2094 = vmul.f32 %v2049, 1.442695
        %v2095 = vpow.pop %v2094
        %v2096 = vmul.f32 %v2050, 1.442695
        %v2097 = vpow.pop %v2096
        %v2098 = vmul.f32 %v2051, 1.442695
        %v2099 = vpow.pop %v2098
        %v2100 = vsel %vm1955, %v2053, 0.0
        %2101 = vadd.xlane.f32.xlu0 %v2100
        %v2102 = vpop.xlane.xlu0 %2101
        %v2103 = vsel %vm1955, %v2055, 0.0
        %2104 = vadd.xlane.f32.xlu0 %v2103
        %v2105 = vpop.xlane.xlu0 %2104
        %v2106 = vsel %vm1955, %v2057, 0.0
        %2107 = vadd.xlane.f32.xlu0 %v2106
        %v2108 = vpop.xlane.xlu0 %2107
        %v2109 = vsel %vm1955, %v2059, 0.0
        %2110 = vadd.xlane.f32.xlu0 %v2109
        %v2111 = vpop.xlane.xlu0 %2110
        %v2112 = vsel %vm1955, %v2061, 0.0
        %2113 = vadd.xlane.f32.xlu0 %v2112
        %v2114 = vpop.xlane.xlu0 %2113
        %v2115 = vsel %vm1955, %v2063, 0.0
        %2116 = vadd.xlane.f32.xlu0 %v2115
        %v2117 = vpop.xlane.xlu0 %2116
        %v2118 = vsel %vm1955, %v2065, 0.0
        %2119 = vadd.xlane.f32.xlu0 %v2118
        %v2120 = vpop.xlane.xlu0 %2119
        %v2121 = vsel %vm1955, %v2067, 0.0
        %2122 = vadd.xlane.f32.xlu0 %v2121
        %v2123 = vpop.xlane.xlu0 %2122
        %v2124 = vsel %vm1955, %v2069, 0.0
        %2125 = vadd.xlane.f32.xlu0 %v2124
        %v2126 = vpop.xlane.xlu0 %2125
        %v2127 = vsel %vm1955, %v2071, 0.0
        %2128 = vadd.xlane.f32.xlu0 %v2127
        %v2129 = vpop.xlane.xlu0 %2128
        %v2130 = vsel %vm1955, %v2073, 0.0
        %2131 = vadd.xlane.f32.xlu0 %v2130
        %v2132 = vpop.xlane.xlu0 %2131
        %v2133 = vsel %vm1955, %v2075, 0.0
        %2134 = vadd.xlane.f32.xlu0 %v2133
        %v2135 = vpop.xlane.xlu0 %2134
        %v2136 = vsel %vm1955, %v2077, 0.0
        %2137 = vadd.xlane.f32.xlu0 %v2136
        %v2138 = vpop.xlane.xlu0 %2137
        %v2139 = vsel %vm1955, %v2079, 0.0
        %2140 = vadd.xlane.f32.xlu0 %v2139
        %v2141 = vpop.xlane.xlu0 %2140
        %v2142 = vsel %vm1955, %v2081, 0.0
        %2143 = vadd.xlane.f32.xlu0 %v2142
        %v2144 = vpop.xlane.xlu0 %2143
        %v2145 = vsel %vm1955, %v2083, 0.0
        %2146 = vadd.xlane.f32.xlu0 %v2145
        %v2147 = vpop.xlane.xlu0 %2146
        %v2148 = vsel %vm1955, %v2085, 0.0
        %2149 = vadd.xlane.f32.xlu0 %v2148
        %v2150 = vpop.xlane.xlu0 %2149
        %v2151 = vsel %vm1955, %v2087, 0.0
        %2152 = vadd.xlane.f32.xlu0 %v2151
        %v2153 = vpop.xlane.xlu0 %2152
        %v2154 = vsel %vm1955, %v2089, 0.0
        %2155 = vadd.xlane.f32.xlu0 %v2154
        %v2156 = vpop.xlane.xlu0 %2155
        %v2157 = vsel %vm1955, %v2091, 0.0
        %2158 = vadd.xlane.f32.xlu0 %v2157
        %v2159 = vpop.xlane.xlu0 %2158
        %v2160 = vsel %vm1955, %v2093, 0.0
        %2161 = vadd.xlane.f32.xlu0 %v2160
        %v2162 = vpop.xlane.xlu0 %2161
        %v2163 = vsel %vm1955, %v2095, 0.0
        %2164 = vadd.xlane.f32.xlu0 %v2163
        %v2165 = vpop.xlane.xlu0 %2164
        %v2166 = vsel %vm1955, %v2097, 0.0
        %2167 = vadd.xlane.f32.xlu0 %v2166
        %v2168 = vpop.xlane.xlu0 %2167
        %v2169 = vsel %vm1955, %v2099, 0.0
        %2170 = vadd.xlane.f32.xlu0 %v2169
        %v2171 = vpop.xlane.xlu0 %2170
        %v2172 = vrcp.pop %v2102
        %v2173 = vrcp.pop %v2105
        %v2174 = vrcp.pop %v2108
        %v2175 = vrcp.pop %v2111
        %v2176 = vrcp.pop %v2114
        %v2177 = vrcp.pop %v2117
        %v2178 = vrcp.pop %v2120
        %v2179 = vrcp.pop %v2123
        %v2180 = vrcp.pop %v2126
        %v2181 = vrcp.pop %v2129
        %v2182 = vrcp.pop %v2132
        %v2183 = vrcp.pop %v2135
        %v2184 = vrcp.pop %v2138
        %v2185 = vrcp.pop %v2141
        %v2186 = vrcp.pop %v2144
        %v2187 = vrcp.pop %v2147
        %v2188 = vrcp.pop %v2150
        %v2189 = vrcp.pop %v2153
        %v2190 = vrcp.pop %v2156
        %v2191 = vrcp.pop %v2159
        %v2192 = vrcp.pop %v2162
        %v2193 = vrcp.pop %v2165
        %v2194 = vrcp.pop %v2168
        %v2195 = vrcp.pop %v2171
        %v2196 = vmul.f32 %v2053, %v2172
        %v2197 = vmul.f32 %v2055, %v2173
        %v2198 = vmul.f32 %v2057, %v2174
        %v2199 = vmul.f32 %v2059, %v2175
        %v2200 = vmul.f32 %v2061, %v2176
        %v2201 = vmul.f32 %v2063, %v2177
        %v2202 = vmul.f32 %v2065, %v2178
        %v2203 = vmul.f32 %v2067, %v2179
        %v2204 = vmul.f32 %v2069, %v2180
        %v2205 = vmul.f32 %v2071, %v2181
        %v2206 = vmul.f32 %v2073, %v2182
        %v2207 = vmul.f32 %v2075, %v2183
        %v2208 = vmul.f32 %v2077, %v2184
        %v2209 = vmul.f32 %v2079, %v2185
        %v2210 = vmul.f32 %v2081, %v2186
        %v2211 = vmul.f32 %v2083, %v2187
        %v2212 = vmul.f32 %v2085, %v2188
        %v2213 = vmul.f32 %v2087, %v2189
        %v2214 = vmul.f32 %v2089, %v2190
        %v2215 = vmul.f32 %v2091, %v2191
        %v2216 = vmul.f32 %v2093, %v2192
        %v2217 = vmul.f32 %v2095, %v2193
        %v2218 = vmul.f32 %v2097, %v2194
        %v2219 = vmul.f32 %v2099, %v2195
        %v2220 = vpack.c.bf16 %v2197, %v2196
        %v2221 = vpack.c.bf16 %v2198, %v2198
        %v2222 = vpack.c.bf16 %v2200, %v2199
        %v2223 = vpack.c.bf16 %v2201, %v2201
        %v2224 = vpack.c.bf16 %v2203, %v2202
        %v2225 = vpack.c.bf16 %v2204, %v2204
        %v2226 = vpack.c.bf16 %v2206, %v2205
        %v2227 = vpack.c.bf16 %v2207, %v2207
        %v2228 = vpack.c.bf16 %v2209, %v2208
        %v2229 = vpack.c.bf16 %v2210, %v2210
        %v2230 = vpack.c.bf16 %v2212, %v2211
        %v2231 = vpack.c.bf16 %v2213, %v2213
        %v2232 = vpack.c.bf16 %v2215, %v2214
        %v2233 = vpack.c.bf16 %v2216, %v2216
        %v2234 = vpack.c.bf16 %v2218, %v2217
        %v2235 = vpack.c.bf16 %v2219, %v2219
        %2236 = vrot.lane.b32.xlu0 %v1400, 64
        %v2237 = vpop.permute.xlu0 %2236
        %2238 = vrot.lane.b32.xlu0 %v1401, 64
        %v2239 = vpop.permute.xlu0 %2238
        %v2242 = vsel %vm1955, %v2220, 0
        %v2245 = vsel %vm1955, %v2221, 0
        %vm2247 = vcmask 1043456
        %v2249 = vsel %vm2247, %v2239, 0
        %2251 = vmatprep.subr.bf16.mxu0 0
        %2252 = vmatpush1.bf16.msra.mxu0 %v2237
        %2253 = vmatprep.subr.bf16.mxu0 0
        %2254 = vmatpush1.bf16.msra.mxu0 %v2249
        %2255 = vmatprep.subr.bf16.mxu0 0
        %2256 = vmatpush1.bf16.msra.mxu0 0
        %2257 = vmatprep.subr.bf16.mxu0 0
        %2258 = vmatpush1.bf16.msra.mxu0 0
        %2259 = vmatprep.subr.bf16.mxu0 0
        %2260 = vmatpush1.bf16.msra.mxu0 0
        %2261 = vmatprep.subr.bf16.mxu0 0
        %2262 = vmatpush1.bf16.msra.mxu0 0
        %2263 = vmatprep.subr.bf16.mxu0 0
        %2264 = vmatpush1.bf16.msra.mxu0 0
        %2265 = vmatprep.subr.bf16.mxu0 0
        %2266 = vmatpush1.bf16.msra.mxu0 0
        %2267 = vmatprep.subr.bf16.mxu0 0
        %2268 = vmatpush1.bf16.msra.mxu0 0
        %2269 = vmatprep.subr.bf16.mxu0 0
        %2270 = vmatpush1.bf16.msra.mxu0 0
        %2271 = vmatprep.subr.bf16.mxu0 0
        %2272 = vmatpush1.bf16.msra.mxu0 0
        %2273 = vmatprep.subr.bf16.mxu0 0
        %2274 = vmatpush1.bf16.msra.mxu0 0
        %2275 = vmatprep.subr.bf16.mxu0 0
        %2276 = vmatpush1.bf16.msra.mxu0 0
        %2277 = vmatprep.subr.bf16.mxu0 0
        %2278 = vmatpush1.bf16.msra.mxu0 0
        %2279 = vmatprep.subr.bf16.mxu0 0
        %2280 = vmatpush1.bf16.msra.mxu0 0
        %2281 = vmatprep.subr.bf16.mxu0 0
        %2282 = vmatpush1.bf16.msra.mxu0 0
        %2283 = vmatprep.mubr.bf16.mxu0 0
        %2284 = vmatmul.mubr.bf16.gmra.mrb[0].mxu0 %v2242
        %v2285 = vpop.f32.mrb[0].mxu0
        %v2286 = vadd.f32 0.0, %v2285
        %v2287 = vpop.f32.mrb[0].mxu0
        %v2288 = vpop.f32.mrb[0].mxu0
        %v2289 = vadd.f32 0.0, %v2288
        %v2290 = vpop.f32.mrb[0].mxu0
        %2291 = vmatprep.mubr.bf16.mxu0 0
        %2292 = vmatmul.mubr.bf16.gmra.mrb[0].mxu0 %v2245
        %v2293 = vpop.f32.mrb[0].mxu0
        %v2294 = vadd.f32 0.0, %v2293
        %v2295 = vpop.f32.mrb[0].mxu0
        %v2296 = vpop.f32.mrb[0].mxu0
        %v2297 = vpop.f32.mrb[0].mxu0
        %2298 = vdwg.mxu0
        %2299 = vrot.lane.b32.xlu0 %v1467, 64
        %v2300 = vpop.permute.xlu0 %2299
        %2301 = vrot.lane.b32.xlu0 %v1468, 64
        %v2302 = vpop.permute.xlu0 %2301
        %v2305 = vsel %vm1955, %v2222, 0
        %v2308 = vsel %vm1955, %v2223, 0
        %v2311 = vsel %vm2247, %v2302, 0
        %2313 = vmatprep.subr.bf16.mxu0 0
        %2314 = vmatpush1.bf16.msra.mxu0 %v2300
        %2315 = vmatprep.subr.bf16.mxu0 0
        %2316 = vmatpush1.bf16.msra.mxu0 %v2311
        %2317 = vmatprep.subr.bf16.mxu0 0
        %2318 = vmatpush1.bf16.msra.mxu0 0
        %2319 = vmatprep.subr.bf16.mxu0 0
        %2320 = vmatpush1.bf16.msra.mxu0 0
        %2321 = vmatprep.subr.bf16.mxu0 0
        %2322 = vmatpush1.bf16.msra.mxu0 0
        %2323 = vmatprep.subr.bf16.mxu0 0
        %2324 = vmatpush1.bf16.msra.mxu0 0
        %2325 = vmatprep.subr.bf16.mxu0 0
        %2326 = vmatpush1.bf16.msra.mxu0 0
        %2327 = vmatprep.subr.bf16.mxu0 0
        %2328 = vmatpush1.bf16.msra.mxu0 0
        %2329 = vmatprep.subr.bf16.mxu0 0
        %2330 = vmatpush1.bf16.msra.mxu0 0
        %2331 = vmatprep.subr.bf16.mxu0 0
        %2332 = vmatpush1.bf16.msra.mxu0 0
        %2333 = vmatprep.subr.bf16.mxu0 0
        %2334 = vmatpush1.bf16.msra.mxu0 0
        %2335 = vmatprep.subr.bf16.mxu0 0
        %2336 = vmatpush1.bf16.msra.mxu0 0
        %2337 = vmatprep.subr.bf16.mxu0 0
        %2338 = vmatpush1.bf16.msra.mxu0 0
        %2339 = vmatprep.subr.bf16.mxu0 0
        %2340 = vmatpush1.bf16.msra.mxu0 0
        %2341 = vmatprep.subr.bf16.mxu0 0
        %2342 = vmatpush1.bf16.msra.mxu0 0
        %2343 = vmatprep.subr.bf16.mxu0 0
        %2344 = vmatpush1.bf16.msra.mxu0 0
        %2345 = vmatprep.mubr.bf16.mxu0 0
        %2346 = vmatmul.mubr.bf16.gmra.mrb[0].mxu0 %v2305
        %v2347 = vpop.f32.mrb[0].mxu0
        %v2348 = vadd.f32 0.0, %v2347
        %v2349 = vpop.f32.mrb[0].mxu0
        %v2350 = vpop.f32.mrb[0].mxu0
        %v2351 = vadd.f32 0.0, %v2350
        %v2352 = vpop.f32.mrb[0].mxu0
        %2353 = vmatprep.mubr.bf16.mxu0 0
        %2354 = vmatmul.mubr.bf16.gmra.mrb[0].mxu0 %v2308
        %v2355 = vpop.f32.mrb[0].mxu0
        %v2356 = vadd.f32 0.0, %v2355
        %v2357 = vpop.f32.mrb[0].mxu0
        %v2358 = vpop.f32.mrb[0].mxu0
        %v2359 = vpop.f32.mrb[0].mxu0
        %2360 = vdwg.mxu0
        %2361 = vrot.lane.b32.xlu0 %v1533, 64
        %v2362 = vpop.permute.xlu0 %2361
        %2363 = vrot.lane.b32.xlu0 %v1534, 64
        %v2364 = vpop.permute.xlu0 %2363
        %v2367 = vsel %vm1955, %v2224, 0
        %v2370 = vsel %vm1955, %v2225, 0
        %v2373 = vsel %vm2247, %v2364, 0
        %2375 = vmatprep.subr.bf16.mxu0 0
        %2376 = vmatpush1.bf16.msra.mxu0 %v2362
        %2377 = vmatprep.subr.bf16.mxu0 0
        %2378 = vmatpush1.bf16.msra.mxu0 %v2373
        %2379 = vmatprep.subr.bf16.mxu0 0
        %2380 = vmatpush1.bf16.msra.mxu0 0
        %2381 = vmatprep.subr.bf16.mxu0 0
        %2382 = vmatpush1.bf16.msra.mxu0 0
        %2383 = vmatprep.subr.bf16.mxu0 0
        %2384 = vmatpush1.bf16.msra.mxu0 0
        %2385 = vmatprep.subr.bf16.mxu0 0
        %2386 = vmatpush1.bf16.msra.mxu0 0
        %2387 = vmatprep.subr.bf16.mxu0 0
        %2388 = vmatpush1.bf16.msra.mxu0 0
        %2389 = vmatprep.subr.bf16.mxu0 0
        %2390 = vmatpush1.bf16.msra.mxu0 0
        %2391 = vmatprep.subr.bf16.mxu0 0
        %2392 = vmatpush1.bf16.msra.mxu0 0
        %2393 = vmatprep.subr.bf16.mxu0 0
        %2394 = vmatpush1.bf16.msra.mxu0 0
        %2395 = vmatprep.subr.bf16.mxu0 0
        %2396 = vmatpush1.bf16.msra.mxu0 0
        %2397 = vmatprep.subr.bf16.mxu0 0
        %2398 = vmatpush1.bf16.msra.mxu0 0
        %2399 = vmatprep.subr.bf16.mxu0 0
        %2400 = vmatpush1.bf16.msra.mxu0 0
        %2401 = vmatprep.subr.bf16.mxu0 0
        %2402 = vmatpush1.bf16.msra.mxu0 0
        %2403 = vmatprep.subr.bf16.mxu0 0
        %2404 = vmatpush1.bf16.msra.mxu0 0
        %2405 = vmatprep.subr.bf16.mxu0 0
        %2406 = vmatpush1.bf16.msra.mxu0 0
        %2407 = vmatprep.mubr.bf16.mxu0 0
        %2408 = vmatmul.mubr.bf16.gmra.mrb[0].mxu0 %v2367
        %v2409 = vpop.f32.mrb[0].mxu0
        %v2410 = vadd.f32 0.0, %v2409
        %v2411 = vpop.f32.mrb[0].mxu0
        %v2412 = vpop.f32.mrb[0].mxu0
        %v2413 = vadd.f32 0.0, %v2412
        %v2414 = vpop.f32.mrb[0].mxu0
        %2415 = vmatprep.mubr.bf16.mxu0 0
        %2416 = vmatmul.mubr.bf16.gmra.mrb[0].mxu0 %v2370
        %v2417 = vpop.f32.mrb[0].mxu0
        %v2418 = vadd.f32 0.0, %v2417
        %v2419 = vpop.f32.mrb[0].mxu0
        %v2420 = vpop.f32.mrb[0].mxu0
        %v2421 = vpop.f32.mrb[0].mxu0
        %2422 = vdwg.mxu0
        %2423 = vrot.lane.b32.xlu0 %v1599, 64
        %v2424 = vpop.permute.xlu0 %2423
        %2425 = vrot.lane.b32.xlu0 %v1600, 64
        %v2426 = vpop.permute.xlu0 %2425
        %v2429 = vsel %vm1955, %v2226, 0
        %v2432 = vsel %vm1955, %v2227, 0
        %v2435 = vsel %vm2247, %v2426, 0
        %2437 = vmatprep.subr.bf16.mxu0 0
        %2438 = vmatpush1.bf16.msra.mxu0 %v2424
        %2439 = vmatprep.subr.bf16.mxu0 0
        %2440 = vmatpush1.bf16.msra.mxu0 %v2435
        %2441 = vmatprep.subr.bf16.mxu0 0
        %2442 = vmatpush1.bf16.msra.mxu0 0
        %2443 = vmatprep.subr.bf16.mxu0 0
        %2444 = vmatpush1.bf16.msra.mxu0 0
        %2445 = vmatprep.subr.bf16.mxu0 0
        %2446 = vmatpush1.bf16.msra.mxu0 0
        %2447 = vmatprep.subr.bf16.mxu0 0
        %2448 = vmatpush1.bf16.msra.mxu0 0
        %2449 = vmatprep.subr.bf16.mxu0 0
        %2450 = vmatpush1.bf16.msra.mxu0 0
        %2451 = vmatprep.subr.bf16.mxu0 0
        %2452 = vmatpush1.bf16.msra.mxu0 0
        %2453 = vmatprep.subr.bf16.mxu0 0
        %2454 = vmatpush1.bf16.msra.mxu0 0
        %2455 = vmatprep.subr.bf16.mxu0 0
        %2456 = vmatpush1.bf16.msra.mxu0 0
        %2457 = vmatprep.subr.bf16.mxu0 0
        %2458 = vmatpush1.bf16.msra.mxu0 0
        %2459 = vmatprep.subr.bf16.mxu0 0
        %2460 = vmatpush1.bf16.msra.mxu0 0
        %2461 = vmatprep.subr.bf16.mxu0 0
        %2462 = vmatpush1.bf16.msra.mxu0 0
        %2463 = vmatprep.subr.bf16.mxu0 0
        %2464 = vmatpush1.bf16.msra.mxu0 0
        %2465 = vmatprep.subr.bf16.mxu0 0
        %2466 = vmatpush1.bf16.msra.mxu0 0
        %2467 = vmatprep.subr.bf16.mxu0 0
        %2468 = vmatpush1.bf16.msra.mxu0 0
        %2469 = vmatprep.mubr.bf16.mxu0 0
        %2470 = vmatmul.mubr.bf16.gmra.mrb[0].mxu0 %v2429
        %v2471 = vpop.f32.mrb[0].mxu0
        %v2472 = vadd.f32 0.0, %v2471
        %v2473 = vpop.f32.mrb[0].mxu0
        %v2474 = vpop.f32.mrb[0].mxu0
        %v2475 = vadd.f32 0.0, %v2474
        %v2476 = vpop.f32.mrb[0].mxu0
        %2477 = vmatprep.mubr.bf16.mxu0 0
        %2478 = vmatmul.mubr.bf16.gmra.mrb[0].mxu0 %v2432
        %v2479 = vpop.f32.mrb[0].mxu0
        %v2480 = vadd.f32 0.0, %v2479
        %v2481 = vpop.f32.mrb[0].mxu0
        %v2482 = vpop.f32.mrb[0].mxu0
        %v2483 = vpop.f32.mrb[0].mxu0
        %2484 = vdwg.mxu0
        %2485 = vrot.lane.b32.xlu0 %v1665, 64
        %v2486 = vpop.permute.xlu0 %2485
        %2487 = vrot.lane.b32.xlu0 %v1666, 64
        %v2488 = vpop.permute.xlu0 %2487
        %v2491 = vsel %vm1955, %v2228, 0
        %v2494 = vsel %vm1955, %v2229, 0
        %v2497 = vsel %vm2247, %v2488, 0
        %2499 = vmatprep.subr.bf16.mxu0 0
        %2500 = vmatpush1.bf16.msra.mxu0 %v2486
        %2501 = vmatprep.subr.bf16.mxu0 0
        %2502 = vmatpush1.bf16.msra.mxu0 %v2497
        %2503 = vmatprep.subr.bf16.mxu0 0
        %2504 = vmatpush1.bf16.msra.mxu0 0
        %2505 = vmatprep.subr.bf16.mxu0 0
        %2506 = vmatpush1.bf16.msra.mxu0 0
        %2507 = vmatprep.subr.bf16.mxu0 0
        %2508 = vmatpush1.bf16.msra.mxu0 0
        %2509 = vmatprep.subr.bf16.mxu0 0
        %2510 = vmatpush1.bf16.msra.mxu0 0
        %2511 = vmatprep.subr.bf16.mxu0 0
        %2512 = vmatpush1.bf16.msra.mxu0 0
        %2513 = vmatprep.subr.bf16.mxu0 0
        %2514 = vmatpush1.bf16.msra.mxu0 0
        %2515 = vmatprep.subr.bf16.mxu0 0
        %2516 = vmatpush1.bf16.msra.mxu0 0
        %2517 = vmatprep.subr.bf16.mxu0 0
        %2518 = vmatpush1.bf16.msra.mxu0 0
        %2519 = vmatprep.subr.bf16.mxu0 0
        %2520 = vmatpush1.bf16.msra.mxu0 0
        %2521 = vmatprep.subr.bf16.mxu0 0
        %2522 = vmatpush1.bf16.msra.mxu0 0
        %2523 = vmatprep.subr.bf16.mxu0 0
        %2524 = vmatpush1.bf16.msra.mxu0 0
        %2525 = vmatprep.subr.bf16.mxu0 0
        %2526 = vmatpush1.bf16.msra.mxu0 0
        %2527 = vmatprep.subr.bf16.mxu0 0
        %2528 = vmatpush1.bf16.msra.mxu0 0
        %2529 = vmatprep.subr.bf16.mxu0 0
        %2530 = vmatpush1.bf16.msra.mxu0 0
        %2531 = vmatprep.mubr.bf16.mxu0 0
        %2532 = vmatmul.mubr.bf16.gmra.mrb[0].mxu0 %v2491
        %v2533 = vpop.f32.mrb[0].mxu0
        %v2534 = vadd.f32 0.0, %v2533
        %v2535 = vpop.f32.mrb[0].mxu0
        %v2536 = vpop.f32.mrb[0].mxu0
        %v2537 = vadd.f32 0.0, %v2536
        %v2538 = vpop.f32.mrb[0].mxu0
        %2539 = vmatprep.mubr.bf16.mxu0 0
        %2540 = vmatmul.mubr.bf16.gmra.mrb[0].mxu0 %v2494
        %v2541 = vpop.f32.mrb[0].mxu0
        %v2542 = vadd.f32 0.0, %v2541
        %v2543 = vpop.f32.mrb[0].mxu0
        %v2544 = vpop.f32.mrb[0].mxu0
        %v2545 = vpop.f32.mrb[0].mxu0
        %2546 = vdwg.mxu0
        %2547 = vrot.lane.b32.xlu0 %v1731, 64
        %v2548 = vpop.permute.xlu0 %2547
        %2549 = vrot.lane.b32.xlu0 %v1732, 64
        %v2550 = vpop.permute.xlu0 %2549
        %v2553 = vsel %vm1955, %v2230, 0
        %v2556 = vsel %vm1955, %v2231, 0
        %v2559 = vsel %vm2247, %v2550, 0
        %2561 = vmatprep.subr.bf16.mxu0 0
        %2562 = vmatpush1.bf16.msra.mxu0 %v2548
        %2563 = vmatprep.subr.bf16.mxu0 0
        %2564 = vmatpush1.bf16.msra.mxu0 %v2559
        %2565 = vmatprep.subr.bf16.mxu0 0
        %2566 = vmatpush1.bf16.msra.mxu0 0
        %2567 = vmatprep.subr.bf16.mxu0 0
        %2568 = vmatpush1.bf16.msra.mxu0 0
        %2569 = vmatprep.subr.bf16.mxu0 0
        %2570 = vmatpush1.bf16.msra.mxu0 0
        %2571 = vmatprep.subr.bf16.mxu0 0
        %2572 = vmatpush1.bf16.msra.mxu0 0
        %2573 = vmatprep.subr.bf16.mxu0 0
        %2574 = vmatpush1.bf16.msra.mxu0 0
        %2575 = vmatprep.subr.bf16.mxu0 0
        %2576 = vmatpush1.bf16.msra.mxu0 0
        %2577 = vmatprep.subr.bf16.mxu0 0
        %2578 = vmatpush1.bf16.msra.mxu0 0
        %2579 = vmatprep.subr.bf16.mxu0 0
        %2580 = vmatpush1.bf16.msra.mxu0 0
        %2581 = vmatprep.subr.bf16.mxu0 0
        %2582 = vmatpush1.bf16.msra.mxu0 0
        %2583 = vmatprep.subr.bf16.mxu0 0
        %2584 = vmatpush1.bf16.msra.mxu0 0
        %2585 = vmatprep.subr.bf16.mxu0 0
        %2586 = vmatpush1.bf16.msra.mxu0 0
        %2587 = vmatprep.subr.bf16.mxu0 0
        %2588 = vmatpush1.bf16.msra.mxu0 0
        %2589 = vmatprep.subr.bf16.mxu0 0
        %2590 = vmatpush1.bf16.msra.mxu0 0
        %2591 = vmatprep.subr.bf16.mxu0 0
        %2592 = vmatpush1.bf16.msra.mxu0 0
        %2593 = vmatprep.mubr.bf16.mxu0 0
        %2594 = vmatmul.mubr.bf16.gmra.mrb[0].mxu0 %v2553
        %v2595 = vpop.f32.mrb[0].mxu0
        %v2596 = vadd.f32 0.0, %v2595
        %v2597 = vpop.f32.mrb[0].mxu0
        %v2598 = vpop.f32.mrb[0].mxu0
        %v2599 = vadd.f32 0.0, %v2598
        %v2600 = vpop.f32.mrb[0].mxu0
        %2601 = vmatprep.mubr.bf16.mxu0 0
        %2602 = vmatmul.mubr.bf16.gmra.mrb[0].mxu0 %v2556
        %v2603 = vpop.f32.mrb[0].mxu0
        %v2604 = vadd.f32 0.0, %v2603
        %v2605 = vpop.f32.mrb[0].mxu0
        %v2606 = vpop.f32.mrb[0].mxu0
        %v2607 = vpop.f32.mrb[0].mxu0
        %2608 = vdwg.mxu0
        %2609 = vrot.lane.b32.xlu0 %v1797, 64
        %v2610 = vpop.permute.xlu0 %2609
        %2611 = vrot.lane.b32.xlu0 %v1798, 64
        %v2612 = vpop.permute.xlu0 %2611
        %v2615 = vsel %vm1955, %v2232, 0
        %v2618 = vsel %vm1955, %v2233, 0
        %v2621 = vsel %vm2247, %v2612, 0
        %2623 = vmatprep.subr.bf16.mxu0 0
        %2624 = vmatpush1.bf16.msra.mxu0 %v2610
        %2625 = vmatprep.subr.bf16.mxu0 0
        %2626 = vmatpush1.bf16.msra.mxu0 %v2621
        %2627 = vmatprep.subr.bf16.mxu0 0
        %2628 = vmatpush1.bf16.msra.mxu0 0
        %2629 = vmatprep.subr.bf16.mxu0 0
        %2630 = vmatpush1.bf16.msra.mxu0 0
        %2631 = vmatprep.subr.bf16.mxu0 0
        %2632 = vmatpush1.bf16.msra.mxu0 0
        %2633 = vmatprep.subr.bf16.mxu0 0
        %2634 = vmatpush1.bf16.msra.mxu0 0
        %2635 = vmatprep.subr.bf16.mxu0 0
        %2636 = vmatpush1.bf16.msra.mxu0 0
        %2637 = vmatprep.subr.bf16.mxu0 0
        %2638 = vmatpush1.bf16.msra.mxu0 0
        %2639 = vmatprep.subr.bf16.mxu0 0
        %2640 = vmatpush1.bf16.msra.mxu0 0
        %2641 = vmatprep.subr.bf16.mxu0 0
        %2642 = vmatpush1.bf16.msra.mxu0 0
        %2643 = vmatprep.subr.bf16.mxu0 0
        %2644 = vmatpush1.bf16.msra.mxu0 0
        %2645 = vmatprep.subr.bf16.mxu0 0
        %2646 = vmatpush1.bf16.msra.mxu0 0
        %2647 = vmatprep.subr.bf16.mxu0 0
        %2648 = vmatpush1.bf16.msra.mxu0 0
        %2649 = vmatprep.subr.bf16.mxu0 0
        %2650 = vmatpush1.bf16.msra.mxu0 0
        %2651 = vmatprep.subr.bf16.mxu0 0
        %2652 = vmatpush1.bf16.msra.mxu0 0
        %2653 = vmatprep.subr.bf16.mxu0 0
        %2654 = vmatpush1.bf16.msra.mxu0 0
        %2655 = vmatprep.mubr.bf16.mxu0 0
        %2656 = vmatmul.mubr.bf16.gmra.mrb[0].mxu0 %v2615
        %v2657 = vpop.f32.mrb[0].mxu0
        %v2658 = vadd.f32 0.0, %v2657
        %v2659 = vpop.f32.mrb[0].mxu0
        %v2660 = vpop.f32.mrb[0].mxu0
        %v2661 = vadd.f32 0.0, %v2660
        %v2662 = vpop.f32.mrb[0].mxu0
        %2663 = vmatprep.mubr.bf16.mxu0 0
        %2664 = vmatmul.mubr.bf16.gmra.mrb[0].mxu0 %v2618
        %v2665 = vpop.f32.mrb[0].mxu0
        %v2666 = vadd.f32 0.0, %v2665
        %v2667 = vpop.f32.mrb[0].mxu0
        %v2668 = vpop.f32.mrb[0].mxu0
        %v2669 = vpop.f32.mrb[0].mxu0
        %2670 = vdwg.mxu0
        %2671 = vrot.lane.b32.xlu0 %v1863, 64
        %v2672 = vpop.permute.xlu0 %2671
        %2673 = vrot.lane.b32.xlu0 %v1864, 64
        %v2674 = vpop.permute.xlu0 %2673
        %v2677 = vsel %vm1955, %v2234, 0
        %v2680 = vsel %vm1955, %v2235, 0
        %v2683 = vsel %vm2247, %v2674, 0
        %2685 = vmatprep.subr.bf16.mxu0 0
        %2686 = vmatpush1.bf16.msra.mxu0 %v2672
        %2687 = vmatprep.subr.bf16.mxu0 0
        %2688 = vmatpush1.bf16.msra.mxu0 %v2683
        %2689 = vmatprep.subr.bf16.mxu0 0
        %2690 = vmatpush1.bf16.msra.mxu0 0
        %2691 = vmatprep.subr.bf16.mxu0 0
        %2692 = vmatpush1.bf16.msra.mxu0 0
        %2693 = vmatprep.subr.bf16.mxu0 0
        %2694 = vmatpush1.bf16.msra.mxu0 0
        %2695 = vmatprep.subr.bf16.mxu0 0
        %2696 = vmatpush1.bf16.msra.mxu0 0
        %2697 = vmatprep.subr.bf16.mxu0 0
        %2698 = vmatpush1.bf16.msra.mxu0 0
        %2699 = vmatprep.subr.bf16.mxu0 0
        %2700 = vmatpush1.bf16.msra.mxu0 0
        %2701 = vmatprep.subr.bf16.mxu0 0
        %2702 = vmatpush1.bf16.msra.mxu0 0
        %2703 = vmatprep.subr.bf16.mxu0 0
        %2704 = vmatpush1.bf16.msra.mxu0 0
        %2705 = vmatprep.subr.bf16.mxu0 0
        %2706 = vmatpush1.bf16.msra.mxu0 0
        %2707 = vmatprep.subr.bf16.mxu0 0
        %2708 = vmatpush1.bf16.msra.mxu0 0
        %2709 = vmatprep.subr.bf16.mxu0 0
        %2710 = vmatpush1.bf16.msra.mxu0 0
        %2711 = vmatprep.subr.bf16.mxu0 0
        %2712 = vmatpush1.bf16.msra.mxu0 0
        %2713 = vmatprep.subr.bf16.mxu0 0
        %2714 = vmatpush1.bf16.msra.mxu0 0
        %2715 = vmatprep.subr.bf16.mxu0 0
        %2716 = vmatpush1.bf16.msra.mxu0 0
        %2717 = vmatprep.mubr.bf16.mxu0 0
        %2718 = vmatmul.mubr.bf16.gmra.mrb[0].mxu0 %v2677
        %v2719 = vpop.f32.mrb[0].mxu0
        %v2720 = vadd.f32 0.0, %v2719
        %v2721 = vpop.f32.mrb[0].mxu0
        %v2722 = vpop.f32.mrb[0].mxu0
        %v2723 = vadd.f32 0.0, %v2722
        %v2724 = vpop.f32.mrb[0].mxu0
        %2725 = vmatprep.mubr.bf16.mxu0 0
        %2726 = vmatmul.mubr.bf16.gmra.mrb[0].mxu0 %v2680
        %v2727 = vpop.f32.mrb[0].mxu0
        %v2728 = vadd.f32 0.0, %v2727
        %v2729 = vpop.f32.mrb[0].mxu0
        %v2730 = vpop.f32.mrb[0].mxu0
        %v2731 = vpop.f32.mrb[0].mxu0
        %2732 = vdwg.mxu0
        %v2733 = vpack.c.bf16 %v2289, %v2286
        %v2734 = vpack.c.bf16 %v2348, %v2294
        %v2735 = vpack.c.bf16 %v2356, %v2351
        %v2736 = vpack.c.bf16 %v2413, %v2410
        %v2737 = vpack.c.bf16 %v2472, %v2418
        %v2738 = vpack.c.bf16 %v2480, %v2475
        %v2739 = vpack.c.bf16 %v2537, %v2534
        %v2740 = vpack.c.bf16 %v2596, %v2542
        %v2741 = vpack.c.bf16 %v2604, %v2599
        %v2742 = vpack.c.bf16 %v2661, %v2658
        %v2743 = vpack.c.bf16 %v2720, %v2666
        %v2744 = vpack.c.bf16 %v2728, %v2723
        %v2745 = vld [vmem:[%s669] sm:$0xf]
        %2746 = vrot.lane.b32.xlu0 %v1400, 120
        %v2747 = vpop.permute.xlu0 %2746
        %2748 = vrot.lane.b32.xlu0 %v1401, 120
        %v2749 = vpop.permute.xlu0 %2748
        %2750 = vrot.lane.b32.xlu0 %v1400, 88
        %v2751 = vpop.permute.xlu0 %2750
        %2752 = vrot.lane.b32.xlu0 %v1401, 88
        %v2753 = vpop.permute.xlu0 %2752
        %v2755 = vsel %vm1406, %v2747, 0
        %v2758 = vsel %vm1406, %v2749, 0
        %v2761 = vsel %vm1406, %v2751, 0
        %v2764 = vsel %vm1406, %v2753, 0
        %2766 = vmatprep.subr.bf16.mxu0 0
        %2767 = vmatpush1.bf16.xpose.msra.mxu0 %v2761
        %2768 = vmatprep.subr.bf16.mxu0 0
        %2769 = vmatpush1.bf16.xpose.msra.mxu0 %v2764
        %2770 = vmatprep.subr.bf16.mxu0 0
        %2771 = vmatpush1.bf16.xpose.msra.mxu0 0
        %2772 = vmatprep.subr.bf16.mxu0 0
        %2773 = vmatpush1.bf16.xpose.msra.mxu0 0
        %2774 = vmatprep.subr.bf16.mxu0 0
        %2775 = vmatpush1.bf16.xpose.msra.mxu0 0
        %2776 = vmatprep.subr.bf16.mxu0 0
        %2777 = vmatpush1.bf16.xpose.msra.mxu0 0
        %2778 = vmatprep.subr.bf16.mxu0 0
        %2779 = vmatpush1.bf16.xpose.msra.mxu0 0
        %2780 = vmatprep.subr.bf16.mxu0 0
        %2781 = vmatpush1.bf16.xpose.msra.mxu0 0
        %2782 = vmatprep.subr.bf16.mxu0 0
        %2783 = vmatpush1.bf16.xpose.msra.mxu0 0
        %2784 = vmatprep.subr.bf16.mxu0 0
        %2785 = vmatpush1.bf16.xpose.msra.mxu0 0
        %2786 = vmatprep.subr.bf16.mxu0 0
        %2787 = vmatpush1.bf16.xpose.msra.mxu0 0
        %2788 = vmatprep.subr.bf16.mxu0 0
        %2789 = vmatpush1.bf16.xpose.msra.mxu0 0
        %2790 = vmatprep.subr.bf16.mxu0 0
        %2791 = vmatpush1.bf16.xpose.msra.mxu0 0
        %2792 = vmatprep.subr.bf16.mxu0 0
        %2793 = vmatpush1.bf16.xpose.msra.mxu0 0
        %2794 = vmatprep.subr.bf16.mxu0 0
        %2795 = vmatpush1.bf16.xpose.msra.mxu0 0
        %2796 = vmatprep.subr.bf16.mxu0 0
        %2797 = vmatpush1.bf16.xpose.msra.mxu0 0
        %2798 = vmatprep.mubr.bf16.mxu0 0
        %2799 = vmatmul.mubr.bf16.gmra.mrb[0].mxu0 %v2755
        %v2800 = vpop.f32.mrb[0].mxu0
        %v2801 = vadd.f32 0.0, %v2800
        %v2802 = vpop.f32.mrb[0].mxu0
        %v2803 = vpop.f32.mrb[0].mxu0
        %v2804 = vadd.f32 0.0, %v2803
        %v2805 = vpop.f32.mrb[0].mxu0
        %2806 = vmatprep.mubr.bf16.mxu0 0
        %2807 = vmatmul.mubr.bf16.gmra.mrb[0].mxu0 %v2758
        %v2808 = vpop.f32.mrb[0].mxu0
        %v2809 = vadd.f32 0.0, %v2808
        %v2810 = vpop.f32.mrb[0].mxu0
        %v2811 = vpop.f32.mrb[0].mxu0
        %v2812 = vpop.f32.mrb[0].mxu0
        %2813 = vdwg.mxu0
        %2814 = vrot.lane.b32.xlu0 %v1467, 120
        %v2815 = vpop.permute.xlu0 %2814
        %2816 = vrot.lane.b32.xlu0 %v1468, 120
        %v2817 = vpop.permute.xlu0 %2816
        %2818 = vrot.lane.b32.xlu0 %v1467, 88
        %v2819 = vpop.permute.xlu0 %2818
        %2820 = vrot.lane.b32.xlu0 %v1468, 88
        %v2821 = vpop.permute.xlu0 %2820
        %v2823 = vsel %vm1406, %v2815, 0
        %v2826 = vsel %vm1406, %v2817, 0
        %v2829 = vsel %vm1406, %v2819, 0
        %v2832 = vsel %vm1406, %v2821, 0
        %2834 = vmatprep.subr.bf16.mxu0 0
        %2835 = vmatpush1.bf16.xpose.msra.mxu0 %v2829
        %2836 = vmatprep.subr.bf16.mxu0 0
        %2837 = vmatpush1.bf16.xpose.msra.mxu0 %v2832
        %2838 = vmatprep.subr.bf16.mxu0 0
        %2839 = vmatpush1.bf16.xpose.msra.mxu0 0
        %2840 = vmatprep.subr.bf16.mxu0 0
        %2841 = vmatpush1.bf16.xpose.msra.mxu0 0
        %2842 = vmatprep.subr.bf16.mxu0 0
        %2843 = vmatpush1.bf16.xpose.msra.mxu0 0
        %2844 = vmatprep.subr.bf16.mxu0 0
        %2845 = vmatpush1.bf16.xpose.msra.mxu0 0
        %2846 = vmatprep.subr.bf16.mxu0 0
        %2847 = vmatpush1.bf16.xpose.msra.mxu0 0
        %2848 = vmatprep.subr.bf16.mxu0 0
        %2849 = vmatpush1.bf16.xpose.msra.mxu0 0
        %2850 = vmatprep.subr.bf16.mxu0 0
        %2851 = vmatpush1.bf16.xpose.msra.mxu0 0
        %2852 = vmatprep.subr.bf16.mxu0 0
        %2853 = vmatpush1.bf16.xpose.msra.mxu0 0
        %2854 = vmatprep.subr.bf16.mxu0 0
        %2855 = vmatpush1.bf16.xpose.msra.mxu0 0
        %2856 = vmatprep.subr.bf16.mxu0 0
        %2857 = vmatpush1.bf16.xpose.msra.mxu0 0
        %2858 = vmatprep.subr.bf16.mxu0 0
        %2859 = vmatpush1.bf16.xpose.msra.mxu0 0
        %2860 = vmatprep.subr.bf16.mxu0 0
        %2861 = vmatpush1.bf16.xpose.msra.mxu0 0
        %2862 = vmatprep.subr.bf16.mxu0 0
        %2863 = vmatpush1.bf16.xpose.msra.mxu0 0
        %2864 = vmatprep.subr.bf16.mxu0 0
        %2865 = vmatpush1.bf16.xpose.msra.mxu0 0
        %2866 = vmatprep.mubr.bf16.mxu0 0
        %2867 = vmatmul.mubr.bf16.gmra.mrb[0].mxu0 %v2823
        %v2868 = vpop.f32.mrb[0].mxu0
        %v2869 = vadd.f32 0.0, %v2868
        %v2870 = vpop.f32.mrb[0].mxu0
        %v2871 = vpop.f32.mrb[0].mxu0
        %v2872 = vadd.f32 0.0, %v2871
        %v2873 = vpop.f32.mrb[0].mxu0
        %2874 = vmatprep.mubr.bf16.mxu0 0
        %2875 = vmatmul.mubr.bf16.gmra.mrb[0].mxu0 %v2826
        %v2876 = vpop.f32.mrb[0].mxu0
        %v2877 = vadd.f32 0.0, %v2876
        %v2878 = vpop.f32.mrb[0].mxu0
        %v2879 = vpop.f32.mrb[0].mxu0
        %v2880 = vpop.f32.mrb[0].mxu0
        %2881 = vdwg.mxu0
        %2882 = vrot.lane.b32.xlu0 %v1533, 120
        %v2883 = vpop.permute.xlu0 %2882
        %2884 = vrot.lane.b32.xlu0 %v1534, 120
        %v2885 = vpop.permute.xlu0 %2884
        %2886 = vrot.lane.b32.xlu0 %v1533, 88
        %v2887 = vpop.permute.xlu0 %2886
        %2888 = vrot.lane.b32.xlu0 %v1534, 88
        %v2889 = vpop.permute.xlu0 %2888
        %v2891 = vsel %vm1406, %v2883, 0
        %v2894 = vsel %vm1406, %v2885, 0
        %v2897 = vsel %vm1406, %v2887, 0
        %v2900 = vsel %vm1406, %v2889, 0
        %2902 = vmatprep.subr.bf16.mxu0 0
        %2903 = vmatpush1.bf16.xpose.msra.mxu0 %v2897
        %2904 = vmatprep.subr.bf16.mxu0 0
        %2905 = vmatpush1.bf16.xpose.msra.mxu0 %v2900
        %2906 = vmatprep.subr.bf16.mxu0 0
        %2907 = vmatpush1.bf16.xpose.msra.mxu0 0
        %2908 = vmatprep.subr.bf16.mxu0 0
        %2909 = vmatpush1.bf16.xpose.msra.mxu0 0
        %2910 = vmatprep.subr.bf16.mxu0 0
        %2911 = vmatpush1.bf16.xpose.msra.mxu0 0
        %2912 = vmatprep.subr.bf16.mxu0 0
        %2913 = vmatpush1.bf16.xpose.msra.mxu0 0
        %2914 = vmatprep.subr.bf16.mxu0 0
        %2915 = vmatpush1.bf16.xpose.msra.mxu0 0
        %2916 = vmatprep.subr.bf16.mxu0 0
        %2917 = vmatpush1.bf16.xpose.msra.mxu0 0
        %2918 = vmatprep.subr.bf16.mxu0 0
        %2919 = vmatpush1.bf16.xpose.msra.mxu0 0
        %2920 = vmatprep.subr.bf16.mxu0 0
        %2921 = vmatpush1.bf16.xpose.msra.mxu0 0
        %2922 = vmatprep.subr.bf16.mxu0 0
        %2923 = vmatpush1.bf16.xpose.msra.mxu0 0
        %2924 = vmatprep.subr.bf16.mxu0 0
        %2925 = vmatpush1.bf16.xpose.msra.mxu0 0
        %2926 = vmatprep.subr.bf16.mxu0 0
        %2927 = vmatpush1.bf16.xpose.msra.mxu0 0
        %2928 = vmatprep.subr.bf16.mxu0 0
        %2929 = vmatpush1.bf16.xpose.msra.mxu0 0
        %2930 = vmatprep.subr.bf16.mxu0 0
        %2931 = vmatpush1.bf16.xpose.msra.mxu0 0
        %2932 = vmatprep.subr.bf16.mxu0 0
        %2933 = vmatpush1.bf16.xpose.msra.mxu0 0
        %2934 = vmatprep.mubr.bf16.mxu0 0
        %2935 = vmatmul.mubr.bf16.gmra.mrb[0].mxu0 %v2891
        %v2936 = vpop.f32.mrb[0].mxu0
        %v2937 = vadd.f32 0.0, %v2936
        %v2938 = vpop.f32.mrb[0].mxu0
        %v2939 = vpop.f32.mrb[0].mxu0
        %v2940 = vadd.f32 0.0, %v2939
        %v2941 = vpop.f32.mrb[0].mxu0
        %2942 = vmatprep.mubr.bf16.mxu0 0
        %2943 = vmatmul.mubr.bf16.gmra.mrb[0].mxu0 %v2894
        %v2944 = vpop.f32.mrb[0].mxu0
        %v2945 = vadd.f32 0.0, %v2944
        %v2946 = vpop.f32.mrb[0].mxu0
        %v2947 = vpop.f32.mrb[0].mxu0
        %v2948 = vpop.f32.mrb[0].mxu0
        %2949 = vdwg.mxu0
        %2950 = vrot.lane.b32.xlu0 %v1599, 120
        %v2951 = vpop.permute.xlu0 %2950
        %2952 = vrot.lane.b32.xlu0 %v1600, 120
        %v2953 = vpop.permute.xlu0 %2952
        %2954 = vrot.lane.b32.xlu0 %v1599, 88
        %v2955 = vpop.permute.xlu0 %2954
        %2956 = vrot.lane.b32.xlu0 %v1600, 88
        %v2957 = vpop.permute.xlu0 %2956
        %v2959 = vsel %vm1406, %v2951, 0
        %v2962 = vsel %vm1406, %v2953, 0
        %v2965 = vsel %vm1406, %v2955, 0
        %v2968 = vsel %vm1406, %v2957, 0
        %2970 = vmatprep.subr.bf16.mxu0 0
        %2971 = vmatpush1.bf16.xpose.msra.mxu0 %v2965
        %2972 = vmatprep.subr.bf16.mxu0 0
        %2973 = vmatpush1.bf16.xpose.msra.mxu0 %v2968
        %2974 = vmatprep.subr.bf16.mxu0 0
        %2975 = vmatpush1.bf16.xpose.msra.mxu0 0
        %2976 = vmatprep.subr.bf16.mxu0 0
        %2977 = vmatpush1.bf16.xpose.msra.mxu0 0
        %2978 = vmatprep.subr.bf16.mxu0 0
        %2979 = vmatpush1.bf16.xpose.msra.mxu0 0
        %2980 = vmatprep.subr.bf16.mxu0 0
        %2981 = vmatpush1.bf16.xpose.msra.mxu0 0
        %2982 = vmatprep.subr.bf16.mxu0 0
        %2983 = vmatpush1.bf16.xpose.msra.mxu0 0
        %2984 = vmatprep.subr.bf16.mxu0 0
        %2985 = vmatpush1.bf16.xpose.msra.mxu0 0
        %2986 = vmatprep.subr.bf16.mxu0 0
        %2987 = vmatpush1.bf16.xpose.msra.mxu0 0
        %2988 = vmatprep.subr.bf16.mxu0 0
        %2989 = vmatpush1.bf16.xpose.msra.mxu0 0
        %2990 = vmatprep.subr.bf16.mxu0 0
        %2991 = vmatpush1.bf16.xpose.msra.mxu0 0
        %2992 = vmatprep.subr.bf16.mxu0 0
        %2993 = vmatpush1.bf16.xpose.msra.mxu0 0
        %2994 = vmatprep.subr.bf16.mxu0 0
        %2995 = vmatpush1.bf16.xpose.msra.mxu0 0
        %2996 = vmatprep.subr.bf16.mxu0 0
        %2997 = vmatpush1.bf16.xpose.msra.mxu0 0
        %2998 = vmatprep.subr.bf16.mxu0 0
        %2999 = vmatpush1.bf16.xpose.msra.mxu0 0
        %3000 = vmatprep.subr.bf16.mxu0 0
        %3001 = vmatpush1.bf16.xpose.msra.mxu0 0
        %3002 = vmatprep.mubr.bf16.mxu0 0
        %3003 = vmatmul.mubr.bf16.gmra.mrb[0].mxu0 %v2959
        %v3004 = vpop.f32.mrb[0].mxu0
        %v3005 = vadd.f32 0.0, %v3004
        %v3006 = vpop.f32.mrb[0].mxu0
        %v3007 = vpop.f32.mrb[0].mxu0
        %v3008 = vadd.f32 0.0, %v3007
        %v3009 = vpop.f32.mrb[0].mxu0
        %3010 = vmatprep.mubr.bf16.mxu0 0
        %3011 = vmatmul.mubr.bf16.gmra.mrb[0].mxu0 %v2962
        %v3012 = vpop.f32.mrb[0].mxu0
        %v3013 = vadd.f32 0.0, %v3012
        %v3014 = vpop.f32.mrb[0].mxu0
        %v3015 = vpop.f32.mrb[0].mxu0
        %v3016 = vpop.f32.mrb[0].mxu0
        %3017 = vdwg.mxu0
        %3018 = vrot.lane.b32.xlu0 %v1665, 120
        %v3019 = vpop.permute.xlu0 %3018
        %3020 = vrot.lane.b32.xlu0 %v1666, 120
        %v3021 = vpop.permute.xlu0 %3020
        %3022 = vrot.lane.b32.xlu0 %v1665, 88
        %v3023 = vpop.permute.xlu0 %3022
        %3024 = vrot.lane.b32.xlu0 %v1666, 88
        %v3025 = vpop.permute.xlu0 %3024
        %v3027 = vsel %vm1406, %v3019, 0
        %v3030 = vsel %vm1406, %v3021, 0
        %v3033 = vsel %vm1406, %v3023, 0
        %v3036 = vsel %vm1406, %v3025, 0
        %3038 = vmatprep.subr.bf16.mxu0 0
        %3039 = vmatpush1.bf16.xpose.msra.mxu0 %v3033
        %3040 = vmatprep.subr.bf16.mxu0 0
        %3041 = vmatpush1.bf16.xpose.msra.mxu0 %v3036
        %3042 = vmatprep.subr.bf16.mxu0 0
        %3043 = vmatpush1.bf16.xpose.msra.mxu0 0
        %3044 = vmatprep.subr.bf16.mxu0 0
        %3045 = vmatpush1.bf16.xpose.msra.mxu0 0
        %3046 = vmatprep.subr.bf16.mxu0 0
        %3047 = vmatpush1.bf16.xpose.msra.mxu0 0
        %3048 = vmatprep.subr.bf16.mxu0 0
        %3049 = vmatpush1.bf16.xpose.msra.mxu0 0
        %3050 = vmatprep.subr.bf16.mxu0 0
        %3051 = vmatpush1.bf16.xpose.msra.mxu0 0
        %3052 = vmatprep.subr.bf16.mxu0 0
        %3053 = vmatpush1.bf16.xpose.msra.mxu0 0
        %3054 = vmatprep.subr.bf16.mxu0 0
        %3055 = vmatpush1.bf16.xpose.msra.mxu0 0
        %3056 = vmatprep.subr.bf16.mxu0 0
        %3057 = vmatpush1.bf16.xpose.msra.mxu0 0
        %3058 = vmatprep.subr.bf16.mxu0 0
        %3059 = vmatpush1.bf16.xpose.msra.mxu0 0
        %3060 = vmatprep.subr.bf16.mxu0 0
        %3061 = vmatpush1.bf16.xpose.msra.mxu0 0
        %3062 = vmatprep.subr.bf16.mxu0 0
        %3063 = vmatpush1.bf16.xpose.msra.mxu0 0
        %3064 = vmatprep.subr.bf16.mxu0 0
        %3065 = vmatpush1.bf16.xpose.msra.mxu0 0
        %3066 = vmatprep.subr.bf16.mxu0 0
        %3067 = vmatpush1.bf16.xpose.msra.mxu0 0
        %3068 = vmatprep.subr.bf16.mxu0 0
        %3069 = vmatpush1.bf16.xpose.msra.mxu0 0
        %3070 = vmatprep.mubr.bf16.mxu0 0
        %3071 = vmatmul.mubr.bf16.gmra.mrb[0].mxu0 %v3027
        %v3072 = vpop.f32.mrb[0].mxu0
        %v3073 = vadd.f32 0.0, %v3072
        %v3074 = vpop.f32.mrb[0].mxu0
        %v3075 = vpop.f32.mrb[0].mxu0
        %v3076 = vadd.f32 0.0, %v3075
        %v3077 = vpop.f32.mrb[0].mxu0
        %3078 = vmatprep.mubr.bf16.mxu0 0
        %3079 = vmatmul.mubr.bf16.gmra.mrb[0].mxu0 %v3030
        %v3080 = vpop.f32.mrb[0].mxu0
        %v3081 = vadd.f32 0.0, %v3080
        %v3082 = vpop.f32.mrb[0].mxu0
        %v3083 = vpop.f32.mrb[0].mxu0
        %v3084 = vpop.f32.mrb[0].mxu0
        %3085 = vdwg.mxu0
        %3086 = vrot.lane.b32.xlu0 %v1731, 120
        %v3087 = vpop.permute.xlu0 %3086
        %3088 = vrot.lane.b32.xlu0 %v1732, 120
        %v3089 = vpop.permute.xlu0 %3088
        %3090 = vrot.lane.b32.xlu0 %v1731, 88
        %v3091 = vpop.permute.xlu0 %3090
        %3092 = vrot.lane.b32.xlu0 %v1732, 88
        %v3093 = vpop.permute.xlu0 %3092
        %v3095 = vsel %vm1406, %v3087, 0
        %v3098 = vsel %vm1406, %v3089, 0
        %v3101 = vsel %vm1406, %v3091, 0
        %v3104 = vsel %vm1406, %v3093, 0
        %3106 = vmatprep.subr.bf16.mxu0 0
        %3107 = vmatpush1.bf16.xpose.msra.mxu0 %v3101
        %3108 = vmatprep.subr.bf16.mxu0 0
        %3109 = vmatpush1.bf16.xpose.msra.mxu0 %v3104
        %3110 = vmatprep.subr.bf16.mxu0 0
        %3111 = vmatpush1.bf16.xpose.msra.mxu0 0
        %3112 = vmatprep.subr.bf16.mxu0 0
        %3113 = vmatpush1.bf16.xpose.msra.mxu0 0
        %3114 = vmatprep.subr.bf16.mxu0 0
        %3115 = vmatpush1.bf16.xpose.msra.mxu0 0
        %3116 = vmatprep.subr.bf16.mxu0 0
        %3117 = vmatpush1.bf16.xpose.msra.mxu0 0
        %3118 = vmatprep.subr.bf16.mxu0 0
        %3119 = vmatpush1.bf16.xpose.msra.mxu0 0
        %3120 = vmatprep.subr.bf16.mxu0 0
        %3121 = vmatpush1.bf16.xpose.msra.mxu0 0
        %3122 = vmatprep.subr.bf16.mxu0 0
        %3123 = vmatpush1.bf16.xpose.msra.mxu0 0
        %3124 = vmatprep.subr.bf16.mxu0 0
        %3125 = vmatpush1.bf16.xpose.msra.mxu0 0
        %3126 = vmatprep.subr.bf16.mxu0 0
        %3127 = vmatpush1.bf16.xpose.msra.mxu0 0
        %3128 = vmatprep.subr.bf16.mxu0 0
        %3129 = vmatpush1.bf16.xpose.msra.mxu0 0
        %3130 = vmatprep.subr.bf16.mxu0 0
        %3131 = vmatpush1.bf16.xpose.msra.mxu0 0
        %3132 = vmatprep.subr.bf16.mxu0 0
        %3133 = vmatpush1.bf16.xpose.msra.mxu0 0
        %3134 = vmatprep.subr.bf16.mxu0 0
        %3135 = vmatpush1.bf16.xpose.msra.mxu0 0
        %3136 = vmatprep.subr.bf16.mxu0 0
        %3137 = vmatpush1.bf16.xpose.msra.mxu0 0
        %3138 = vmatprep.mubr.bf16.mxu0 0
        %3139 = vmatmul.mubr.bf16.gmra.mrb[0].mxu0 %v3095
        %v3140 = vpop.f32.mrb[0].mxu0
        %v3141 = vadd.f32 0.0, %v3140
        %v3142 = vpop.f32.mrb[0].mxu0
        %v3143 = vpop.f32.mrb[0].mxu0
        %v3144 = vadd.f32 0.0, %v3143
        %v3145 = vpop.f32.mrb[0].mxu0
        %3146 = vmatprep.mubr.bf16.mxu0 0
        %3147 = vmatmul.mubr.bf16.gmra.mrb[0].mxu0 %v3098
        %v3148 = vpop.f32.mrb[0].mxu0
        %v3149 = vadd.f32 0.0, %v3148
        %v3150 = vpop.f32.mrb[0].mxu0
        %v3151 = vpop.f32.mrb[0].mxu0
        %v3152 = vpop.f32.mrb[0].mxu0
        %3153 = vdwg.mxu0
        %3154 = vrot.lane.b32.xlu0 %v1797, 120
        %v3155 = vpop.permute.xlu0 %3154
        %3156 = vrot.lane.b32.xlu0 %v1798, 120
        %v3157 = vpop.permute.xlu0 %3156
        %3158 = vrot.lane.b32.xlu0 %v1797, 88
        %v3159 = vpop.permute.xlu0 %3158
        %3160 = vrot.lane.b32.xlu0 %v1798, 88
        %v3161 = vpop.permute.xlu0 %3160
        %v3163 = vsel %vm1406, %v3155, 0
        %v3166 = vsel %vm1406, %v3157, 0
        %v3169 = vsel %vm1406, %v3159, 0
        %v3172 = vsel %vm1406, %v3161, 0
        %3174 = vmatprep.subr.bf16.mxu0 0
        %3175 = vmatpush1.bf16.xpose.msra.mxu0 %v3169
        %3176 = vmatprep.subr.bf16.mxu0 0
        %3177 = vmatpush1.bf16.xpose.msra.mxu0 %v3172
        %3178 = vmatprep.subr.bf16.mxu0 0
        %3179 = vmatpush1.bf16.xpose.msra.mxu0 0
        %3180 = vmatprep.subr.bf16.mxu0 0
        %3181 = vmatpush1.bf16.xpose.msra.mxu0 0
        %3182 = vmatprep.subr.bf16.mxu0 0
        %3183 = vmatpush1.bf16.xpose.msra.mxu0 0
        %3184 = vmatprep.subr.bf16.mxu0 0
        %3185 = vmatpush1.bf16.xpose.msra.mxu0 0
        %3186 = vmatprep.subr.bf16.mxu0 0
        %3187 = vmatpush1.bf16.xpose.msra.mxu0 0
        %3188 = vmatprep.subr.bf16.mxu0 0
        %3189 = vmatpush1.bf16.xpose.msra.mxu0 0
        %3190 = vmatprep.subr.bf16.mxu0 0
        %3191 = vmatpush1.bf16.xpose.msra.mxu0 0
        %3192 = vmatprep.subr.bf16.mxu0 0
        %3193 = vmatpush1.bf16.xpose.msra.mxu0 0
        %3194 = vmatprep.subr.bf16.mxu0 0
        %3195 = vmatpush1.bf16.xpose.msra.mxu0 0
        %3196 = vmatprep.subr.bf16.mxu0 0
        %3197 = vmatpush1.bf16.xpose.msra.mxu0 0
        %3198 = vmatprep.subr.bf16.mxu0 0
        %3199 = vmatpush1.bf16.xpose.msra.mxu0 0
        %3200 = vmatprep.subr.bf16.mxu0 0
        %3201 = vmatpush1.bf16.xpose.msra.mxu0 0
        %3202 = vmatprep.subr.bf16.mxu0 0
        %3203 = vmatpush1.bf16.xpose.msra.mxu0 0
        %3204 = vmatprep.subr.bf16.mxu0 0
        %3205 = vmatpush1.bf16.xpose.msra.mxu0 0
        %3206 = vmatprep.mubr.bf16.mxu0 0
        %3207 = vmatmul.mubr.bf16.gmra.mrb[0].mxu0 %v3163
        %v3208 = vpop.f32.mrb[0].mxu0
        %v3209 = vadd.f32 0.0, %v3208
        %v3210 = vpop.f32.mrb[0].mxu0
        %v3211 = vpop.f32.mrb[0].mxu0
        %v3212 = vadd.f32 0.0, %v3211
        %v3213 = vpop.f32.mrb[0].mxu0
        %3214 = vmatprep.mubr.bf16.mxu0 0
        %3215 = vmatmul.mubr.bf16.gmra.mrb[0].mxu0 %v3166
        %v3216 = vpop.f32.mrb[0].mxu0
        %v3217 = vadd.f32 0.0, %v3216
        %v3218 = vpop.f32.mrb[0].mxu0
        %v3219 = vpop.f32.mrb[0].mxu0
        %v3220 = vpop.f32.mrb[0].mxu0
        %3221 = vdwg.mxu0
        %3222 = vrot.lane.b32.xlu0 %v1863, 120
        %v3223 = vpop.permute.xlu0 %3222
        %3224 = vrot.lane.b32.xlu0 %v1864, 120
        %v3225 = vpop.permute.xlu0 %3224
        %3226 = vrot.lane.b32.xlu0 %v1863, 88
        %v3227 = vpop.permute.xlu0 %3226
        %3228 = vrot.lane.b32.xlu0 %v1864, 88
        %v3229 = vpop.permute.xlu0 %3228
        %v3231 = vsel %vm1406, %v3223, 0
        %v3234 = vsel %vm1406, %v3225, 0
        %v3237 = vsel %vm1406, %v3227, 0
        %v3240 = vsel %vm1406, %v3229, 0
        %3242 = vmatprep.subr.bf16.mxu0 0
        %3243 = vmatpush1.bf16.xpose.msra.mxu0 %v3237
        %3244 = vmatprep.subr.bf16.mxu0 0
        %3245 = vmatpush1.bf16.xpose.msra.mxu0 %v3240
        %3246 = vmatprep.subr.bf16.mxu0 0
        %3247 = vmatpush1.bf16.xpose.msra.mxu0 0
        %3248 = vmatprep.subr.bf16.mxu0 0
        %3249 = vmatpush1.bf16.xpose.msra.mxu0 0
        %3250 = vmatprep.subr.bf16.mxu0 0
        %3251 = vmatpush1.bf16.xpose.msra.mxu0 0
        %3252 = vmatprep.subr.bf16.mxu0 0
        %3253 = vmatpush1.bf16.xpose.msra.mxu0 0
        %3254 = vmatprep.subr.bf16.mxu0 0
        %3255 = vmatpush1.bf16.xpose.msra.mxu0 0
        %3256 = vmatprep.subr.bf16.mxu0 0
        %3257 = vmatpush1.bf16.xpose.msra.mxu0 0
        %3258 = vmatprep.subr.bf16.mxu0 0
        %3259 = vmatpush1.bf16.xpose.msra.mxu0 0
        %3260 = vmatprep.subr.bf16.mxu0 0
        %3261 = vmatpush1.bf16.xpose.msra.mxu0 0
        %3262 = vmatprep.subr.bf16.mxu0 0
        %3263 = vmatpush1.bf16.xpose.msra.mxu0 0
        %3264 = vmatprep.subr.bf16.mxu0 0
        %3265 = vmatpush1.bf16.xpose.msra.mxu0 0
        %3266 = vmatprep.subr.bf16.mxu0 0
        %3267 = vmatpush1.bf16.xpose.msra.mxu0 0
        %3268 = vmatprep.subr.bf16.mxu0 0
        %3269 = vmatpush1.bf16.xpose.msra.mxu0 0
        %3270 = vmatprep.subr.bf16.mxu0 0
        %3271 = vmatpush1.bf16.xpose.msra.mxu0 0
        %3272 = vmatprep.subr.bf16.mxu0 0
        %3273 = vmatpush1.bf16.xpose.msra.mxu0 0
        %3274 = vmatprep.mubr.bf16.mxu0 0
        %3275 = vmatmul.mubr.bf16.gmra.mrb[0].mxu0 %v3231
        %v3276 = vpop.f32.mrb[0].mxu0
        %v3277 = vadd.f32 0.0, %v3276
        %v3278 = vpop.f32.mrb[0].mxu0
        %v3279 = vpop.f32.mrb[0].mxu0
        %v3280 = vadd.f32 0.0, %v3279
        %v3281 = vpop.f32.mrb[0].mxu0
        %3282 = vmatprep.mubr.bf16.mxu0 0
        %3283 = vmatmul.mubr.bf16.gmra.mrb[0].mxu0 %v3234
        %v3284 = vpop.f32.mrb[0].mxu0
        %v3285 = vadd.f32 0.0, %v3284
        %v3286 = vpop.f32.mrb[0].mxu0
        %v3287 = vpop.f32.mrb[0].mxu0
        %v3288 = vpop.f32.mrb[0].mxu0
        %3289 = vdwg.mxu0
        %v3290 = vsel %vm1930, %v2801, -1e+30
        %v3291 = vsel %vm1930, %v2804, -1e+30
        %v3292 = vsel %vm1930, %v2809, -1e+30
        %v3293 = vsel %vm1930, %v2869, -1e+30
        %v3294 = vsel %vm1930, %v2872, -1e+30
        %v3295 = vsel %vm1930, %v2877, -1e+30
        %v3296 = vsel %vm1930, %v2937, -1e+30
        %v3297 = vsel %vm1930, %v2940, -1e+30
        %v3298 = vsel %vm1930, %v2945, -1e+30
        %v3299 = vsel %vm1930, %v3005, -1e+30
        %v3300 = vsel %vm1930, %v3008, -1e+30
        %v3301 = vsel %vm1930, %v3013, -1e+30
        %v3302 = vsel %vm1930, %v3073, -1e+30
        %v3303 = vsel %vm1930, %v3076, -1e+30
        %v3304 = vsel %vm1930, %v3081, -1e+30
        %v3305 = vsel %vm1930, %v3141, -1e+30
        %v3306 = vsel %vm1930, %v3144, -1e+30
        %v3307 = vsel %vm1930, %v3149, -1e+30
        %v3308 = vsel %vm1930, %v3209, -1e+30
        %v3309 = vsel %vm1930, %v3212, -1e+30
        %v3310 = vsel %vm1930, %v3217, -1e+30
        %v3311 = vsel %vm1930, %v3277, -1e+30
        %v3312 = vsel %vm1930, %v3280, -1e+30
        %v3313 = vsel %vm1930, %v3285, -1e+30
        %v3314 = vsel %vm1955, %v3290, -inf
        %3315 = vmax.xlane.f32.xlu0 %v3314
        %v3316 = vpop.xlane.xlu0 %3315
        %v3317 = vsel %vm1955, %v3291, -inf
        %3318 = vmax.xlane.f32.xlu0 %v3317
        %v3319 = vpop.xlane.xlu0 %3318
        %v3320 = vsel %vm1955, %v3292, -inf
        %3321 = vmax.xlane.f32.xlu0 %v3320
        %v3322 = vpop.xlane.xlu0 %3321
        %v3323 = vsel %vm1955, %v3293, -inf
        %3324 = vmax.xlane.f32.xlu0 %v3323
        %v3325 = vpop.xlane.xlu0 %3324
        %v3326 = vsel %vm1955, %v3294, -inf
        %3327 = vmax.xlane.f32.xlu0 %v3326
        %v3328 = vpop.xlane.xlu0 %3327
        %v3329 = vsel %vm1955, %v3295, -inf
        %3330 = vmax.xlane.f32.xlu0 %v3329
        %v3331 = vpop.xlane.xlu0 %3330
        %v3332 = vsel %vm1955, %v3296, -inf
        %3333 = vmax.xlane.f32.xlu0 %v3332
        %v3334 = vpop.xlane.xlu0 %3333
        %v3335 = vsel %vm1955, %v3297, -inf
        %3336 = vmax.xlane.f32.xlu0 %v3335
        %v3337 = vpop.xlane.xlu0 %3336
        %v3338 = vsel %vm1955, %v3298, -inf
        %3339 = vmax.xlane.f32.xlu0 %v3338
        %v3340 = vpop.xlane.xlu0 %3339
        %v3341 = vsel %vm1955, %v3299, -inf
        %3342 = vmax.xlane.f32.xlu0 %v3341
        %v3343 = vpop.xlane.xlu0 %3342
        %v3344 = vsel %vm1955, %v3300, -inf
        %3345 = vmax.xlane.f32.xlu0 %v3344
        %v3346 = vpop.xlane.xlu0 %3345
        %v3347 = vsel %vm1955, %v3301, -inf
        %3348 = vmax.xlane.f32.xlu0 %v3347
        %v3349 = vpop.xlane.xlu0 %3348
        %v3350 = vsel %vm1955, %v3302, -inf
        %3351 = vmax.xlane.f32.xlu0 %v3350
        %v3352 = vpop.xlane.xlu0 %3351
        %v3353 = vsel %vm1955, %v3303, -inf
        %3354 = vmax.xlane.f32.xlu0 %v3353
        %v3355 = vpop.xlane.xlu0 %3354
        %v3356 = vsel %vm1955, %v3304, -inf
        %3357 = vmax.xlane.f32.xlu0 %v3356
        %v3358 = vpop.xlane.xlu0 %3357
        %v3359 = vsel %vm1955, %v3305, -inf
        %3360 = vmax.xlane.f32.xlu0 %v3359
        %v3361 = vpop.xlane.xlu0 %3360
        %v3362 = vsel %vm1955, %v3306, -inf
        %3363 = vmax.xlane.f32.xlu0 %v3362
        %v3364 = vpop.xlane.xlu0 %3363
        %v3365 = vsel %vm1955, %v3307, -inf
        %3366 = vmax.xlane.f32.xlu0 %v3365
        %v3367 = vpop.xlane.xlu0 %3366
        %v3368 = vsel %vm1955, %v3308, -inf
        %3369 = vmax.xlane.f32.xlu0 %v3368
        %v3370 = vpop.xlane.xlu0 %3369
        %v3371 = vsel %vm1955, %v3309, -inf
        %3372 = vmax.xlane.f32.xlu0 %v3371
        %v3373 = vpop.xlane.xlu0 %3372
        %v3374 = vsel %vm1955, %v3310, -inf
        %3375 = vmax.xlane.f32.xlu0 %v3374
        %v3376 = vpop.xlane.xlu0 %3375
        %v3377 = vsel %vm1955, %v3311, -inf
        %3378 = vmax.xlane.f32.xlu0 %v3377
        %v3379 = vpop.xlane.xlu0 %3378
        %v3380 = vsel %vm1955, %v3312, -inf
        %3381 = vmax.xlane.f32.xlu0 %v3380
        %v3382 = vpop.xlane.xlu0 %3381
        %v3383 = vsel %vm1955, %v3313, -inf
        %3384 = vmax.xlane.f32.xlu0 %v3383
        %v3385 = vpop.xlane.xlu0 %3384
        %v3386 = vsub.f32 %v3290, %v3316
        %v3387 = vsub.f32 %v3291, %v3319
        %v3388 = vsub.f32 %v3292, %v3322
        %v3389 = vsub.f32 %v3293, %v3325
        %v3390 = vsub.f32 %v3294, %v3328
        %v3391 = vsub.f32 %v3295, %v3331
        %v3392 = vsub.f32 %v3296, %v3334
        %v3393 = vsub.f32 %v3297, %v3337
        %v3394 = vsub.f32 %v3298, %v3340
        %v3395 = vsub.f32 %v3299, %v3343
        %v3396 = vsub.f32 %v3300, %v3346
        %v3397 = vsub.f32 %v3301, %v3349
        %v3398 = vsub.f32 %v3302, %v3352
        %v3399 = vsub.f32 %v3303, %v3355
        %v3400 = vsub.f32 %v3304, %v3358
        %v3401 = vsub.f32 %v3305, %v3361
        %v3402 = vsub.f32 %v3306, %v3364
        %v3403 = vsub.f32 %v3307, %v3367
        %v3404 = vsub.f32 %v3308, %v3370
        %v3405 = vsub.f32 %v3309, %v3373
        %v3406 = vsub.f32 %v3310, %v3376
        %v3407 = vsub.f32 %v3311, %v3379
        %v3408 = vsub.f32 %v3312, %v3382
        %v3409 = vsub.f32 %v3313, %v3385
        %v3410 = vmul.f32 %v3386, 1.442695
        %v3411 = vpow.pop %v3410
        %v3412 = vmul.f32 %v3387, 1.442695
        %v3413 = vpow.pop %v3412
        %v3414 = vmul.f32 %v3388, 1.442695
        %v3415 = vpow.pop %v3414
        %v3416 = vmul.f32 %v3389, 1.442695
        %v3417 = vpow.pop %v3416
        %v3418 = vmul.f32 %v3390, 1.442695
        %v3419 = vpow.pop %v3418
        %v3420 = vmul.f32 %v3391, 1.442695
        %v3421 = vpow.pop %v3420
        %v3422 = vmul.f32 %v3392, 1.442695
        %v3423 = vpow.pop %v3422
        %v3424 = vmul.f32 %v3393, 1.442695
        %v3425 = vpow.pop %v3424
        %v3426 = vmul.f32 %v3394, 1.442695
        %v3427 = vpow.pop %v3426
        %v3428 = vmul.f32 %v3395, 1.442695
        %v3429 = vpow.pop %v3428
        %v3430 = vmul.f32 %v3396, 1.442695
        %v3431 = vpow.pop %v3430
        %v3432 = vmul.f32 %v3397, 1.442695
        %v3433 = vpow.pop %v3432
        %v3434 = vmul.f32 %v3398, 1.442695
        %v3435 = vpow.pop %v3434
        %v3436 = vmul.f32 %v3399, 1.442695
        %v3437 = vpow.pop %v3436
        %v3438 = vmul.f32 %v3400, 1.442695
        %v3439 = vpow.pop %v3438
        %v3440 = vmul.f32 %v3401, 1.442695
        %v3441 = vpow.pop %v3440
        %v3442 = vmul.f32 %v3402, 1.442695
        %v3443 = vpow.pop %v3442
        %v3444 = vmul.f32 %v3403, 1.442695
        %v3445 = vpow.pop %v3444
        %v3446 = vmul.f32 %v3404, 1.442695
        %v3447 = vpow.pop %v3446
        %v3448 = vmul.f32 %v3405, 1.442695
        %v3449 = vpow.pop %v3448
        %v3450 = vmul.f32 %v3406, 1.442695
        %v3451 = vpow.pop %v3450
        %v3452 = vmul.f32 %v3407, 1.442695
        %v3453 = vpow.pop %v3452
        %v3454 = vmul.f32 %v3408, 1.442695
        %v3455 = vpow.pop %v3454
        %v3456 = vmul.f32 %v3409, 1.442695
        %v3457 = vpow.pop %v3456
        %v3458 = vsel %vm1955, %v3411, 0.0
        %3459 = vadd.xlane.f32.xlu0 %v3458
        %v3460 = vpop.xlane.xlu0 %3459
        %v3461 = vsel %vm1955, %v3413, 0.0
        %3462 = vadd.xlane.f32.xlu0 %v3461
        %v3463 = vpop.xlane.xlu0 %3462
        %v3464 = vsel %vm1955, %v3415, 0.0
        %3465 = vadd.xlane.f32.xlu0 %v3464
        %v3466 = vpop.xlane.xlu0 %3465
        %v3467 = vsel %vm1955, %v3417, 0.0
        %3468 = vadd.xlane.f32.xlu0 %v3467
        %v3469 = vpop.xlane.xlu0 %3468
        %v3470 = vsel %vm1955, %v3419, 0.0
        %3471 = vadd.xlane.f32.xlu0 %v3470
        %v3472 = vpop.xlane.xlu0 %3471
        %v3473 = vsel %vm1955, %v3421, 0.0
        %3474 = vadd.xlane.f32.xlu0 %v3473
        %v3475 = vpop.xlane.xlu0 %3474
        %v3476 = vsel %vm1955, %v3423, 0.0
        %3477 = vadd.xlane.f32.xlu0 %v3476
        %v3478 = vpop.xlane.xlu0 %3477
        %v3479 = vsel %vm1955, %v3425, 0.0
        %3480 = vadd.xlane.f32.xlu0 %v3479
        %v3481 = vpop.xlane.xlu0 %3480
        %v3482 = vsel %vm1955, %v3427, 0.0
        %3483 = vadd.xlane.f32.xlu0 %v3482
        %v3484 = vpop.xlane.xlu0 %3483
        %v3485 = vsel %vm1955, %v3429, 0.0
        %3486 = vadd.xlane.f32.xlu0 %v3485
        %v3487 = vpop.xlane.xlu0 %3486
        %v3488 = vsel %vm1955, %v3431, 0.0
        %3489 = vadd.xlane.f32.xlu0 %v3488
        %v3490 = vpop.xlane.xlu0 %3489
        %v3491 = vsel %vm1955, %v3433, 0.0
        %3492 = vadd.xlane.f32.xlu0 %v3491
        %v3493 = vpop.xlane.xlu0 %3492
        %v3494 = vsel %vm1955, %v3435, 0.0
        %3495 = vadd.xlane.f32.xlu0 %v3494
        %v3496 = vpop.xlane.xlu0 %3495
        %v3497 = vsel %vm1955, %v3437, 0.0
        %3498 = vadd.xlane.f32.xlu0 %v3497
        %v3499 = vpop.xlane.xlu0 %3498
        %v3500 = vsel %vm1955, %v3439, 0.0
        %3501 = vadd.xlane.f32.xlu0 %v3500
        %v3502 = vpop.xlane.xlu0 %3501
        %v3503 = vsel %vm1955, %v3441, 0.0
        %3504 = vadd.xlane.f32.xlu0 %v3503
        %v3505 = vpop.xlane.xlu0 %3504
        %v3506 = vsel %vm1955, %v3443, 0.0
        %3507 = vadd.xlane.f32.xlu0 %v3506
        %v3508 = vpop.xlane.xlu0 %3507
        %v3509 = vsel %vm1955, %v3445, 0.0
        %3510 = vadd.xlane.f32.xlu0 %v3509
        %v3511 = vpop.xlane.xlu0 %3510
        %v3512 = vsel %vm1955, %v3447, 0.0
        %3513 = vadd.xlane.f32.xlu0 %v3512
        %v3514 = vpop.xlane.xlu0 %3513
        %v3515 = vsel %vm1955, %v3449, 0.0
        %3516 = vadd.xlane.f32.xlu0 %v3515
        %v3517 = vpop.xlane.xlu0 %3516
        %v3518 = vsel %vm1955, %v3451, 0.0
        %3519 = vadd.xlane.f32.xlu0 %v3518
        %v3520 = vpop.xlane.xlu0 %3519
        %v3521 = vsel %vm1955, %v3453, 0.0
        %3522 = vadd.xlane.f32.xlu0 %v3521
        %v3523 = vpop.xlane.xlu0 %3522
        %v3524 = vsel %vm1955, %v3455, 0.0
        %3525 = vadd.xlane.f32.xlu0 %v3524
        %v3526 = vpop.xlane.xlu0 %3525
        %v3527 = vsel %vm1955, %v3457, 0.0
        %3528 = vadd.xlane.f32.xlu0 %v3527
        %v3529 = vpop.xlane.xlu0 %3528
        %v3530 = vrcp.pop %v3460
        %v3531 = vrcp.pop %v3463
        %v3532 = vrcp.pop %v3466
        %v3533 = vrcp.pop %v3469
        %v3534 = vrcp.pop %v3472
        %v3535 = vrcp.pop %v3475
        %v3536 = vrcp.pop %v3478
        %v3537 = vrcp.pop %v3481
        %v3538 = vrcp.pop %v3484
        %v3539 = vrcp.pop %v3487
        %v3540 = vrcp.pop %v3490
        %v3541 = vrcp.pop %v3493
        %v3542 = vrcp.pop %v3496
        %v3543 = vrcp.pop %v3499
        %v3544 = vrcp.pop %v3502
        %v3545 = vrcp.pop %v3505
        %v3546 = vrcp.pop %v3508
        %v3547 = vrcp.pop %v3511
        %v3548 = vrcp.pop %v3514
        %v3549 = vrcp.pop %v3517
        %v3550 = vrcp.pop %v3520
        %v3551 = vrcp.pop %v3523
        %v3552 = vrcp.pop %v3526
        %v3553 = vrcp.pop %v3529
        %v3554 = vmul.f32 %v3411, %v3530
        %v3555 = vmul.f32 %v3413, %v3531
        %v3556 = vmul.f32 %v3415, %v3532
        %v3557 = vmul.f32 %v3417, %v3533
        %v3558 = vmul.f32 %v3419, %v3534
        %v3559 = vmul.f32 %v3421, %v3535
        %v3560 = vmul.f32 %v3423, %v3536
        %v3561 = vmul.f32 %v3425, %v3537
        %v3562 = vmul.f32 %v3427, %v3538
        %v3563 = vmul.f32 %v3429, %v3539
        %v3564 = vmul.f32 %v3431, %v3540
        %v3565 = vmul.f32 %v3433, %v3541
        %v3566 = vmul.f32 %v3435, %v3542
        %v3567 = vmul.f32 %v3437, %v3543
        %v3568 = vmul.f32 %v3439, %v3544
        %v3569 = vmul.f32 %v3441, %v3545
        %v3570 = vmul.f32 %v3443, %v3546
        %v3571 = vmul.f32 %v3445, %v3547
        %v3572 = vmul.f32 %v3447, %v3548
        %v3573 = vmul.f32 %v3449, %v3549
        %v3574 = vmul.f32 %v3451, %v3550
        %v3575 = vmul.f32 %v3453, %v3551
        %v3576 = vmul.f32 %v3455, %v3552
        %v3577 = vmul.f32 %v3457, %v3553
        %v3578 = vpack.c.bf16 %v3555, %v3554
        %v3579 = vpack.c.bf16 %v3556, %v3556
        %v3580 = vpack.c.bf16 %v3558, %v3557
        %v3581 = vpack.c.bf16 %v3559, %v3559
        %v3582 = vpack.c.bf16 %v3561, %v3560
        %v3583 = vpack.c.bf16 %v3562, %v3562
        %v3584 = vpack.c.bf16 %v3564, %v3563
        %v3585 = vpack.c.bf16 %v3565, %v3565
        %v3586 = vpack.c.bf16 %v3567, %v3566
        %v3587 = vpack.c.bf16 %v3568, %v3568
        %v3588 = vpack.c.bf16 %v3570, %v3569
        %v3589 = vpack.c.bf16 %v3571, %v3571
        %v3590 = vpack.c.bf16 %v3573, %v3572
        %v3591 = vpack.c.bf16 %v3574, %v3574
        %v3592 = vpack.c.bf16 %v3576, %v3575
        %v3593 = vpack.c.bf16 %v3577, %v3577
        %3594 = vrot.lane.b32.xlu0 %v1400, 56
        %v3595 = vpop.permute.xlu0 %3594
        %3596 = vrot.lane.b32.xlu0 %v1401, 56
        %v3597 = vpop.permute.xlu0 %3596
        %v3600 = vsel %vm1955, %v3578, 0
        %v3603 = vsel %vm1955, %v3579, 0
        %v3606 = vsel %vm2247, %v3597, 0
        %3608 = vmatprep.subr.bf16.mxu0 0
        %3609 = vmatpush1.bf16.msra.mxu0 %v3595
        %3610 = vmatprep.subr.bf16.mxu0 0
        %3611 = vmatpush1.bf16.msra.mxu0 %v3606
        %3612 = vmatprep.subr.bf16.mxu0 0
        %3613 = vmatpush1.bf16.msra.mxu0 0
        %3614 = vmatprep.subr.bf16.mxu0 0
        %3615 = vmatpush1.bf16.msra.mxu0 0
        %3616 = vmatprep.subr.bf16.mxu0 0
        %3617 = vmatpush1.bf16.msra.mxu0 0
        %3618 = vmatprep.subr.bf16.mxu0 0
        %3619 = vmatpush1.bf16.msra.mxu0 0
        %3620 = vmatprep.subr.bf16.mxu0 0
        %3621 = vmatpush1.bf16.msra.mxu0 0
        %3622 = vmatprep.subr.bf16.mxu0 0
        %3623 = vmatpush1.bf16.msra.mxu0 0
        %3624 = vmatprep.subr.bf16.mxu0 0
        %3625 = vmatpush1.bf16.msra.mxu0 0
        %3626 = vmatprep.subr.bf16.mxu0 0
        %3627 = vmatpush1.bf16.msra.mxu0 0
        %3628 = vmatprep.subr.bf16.mxu0 0
        %3629 = vmatpush1.bf16.msra.mxu0 0
        %3630 = vmatprep.subr.bf16.mxu0 0
        %3631 = vmatpush1.bf16.msra.mxu0 0
        %3632 = vmatprep.subr.bf16.mxu0 0
        %3633 = vmatpush1.bf16.msra.mxu0 0
        %3634 = vmatprep.subr.bf16.mxu0 0
        %3635 = vmatpush1.bf16.msra.mxu0 0
        %3636 = vmatprep.subr.bf16.mxu0 0
        %3637 = vmatpush1.bf16.msra.mxu0 0
        %3638 = vmatprep.subr.bf16.mxu0 0
        %3639 = vmatpush1.bf16.msra.mxu0 0
        %3640 = vmatprep.mubr.bf16.mxu0 0
        %3641 = vmatmul.mubr.bf16.gmra.mrb[0].mxu0 %v3600
        %v3642 = vpop.f32.mrb[0].mxu0
        %v3643 = vadd.f32 0.0, %v3642
        %v3644 = vpop.f32.mrb[0].mxu0
        %v3645 = vpop.f32.mrb[0].mxu0
        %v3646 = vadd.f32 0.0, %v3645
        %v3647 = vpop.f32.mrb[0].mxu0
        %3648 = vmatprep.mubr.bf16.mxu0 0
        %3649 = vmatmul.mubr.bf16.gmra.mrb[0].mxu0 %v3603
        %v3650 = vpop.f32.mrb[0].mxu0
        %v3651 = vadd.f32 0.0, %v3650
        %v3652 = vpop.f32.mrb[0].mxu0
        %v3653 = vpop.f32.mrb[0].mxu0
        %v3654 = vpop.f32.mrb[0].mxu0
        %3655 = vdwg.mxu0
        %3656 = vrot.lane.b32.xlu0 %v1467, 56
        %v3657 = vpop.permute.xlu0 %3656
        %3658 = vrot.lane.b32.xlu0 %v1468, 56
        %v3659 = vpop.permute.xlu0 %3658
        %v3662 = vsel %vm1955, %v3580, 0
        %v3665 = vsel %vm1955, %v3581, 0
        %v3668 = vsel %vm2247, %v3659, 0
        %3670 = vmatprep.subr.bf16.mxu0 0
        %3671 = vmatpush1.bf16.msra.mxu0 %v3657
        %3672 = vmatprep.subr.bf16.mxu0 0
        %3673 = vmatpush1.bf16.msra.mxu0 %v3668
        %3674 = vmatprep.subr.bf16.mxu0 0
        %3675 = vmatpush1.bf16.msra.mxu0 0
        %3676 = vmatprep.subr.bf16.mxu0 0
        %3677 = vmatpush1.bf16.msra.mxu0 0
        %3678 = vmatprep.subr.bf16.mxu0 0
        %3679 = vmatpush1.bf16.msra.mxu0 0
        %3680 = vmatprep.subr.bf16.mxu0 0
        %3681 = vmatpush1.bf16.msra.mxu0 0
        %3682 = vmatprep.subr.bf16.mxu0 0
        %3683 = vmatpush1.bf16.msra.mxu0 0
        %3684 = vmatprep.subr.bf16.mxu0 0
        %3685 = vmatpush1.bf16.msra.mxu0 0
        %3686 = vmatprep.subr.bf16.mxu0 0
        %3687 = vmatpush1.bf16.msra.mxu0 0
        %3688 = vmatprep.subr.bf16.mxu0 0
        %3689 = vmatpush1.bf16.msra.mxu0 0
        %3690 = vmatprep.subr.bf16.mxu0 0
        %3691 = vmatpush1.bf16.msra.mxu0 0
        %3692 = vmatprep.subr.bf16.mxu0 0
        %3693 = vmatpush1.bf16.msra.mxu0 0
        %3694 = vmatprep.subr.bf16.mxu0 0
        %3695 = vmatpush1.bf16.msra.mxu0 0
        %3696 = vmatprep.subr.bf16.mxu0 0
        %3697 = vmatpush1.bf16.msra.mxu0 0
        %3698 = vmatprep.subr.bf16.mxu0 0
        %3699 = vmatpush1.bf16.msra.mxu0 0
        %3700 = vmatprep.subr.bf16.mxu0 0
        %3701 = vmatpush1.bf16.msra.mxu0 0
        %3702 = vmatprep.mubr.bf16.mxu0 0
        %3703 = vmatmul.mubr.bf16.gmra.mrb[0].mxu0 %v3662
        %v3704 = vpop.f32.mrb[0].mxu0
        %v3705 = vadd.f32 0.0, %v3704
        %v3706 = vpop.f32.mrb[0].mxu0
        %v3707 = vpop.f32.mrb[0].mxu0
        %v3708 = vadd.f32 0.0, %v3707
        %v3709 = vpop.f32.mrb[0].mxu0
        %3710 = vmatprep.mubr.bf16.mxu0 0
        %3711 = vmatmul.mubr.bf16.gmra.mrb[0].mxu0 %v3665
        %v3712 = vpop.f32.mrb[0].mxu0
        %v3713 = vadd.f32 0.0, %v3712
        %v3714 = vpop.f32.mrb[0].mxu0
        %v3715 = vpop.f32.mrb[0].mxu0
        %v3716 = vpop.f32.mrb[0].mxu0
        %3717 = vdwg.mxu0
        %3718 = vrot.lane.b32.xlu0 %v1533, 56
        %v3719 = vpop.permute.xlu0 %3718
        %3720 = vrot.lane.b32.xlu0 %v1534, 56
        %v3721 = vpop.permute.xlu0 %3720
        %v3724 = vsel %vm1955, %v3582, 0
        %v3727 = vsel %vm1955, %v3583, 0
        %v3730 = vsel %vm2247, %v3721, 0
        %3732 = vmatprep.subr.bf16.mxu0 0
        %3733 = vmatpush1.bf16.msra.mxu0 %v3719
        %3734 = vmatprep.subr.bf16.mxu0 0
        %3735 = vmatpush1.bf16.msra.mxu0 %v3730
        %3736 = vmatprep.subr.bf16.mxu0 0
        %3737 = vmatpush1.bf16.msra.mxu0 0
        %3738 = vmatprep.subr.bf16.mxu0 0
        %3739 = vmatpush1.bf16.msra.mxu0 0
        %3740 = vmatprep.subr.bf16.mxu0 0
        %3741 = vmatpush1.bf16.msra.mxu0 0
        %3742 = vmatprep.subr.bf16.mxu0 0
        %3743 = vmatpush1.bf16.msra.mxu0 0
        %3744 = vmatprep.subr.bf16.mxu0 0
        %3745 = vmatpush1.bf16.msra.mxu0 0
        %3746 = vmatprep.subr.bf16.mxu0 0
        %3747 = vmatpush1.bf16.msra.mxu0 0
        %3748 = vmatprep.subr.bf16.mxu0 0
        %3749 = vmatpush1.bf16.msra.mxu0 0
        %3750 = vmatprep.subr.bf16.mxu0 0
        %3751 = vmatpush1.bf16.msra.mxu0 0
        %3752 = vmatprep.subr.bf16.mxu0 0
        %3753 = vmatpush1.bf16.msra.mxu0 0
        %3754 = vmatprep.subr.bf16.mxu0 0
        %3755 = vmatpush1.bf16.msra.mxu0 0
        %3756 = vmatprep.subr.bf16.mxu0 0
        %3757 = vmatpush1.bf16.msra.mxu0 0
        %3758 = vmatprep.subr.bf16.mxu0 0
        %3759 = vmatpush1.bf16.msra.mxu0 0
        %3760 = vmatprep.subr.bf16.mxu0 0
        %3761 = vmatpush1.bf16.msra.mxu0 0
        %3762 = vmatprep.subr.bf16.mxu0 0
        %3763 = vmatpush1.bf16.msra.mxu0 0
        %3764 = vmatprep.mubr.bf16.mxu0 0
        %3765 = vmatmul.mubr.bf16.gmra.mrb[0].mxu0 %v3724
        %v3766 = vpop.f32.mrb[0].mxu0
        %v3767 = vadd.f32 0.0, %v3766
        %v3768 = vpop.f32.mrb[0].mxu0
        %v3769 = vpop.f32.mrb[0].mxu0
        %v3770 = vadd.f32 0.0, %v3769
        %v3771 = vpop.f32.mrb[0].mxu0
        %3772 = vmatprep.mubr.bf16.mxu0 0
        %3773 = vmatmul.mubr.bf16.gmra.mrb[0].mxu0 %v3727
        %v3774 = vpop.f32.mrb[0].mxu0
        %v3775 = vadd.f32 0.0, %v3774
        %v3776 = vpop.f32.mrb[0].mxu0
        %v3777 = vpop.f32.mrb[0].mxu0
        %v3778 = vpop.f32.mrb[0].mxu0
        %3779 = vdwg.mxu0
        %3780 = vrot.lane.b32.xlu0 %v1599, 56
        %v3781 = vpop.permute.xlu0 %3780
        %3782 = vrot.lane.b32.xlu0 %v1600, 56
        %v3783 = vpop.permute.xlu0 %3782
        %v3786 = vsel %vm1955, %v3584, 0
        %v3789 = vsel %vm1955, %v3585, 0
        %v3792 = vsel %vm2247, %v3783, 0
        %3794 = vmatprep.subr.bf16.mxu0 0
        %3795 = vmatpush1.bf16.msra.mxu0 %v3781
        %3796 = vmatprep.subr.bf16.mxu0 0
        %3797 = vmatpush1.bf16.msra.mxu0 %v3792
        %3798 = vmatprep.subr.bf16.mxu0 0
        %3799 = vmatpush1.bf16.msra.mxu0 0
        %3800 = vmatprep.subr.bf16.mxu0 0
        %3801 = vmatpush1.bf16.msra.mxu0 0
        %3802 = vmatprep.subr.bf16.mxu0 0
        %3803 = vmatpush1.bf16.msra.mxu0 0
        %3804 = vmatprep.subr.bf16.mxu0 0
        %3805 = vmatpush1.bf16.msra.mxu0 0
        %3806 = vmatprep.subr.bf16.mxu0 0
        %3807 = vmatpush1.bf16.msra.mxu0 0
        %3808 = vmatprep.subr.bf16.mxu0 0
        %3809 = vmatpush1.bf16.msra.mxu0 0
        %3810 = vmatprep.subr.bf16.mxu0 0
        %3811 = vmatpush1.bf16.msra.mxu0 0
        %3812 = vmatprep.subr.bf16.mxu0 0
        %3813 = vmatpush1.bf16.msra.mxu0 0
        %3814 = vmatprep.subr.bf16.mxu0 0
        %3815 = vmatpush1.bf16.msra.mxu0 0
        %3816 = vmatprep.subr.bf16.mxu0 0
        %3817 = vmatpush1.bf16.msra.mxu0 0
        %3818 = vmatprep.subr.bf16.mxu0 0
        %3819 = vmatpush1.bf16.msra.mxu0 0
        %3820 = vmatprep.subr.bf16.mxu0 0
        %3821 = vmatpush1.bf16.msra.mxu0 0
        %3822 = vmatprep.subr.bf16.mxu0 0
        %3823 = vmatpush1.bf16.msra.mxu0 0
        %3824 = vmatprep.subr.bf16.mxu0 0
        %3825 = vmatpush1.bf16.msra.mxu0 0
        %3826 = vmatprep.mubr.bf16.mxu0 0
        %3827 = vmatmul.mubr.bf16.gmra.mrb[0].mxu0 %v3786
        %v3828 = vpop.f32.mrb[0].mxu0
        %v3829 = vadd.f32 0.0, %v3828
        %v3830 = vpop.f32.mrb[0].mxu0
        %v3831 = vpop.f32.mrb[0].mxu0
        %v3832 = vadd.f32 0.0, %v3831
        %v3833 = vpop.f32.mrb[0].mxu0
        %3834 = vmatprep.mubr.bf16.mxu0 0
        %3835 = vmatmul.mubr.bf16.gmra.mrb[0].mxu0 %v3789
        %v3836 = vpop.f32.mrb[0].mxu0
        %v3837 = vadd.f32 0.0, %v3836
        %v3838 = vpop.f32.mrb[0].mxu0
        %v3839 = vpop.f32.mrb[0].mxu0
        %v3840 = vpop.f32.mrb[0].mxu0
        %3841 = vdwg.mxu0
        %3842 = vrot.lane.b32.xlu0 %v1665, 56
        %v3843 = vpop.permute.xlu0 %3842
        %3844 = vrot.lane.b32.xlu0 %v1666, 56
        %v3845 = vpop.permute.xlu0 %3844
        %v3848 = vsel %vm1955, %v3586, 0
        %v3851 = vsel %vm1955, %v3587, 0
        %v3854 = vsel %vm2247, %v3845, 0
        %3856 = vmatprep.subr.bf16.mxu0 0
        %3857 = vmatpush1.bf16.msra.mxu0 %v3843
        %3858 = vmatprep.subr.bf16.mxu0 0
        %3859 = vmatpush1.bf16.msra.mxu0 %v3854
        %3860 = vmatprep.subr.bf16.mxu0 0
        %3861 = vmatpush1.bf16.msra.mxu0 0
        %3862 = vmatprep.subr.bf16.mxu0 0
        %3863 = vmatpush1.bf16.msra.mxu0 0
        %3864 = vmatprep.subr.bf16.mxu0 0
        %3865 = vmatpush1.bf16.msra.mxu0 0
        %3866 = vmatprep.subr.bf16.mxu0 0
        %3867 = vmatpush1.bf16.msra.mxu0 0
        %3868 = vmatprep.subr.bf16.mxu0 0
        %3869 = vmatpush1.bf16.msra.mxu0 0
        %3870 = vmatprep.subr.bf16.mxu0 0
        %3871 = vmatpush1.bf16.msra.mxu0 0
        %3872 = vmatprep.subr.bf16.mxu0 0
        %3873 = vmatpush1.bf16.msra.mxu0 0
        %3874 = vmatprep.subr.bf16.mxu0 0
        %3875 = vmatpush1.bf16.msra.mxu0 0
        %3876 = vmatprep.subr.bf16.mxu0 0
        %3877 = vmatpush1.bf16.msra.mxu0 0
        %3878 = vmatprep.subr.bf16.mxu0 0
        %3879 = vmatpush1.bf16.msra.mxu0 0
        %3880 = vmatprep.subr.bf16.mxu0 0
        %3881 = vmatpush1.bf16.msra.mxu0 0
        %3882 = vmatprep.subr.bf16.mxu0 0
        %3883 = vmatpush1.bf16.msra.mxu0 0
        %3884 = vmatprep.subr.bf16.mxu0 0
        %3885 = vmatpush1.bf16.msra.mxu0 0
        %3886 = vmatprep.subr.bf16.mxu0 0
        %3887 = vmatpush1.bf16.msra.mxu0 0
        %3888 = vmatprep.mubr.bf16.mxu0 0
        %3889 = vmatmul.mubr.bf16.gmra.mrb[0].mxu0 %v3848
        %v3890 = vpop.f32.mrb[0].mxu0
        %v3891 = vadd.f32 0.0, %v3890
        %v3892 = vpop.f32.mrb[0].mxu0
        %v3893 = vpop.f32.mrb[0].mxu0
        %v3894 = vadd.f32 0.0, %v3893
        %v3895 = vpop.f32.mrb[0].mxu0
        %3896 = vmatprep.mubr.bf16.mxu0 0
        %3897 = vmatmul.mubr.bf16.gmra.mrb[0].mxu0 %v3851
        %v3898 = vpop.f32.mrb[0].mxu0
        %v3899 = vadd.f32 0.0, %v3898
        %v3900 = vpop.f32.mrb[0].mxu0
        %v3901 = vpop.f32.mrb[0].mxu0
        %v3902 = vpop.f32.mrb[0].mxu0
        %3903 = vdwg.mxu0
        %3904 = vrot.lane.b32.xlu0 %v1731, 56
        %v3905 = vpop.permute.xlu0 %3904
        %3906 = vrot.lane.b32.xlu0 %v1732, 56
        %v3907 = vpop.permute.xlu0 %3906
        %v3910 = vsel %vm1955, %v3588, 0
        %v3913 = vsel %vm1955, %v3589, 0
        %v3916 = vsel %vm2247, %v3907, 0
        %3918 = vmatprep.subr.bf16.mxu0 0
        %3919 = vmatpush1.bf16.msra.mxu0 %v3905
        %3920 = vmatprep.subr.bf16.mxu0 0
        %3921 = vmatpush1.bf16.msra.mxu0 %v3916
        %3922 = vmatprep.subr.bf16.mxu0 0
        %3923 = vmatpush1.bf16.msra.mxu0 0
        %3924 = vmatprep.subr.bf16.mxu0 0
        %3925 = vmatpush1.bf16.msra.mxu0 0
        %3926 = vmatprep.subr.bf16.mxu0 0
        %3927 = vmatpush1.bf16.msra.mxu0 0
        %3928 = vmatprep.subr.bf16.mxu0 0
        %3929 = vmatpush1.bf16.msra.mxu0 0
        %3930 = vmatprep.subr.bf16.mxu0 0
        %3931 = vmatpush1.bf16.msra.mxu0 0
        %3932 = vmatprep.subr.bf16.mxu0 0
        %3933 = vmatpush1.bf16.msra.mxu0 0
        %3934 = vmatprep.subr.bf16.mxu0 0
        %3935 = vmatpush1.bf16.msra.mxu0 0
        %3936 = vmatprep.subr.bf16.mxu0 0
        %3937 = vmatpush1.bf16.msra.mxu0 0
        %3938 = vmatprep.subr.bf16.mxu0 0
        %3939 = vmatpush1.bf16.msra.mxu0 0
        %3940 = vmatprep.subr.bf16.mxu0 0
        %3941 = vmatpush1.bf16.msra.mxu0 0
        %3942 = vmatprep.subr.bf16.mxu0 0
        %3943 = vmatpush1.bf16.msra.mxu0 0
        %3944 = vmatprep.subr.bf16.mxu0 0
        %3945 = vmatpush1.bf16.msra.mxu0 0
        %3946 = vmatprep.subr.bf16.mxu0 0
        %3947 = vmatpush1.bf16.msra.mxu0 0
        %3948 = vmatprep.subr.bf16.mxu0 0
        %3949 = vmatpush1.bf16.msra.mxu0 0
        %3950 = vmatprep.mubr.bf16.mxu0 0
        %3951 = vmatmul.mubr.bf16.gmra.mrb[0].mxu0 %v3910
        %v3952 = vpop.f32.mrb[0].mxu0
        %v3953 = vadd.f32 0.0, %v3952
        %v3954 = vpop.f32.mrb[0].mxu0
        %v3955 = vpop.f32.mrb[0].mxu0
        %v3956 = vadd.f32 0.0, %v3955
        %v3957 = vpop.f32.mrb[0].mxu0
        %3958 = vmatprep.mubr.bf16.mxu0 0
        %3959 = vmatmul.mubr.bf16.gmra.mrb[0].mxu0 %v3913
        %v3960 = vpop.f32.mrb[0].mxu0
        %v3961 = vadd.f32 0.0, %v3960
        %v3962 = vpop.f32.mrb[0].mxu0
        %v3963 = vpop.f32.mrb[0].mxu0
        %v3964 = vpop.f32.mrb[0].mxu0
        %3965 = vdwg.mxu0
        %3966 = vrot.lane.b32.xlu0 %v1797, 56
        %v3967 = vpop.permute.xlu0 %3966
        %3968 = vrot.lane.b32.xlu0 %v1798, 56
        %v3969 = vpop.permute.xlu0 %3968
        %v3972 = vsel %vm1955, %v3590, 0
        %v3975 = vsel %vm1955, %v3591, 0
        %v3978 = vsel %vm2247, %v3969, 0
        %3980 = vmatprep.subr.bf16.mxu0 0
        %3981 = vmatpush1.bf16.msra.mxu0 %v3967
        %3982 = vmatprep.subr.bf16.mxu0 0
        %3983 = vmatpush1.bf16.msra.mxu0 %v3978
        %3984 = vmatprep.subr.bf16.mxu0 0
        %3985 = vmatpush1.bf16.msra.mxu0 0
        %3986 = vmatprep.subr.bf16.mxu0 0
        %3987 = vmatpush1.bf16.msra.mxu0 0
        %3988 = vmatprep.subr.bf16.mxu0 0
        %3989 = vmatpush1.bf16.msra.mxu0 0
        %3990 = vmatprep.subr.bf16.mxu0 0
        %3991 = vmatpush1.bf16.msra.mxu0 0
        %3992 = vmatprep.subr.bf16.mxu0 0
        %3993 = vmatpush1.bf16.msra.mxu0 0
        %3994 = vmatprep.subr.bf16.mxu0 0
        %3995 = vmatpush1.bf16.msra.mxu0 0
        %3996 = vmatprep.subr.bf16.mxu0 0
        %3997 = vmatpush1.bf16.msra.mxu0 0
        %3998 = vmatprep.subr.bf16.mxu0 0
        %3999 = vmatpush1.bf16.msra.mxu0 0
        %4000 = vmatprep.subr.bf16.mxu0 0
        %4001 = vmatpush1.bf16.msra.mxu0 0
        %4002 = vmatprep.subr.bf16.mxu0 0
        %4003 = vmatpush1.bf16.msra.mxu0 0
        %4004 = vmatprep.subr.bf16.mxu0 0
        %4005 = vmatpush1.bf16.msra.mxu0 0
        %4006 = vmatprep.subr.bf16.mxu0 0
        %4007 = vmatpush1.bf16.msra.mxu0 0
        %4008 = vmatprep.subr.bf16.mxu0 0
        %4009 = vmatpush1.bf16.msra.mxu0 0
        %4010 = vmatprep.subr.bf16.mxu0 0
        %4011 = vmatpush1.bf16.msra.mxu0 0
        %4012 = vmatprep.mubr.bf16.mxu0 0
        %4013 = vmatmul.mubr.bf16.gmra.mrb[0].mxu0 %v3972
        %v4014 = vpop.f32.mrb[0].mxu0
        %v4015 = vadd.f32 0.0, %v4014
        %v4016 = vpop.f32.mrb[0].mxu0
        %v4017 = vpop.f32.mrb[0].mxu0
        %v4018 = vadd.f32 0.0, %v4017
        %v4019 = vpop.f32.mrb[0].mxu0
        %4020 = vmatprep.mubr.bf16.mxu0 0
        %4021 = vmatmul.mubr.bf16.gmra.mrb[0].mxu0 %v3975
        %v4022 = vpop.f32.mrb[0].mxu0
        %v4023 = vadd.f32 0.0, %v4022
        %v4024 = vpop.f32.mrb[0].mxu0
        %v4025 = vpop.f32.mrb[0].mxu0
        %v4026 = vpop.f32.mrb[0].mxu0
        %4027 = vdwg.mxu0
        %4028 = vrot.lane.b32.xlu0 %v1863, 56
        %v4029 = vpop.permute.xlu0 %4028
        %4030 = vrot.lane.b32.xlu0 %v1864, 56
        %v4031 = vpop.permute.xlu0 %4030
        %v4034 = vsel %vm1955, %v3592, 0
        %v4037 = vsel %vm1955, %v3593, 0
        %v4040 = vsel %vm2247, %v4031, 0
        %4042 = vmatprep.subr.bf16.mxu0 0
        %4043 = vmatpush1.bf16.msra.mxu0 %v4029
        %4044 = vmatprep.subr.bf16.mxu0 0
        %4045 = vmatpush1.bf16.msra.mxu0 %v4040
        %4046 = vmatprep.subr.bf16.mxu0 0
        %4047 = vmatpush1.bf16.msra.mxu0 0
        %4048 = vmatprep.subr.bf16.mxu0 0
        %4049 = vmatpush1.bf16.msra.mxu0 0
        %4050 = vmatprep.subr.bf16.mxu0 0
        %4051 = vmatpush1.bf16.msra.mxu0 0
        %4052 = vmatprep.subr.bf16.mxu0 0
        %4053 = vmatpush1.bf16.msra.mxu0 0
        %4054 = vmatprep.subr.bf16.mxu0 0
        %4055 = vmatpush1.bf16.msra.mxu0 0
        %4056 = vmatprep.subr.bf16.mxu0 0
        %4057 = vmatpush1.bf16.msra.mxu0 0
        %4058 = vmatprep.subr.bf16.mxu0 0
        %4059 = vmatpush1.bf16.msra.mxu0 0
        %4060 = vmatprep.subr.bf16.mxu0 0
        %4061 = vmatpush1.bf16.msra.mxu0 0
        %4062 = vmatprep.subr.bf16.mxu0 0
        %4063 = vmatpush1.bf16.msra.mxu0 0
        %4064 = vmatprep.subr.bf16.mxu0 0
        %4065 = vmatpush1.bf16.msra.mxu0 0
        %4066 = vmatprep.subr.bf16.mxu0 0
        %4067 = vmatpush1.bf16.msra.mxu0 0
        %4068 = vmatprep.subr.bf16.mxu0 0
        %4069 = vmatpush1.bf16.msra.mxu0 0
        %4070 = vmatprep.subr.bf16.mxu0 0
        %4071 = vmatpush1.bf16.msra.mxu0 0
        %4072 = vmatprep.subr.bf16.mxu0 0
        %4073 = vmatpush1.bf16.msra.mxu0 0
        %4074 = vmatprep.mubr.bf16.mxu0 0
        %4075 = vmatmul.mubr.bf16.gmra.mrb[0].mxu0 %v4034
        %v4076 = vpop.f32.mrb[0].mxu0
        %v4077 = vadd.f32 0.0, %v4076
        %v4078 = vpop.f32.mrb[0].mxu0
        %v4079 = vpop.f32.mrb[0].mxu0
        %v4080 = vadd.f32 0.0, %v4079
        %v4081 = vpop.f32.mrb[0].mxu0
        %4082 = vmatprep.mubr.bf16.mxu0 0
        %4083 = vmatmul.mubr.bf16.gmra.mrb[0].mxu0 %v4037
        %v4084 = vpop.f32.mrb[0].mxu0
        %v4085 = vadd.f32 0.0, %v4084
        %v4086 = vpop.f32.mrb[0].mxu0
        %v4087 = vpop.f32.mrb[0].mxu0
        %v4088 = vpop.f32.mrb[0].mxu0
        %4089 = vdwg.mxu0
        %v4090 = vpack.c.bf16 %v3646, %v3643
        %v4091 = vpack.c.bf16 %v3705, %v3651
        %v4092 = vpack.c.bf16 %v3713, %v3708
        %v4093 = vpack.c.bf16 %v3770, %v3767
        %v4094 = vpack.c.bf16 %v3829, %v3775
        %v4095 = vpack.c.bf16 %v3837, %v3832
        %v4096 = vpack.c.bf16 %v3894, %v3891
        %v4097 = vpack.c.bf16 %v3953, %v3899
        %v4098 = vpack.c.bf16 %v3961, %v3956
        %v4099 = vpack.c.bf16 %v4018, %v4015
        %v4100 = vpack.c.bf16 %v4077, %v4023
        %v4101 = vpack.c.bf16 %v4085, %v4080
        %v4102 = vld [vmem:[%s669 + $0x4] sm:$0xf]
        %v4104 = vsel %vm1406, %v4090, 0
        %v4107 = vsel %vm1406, %v4091, 0
        %v4110 = vsel %vm1406, %v4092, 0
        %v4113 = vsel %vm1406, %v4093, 0
        %v4116 = vsel %vm1406, %v4094, 0
        %v4119 = vsel %vm1406, %v4095, 0
        %v4122 = vsel %vm1406, %v4096, 0
        %v4125 = vsel %vm1406, %v4097, 0
        %v4128 = vsel %vm1406, %v4098, 0
        %v4131 = vsel %vm1406, %v4099, 0
        %v4134 = vsel %vm1406, %v4100, 0
        %v4137 = vsel %vm1406, %v4101, 0
        %v4140 = vsel %vm2247, %v4102, 0
        %4142 = vmatprep.subr.bf16.mxu0 0
        %4143 = vmatpush1.bf16.msra.mxu0 %v4140
        %4144 = vmatprep.subr.bf16.mxu0 0
        %4145 = vmatpush1.bf16.msra.mxu0 0
        %4146 = vmatprep.subr.bf16.mxu0 0
        %4147 = vmatpush1.bf16.msra.mxu0 0
        %4148 = vmatprep.subr.bf16.mxu0 0
        %4149 = vmatpush1.bf16.msra.mxu0 0
        %4150 = vmatprep.subr.bf16.mxu0 0
        %4151 = vmatpush1.bf16.msra.mxu0 0
        %4152 = vmatprep.subr.bf16.mxu0 0
        %4153 = vmatpush1.bf16.msra.mxu0 0
        %4154 = vmatprep.subr.bf16.mxu0 0
        %4155 = vmatpush1.bf16.msra.mxu0 0
        %4156 = vmatprep.subr.bf16.mxu0 0
        %4157 = vmatpush1.bf16.msra.mxu0 0
        %4158 = vmatprep.subr.bf16.mxu0 0
        %4159 = vmatpush1.bf16.msra.mxu0 0
        %4160 = vmatprep.subr.bf16.mxu0 0
        %4161 = vmatpush1.bf16.msra.mxu0 0
        %4162 = vmatprep.subr.bf16.mxu0 0
        %4163 = vmatpush1.bf16.msra.mxu0 0
        %4164 = vmatprep.subr.bf16.mxu0 0
        %4165 = vmatpush1.bf16.msra.mxu0 0
        %4166 = vmatprep.subr.bf16.mxu0 0
        %4167 = vmatpush1.bf16.msra.mxu0 0
        %4168 = vmatprep.subr.bf16.mxu0 0
        %4169 = vmatpush1.bf16.msra.mxu0 0
        %4170 = vmatprep.subr.bf16.mxu0 0
        %4171 = vmatpush1.bf16.msra.mxu0 0
        %4172 = vmatprep.subr.bf16.mxu0 0
        %4173 = vmatpush1.bf16.msra.mxu0 0
        %4174 = vmatprep.mubr.bf16.mxu0 0
        %4175 = vmatmul.mubr.bf16.gmra.mrb[0].mxu0 %v4104
        %v4176 = vpop.f32.mrb[0].mxu0
        %v4177 = vadd.f32 0.0, %v4176
        %v4178 = vpop.f32.mrb[0].mxu0
        %v4179 = vpop.f32.mrb[0].mxu0
        %v4180 = vadd.f32 0.0, %v4179
        %v4181 = vpop.f32.mrb[0].mxu0
        %4182 = vmatprep.mubr.bf16.mxu0 0
        %4183 = vmatmul.mubr.bf16.gmra.mrb[0].mxu0 %v4107
        %v4184 = vpop.f32.mrb[0].mxu0
        %v4185 = vadd.f32 0.0, %v4184
        %v4186 = vpop.f32.mrb[0].mxu0
        %v4187 = vpop.f32.mrb[0].mxu0
        %v4188 = vadd.f32 0.0, %v4187
        %v4189 = vpop.f32.mrb[0].mxu0
        %4190 = vmatprep.mubr.bf16.mxu0 0
        %4191 = vmatmul.mubr.bf16.gmra.mrb[0].mxu0 %v4110
        %v4192 = vpop.f32.mrb[0].mxu0
        %v4193 = vadd.f32 0.0, %v4192
        %v4194 = vpop.f32.mrb[0].mxu0
        %v4195 = vpop.f32.mrb[0].mxu0
        %v4196 = vadd.f32 0.0, %v4195
        %v4197 = vpop.f32.mrb[0].mxu0
        %4198 = vmatprep.mubr.bf16.mxu0 0
        %4199 = vmatmul.mubr.bf16.gmra.mrb[0].mxu0 %v4113
        %v4200 = vpop.f32.mrb[0].mxu0
        %v4201 = vadd.f32 0.0, %v4200
        %v4202 = vpop.f32.mrb[0].mxu0
        %v4203 = vpop.f32.mrb[0].mxu0
        %v4204 = vadd.f32 0.0, %v4203
        %v4205 = vpop.f32.mrb[0].mxu0
        %4206 = vmatprep.mubr.bf16.mxu0 0
        %4207 = vmatmul.mubr.bf16.gmra.mrb[0].mxu0 %v4116
        %v4208 = vpop.f32.mrb[0].mxu0
        %v4209 = vadd.f32 0.0, %v4208
        %v4210 = vpop.f32.mrb[0].mxu0
        %v4211 = vpop.f32.mrb[0].mxu0
        %v4212 = vadd.f32 0.0, %v4211
        %v4213 = vpop.f32.mrb[0].mxu0
        %4214 = vmatprep.mubr.bf16.mxu0 0
        %4215 = vmatmul.mubr.bf16.gmra.mrb[0].mxu0 %v4119
        %v4216 = vpop.f32.mrb[0].mxu0
        %v4217 = vadd.f32 0.0, %v4216
        %v4218 = vpop.f32.mrb[0].mxu0
        %v4219 = vpop.f32.mrb[0].mxu0
        %v4220 = vadd.f32 0.0, %v4219
        %v4221 = vpop.f32.mrb[0].mxu0
        %4222 = vmatprep.mubr.bf16.mxu0 0
        %4223 = vmatmul.mubr.bf16.gmra.mrb[0].mxu0 %v4122
        %v4224 = vpop.f32.mrb[0].mxu0
        %v4225 = vadd.f32 0.0, %v4224
        %v4226 = vpop.f32.mrb[0].mxu0
        %v4227 = vpop.f32.mrb[0].mxu0
        %v4228 = vadd.f32 0.0, %v4227
        %v4229 = vpop.f32.mrb[0].mxu0
        %4230 = vmatprep.mubr.bf16.mxu0 0
        %4231 = vmatmul.mubr.bf16.gmra.mrb[0].mxu0 %v4125
        %v4232 = vpop.f32.mrb[0].mxu0
        %v4233 = vadd.f32 0.0, %v4232
        %v4234 = vpop.f32.mrb[0].mxu0
        %v4235 = vpop.f32.mrb[0].mxu0
        %v4236 = vadd.f32 0.0, %v4235
        %v4237 = vpop.f32.mrb[0].mxu0
        %4238 = vmatprep.mubr.bf16.mxu0 0
        %4239 = vmatmul.mubr.bf16.gmra.mrb[0].mxu0 %v4128
        %v4240 = vpop.f32.mrb[0].mxu0
        %v4241 = vadd.f32 0.0, %v4240
        %v4242 = vpop.f32.mrb[0].mxu0
        %v4243 = vpop.f32.mrb[0].mxu0
        %v4244 = vadd.f32 0.0, %v4243
        %v4245 = vpop.f32.mrb[0].mxu0
        %4246 = vmatprep.mubr.bf16.mxu0 0
        %4247 = vmatmul.mubr.bf16.gmra.mrb[0].mxu0 %v4131
        %v4248 = vpop.f32.mrb[0].mxu0
        %v4249 = vadd.f32 0.0, %v4248
        %v4250 = vpop.f32.mrb[0].mxu0
        %v4251 = vpop.f32.mrb[0].mxu0
        %v4252 = vadd.f32 0.0, %v4251
        %v4253 = vpop.f32.mrb[0].mxu0
        %4254 = vmatprep.mubr.bf16.mxu0 0
        %4255 = vmatmul.mubr.bf16.gmra.mrb[0].mxu0 %v4134
        %v4256 = vpop.f32.mrb[0].mxu0
        %v4257 = vadd.f32 0.0, %v4256
        %v4258 = vpop.f32.mrb[0].mxu0
        %v4259 = vpop.f32.mrb[0].mxu0
        %v4260 = vadd.f32 0.0, %v4259
        %v4261 = vpop.f32.mrb[0].mxu0
        %4262 = vmatprep.mubr.bf16.mxu0 0
        %4263 = vmatmul.mubr.bf16.gmra.mrb[0].mxu0 %v4137
        %v4264 = vpop.f32.mrb[0].mxu0
        %v4265 = vadd.f32 0.0, %v4264
        %v4266 = vpop.f32.mrb[0].mxu0
        %v4267 = vpop.f32.mrb[0].mxu0
        %v4268 = vadd.f32 0.0, %v4267
        %v4269 = vpop.f32.mrb[0].mxu0
        %4270 = vdwg.mxu0
        %v4272 = vsel %vm1406, %v2733, 0
        %v4275 = vsel %vm1406, %v2734, 0
        %v4278 = vsel %vm1406, %v2735, 0
        %v4281 = vsel %vm1406, %v2736, 0
        %v4284 = vsel %vm1406, %v2737, 0
        %v4287 = vsel %vm1406, %v2738, 0
        %v4290 = vsel %vm1406, %v2739, 0
        %v4293 = vsel %vm1406, %v2740, 0
        %v4296 = vsel %vm1406, %v2741, 0
        %v4299 = vsel %vm1406, %v2742, 0
        %v4302 = vsel %vm1406, %v2743, 0
        %v4305 = vsel %vm1406, %v2744, 0
        %v4308 = vsel %vm2247, %v2745, 0
        %4310 = vmatprep.subr.bf16.mxu0 0
        %4311 = vmatpush1.bf16.msra.mxu0 %v4308
        %4312 = vmatprep.subr.bf16.mxu0 0
        %4313 = vmatpush1.bf16.msra.mxu0 0
        %4314 = vmatprep.subr.bf16.mxu0 0
        %4315 = vmatpush1.bf16.msra.mxu0 0
        %4316 = vmatprep.subr.bf16.mxu0 0
        %4317 = vmatpush1.bf16.msra.mxu0 0
        %4318 = vmatprep.subr.bf16.mxu0 0
        %4319 = vmatpush1.bf16.msra.mxu0 0
        %4320 = vmatprep.subr.bf16.mxu0 0
        %4321 = vmatpush1.bf16.msra.mxu0 0
        %4322 = vmatprep.subr.bf16.mxu0 0
        %4323 = vmatpush1.bf16.msra.mxu0 0
        %4324 = vmatprep.subr.bf16.mxu0 0
        %4325 = vmatpush1.bf16.msra.mxu0 0
        %4326 = vmatprep.subr.bf16.mxu0 0
        %4327 = vmatpush1.bf16.msra.mxu0 0
        %4328 = vmatprep.subr.bf16.mxu0 0
        %4329 = vmatpush1.bf16.msra.mxu0 0
        %4330 = vmatprep.subr.bf16.mxu0 0
        %4331 = vmatpush1.bf16.msra.mxu0 0
        %4332 = vmatprep.subr.bf16.mxu0 0
        %4333 = vmatpush1.bf16.msra.mxu0 0
        %4334 = vmatprep.subr.bf16.mxu0 0
        %4335 = vmatpush1.bf16.msra.mxu0 0
        %4336 = vmatprep.subr.bf16.mxu0 0
        %4337 = vmatpush1.bf16.msra.mxu0 0
        %4338 = vmatprep.subr.bf16.mxu0 0
        %4339 = vmatpush1.bf16.msra.mxu0 0
        %4340 = vmatprep.subr.bf16.mxu0 0
        %4341 = vmatpush1.bf16.msra.mxu0 0
        %4342 = vmatprep.mubr.bf16.mxu0 0
        %4343 = vmatmul.mubr.bf16.gmra.mrb[0].mxu0 %v4272
        %v4344 = vpop.f32.mrb[0].mxu0
        %v4345 = vadd.f32 %v4177, %v4344
        %v4346 = vpop.f32.mrb[0].mxu0
        %v4347 = vpop.f32.mrb[0].mxu0
        %v4348 = vadd.f32 %v4180, %v4347
        %v4349 = vpop.f32.mrb[0].mxu0
        %4350 = vmatprep.mubr.bf16.mxu0 0
        %4351 = vmatmul.mubr.bf16.gmra.mrb[0].mxu0 %v4275
        %v4352 = vpop.f32.mrb[0].mxu0
        %v4353 = vadd.f32 %v4185, %v4352
        %v4354 = vpop.f32.mrb[0].mxu0
        %v4355 = vpop.f32.mrb[0].mxu0
        %v4356 = vadd.f32 %v4188, %v4355
        %v4357 = vpop.f32.mrb[0].mxu0
        %4358 = vmatprep.mubr.bf16.mxu0 0
        %4359 = vmatmul.mubr.bf16.gmra.mrb[0].mxu0 %v4278
        %v4360 = vpop.f32.mrb[0].mxu0
        %v4361 = vadd.f32 %v4193, %v4360
        %v4362 = vpop.f32.mrb[0].mxu0
        %v4363 = vpop.f32.mrb[0].mxu0
        %v4364 = vadd.f32 %v4196, %v4363
        %v4365 = vpop.f32.mrb[0].mxu0
        %4366 = vmatprep.mubr.bf16.mxu0 0
        %4367 = vmatmul.mubr.bf16.gmra.mrb[0].mxu0 %v4281
        %v4368 = vpop.f32.mrb[0].mxu0
        %v4369 = vadd.f32 %v4201, %v4368
        %v4370 = vpop.f32.mrb[0].mxu0
        %v4371 = vpop.f32.mrb[0].mxu0
        %v4372 = vadd.f32 %v4204, %v4371
        %v4373 = vpop.f32.mrb[0].mxu0
        %4374 = vmatprep.mubr.bf16.mxu0 0
        %4375 = vmatmul.mubr.bf16.gmra.mrb[0].mxu0 %v4284
        %v4376 = vpop.f32.mrb[0].mxu0
        %v4377 = vadd.f32 %v4209, %v4376
        %v4378 = vpop.f32.mrb[0].mxu0
        %v4379 = vpop.f32.mrb[0].mxu0
        %v4380 = vadd.f32 %v4212, %v4379
        %v4381 = vpop.f32.mrb[0].mxu0
        %4382 = vmatprep.mubr.bf16.mxu0 0
        %4383 = vmatmul.mubr.bf16.gmra.mrb[0].mxu0 %v4287
        %v4384 = vpop.f32.mrb[0].mxu0
        %v4385 = vadd.f32 %v4217, %v4384
        %v4386 = vpop.f32.mrb[0].mxu0
        %v4387 = vpop.f32.mrb[0].mxu0
        %v4388 = vadd.f32 %v4220, %v4387
        %v4389 = vpop.f32.mrb[0].mxu0
        %4390 = vmatprep.mubr.bf16.mxu0 0
        %4391 = vmatmul.mubr.bf16.gmra.mrb[0].mxu0 %v4290
        %v4392 = vpop.f32.mrb[0].mxu0
        %v4393 = vadd.f32 %v4225, %v4392
        %v4394 = vpop.f32.mrb[0].mxu0
        %v4395 = vpop.f32.mrb[0].mxu0
        %v4396 = vadd.f32 %v4228, %v4395
        %v4397 = vpop.f32.mrb[0].mxu0
        %4398 = vmatprep.mubr.bf16.mxu0 0
        %4399 = vmatmul.mubr.bf16.gmra.mrb[0].mxu0 %v4293
        %v4400 = vpop.f32.mrb[0].mxu0
        %v4401 = vadd.f32 %v4233, %v4400
        %v4402 = vpop.f32.mrb[0].mxu0
        %v4403 = vpop.f32.mrb[0].mxu0
        %v4404 = vadd.f32 %v4236, %v4403
        %v4405 = vpop.f32.mrb[0].mxu0
        %4406 = vmatprep.mubr.bf16.mxu0 0
        %4407 = vmatmul.mubr.bf16.gmra.mrb[0].mxu0 %v4296
        %v4408 = vpop.f32.mrb[0].mxu0
        %v4409 = vadd.f32 %v4241, %v4408
        %v4410 = vpop.f32.mrb[0].mxu0
        %v4411 = vpop.f32.mrb[0].mxu0
        %v4412 = vadd.f32 %v4244, %v4411
        %v4413 = vpop.f32.mrb[0].mxu0
        %4414 = vmatprep.mubr.bf16.mxu0 0
        %4415 = vmatmul.mubr.bf16.gmra.mrb[0].mxu0 %v4299
        %v4416 = vpop.f32.mrb[0].mxu0
        %v4417 = vadd.f32 %v4249, %v4416
        %v4418 = vpop.f32.mrb[0].mxu0
        %v4419 = vpop.f32.mrb[0].mxu0
        %v4420 = vadd.f32 %v4252, %v4419
        %v4421 = vpop.f32.mrb[0].mxu0
        %4422 = vmatprep.mubr.bf16.mxu0 0
        %4423 = vmatmul.mubr.bf16.gmra.mrb[0].mxu0 %v4302
        %v4424 = vpop.f32.mrb[0].mxu0
        %v4425 = vadd.f32 %v4257, %v4424
        %v4426 = vpop.f32.mrb[0].mxu0
        %v4427 = vpop.f32.mrb[0].mxu0
        %v4428 = vadd.f32 %v4260, %v4427
        %v4429 = vpop.f32.mrb[0].mxu0
        %4430 = vmatprep.mubr.bf16.mxu0 0
        %4431 = vmatmul.mubr.bf16.gmra.mrb[0].mxu0 %v4305
        %v4432 = vpop.f32.mrb[0].mxu0
        %v4433 = vadd.f32 %v4265, %v4432
        %v4434 = vpop.f32.mrb[0].mxu0
        %v4435 = vpop.f32.mrb[0].mxu0
        %v4436 = vadd.f32 %v4268, %v4435
        %v4437 = vpop.f32.mrb[0].mxu0
        %4438 = vdwg.mxu0
        %4439 = vrot.lane.b32.xlu0 %v1400, 112
        %v4440 = vpop.permute.xlu0 %4439
        %4441 = vrot.lane.b32.xlu0 %v1401, 112
        %v4442 = vpop.permute.xlu0 %4441
        %4443 = vrot.lane.b32.xlu0 %v1400, 80
        %v4444 = vpop.permute.xlu0 %4443
        %4445 = vrot.lane.b32.xlu0 %v1401, 80
        %v4446 = vpop.permute.xlu0 %4445
        %v4448 = vsel %vm1406, %v4440, 0
        %v4451 = vsel %vm1406, %v4442, 0
        %v4454 = vsel %vm1406, %v4444, 0
        %v4457 = vsel %vm1406, %v4446, 0
        %4459 = vmatprep.subr.bf16.mxu0 0
        %4460 = vmatpush1.bf16.xpose.msra.mxu0 %v4454
        %4461 = vmatprep.subr.bf16.mxu0 0
        %4462 = vmatpush1.bf16.xpose.msra.mxu0 %v4457
        %4463 = vmatprep.subr.bf16.mxu0 0
        %4464 = vmatpush1.bf16.xpose.msra.mxu0 0
        %4465 = vmatprep.subr.bf16.mxu0 0
        %4466 = vmatpush1.bf16.xpose.msra.mxu0 0
        %4467 = vmatprep.subr.bf16.mxu0 0
        %4468 = vmatpush1.bf16.xpose.msra.mxu0 0
        %4469 = vmatprep.subr.bf16.mxu0 0
        %4470 = vmatpush1.bf16.xpose.msra.mxu0 0
        %4471 = vmatprep.subr.bf16.mxu0 0
        %4472 = vmatpush1.bf16.xpose.msra.mxu0 0
        %4473 = vmatprep.subr.bf16.mxu0 0
        %4474 = vmatpush1.bf16.xpose.msra.mxu0 0
        %4475 = vmatprep.subr.bf16.mxu0 0
        %4476 = vmatpush1.bf16.xpose.msra.mxu0 0
        %4477 = vmatprep.subr.bf16.mxu0 0
        %4478 = vmatpush1.bf16.xpose.msra.mxu0 0
        %4479 = vmatprep.subr.bf16.mxu0 0
        %4480 = vmatpush1.bf16.xpose.msra.mxu0 0
        %4481 = vmatprep.subr.bf16.mxu0 0
        %4482 = vmatpush1.bf16.xpose.msra.mxu0 0
        %4483 = vmatprep.subr.bf16.mxu0 0
        %4484 = vmatpush1.bf16.xpose.msra.mxu0 0
        %4485 = vmatprep.subr.bf16.mxu0 0
        %4486 = vmatpush1.bf16.xpose.msra.mxu0 0
        %4487 = vmatprep.subr.bf16.mxu0 0
        %4488 = vmatpush1.bf16.xpose.msra.mxu0 0
        %4489 = vmatprep.subr.bf16.mxu0 0
        %4490 = vmatpush1.bf16.xpose.msra.mxu0 0
        %4491 = vmatprep.mubr.bf16.mxu0 0
        %4492 = vmatmul.mubr.bf16.gmra.mrb[0].mxu0 %v4448
        %v4493 = vpop.f32.mrb[0].mxu0
        %v4494 = vadd.f32 0.0, %v4493
        %v4495 = vpop.f32.mrb[0].mxu0
        %v4496 = vpop.f32.mrb[0].mxu0
        %v4497 = vadd.f32 0.0, %v4496
        %v4498 = vpop.f32.mrb[0].mxu0
        %4499 = vmatprep.mubr.bf16.mxu0 0
        %4500 = vmatmul.mubr.bf16.gmra.mrb[0].mxu0 %v4451
        %v4501 = vpop.f32.mrb[0].mxu0
        %v4502 = vadd.f32 0.0, %v4501
        %v4503 = vpop.f32.mrb[0].mxu0
        %v4504 = vpop.f32.mrb[0].mxu0
        %v4505 = vpop.f32.mrb[0].mxu0
        %4506 = vdwg.mxu0
        %4507 = vrot.lane.b32.xlu0 %v1467, 112
        %v4508 = vpop.permute.xlu0 %4507
        %4509 = vrot.lane.b32.xlu0 %v1468, 112
        %v4510 = vpop.permute.xlu0 %4509
        %4511 = vrot.lane.b32.xlu0 %v1467, 80
        %v4512 = vpop.permute.xlu0 %4511
        %4513 = vrot.lane.b32.xlu0 %v1468, 80
        %v4514 = vpop.permute.xlu0 %4513
        %v4516 = vsel %vm1406, %v4508, 0
        %v4519 = vsel %vm1406, %v4510, 0
        %v4522 = vsel %vm1406, %v4512, 0
        %v4525 = vsel %vm1406, %v4514, 0
        %4527 = vmatprep.subr.bf16.mxu0 0
        %4528 = vmatpush1.bf16.xpose.msra.mxu0 %v4522
        %4529 = vmatprep.subr.bf16.mxu0 0
        %4530 = vmatpush1.bf16.xpose.msra.mxu0 %v4525
        %4531 = vmatprep.subr.bf16.mxu0 0
        %4532 = vmatpush1.bf16.xpose.msra.mxu0 0
        %4533 = vmatprep.subr.bf16.mxu0 0
        %4534 = vmatpush1.bf16.xpose.msra.mxu0 0
        %4535 = vmatprep.subr.bf16.mxu0 0
        %4536 = vmatpush1.bf16.xpose.msra.mxu0 0
        %4537 = vmatprep.subr.bf16.mxu0 0
        %4538 = vmatpush1.bf16.xpose.msra.mxu0 0
        %4539 = vmatprep.subr.bf16.mxu0 0
        %4540 = vmatpush1.bf16.xpose.msra.mxu0 0
        %4541 = vmatprep.subr.bf16.mxu0 0
        %4542 = vmatpush1.bf16.xpose.msra.mxu0 0
        %4543 = vmatprep.subr.bf16.mxu0 0
        %4544 = vmatpush1.bf16.xpose.msra.mxu0 0
        %4545 = vmatprep.subr.bf16.mxu0 0
        %4546 = vmatpush1.bf16.xpose.msra.mxu0 0
        %4547 = vmatprep.subr.bf16.mxu0 0
        %4548 = vmatpush1.bf16.xpose.msra.mxu0 0
        %4549 = vmatprep.subr.bf16.mxu0 0
        %4550 = vmatpush1.bf16.xpose.msra.mxu0 0
        %4551 = vmatprep.subr.bf16.mxu0 0
        %4552 = vmatpush1.bf16.xpose.msra.mxu0 0
        %4553 = vmatprep.subr.bf16.mxu0 0
        %4554 = vmatpush1.bf16.xpose.msra.mxu0 0
        %4555 = vmatprep.subr.bf16.mxu0 0
        %4556 = vmatpush1.bf16.xpose.msra.mxu0 0
        %4557 = vmatprep.subr.bf16.mxu0 0
        %4558 = vmatpush1.bf16.xpose.msra.mxu0 0
        %4559 = vmatprep.mubr.bf16.mxu0 0
        %4560 = vmatmul.mubr.bf16.gmra.mrb[0].mxu0 %v4516
        %v4561 = vpop.f32.mrb[0].mxu0
        %v4562 = vadd.f32 0.0, %v4561
        %v4563 = vpop.f32.mrb[0].mxu0
        %v4564 = vpop.f32.mrb[0].mxu0
        %v4565 = vadd.f32 0.0, %v4564
        %v4566 = vpop.f32.mrb[0].mxu0
        %4567 = vmatprep.mubr.bf16.mxu0 0
        %4568 = vmatmul.mubr.bf16.gmra.mrb[0].mxu0 %v4519
        %v4569 = vpop.f32.mrb[0].mxu0
        %v4570 = vadd.f32 0.0, %v4569
        %v4571 = vpop.f32.mrb[0].mxu0
        %v4572 = vpop.f32.mrb[0].mxu0
        %v4573 = vpop.f32.mrb[0].mxu0
        %4574 = vdwg.mxu0
        %4575 = vrot.lane.b32.xlu0 %v1533, 112
        %v4576 = vpop.permute.xlu0 %4575
        %4577 = vrot.lane.b32.xlu0 %v1534, 112
        %v4578 = vpop.permute.xlu0 %4577
        %4579 = vrot.lane.b32.xlu0 %v1533, 80
        %v4580 = vpop.permute.xlu0 %4579
        %4581 = vrot.lane.b32.xlu0 %v1534, 80
        %v4582 = vpop.permute.xlu0 %4581
        %v4584 = vsel %vm1406, %v4576, 0
        %v4587 = vsel %vm1406, %v4578, 0
        %v4590 = vsel %vm1406, %v4580, 0
        %v4593 = vsel %vm1406, %v4582, 0
        %4595 = vmatprep.subr.bf16.mxu0 0
        %4596 = vmatpush1.bf16.xpose.msra.mxu0 %v4590
        %4597 = vmatprep.subr.bf16.mxu0 0
        %4598 = vmatpush1.bf16.xpose.msra.mxu0 %v4593
        %4599 = vmatprep.subr.bf16.mxu0 0
        %4600 = vmatpush1.bf16.xpose.msra.mxu0 0
        %4601 = vmatprep.subr.bf16.mxu0 0
        %4602 = vmatpush1.bf16.xpose.msra.mxu0 0
        %4603 = vmatprep.subr.bf16.mxu0 0
        %4604 = vmatpush1.bf16.xpose.msra.mxu0 0
        %4605 = vmatprep.subr.bf16.mxu0 0
        %4606 = vmatpush1.bf16.xpose.msra.mxu0 0
        %4607 = vmatprep.subr.bf16.mxu0 0
        %4608 = vmatpush1.bf16.xpose.msra.mxu0 0
        %4609 = vmatprep.subr.bf16.mxu0 0
        %4610 = vmatpush1.bf16.xpose.msra.mxu0 0
        %4611 = vmatprep.subr.bf16.mxu0 0
        %4612 = vmatpush1.bf16.xpose.msra.mxu0 0
        %4613 = vmatprep.subr.bf16.mxu0 0
        %4614 = vmatpush1.bf16.xpose.msra.mxu0 0
        %4615 = vmatprep.subr.bf16.mxu0 0
        %4616 = vmatpush1.bf16.xpose.msra.mxu0 0
        %4617 = vmatprep.subr.bf16.mxu0 0
        %4618 = vmatpush1.bf16.xpose.msra.mxu0 0
        %4619 = vmatprep.subr.bf16.mxu0 0
        %4620 = vmatpush1.bf16.xpose.msra.mxu0 0
        %4621 = vmatprep.subr.bf16.mxu0 0
        %4622 = vmatpush1.bf16.xpose.msra.mxu0 0
        %4623 = vmatprep.subr.bf16.mxu0 0
        %4624 = vmatpush1.bf16.xpose.msra.mxu0 0
        %4625 = vmatprep.subr.bf16.mxu0 0
        %4626 = vmatpush1.bf16.xpose.msra.mxu0 0
        %4627 = vmatprep.mubr.bf16.mxu0 0
        %4628 = vmatmul.mubr.bf16.gmra.mrb[0].mxu0 %v4584
        %v4629 = vpop.f32.mrb[0].mxu0
        %v4630 = vadd.f32 0.0, %v4629
        %v4631 = vpop.f32.mrb[0].mxu0
        %v4632 = vpop.f32.mrb[0].mxu0
        %v4633 = vadd.f32 0.0, %v4632
        %v4634 = vpop.f32.mrb[0].mxu0
        %4635 = vmatprep.mubr.bf16.mxu0 0
        %4636 = vmatmul.mubr.bf16.gmra.mrb[0].mxu0 %v4587
        %v4637 = vpop.f32.mrb[0].mxu0
        %v4638 = vadd.f32 0.0, %v4637
        %v4639 = vpop.f32.mrb[0].mxu0
        %v4640 = vpop.f32.mrb[0].mxu0
        %v4641 = vpop.f32.mrb[0].mxu0
        %4642 = vdwg.mxu0
        %4643 = vrot.lane.b32.xlu0 %v1599, 112
        %v4644 = vpop.permute.xlu0 %4643
        %4645 = vrot.lane.b32.xlu0 %v1600, 112
        %v4646 = vpop.permute.xlu0 %4645
        %4647 = vrot.lane.b32.xlu0 %v1599, 80
        %v4648 = vpop.permute.xlu0 %4647
        %4649 = vrot.lane.b32.xlu0 %v1600, 80
        %v4650 = vpop.permute.xlu0 %4649
        %v4652 = vsel %vm1406, %v4644, 0
        %v4655 = vsel %vm1406, %v4646, 0
        %v4658 = vsel %vm1406, %v4648, 0
        %v4661 = vsel %vm1406, %v4650, 0
        %4663 = vmatprep.subr.bf16.mxu0 0
        %4664 = vmatpush1.bf16.xpose.msra.mxu0 %v4658
        %4665 = vmatprep.subr.bf16.mxu0 0
        %4666 = vmatpush1.bf16.xpose.msra.mxu0 %v4661
        %4667 = vmatprep.subr.bf16.mxu0 0
        %4668 = vmatpush1.bf16.xpose.msra.mxu0 0
        %4669 = vmatprep.subr.bf16.mxu0 0
        %4670 = vmatpush1.bf16.xpose.msra.mxu0 0
        %4671 = vmatprep.subr.bf16.mxu0 0
        %4672 = vmatpush1.bf16.xpose.msra.mxu0 0
        %4673 = vmatprep.subr.bf16.mxu0 0
        %4674 = vmatpush1.bf16.xpose.msra.mxu0 0
        %4675 = vmatprep.subr.bf16.mxu0 0
        %4676 = vmatpush1.bf16.xpose.msra.mxu0 0
        %4677 = vmatprep.subr.bf16.mxu0 0
        %4678 = vmatpush1.bf16.xpose.msra.mxu0 0
        %4679 = vmatprep.subr.bf16.mxu0 0
        %4680 = vmatpush1.bf16.xpose.msra.mxu0 0
        %4681 = vmatprep.subr.bf16.mxu0 0
        %4682 = vmatpush1.bf16.xpose.msra.mxu0 0
        %4683 = vmatprep.subr.bf16.mxu0 0
        %4684 = vmatpush1.bf16.xpose.msra.mxu0 0
        %4685 = vmatprep.subr.bf16.mxu0 0
        %4686 = vmatpush1.bf16.xpose.msra.mxu0 0
        %4687 = vmatprep.subr.bf16.mxu0 0
        %4688 = vmatpush1.bf16.xpose.msra.mxu0 0
        %4689 = vmatprep.subr.bf16.mxu0 0
        %4690 = vmatpush1.bf16.xpose.msra.mxu0 0
        %4691 = vmatprep.subr.bf16.mxu0 0
        %4692 = vmatpush1.bf16.xpose.msra.mxu0 0
        %4693 = vmatprep.subr.bf16.mxu0 0
        %4694 = vmatpush1.bf16.xpose.msra.mxu0 0
        %4695 = vmatprep.mubr.bf16.mxu0 0
        %4696 = vmatmul.mubr.bf16.gmra.mrb[0].mxu0 %v4652
        %v4697 = vpop.f32.mrb[0].mxu0
        %v4698 = vadd.f32 0.0, %v4697
        %v4699 = vpop.f32.mrb[0].mxu0
        %v4700 = vpop.f32.mrb[0].mxu0
        %v4701 = vadd.f32 0.0, %v4700
        %v4702 = vpop.f32.mrb[0].mxu0
        %4703 = vmatprep.mubr.bf16.mxu0 0
        %4704 = vmatmul.mubr.bf16.gmra.mrb[0].mxu0 %v4655
        %v4705 = vpop.f32.mrb[0].mxu0
        %v4706 = vadd.f32 0.0, %v4705
        %v4707 = vpop.f32.mrb[0].mxu0
        %v4708 = vpop.f32.mrb[0].mxu0
        %v4709 = vpop.f32.mrb[0].mxu0
        %4710 = vdwg.mxu0
        %4711 = vrot.lane.b32.xlu0 %v1665, 112
        %v4712 = vpop.permute.xlu0 %4711
        %4713 = vrot.lane.b32.xlu0 %v1666, 112
        %v4714 = vpop.permute.xlu0 %4713
        %4715 = vrot.lane.b32.xlu0 %v1665, 80
        %v4716 = vpop.permute.xlu0 %4715
        %4717 = vrot.lane.b32.xlu0 %v1666, 80
        %v4718 = vpop.permute.xlu0 %4717
        %v4720 = vsel %vm1406, %v4712, 0
        %v4723 = vsel %vm1406, %v4714, 0
        %v4726 = vsel %vm1406, %v4716, 0
        %v4729 = vsel %vm1406, %v4718, 0
        %4731 = vmatprep.subr.bf16.mxu0 0
        %4732 = vmatpush1.bf16.xpose.msra.mxu0 %v4726
        %4733 = vmatprep.subr.bf16.mxu0 0
        %4734 = vmatpush1.bf16.xpose.msra.mxu0 %v4729
        %4735 = vmatprep.subr.bf16.mxu0 0
        %4736 = vmatpush1.bf16.xpose.msra.mxu0 0
        %4737 = vmatprep.subr.bf16.mxu0 0
        %4738 = vmatpush1.bf16.xpose.msra.mxu0 0
        %4739 = vmatprep.subr.bf16.mxu0 0
        %4740 = vmatpush1.bf16.xpose.msra.mxu0 0
        %4741 = vmatprep.subr.bf16.mxu0 0
        %4742 = vmatpush1.bf16.xpose.msra.mxu0 0
        %4743 = vmatprep.subr.bf16.mxu0 0
        %4744 = vmatpush1.bf16.xpose.msra.mxu0 0
        %4745 = vmatprep.subr.bf16.mxu0 0
        %4746 = vmatpush1.bf16.xpose.msra.mxu0 0
        %4747 = vmatprep.subr.bf16.mxu0 0
        %4748 = vmatpush1.bf16.xpose.msra.mxu0 0
        %4749 = vmatprep.subr.bf16.mxu0 0
        %4750 = vmatpush1.bf16.xpose.msra.mxu0 0
        %4751 = vmatprep.subr.bf16.mxu0 0
        %4752 = vmatpush1.bf16.xpose.msra.mxu0 0
        %4753 = vmatprep.subr.bf16.mxu0 0
        %4754 = vmatpush1.bf16.xpose.msra.mxu0 0
        %4755 = vmatprep.subr.bf16.mxu0 0
        %4756 = vmatpush1.bf16.xpose.msra.mxu0 0
        %4757 = vmatprep.subr.bf16.mxu0 0
        %4758 = vmatpush1.bf16.xpose.msra.mxu0 0
        %4759 = vmatprep.subr.bf16.mxu0 0
        %4760 = vmatpush1.bf16.xpose.msra.mxu0 0
        %4761 = vmatprep.subr.bf16.mxu0 0
        %4762 = vmatpush1.bf16.xpose.msra.mxu0 0
        %4763 = vmatprep.mubr.bf16.mxu0 0
        %4764 = vmatmul.mubr.bf16.gmra.mrb[0].mxu0 %v4720
        %v4765 = vpop.f32.mrb[0].mxu0
        %v4766 = vadd.f32 0.0, %v4765
        %v4767 = vpop.f32.mrb[0].mxu0
        %v4768 = vpop.f32.mrb[0].mxu0
        %v4769 = vadd.f32 0.0, %v4768
        %v4770 = vpop.f32.mrb[0].mxu0
        %4771 = vmatprep.mubr.bf16.mxu0 0
        %4772 = vmatmul.mubr.bf16.gmra.mrb[0].mxu0 %v4723
        %v4773 = vpop.f32.mrb[0].mxu0
        %v4774 = vadd.f32 0.0, %v4773
        %v4775 = vpop.f32.mrb[0].mxu0
        %v4776 = vpop.f32.mrb[0].mxu0
        %v4777 = vpop.f32.mrb[0].mxu0
        %4778 = vdwg.mxu0
        %4779 = vrot.lane.b32.xlu0 %v1731, 112
        %v4780 = vpop.permute.xlu0 %4779
        %4781 = vrot.lane.b32.xlu0 %v1732, 112
        %v4782 = vpop.permute.xlu0 %4781
        %4783 = vrot.lane.b32.xlu0 %v1731, 80
        %v4784 = vpop.permute.xlu0 %4783
        %4785 = vrot.lane.b32.xlu0 %v1732, 80
        %v4786 = vpop.permute.xlu0 %4785
        %v4788 = vsel %vm1406, %v4780, 0
        %v4791 = vsel %vm1406, %v4782, 0
        %v4794 = vsel %vm1406, %v4784, 0
        %v4797 = vsel %vm1406, %v4786, 0
        %4799 = vmatprep.subr.bf16.mxu0 0
        %4800 = vmatpush1.bf16.xpose.msra.mxu0 %v4794
        %4801 = vmatprep.subr.bf16.mxu0 0
        %4802 = vmatpush1.bf16.xpose.msra.mxu0 %v4797
        %4803 = vmatprep.subr.bf16.mxu0 0
        %4804 = vmatpush1.bf16.xpose.msra.mxu0 0
        %4805 = vmatprep.subr.bf16.mxu0 0
        %4806 = vmatpush1.bf16.xpose.msra.mxu0 0
        %4807 = vmatprep.subr.bf16.mxu0 0
        %4808 = vmatpush1.bf16.xpose.msra.mxu0 0
        %4809 = vmatprep.subr.bf16.mxu0 0
        %4810 = vmatpush1.bf16.xpose.msra.mxu0 0
        %4811 = vmatprep.subr.bf16.mxu0 0
        %4812 = vmatpush1.bf16.xpose.msra.mxu0 0
        %4813 = vmatprep.subr.bf16.mxu0 0
        %4814 = vmatpush1.bf16.xpose.msra.mxu0 0
        %4815 = vmatprep.subr.bf16.mxu0 0
        %4816 = vmatpush1.bf16.xpose.msra.mxu0 0
        %4817 = vmatprep.subr.bf16.mxu0 0
        %4818 = vmatpush1.bf16.xpose.msra.mxu0 0
        %4819 = vmatprep.subr.bf16.mxu0 0
        %4820 = vmatpush1.bf16.xpose.msra.mxu0 0
        %4821 = vmatprep.subr.bf16.mxu0 0
        %4822 = vmatpush1.bf16.xpose.msra.mxu0 0
        %4823 = vmatprep.subr.bf16.mxu0 0
        %4824 = vmatpush1.bf16.xpose.msra.mxu0 0
        %4825 = vmatprep.subr.bf16.mxu0 0
        %4826 = vmatpush1.bf16.xpose.msra.mxu0 0
        %4827 = vmatprep.subr.bf16.mxu0 0
        %4828 = vmatpush1.bf16.xpose.msra.mxu0 0
        %4829 = vmatprep.subr.bf16.mxu0 0
        %4830 = vmatpush1.bf16.xpose.msra.mxu0 0
        %4831 = vmatprep.mubr.bf16.mxu0 0
        %4832 = vmatmul.mubr.bf16.gmra.mrb[0].mxu0 %v4788
        %v4833 = vpop.f32.mrb[0].mxu0
        %v4834 = vadd.f32 0.0, %v4833
        %v4835 = vpop.f32.mrb[0].mxu0
        %v4836 = vpop.f32.mrb[0].mxu0
        %v4837 = vadd.f32 0.0, %v4836
        %v4838 = vpop.f32.mrb[0].mxu0
        %4839 = vmatprep.mubr.bf16.mxu0 0
        %4840 = vmatmul.mubr.bf16.gmra.mrb[0].mxu0 %v4791
        %v4841 = vpop.f32.mrb[0].mxu0
        %v4842 = vadd.f32 0.0, %v4841
        %v4843 = vpop.f32.mrb[0].mxu0
        %v4844 = vpop.f32.mrb[0].mxu0
        %v4845 = vpop.f32.mrb[0].mxu0
        %4846 = vdwg.mxu0
        %4847 = vrot.lane.b32.xlu0 %v1797, 112
        %v4848 = vpop.permute.xlu0 %4847
        %4849 = vrot.lane.b32.xlu0 %v1798, 112
        %v4850 = vpop.permute.xlu0 %4849
        %4851 = vrot.lane.b32.xlu0 %v1797, 80
        %v4852 = vpop.permute.xlu0 %4851
        %4853 = vrot.lane.b32.xlu0 %v1798, 80
        %v4854 = vpop.permute.xlu0 %4853
        %v4856 = vsel %vm1406, %v4848, 0
        %v4859 = vsel %vm1406, %v4850, 0
        %v4862 = vsel %vm1406, %v4852, 0
        %v4865 = vsel %vm1406, %v4854, 0
        %4867 = vmatprep.subr.bf16.mxu0 0
        %4868 = vmatpush1.bf16.xpose.msra.mxu0 %v4862
        %4869 = vmatprep.subr.bf16.mxu0 0
        %4870 = vmatpush1.bf16.xpose.msra.mxu0 %v4865
        %4871 = vmatprep.subr.bf16.mxu0 0
        %4872 = vmatpush1.bf16.xpose.msra.mxu0 0
        %4873 = vmatprep.subr.bf16.mxu0 0
        %4874 = vmatpush1.bf16.xpose.msra.mxu0 0
        %4875 = vmatprep.subr.bf16.mxu0 0
        %4876 = vmatpush1.bf16.xpose.msra.mxu0 0
        %4877 = vmatprep.subr.bf16.mxu0 0
        %4878 = vmatpush1.bf16.xpose.msra.mxu0 0
        %4879 = vmatprep.subr.bf16.mxu0 0
        %4880 = vmatpush1.bf16.xpose.msra.mxu0 0
        %4881 = vmatprep.subr.bf16.mxu0 0
        %4882 = vmatpush1.bf16.xpose.msra.mxu0 0
        %4883 = vmatprep.subr.bf16.mxu0 0
        %4884 = vmatpush1.bf16.xpose.msra.mxu0 0
        %4885 = vmatprep.subr.bf16.mxu0 0
        %4886 = vmatpush1.bf16.xpose.msra.mxu0 0
        %4887 = vmatprep.subr.bf16.mxu0 0
        %4888 = vmatpush1.bf16.xpose.msra.mxu0 0
        %4889 = vmatprep.subr.bf16.mxu0 0
        %4890 = vmatpush1.bf16.xpose.msra.mxu0 0
        %4891 = vmatprep.subr.bf16.mxu0 0
        %4892 = vmatpush1.bf16.xpose.msra.mxu0 0
        %4893 = vmatprep.subr.bf16.mxu0 0
        %4894 = vmatpush1.bf16.xpose.msra.mxu0 0
        %4895 = vmatprep.subr.bf16.mxu0 0
        %4896 = vmatpush1.bf16.xpose.msra.mxu0 0
        %4897 = vmatprep.subr.bf16.mxu0 0
        %4898 = vmatpush1.bf16.xpose.msra.mxu0 0
        %4899 = vmatprep.mubr.bf16.mxu0 0
        %4900 = vmatmul.mubr.bf16.gmra.mrb[0].mxu0 %v4856
        %v4901 = vpop.f32.mrb[0].mxu0
        %v4902 = vadd.f32 0.0, %v4901
        %v4903 = vpop.f32.mrb[0].mxu0
        %v4904 = vpop.f32.mrb[0].mxu0
        %v4905 = vadd.f32 0.0, %v4904
        %v4906 = vpop.f32.mrb[0].mxu0
        %4907 = vmatprep.mubr.bf16.mxu0 0
        %4908 = vmatmul.mubr.bf16.gmra.mrb[0].mxu0 %v4859
        %v4909 = vpop.f32.mrb[0].mxu0
        %v4910 = vadd.f32 0.0, %v4909
        %v4911 = vpop.f32.mrb[0].mxu0
        %v4912 = vpop.f32.mrb[0].mxu0
        %v4913 = vpop.f32.mrb[0].mxu0
        %4914 = vdwg.mxu0
        %4915 = vrot.lane.b32.xlu0 %v1863, 112
        %v4916 = vpop.permute.xlu0 %4915
        %4917 = vrot.lane.b32.xlu0 %v1864, 112
        %v4918 = vpop.permute.xlu0 %4917
        %4919 = vrot.lane.b32.xlu0 %v1863, 80
        %v4920 = vpop.permute.xlu0 %4919
        %4921 = vrot.lane.b32.xlu0 %v1864, 80
        %v4922 = vpop.permute.xlu0 %4921
        %v4924 = vsel %vm1406, %v4916, 0
        %v4927 = vsel %vm1406, %v4918, 0
        %v4930 = vsel %vm1406, %v4920, 0
        %v4933 = vsel %vm1406, %v4922, 0
        %4935 = vmatprep.subr.bf16.mxu0 0
        %4936 = vmatpush1.bf16.xpose.msra.mxu0 %v4930
        %4937 = vmatprep.subr.bf16.mxu0 0
        %4938 = vmatpush1.bf16.xpose.msra.mxu0 %v4933
        %4939 = vmatprep.subr.bf16.mxu0 0
        %4940 = vmatpush1.bf16.xpose.msra.mxu0 0
        %4941 = vmatprep.subr.bf16.mxu0 0
        %4942 = vmatpush1.bf16.xpose.msra.mxu0 0
        %4943 = vmatprep.subr.bf16.mxu0 0
        %4944 = vmatpush1.bf16.xpose.msra.mxu0 0
        %4945 = vmatprep.subr.bf16.mxu0 0
        %4946 = vmatpush1.bf16.xpose.msra.mxu0 0
        %4947 = vmatprep.subr.bf16.mxu0 0
        %4948 = vmatpush1.bf16.xpose.msra.mxu0 0
        %4949 = vmatprep.subr.bf16.mxu0 0
        %4950 = vmatpush1.bf16.xpose.msra.mxu0 0
        %4951 = vmatprep.subr.bf16.mxu0 0
        %4952 = vmatpush1.bf16.xpose.msra.mxu0 0
        %4953 = vmatprep.subr.bf16.mxu0 0
        %4954 = vmatpush1.bf16.xpose.msra.mxu0 0
        %4955 = vmatprep.subr.bf16.mxu0 0
        %4956 = vmatpush1.bf16.xpose.msra.mxu0 0
        %4957 = vmatprep.subr.bf16.mxu0 0
        %4958 = vmatpush1.bf16.xpose.msra.mxu0 0
        %4959 = vmatprep.subr.bf16.mxu0 0
        %4960 = vmatpush1.bf16.xpose.msra.mxu0 0
        %4961 = vmatprep.subr.bf16.mxu0 0
        %4962 = vmatpush1.bf16.xpose.msra.mxu0 0
        %4963 = vmatprep.subr.bf16.mxu0 0
        %4964 = vmatpush1.bf16.xpose.msra.mxu0 0
        %4965 = vmatprep.subr.bf16.mxu0 0
        %4966 = vmatpush1.bf16.xpose.msra.mxu0 0
        %4967 = vmatprep.mubr.bf16.mxu0 0
        %4968 = vmatmul.mubr.bf16.gmra.mrb[0].mxu0 %v4924
        %v4969 = vpop.f32.mrb[0].mxu0
        %v4970 = vadd.f32 0.0, %v4969
        %v4971 = vpop.f32.mrb[0].mxu0
        %v4972 = vpop.f32.mrb[0].mxu0
        %v4973 = vadd.f32 0.0, %v4972
        %v4974 = vpop.f32.mrb[0].mxu0
        %4975 = vmatprep.mubr.bf16.mxu0 0
        %4976 = vmatmul.mubr.bf16.gmra.mrb[0].mxu0 %v4927
        %v4977 = vpop.f32.mrb[0].mxu0
        %v4978 = vadd.f32 0.0, %v4977
        %v4979 = vpop.f32.mrb[0].mxu0
        %v4980 = vpop.f32.mrb[0].mxu0
        %v4981 = vpop.f32.mrb[0].mxu0
        %4982 = vdwg.mxu0
        %v4983 = vsel %vm1930, %v4494, -1e+30
        %v4984 = vsel %vm1930, %v4497, -1e+30
        %v4985 = vsel %vm1930, %v4502, -1e+30
        %v4986 = vsel %vm1930, %v4562, -1e+30
        %v4987 = vsel %vm1930, %v4565, -1e+30
        %v4988 = vsel %vm1930, %v4570, -1e+30
        %v4989 = vsel %vm1930, %v4630, -1e+30
        %v4990 = vsel %vm1930, %v4633, -1e+30
        %v4991 = vsel %vm1930, %v4638, -1e+30
        %v4992 = vsel %vm1930, %v4698, -1e+30
        %v4993 = vsel %vm1930, %v4701, -1e+30
        %v4994 = vsel %vm1930, %v4706, -1e+30
        %v4995 = vsel %vm1930, %v4766, -1e+30
        %v4996 = vsel %vm1930, %v4769, -1e+30
        %v4997 = vsel %vm1930, %v4774, -1e+30
        %v4998 = vsel %vm1930, %v4834, -1e+30
        %v4999 = vsel %vm1930, %v4837, -1e+30
        %v5000 = vsel %vm1930, %v4842, -1e+30
        %v5001 = vsel %vm1930, %v4902, -1e+30
        %v5002 = vsel %vm1930, %v4905, -1e+30
        %v5003 = vsel %vm1930, %v4910, -1e+30
        %v5004 = vsel %vm1930, %v4970, -1e+30
        %v5005 = vsel %vm1930, %v4973, -1e+30
        %v5006 = vsel %vm1930, %v4978, -1e+30
        %v5007 = vsel %vm1955, %v4983, -inf
        %5008 = vmax.xlane.f32.xlu0 %v5007
        %v5009 = vpop.xlane.xlu0 %5008
        %v5010 = vsel %vm1955, %v4984, -inf
        %5011 = vmax.xlane.f32.xlu0 %v5010
        %v5012 = vpop.xlane.xlu0 %5011
        %v5013 = vsel %vm1955, %v4985, -inf
        %5014 = vmax.xlane.f32.xlu0 %v5013
        %v5015 = vpop.xlane.xlu0 %5014
        %v5016 = vsel %vm1955, %v4986, -inf
        %5017 = vmax.xlane.f32.xlu0 %v5016
        %v5018 = vpop.xlane.xlu0 %5017
        %v5019 = vsel %vm1955, %v4987, -inf
        %5020 = vmax.xlane.f32.xlu0 %v5019
        %v5021 = vpop.xlane.xlu0 %5020
        %v5022 = vsel %vm1955, %v4988, -inf
        %5023 = vmax.xlane.f32.xlu0 %v5022
        %v5024 = vpop.xlane.xlu0 %5023
        %v5025 = vsel %vm1955, %v4989, -inf
        %5026 = vmax.xlane.f32.xlu0 %v5025
        %v5027 = vpop.xlane.xlu0 %5026
        %v5028 = vsel %vm1955, %v4990, -inf
        %5029 = vmax.xlane.f32.xlu0 %v5028
        %v5030 = vpop.xlane.xlu0 %5029
        %v5031 = vsel %vm1955, %v4991, -inf
        %5032 = vmax.xlane.f32.xlu0 %v5031
        %v5033 = vpop.xlane.xlu0 %5032
        %v5034 = vsel %vm1955, %v4992, -inf
        %5035 = vmax.xlane.f32.xlu0 %v5034
        %v5036 = vpop.xlane.xlu0 %5035
        %v5037 = vsel %vm1955, %v4993, -inf
        %5038 = vmax.xlane.f32.xlu0 %v5037
        %v5039 = vpop.xlane.xlu0 %5038
        %v5040 = vsel %vm1955, %v4994, -inf
        %5041 = vmax.xlane.f32.xlu0 %v5040
        %v5042 = vpop.xlane.xlu0 %5041
        %v5043 = vsel %vm1955, %v4995, -inf
        %5044 = vmax.xlane.f32.xlu0 %v5043
        %v5045 = vpop.xlane.xlu0 %5044
        %v5046 = vsel %vm1955, %v4996, -inf
        %5047 = vmax.xlane.f32.xlu0 %v5046
        %v5048 = vpop.xlane.xlu0 %5047
        %v5049 = vsel %vm1955, %v4997, -inf
        %5050 = vmax.xlane.f32.xlu0 %v5049
        %v5051 = vpop.xlane.xlu0 %5050
        %v5052 = vsel %vm1955, %v4998, -inf
        %5053 = vmax.xlane.f32.xlu0 %v5052
        %v5054 = vpop.xlane.xlu0 %5053
        %v5055 = vsel %vm1955, %v4999, -inf
        %5056 = vmax.xlane.f32.xlu0 %v5055
        %v5057 = vpop.xlane.xlu0 %5056
        %v5058 = vsel %vm1955, %v5000, -inf
        %5059 = vmax.xlane.f32.xlu0 %v5058
        %v5060 = vpop.xlane.xlu0 %5059
        %v5061 = vsel %vm1955, %v5001, -inf
        %5062 = vmax.xlane.f32.xlu0 %v5061
        %v5063 = vpop.xlane.xlu0 %5062
        %v5064 = vsel %vm1955, %v5002, -inf
        %5065 = vmax.xlane.f32.xlu0 %v5064
        %v5066 = vpop.xlane.xlu0 %5065
        %v5067 = vsel %vm1955, %v5003, -inf
        %5068 = vmax.xlane.f32.xlu0 %v5067
        %v5069 = vpop.xlane.xlu0 %5068
        %v5070 = vsel %vm1955, %v5004, -inf
        %5071 = vmax.xlane.f32.xlu0 %v5070
        %v5072 = vpop.xlane.xlu0 %5071
        %v5073 = vsel %vm1955, %v5005, -inf
        %5074 = vmax.xlane.f32.xlu0 %v5073
        %v5075 = vpop.xlane.xlu0 %5074
        %v5076 = vsel %vm1955, %v5006, -inf
        %5077 = vmax.xlane.f32.xlu0 %v5076
        %v5078 = vpop.xlane.xlu0 %5077
        %v5079 = vsub.f32 %v4983, %v5009
        %v5080 = vsub.f32 %v4984, %v5012
        %v5081 = vsub.f32 %v4985, %v5015
        %v5082 = vsub.f32 %v4986, %v5018
        %v5083 = vsub.f32 %v4987, %v5021
        %v5084 = vsub.f32 %v4988, %v5024
        %v5085 = vsub.f32 %v4989, %v5027
        %v5086 = vsub.f32 %v4990, %v5030
        %v5087 = vsub.f32 %v4991, %v5033
        %v5088 = vsub.f32 %v4992, %v5036
        %v5089 = vsub.f32 %v4993, %v5039
        %v5090 = vsub.f32 %v4994, %v5042
        %v5091 = vsub.f32 %v4995, %v5045
        %v5092 = vsub.f32 %v4996, %v5048
        %v5093 = vsub.f32 %v4997, %v5051
        %v5094 = vsub.f32 %v4998, %v5054
        %v5095 = vsub.f32 %v4999, %v5057
        %v5096 = vsub.f32 %v5000, %v5060
        %v5097 = vsub.f32 %v5001, %v5063
        %v5098 = vsub.f32 %v5002, %v5066
        %v5099 = vsub.f32 %v5003, %v5069
        %v5100 = vsub.f32 %v5004, %v5072
        %v5101 = vsub.f32 %v5005, %v5075
        %v5102 = vsub.f32 %v5006, %v5078
        %v5103 = vmul.f32 %v5079, 1.442695
        %v5104 = vpow.pop %v5103
        %v5105 = vmul.f32 %v5080, 1.442695
        %v5106 = vpow.pop %v5105
        %v5107 = vmul.f32 %v5081, 1.442695
        %v5108 = vpow.pop %v5107
        %v5109 = vmul.f32 %v5082, 1.442695
        %v5110 = vpow.pop %v5109
        %v5111 = vmul.f32 %v5083, 1.442695
        %v5112 = vpow.pop %v5111
        %v5113 = vmul.f32 %v5084, 1.442695
        %v5114 = vpow.pop %v5113
        %v5115 = vmul.f32 %v5085, 1.442695
        %v5116 = vpow.pop %v5115
        %v5117 = vmul.f32 %v5086, 1.442695
        %v5118 = vpow.pop %v5117
        %v5119 = vmul.f32 %v5087, 1.442695
        %v5120 = vpow.pop %v5119
        %v5121 = vmul.f32 %v5088, 1.442695
        %v5122 = vpow.pop %v5121
        %v5123 = vmul.f32 %v5089, 1.442695
        %v5124 = vpow.pop %v5123
        %v5125 = vmul.f32 %v5090, 1.442695
        %v5126 = vpow.pop %v5125
        %v5127 = vmul.f32 %v5091, 1.442695
        %v5128 = vpow.pop %v5127
        %v5129 = vmul.f32 %v5092, 1.442695
        %v5130 = vpow.pop %v5129
        %v5131 = vmul.f32 %v5093, 1.442695
        %v5132 = vpow.pop %v5131
        %v5133 = vmul.f32 %v5094, 1.442695
        %v5134 = vpow.pop %v5133
        %v5135 = vmul.f32 %v5095, 1.442695
        %v5136 = vpow.pop %v5135
        %v5137 = vmul.f32 %v5096, 1.442695
        %v5138 = vpow.pop %v5137
        %v5139 = vmul.f32 %v5097, 1.442695
        %v5140 = vpow.pop %v5139
        %v5141 = vmul.f32 %v5098, 1.442695
        %v5142 = vpow.pop %v5141
        %v5143 = vmul.f32 %v5099, 1.442695
        %v5144 = vpow.pop %v5143
        %v5145 = vmul.f32 %v5100, 1.442695
        %v5146 = vpow.pop %v5145
        %v5147 = vmul.f32 %v5101, 1.442695
        %v5148 = vpow.pop %v5147
        %v5149 = vmul.f32 %v5102, 1.442695
        %v5150 = vpow.pop %v5149
        %v5151 = vsel %vm1955, %v5104, 0.0
        %5152 = vadd.xlane.f32.xlu0 %v5151
        %v5153 = vpop.xlane.xlu0 %5152
        %v5154 = vsel %vm1955, %v5106, 0.0
        %5155 = vadd.xlane.f32.xlu0 %v5154
        %v5156 = vpop.xlane.xlu0 %5155
        %v5157 = vsel %vm1955, %v5108, 0.0
        %5158 = vadd.xlane.f32.xlu0 %v5157
        %v5159 = vpop.xlane.xlu0 %5158
        %v5160 = vsel %vm1955, %v5110, 0.0
        %5161 = vadd.xlane.f32.xlu0 %v5160
        %v5162 = vpop.xlane.xlu0 %5161
        %v5163 = vsel %vm1955, %v5112, 0.0
        %5164 = vadd.xlane.f32.xlu0 %v5163
        %v5165 = vpop.xlane.xlu0 %5164
        %v5166 = vsel %vm1955, %v5114, 0.0
        %5167 = vadd.xlane.f32.xlu0 %v5166
        %v5168 = vpop.xlane.xlu0 %5167
        %v5169 = vsel %vm1955, %v5116, 0.0
        %5170 = vadd.xlane.f32.xlu0 %v5169
        %v5171 = vpop.xlane.xlu0 %5170
        %v5172 = vsel %vm1955, %v5118, 0.0
        %5173 = vadd.xlane.f32.xlu0 %v5172
        %v5174 = vpop.xlane.xlu0 %5173
        %v5175 = vsel %vm1955, %v5120, 0.0
        %5176 = vadd.xlane.f32.xlu0 %v5175
        %v5177 = vpop.xlane.xlu0 %5176
        %v5178 = vsel %vm1955, %v5122, 0.0
        %5179 = vadd.xlane.f32.xlu0 %v5178
        %v5180 = vpop.xlane.xlu0 %5179
        %v5181 = vsel %vm1955, %v5124, 0.0
        %5182 = vadd.xlane.f32.xlu0 %v5181
        %v5183 = vpop.xlane.xlu0 %5182
        %v5184 = vsel %vm1955, %v5126, 0.0
        %5185 = vadd.xlane.f32.xlu0 %v5184
        %v5186 = vpop.xlane.xlu0 %5185
        %v5187 = vsel %vm1955, %v5128, 0.0
        %5188 = vadd.xlane.f32.xlu0 %v5187
        %v5189 = vpop.xlane.xlu0 %5188
        %v5190 = vsel %vm1955, %v5130, 0.0
        %5191 = vadd.xlane.f32.xlu0 %v5190
        %v5192 = vpop.xlane.xlu0 %5191
        %v5193 = vsel %vm1955, %v5132, 0.0
        %5194 = vadd.xlane.f32.xlu0 %v5193
        %v5195 = vpop.xlane.xlu0 %5194
        %v5196 = vsel %vm1955, %v5134, 0.0
        %5197 = vadd.xlane.f32.xlu0 %v5196
        %v5198 = vpop.xlane.xlu0 %5197
        %v5199 = vsel %vm1955, %v5136, 0.0
        %5200 = vadd.xlane.f32.xlu0 %v5199
        %v5201 = vpop.xlane.xlu0 %5200
        %v5202 = vsel %vm1955, %v5138, 0.0
        %5203 = vadd.xlane.f32.xlu0 %v5202
        %v5204 = vpop.xlane.xlu0 %5203
        %v5205 = vsel %vm1955, %v5140, 0.0
        %5206 = vadd.xlane.f32.xlu0 %v5205
        %v5207 = vpop.xlane.xlu0 %5206
        %v5208 = vsel %vm1955, %v5142, 0.0
        %5209 = vadd.xlane.f32.xlu0 %v5208
        %v5210 = vpop.xlane.xlu0 %5209
        %v5211 = vsel %vm1955, %v5144, 0.0
        %5212 = vadd.xlane.f32.xlu0 %v5211
        %v5213 = vpop.xlane.xlu0 %5212
        %v5214 = vsel %vm1955, %v5146, 0.0
        %5215 = vadd.xlane.f32.xlu0 %v5214
        %v5216 = vpop.xlane.xlu0 %5215
        %v5217 = vsel %vm1955, %v5148, 0.0
        %5218 = vadd.xlane.f32.xlu0 %v5217
        %v5219 = vpop.xlane.xlu0 %5218
        %v5220 = vsel %vm1955, %v5150, 0.0
        %5221 = vadd.xlane.f32.xlu0 %v5220
        %v5222 = vpop.xlane.xlu0 %5221
        %v5223 = vrcp.pop %v5153
        %v5224 = vrcp.pop %v5156
        %v5225 = vrcp.pop %v5159
        %v5226 = vrcp.pop %v5162
        %v5227 = vrcp.pop %v5165
        %v5228 = vrcp.pop %v5168
        %v5229 = vrcp.pop %v5171
        %v5230 = vrcp.pop %v5174
        %v5231 = vrcp.pop %v5177
        %v5232 = vrcp.pop %v5180
        %v5233 = vrcp.pop %v5183
        %v5234 = vrcp.pop %v5186
        %v5235 = vrcp.pop %v5189
        %v5236 = vrcp.pop %v5192
        %v5237 = vrcp.pop %v5195
        %v5238 = vrcp.pop %v5198
        %v5239 = vrcp.pop %v5201
        %v5240 = vrcp.pop %v5204
        %v5241 = vrcp.pop %v5207
        %v5242 = vrcp.pop %v5210
        %v5243 = vrcp.pop %v5213
        %v5244 = vrcp.pop %v5216
        %v5245 = vrcp.pop %v5219
        %v5246 = vrcp.pop %v5222
        %v5247 = vmul.f32 %v5104, %v5223
        %v5248 = vmul.f32 %v5106, %v5224
        %v5249 = vmul.f32 %v5108, %v5225
        %v5250 = vmul.f32 %v5110, %v5226
        %v5251 = vmul.f32 %v5112, %v5227
        %v5252 = vmul.f32 %v5114, %v5228
        %v5253 = vmul.f32 %v5116, %v5229
        %v5254 = vmul.f32 %v5118, %v5230
        %v5255 = vmul.f32 %v5120, %v5231
        %v5256 = vmul.f32 %v5122, %v5232
        %v5257 = vmul.f32 %v5124, %v5233
        %v5258 = vmul.f32 %v5126, %v5234
        %v5259 = vmul.f32 %v5128, %v5235
        %v5260 = vmul.f32 %v5130, %v5236
        %v5261 = vmul.f32 %v5132, %v5237
        %v5262 = vmul.f32 %v5134, %v5238
        %v5263 = vmul.f32 %v5136, %v5239
        %v5264 = vmul.f32 %v5138, %v5240
        %v5265 = vmul.f32 %v5140, %v5241
        %v5266 = vmul.f32 %v5142, %v5242
        %v5267 = vmul.f32 %v5144, %v5243
        %v5268 = vmul.f32 %v5146, %v5244
        %v5269 = vmul.f32 %v5148, %v5245
        %v5270 = vmul.f32 %v5150, %v5246
        %v5271 = vpack.c.bf16 %v5248, %v5247
        %v5272 = vpack.c.bf16 %v5249, %v5249
        %v5273 = vpack.c.bf16 %v5251, %v5250
        %v5274 = vpack.c.bf16 %v5252, %v5252
        %v5275 = vpack.c.bf16 %v5254, %v5253
        %v5276 = vpack.c.bf16 %v5255, %v5255
        %v5277 = vpack.c.bf16 %v5257, %v5256
        %v5278 = vpack.c.bf16 %v5258, %v5258
        %v5279 = vpack.c.bf16 %v5260, %v5259
        %v5280 = vpack.c.bf16 %v5261, %v5261
        %v5281 = vpack.c.bf16 %v5263, %v5262
        %v5282 = vpack.c.bf16 %v5264, %v5264
        %v5283 = vpack.c.bf16 %v5266, %v5265
        %v5284 = vpack.c.bf16 %v5267, %v5267
        %v5285 = vpack.c.bf16 %v5269, %v5268
        %v5286 = vpack.c.bf16 %v5270, %v5270
        %5287 = vrot.lane.b32.xlu0 %v1400, 48
        %v5288 = vpop.permute.xlu0 %5287
        %5289 = vrot.lane.b32.xlu0 %v1401, 48
        %v5290 = vpop.permute.xlu0 %5289
        %v5293 = vsel %vm1955, %v5271, 0
        %v5296 = vsel %vm1955, %v5272, 0
        %v5299 = vsel %vm2247, %v5290, 0
        %5301 = vmatprep.subr.bf16.mxu0 0
        %5302 = vmatpush1.bf16.msra.mxu0 %v5288
        %5303 = vmatprep.subr.bf16.mxu0 0
        %5304 = vmatpush1.bf16.msra.mxu0 %v5299
        %5305 = vmatprep.subr.bf16.mxu0 0
        %5306 = vmatpush1.bf16.msra.mxu0 0
        %5307 = vmatprep.subr.bf16.mxu0 0
        %5308 = vmatpush1.bf16.msra.mxu0 0
        %5309 = vmatprep.subr.bf16.mxu0 0
        %5310 = vmatpush1.bf16.msra.mxu0 0
        %5311 = vmatprep.subr.bf16.mxu0 0
        %5312 = vmatpush1.bf16.msra.mxu0 0
        %5313 = vmatprep.subr.bf16.mxu0 0
        %5314 = vmatpush1.bf16.msra.mxu0 0
        %5315 = vmatprep.subr.bf16.mxu0 0
        %5316 = vmatpush1.bf16.msra.mxu0 0
        %5317 = vmatprep.subr.bf16.mxu0 0
        %5318 = vmatpush1.bf16.msra.mxu0 0
        %5319 = vmatprep.subr.bf16.mxu0 0
        %5320 = vmatpush1.bf16.msra.mxu0 0
        %5321 = vmatprep.subr.bf16.mxu0 0
        %5322 = vmatpush1.bf16.msra.mxu0 0
        %5323 = vmatprep.subr.bf16.mxu0 0
        %5324 = vmatpush1.bf16.msra.mxu0 0
        %5325 = vmatprep.subr.bf16.mxu0 0
        %5326 = vmatpush1.bf16.msra.mxu0 0
        %5327 = vmatprep.subr.bf16.mxu0 0
        %5328 = vmatpush1.bf16.msra.mxu0 0
        %5329 = vmatprep.subr.bf16.mxu0 0
        %5330 = vmatpush1.bf16.msra.mxu0 0
        %5331 = vmatprep.subr.bf16.mxu0 0
        %5332 = vmatpush1.bf16.msra.mxu0 0
        %5333 = vmatprep.mubr.bf16.mxu0 0
        %5334 = vmatmul.mubr.bf16.gmra.mrb[0].mxu0 %v5293
        %v5335 = vpop.f32.mrb[0].mxu0
        %v5336 = vadd.f32 0.0, %v5335
        %v5337 = vpop.f32.mrb[0].mxu0
        %v5338 = vpop.f32.mrb[0].mxu0
        %v5339 = vadd.f32 0.0, %v5338
        %v5340 = vpop.f32.mrb[0].mxu0
        %5341 = vmatprep.mubr.bf16.mxu0 0
        %5342 = vmatmul.mubr.bf16.gmra.mrb[0].mxu0 %v5296
        %v5343 = vpop.f32.mrb[0].mxu0
        %v5344 = vadd.f32 0.0, %v5343
        %v5345 = vpop.f32.mrb[0].mxu0
        %v5346 = vpop.f32.mrb[0].mxu0
        %v5347 = vpop.f32.mrb[0].mxu0
        %5348 = vdwg.mxu0
        %5349 = vrot.lane.b32.xlu0 %v1467, 48
        %v5350 = vpop.permute.xlu0 %5349
        %5351 = vrot.lane.b32.xlu0 %v1468, 48
        %v5352 = vpop.permute.xlu0 %5351
        %v5355 = vsel %vm1955, %v5273, 0
        %v5358 = vsel %vm1955, %v5274, 0
        %v5361 = vsel %vm2247, %v5352, 0
        %5363 = vmatprep.subr.bf16.mxu0 0
        %5364 = vmatpush1.bf16.msra.mxu0 %v5350
        %5365 = vmatprep.subr.bf16.mxu0 0
        %5366 = vmatpush1.bf16.msra.mxu0 %v5361
        %5367 = vmatprep.subr.bf16.mxu0 0
        %5368 = vmatpush1.bf16.msra.mxu0 0
        %5369 = vmatprep.subr.bf16.mxu0 0
        %5370 = vmatpush1.bf16.msra.mxu0 0
        %5371 = vmatprep.subr.bf16.mxu0 0
        %5372 = vmatpush1.bf16.msra.mxu0 0
        %5373 = vmatprep.subr.bf16.mxu0 0
        %5374 = vmatpush1.bf16.msra.mxu0 0
        %5375 = vmatprep.subr.bf16.mxu0 0
        %5376 = vmatpush1.bf16.msra.mxu0 0
        %5377 = vmatprep.subr.bf16.mxu0 0
        %5378 = vmatpush1.bf16.msra.mxu0 0
        %5379 = vmatprep.subr.bf16.mxu0 0
        %5380 = vmatpush1.bf16.msra.mxu0 0
        %5381 = vmatprep.subr.bf16.mxu0 0
        %5382 = vmatpush1.bf16.msra.mxu0 0
        %5383 = vmatprep.subr.bf16.mxu0 0
        %5384 = vmatpush1.bf16.msra.mxu0 0
        %5385 = vmatprep.subr.bf16.mxu0 0
        %5386 = vmatpush1.bf16.msra.mxu0 0
        %5387 = vmatprep.subr.bf16.mxu0 0
        %5388 = vmatpush1.bf16.msra.mxu0 0
        %5389 = vmatprep.subr.bf16.mxu0 0
        %5390 = vmatpush1.bf16.msra.mxu0 0
        %5391 = vmatprep.subr.bf16.mxu0 0
        %5392 = vmatpush1.bf16.msra.mxu0 0
        %5393 = vmatprep.subr.bf16.mxu0 0
        %5394 = vmatpush1.bf16.msra.mxu0 0
        %5395 = vmatprep.mubr.bf16.mxu0 0
        %5396 = vmatmul.mubr.bf16.gmra.mrb[0].mxu0 %v5355
        %v5397 = vpop.f32.mrb[0].mxu0
        %v5398 = vadd.f32 0.0, %v5397
        %v5399 = vpop.f32.mrb[0].mxu0
        %v5400 = vpop.f32.mrb[0].mxu0
        %v5401 = vadd.f32 0.0, %v5400
        %v5402 = vpop.f32.mrb[0].mxu0
        %5403 = vmatprep.mubr.bf16.mxu0 0
        %5404 = vmatmul.mubr.bf16.gmra.mrb[0].mxu0 %v5358
        %v5405 = vpop.f32.mrb[0].mxu0
        %v5406 = vadd.f32 0.0, %v5405
        %v5407 = vpop.f32.mrb[0].mxu0
        %v5408 = vpop.f32.mrb[0].mxu0
        %v5409 = vpop.f32.mrb[0].mxu0
        %5410 = vdwg.mxu0
        %5411 = vrot.lane.b32.xlu0 %v1533, 48
        %v5412 = vpop.permute.xlu0 %5411
        %5413 = vrot.lane.b32.xlu0 %v1534, 48
        %v5414 = vpop.permute.xlu0 %5413
        %v5417 = vsel %vm1955, %v5275, 0
        %v5420 = vsel %vm1955, %v5276, 0
        %v5423 = vsel %vm2247, %v5414, 0
        %5425 = vmatprep.subr.bf16.mxu0 0
        %5426 = vmatpush1.bf16.msra.mxu0 %v5412
        %5427 = vmatprep.subr.bf16.mxu0 0
        %5428 = vmatpush1.bf16.msra.mxu0 %v5423
        %5429 = vmatprep.subr.bf16.mxu0 0
        %5430 = vmatpush1.bf16.msra.mxu0 0
        %5431 = vmatprep.subr.bf16.mxu0 0
        %5432 = vmatpush1.bf16.msra.mxu0 0
        %5433 = vmatprep.subr.bf16.mxu0 0
        %5434 = vmatpush1.bf16.msra.mxu0 0
        %5435 = vmatprep.subr.bf16.mxu0 0
        %5436 = vmatpush1.bf16.msra.mxu0 0
        %5437 = vmatprep.subr.bf16.mxu0 0
        %5438 = vmatpush1.bf16.msra.mxu0 0
        %5439 = vmatprep.subr.bf16.mxu0 0
        %5440 = vmatpush1.bf16.msra.mxu0 0
        %5441 = vmatprep.subr.bf16.mxu0 0
        %5442 = vmatpush1.bf16.msra.mxu0 0
        %5443 = vmatprep.subr.bf16.mxu0 0
        %5444 = vmatpush1.bf16.msra.mxu0 0
        %5445 = vmatprep.subr.bf16.mxu0 0
        %5446 = vmatpush1.bf16.msra.mxu0 0
        %5447 = vmatprep.subr.bf16.mxu0 0
        %5448 = vmatpush1.bf16.msra.mxu0 0
        %5449 = vmatprep.subr.bf16.mxu0 0
        %5450 = vmatpush1.bf16.msra.mxu0 0
        %5451 = vmatprep.subr.bf16.mxu0 0
        %5452 = vmatpush1.bf16.msra.mxu0 0
        %5453 = vmatprep.subr.bf16.mxu0 0
        %5454 = vmatpush1.bf16.msra.mxu0 0
        %5455 = vmatprep.subr.bf16.mxu0 0
        %5456 = vmatpush1.bf16.msra.mxu0 0
        %5457 = vmatprep.mubr.bf16.mxu0 0
        %5458 = vmatmul.mubr.bf16.gmra.mrb[0].mxu0 %v5417
        %v5459 = vpop.f32.mrb[0].mxu0
        %v5460 = vadd.f32 0.0, %v5459
        %v5461 = vpop.f32.mrb[0].mxu0
        %v5462 = vpop.f32.mrb[0].mxu0
        %v5463 = vadd.f32 0.0, %v5462
        %v5464 = vpop.f32.mrb[0].mxu0
        %5465 = vmatprep.mubr.bf16.mxu0 0
        %5466 = vmatmul.mubr.bf16.gmra.mrb[0].mxu0 %v5420
        %v5467 = vpop.f32.mrb[0].mxu0
        %v5468 = vadd.f32 0.0, %v5467
        %v5469 = vpop.f32.mrb[0].mxu0
        %v5470 = vpop.f32.mrb[0].mxu0
        %v5471 = vpop.f32.mrb[0].mxu0
        %5472 = vdwg.mxu0
        %5473 = vrot.lane.b32.xlu0 %v1599, 48
        %v5474 = vpop.permute.xlu0 %5473
        %5475 = vrot.lane.b32.xlu0 %v1600, 48
        %v5476 = vpop.permute.xlu0 %5475
        %v5479 = vsel %vm1955, %v5277, 0
        %v5482 = vsel %vm1955, %v5278, 0
        %v5485 = vsel %vm2247, %v5476, 0
        %5487 = vmatprep.subr.bf16.mxu0 0
        %5488 = vmatpush1.bf16.msra.mxu0 %v5474
        %5489 = vmatprep.subr.bf16.mxu0 0
        %5490 = vmatpush1.bf16.msra.mxu0 %v5485
        %5491 = vmatprep.subr.bf16.mxu0 0
        %5492 = vmatpush1.bf16.msra.mxu0 0
        %5493 = vmatprep.subr.bf16.mxu0 0
        %5494 = vmatpush1.bf16.msra.mxu0 0
        %5495 = vmatprep.subr.bf16.mxu0 0
        %5496 = vmatpush1.bf16.msra.mxu0 0
        %5497 = vmatprep.subr.bf16.mxu0 0
        %5498 = vmatpush1.bf16.msra.mxu0 0
        %5499 = vmatprep.subr.bf16.mxu0 0
        %5500 = vmatpush1.bf16.msra.mxu0 0
        %5501 = vmatprep.subr.bf16.mxu0 0
        %5502 = vmatpush1.bf16.msra.mxu0 0
        %5503 = vmatprep.subr.bf16.mxu0 0
        %5504 = vmatpush1.bf16.msra.mxu0 0
        %5505 = vmatprep.subr.bf16.mxu0 0
        %5506 = vmatpush1.bf16.msra.mxu0 0
        %5507 = vmatprep.subr.bf16.mxu0 0
        %5508 = vmatpush1.bf16.msra.mxu0 0
        %5509 = vmatprep.subr.bf16.mxu0 0
        %5510 = vmatpush1.bf16.msra.mxu0 0
        %5511 = vmatprep.subr.bf16.mxu0 0
        %5512 = vmatpush1.bf16.msra.mxu0 0
        %5513 = vmatprep.subr.bf16.mxu0 0
        %5514 = vmatpush1.bf16.msra.mxu0 0
        %5515 = vmatprep.subr.bf16.mxu0 0
        %5516 = vmatpush1.bf16.msra.mxu0 0
        %5517 = vmatprep.subr.bf16.mxu0 0
        %5518 = vmatpush1.bf16.msra.mxu0 0
        %5519 = vmatprep.mubr.bf16.mxu0 0
        %5520 = vmatmul.mubr.bf16.gmra.mrb[0].mxu0 %v5479
        %v5521 = vpop.f32.mrb[0].mxu0
        %v5522 = vadd.f32 0.0, %v5521
        %v5523 = vpop.f32.mrb[0].mxu0
        %v5524 = vpop.f32.mrb[0].mxu0
        %v5525 = vadd.f32 0.0, %v5524
        %v5526 = vpop.f32.mrb[0].mxu0
        %5527 = vmatprep.mubr.bf16.mxu0 0
        %5528 = vmatmul.mubr.bf16.gmra.mrb[0].mxu0 %v5482
        %v5529 = vpop.f32.mrb[0].mxu0
        %v5530 = vadd.f32 0.0, %v5529
        %v5531 = vpop.f32.mrb[0].mxu0
        %v5532 = vpop.f32.mrb[0].mxu0
        %v5533 = vpop.f32.mrb[0].mxu0
        %5534 = vdwg.mxu0
        %5535 = vrot.lane.b32.xlu0 %v1665, 48
        %v5536 = vpop.permute.xlu0 %5535
        %5537 = vrot.lane.b32.xlu0 %v1666, 48
        %v5538 = vpop.permute.xlu0 %5537
        %v5541 = vsel %vm1955, %v5279, 0
        %v5544 = vsel %vm1955, %v5280, 0
        %v5547 = vsel %vm2247, %v5538, 0
        %5549 = vmatprep.subr.bf16.mxu0 0
        %5550 = vmatpush1.bf16.msra.mxu0 %v5536
        %5551 = vmatprep.subr.bf16.mxu0 0
        %5552 = vmatpush1.bf16.msra.mxu0 %v5547
        %5553 = vmatprep.subr.bf16.mxu0 0
        %5554 = vmatpush1.bf16.msra.mxu0 0
        %5555 = vmatprep.subr.bf16.mxu0 0
        %5556 = vmatpush1.bf16.msra.mxu0 0
        %5557 = vmatprep.subr.bf16.mxu0 0
        %5558 = vmatpush1.bf16.msra.mxu0 0
        %5559 = vmatprep.subr.bf16.mxu0 0
        %5560 = vmatpush1.bf16.msra.mxu0 0
        %5561 = vmatprep.subr.bf16.mxu0 0
        %5562 = vmatpush1.bf16.msra.mxu0 0
        %5563 = vmatprep.subr.bf16.mxu0 0
        %5564 = vmatpush1.bf16.msra.mxu0 0
        %5565 = vmatprep.subr.bf16.mxu0 0
        %5566 = vmatpush1.bf16.msra.mxu0 0
        %5567 = vmatprep.subr.bf16.mxu0 0
        %5568 = vmatpush1.bf16.msra.mxu0 0
        %5569 = vmatprep.subr.bf16.mxu0 0
        %5570 = vmatpush1.bf16.msra.mxu0 0
        %5571 = vmatprep.subr.bf16.mxu0 0
        %5572 = vmatpush1.bf16.msra.mxu0 0
        %5573 = vmatprep.subr.bf16.mxu0 0
        %5574 = vmatpush1.bf16.msra.mxu0 0
        %5575 = vmatprep.subr.bf16.mxu0 0
        %5576 = vmatpush1.bf16.msra.mxu0 0
        %5577 = vmatprep.subr.bf16.mxu0 0
        %5578 = vmatpush1.bf16.msra.mxu0 0
        %5579 = vmatprep.subr.bf16.mxu0 0
        %5580 = vmatpush1.bf16.msra.mxu0 0
        %5581 = vmatprep.mubr.bf16.mxu0 0
        %5582 = vmatmul.mubr.bf16.gmra.mrb[0].mxu0 %v5541
        %v5583 = vpop.f32.mrb[0].mxu0
        %v5584 = vadd.f32 0.0, %v5583
        %v5585 = vpop.f32.mrb[0].mxu0
        %v5586 = vpop.f32.mrb[0].mxu0
        %v5587 = vadd.f32 0.0, %v5586
        %v5588 = vpop.f32.mrb[0].mxu0
        %5589 = vmatprep.mubr.bf16.mxu0 0
        %5590 = vmatmul.mubr.bf16.gmra.mrb[0].mxu0 %v5544
        %v5591 = vpop.f32.mrb[0].mxu0
        %v5592 = vadd.f32 0.0, %v5591
        %v5593 = vpop.f32.mrb[0].mxu0
        %v5594 = vpop.f32.mrb[0].mxu0
        %v5595 = vpop.f32.mrb[0].mxu0
        %5596 = vdwg.mxu0
        %5597 = vrot.lane.b32.xlu0 %v1731, 48
        %v5598 = vpop.permute.xlu0 %5597
        %5599 = vrot.lane.b32.xlu0 %v1732, 48
        %v5600 = vpop.permute.xlu0 %5599
        %v5603 = vsel %vm1955, %v5281, 0
        %v5606 = vsel %vm1955, %v5282, 0
        %v5609 = vsel %vm2247, %v5600, 0
        %5611 = vmatprep.subr.bf16.mxu0 0
        %5612 = vmatpush1.bf16.msra.mxu0 %v5598
        %5613 = vmatprep.subr.bf16.mxu0 0
        %5614 = vmatpush1.bf16.msra.mxu0 %v5609
        %5615 = vmatprep.subr.bf16.mxu0 0
        %5616 = vmatpush1.bf16.msra.mxu0 0
        %5617 = vmatprep.subr.bf16.mxu0 0
        %5618 = vmatpush1.bf16.msra.mxu0 0
        %5619 = vmatprep.subr.bf16.mxu0 0
        %5620 = vmatpush1.bf16.msra.mxu0 0
        %5621 = vmatprep.subr.bf16.mxu0 0
        %5622 = vmatpush1.bf16.msra.mxu0 0
        %5623 = vmatprep.subr.bf16.mxu0 0
        %5624 = vmatpush1.bf16.msra.mxu0 0
        %5625 = vmatprep.subr.bf16.mxu0 0
        %5626 = vmatpush1.bf16.msra.mxu0 0
        %5627 = vmatprep.subr.bf16.mxu0 0
        %5628 = vmatpush1.bf16.msra.mxu0 0
        %5629 = vmatprep.subr.bf16.mxu0 0
        %5630 = vmatpush1.bf16.msra.mxu0 0
        %5631 = vmatprep.subr.bf16.mxu0 0
        %5632 = vmatpush1.bf16.msra.mxu0 0
        %5633 = vmatprep.subr.bf16.mxu0 0
        %5634 = vmatpush1.bf16.msra.mxu0 0
        %5635 = vmatprep.subr.bf16.mxu0 0
        %5636 = vmatpush1.bf16.msra.mxu0 0
        %5637 = vmatprep.subr.bf16.mxu0 0
        %5638 = vmatpush1.bf16.msra.mxu0 0
        %5639 = vmatprep.subr.bf16.mxu0 0
        %5640 = vmatpush1.bf16.msra.mxu0 0
        %5641 = vmatprep.subr.bf16.mxu0 0
        %5642 = vmatpush1.bf16.msra.mxu0 0
        %5643 = vmatprep.mubr.bf16.mxu0 0
        %5644 = vmatmul.mubr.bf16.gmra.mrb[0].mxu0 %v5603
        %v5645 = vpop.f32.mrb[0].mxu0
        %v5646 = vadd.f32 0.0, %v5645
        %v5647 = vpop.f32.mrb[0].mxu0
        %v5648 = vpop.f32.mrb[0].mxu0
        %v5649 = vadd.f32 0.0, %v5648
        %v5650 = vpop.f32.mrb[0].mxu0
        %5651 = vmatprep.mubr.bf16.mxu0 0
        %5652 = vmatmul.mubr.bf16.gmra.mrb[0].mxu0 %v5606
        %v5653 = vpop.f32.mrb[0].mxu0
        %v5654 = vadd.f32 0.0, %v5653
        %v5655 = vpop.f32.mrb[0].mxu0
        %v5656 = vpop.f32.mrb[0].mxu0
        %v5657 = vpop.f32.mrb[0].mxu0
        %5658 = vdwg.mxu0
        %5659 = vrot.lane.b32.xlu0 %v1797, 48
        %v5660 = vpop.permute.xlu0 %5659
        %5661 = vrot.lane.b32.xlu0 %v1798, 48
        %v5662 = vpop.permute.xlu0 %5661
        %v5665 = vsel %vm1955, %v5283, 0
        %v5668 = vsel %vm1955, %v5284, 0
        %v5671 = vsel %vm2247, %v5662, 0
        %5673 = vmatprep.subr.bf16.mxu0 0
        %5674 = vmatpush1.bf16.msra.mxu0 %v5660
        %5675 = vmatprep.subr.bf16.mxu0 0
        %5676 = vmatpush1.bf16.msra.mxu0 %v5671
        %5677 = vmatprep.subr.bf16.mxu0 0
        %5678 = vmatpush1.bf16.msra.mxu0 0
        %5679 = vmatprep.subr.bf16.mxu0 0
        %5680 = vmatpush1.bf16.msra.mxu0 0
        %5681 = vmatprep.subr.bf16.mxu0 0
        %5682 = vmatpush1.bf16.msra.mxu0 0
        %5683 = vmatprep.subr.bf16.mxu0 0
        %5684 = vmatpush1.bf16.msra.mxu0 0
        %5685 = vmatprep.subr.bf16.mxu0 0
        %5686 = vmatpush1.bf16.msra.mxu0 0
        %5687 = vmatprep.subr.bf16.mxu0 0
        %5688 = vmatpush1.bf16.msra.mxu0 0
        %5689 = vmatprep.subr.bf16.mxu0 0
        %5690 = vmatpush1.bf16.msra.mxu0 0
        %5691 = vmatprep.subr.bf16.mxu0 0
        %5692 = vmatpush1.bf16.msra.mxu0 0
        %5693 = vmatprep.subr.bf16.mxu0 0
        %5694 = vmatpush1.bf16.msra.mxu0 0
        %5695 = vmatprep.subr.bf16.mxu0 0
        %5696 = vmatpush1.bf16.msra.mxu0 0
        %5697 = vmatprep.subr.bf16.mxu0 0
        %5698 = vmatpush1.bf16.msra.mxu0 0
        %5699 = vmatprep.subr.bf16.mxu0 0
        %5700 = vmatpush1.bf16.msra.mxu0 0
        %5701 = vmatprep.subr.bf16.mxu0 0
        %5702 = vmatpush1.bf16.msra.mxu0 0
        %5703 = vmatprep.subr.bf16.mxu0 0
        %5704 = vmatpush1.bf16.msra.mxu0 0
        %5705 = vmatprep.mubr.bf16.mxu0 0
        %5706 = vmatmul.mubr.bf16.gmra.mrb[0].mxu0 %v5665
        %v5707 = vpop.f32.mrb[0].mxu0
        %v5708 = vadd.f32 0.0, %v5707
        %v5709 = vpop.f32.mrb[0].mxu0
        %v5710 = vpop.f32.mrb[0].mxu0
        %v5711 = vadd.f32 0.0, %v5710
        %v5712 = vpop.f32.mrb[0].mxu0
        %5713 = vmatprep.mubr.bf16.mxu0 0
        %5714 = vmatmul.mubr.bf16.gmra.mrb[0].mxu0 %v5668
        %v5715 = vpop.f32.mrb[0].mxu0
        %v5716 = vadd.f32 0.0, %v5715
        %v5717 = vpop.f32.mrb[0].mxu0
        %v5718 = vpop.f32.mrb[0].mxu0
        %v5719 = vpop.f32.mrb[0].mxu0
        %5720 = vdwg.mxu0
        %5721 = vrot.lane.b32.xlu0 %v1863, 48
        %v5722 = vpop.permute.xlu0 %5721
        %5723 = vrot.lane.b32.xlu0 %v1864, 48
        %v5724 = vpop.permute.xlu0 %5723
        %v5727 = vsel %vm1955, %v5285, 0
        %v5730 = vsel %vm1955, %v5286, 0
        %v5733 = vsel %vm2247, %v5724, 0
        %5735 = vmatprep.subr.bf16.mxu0 0
        %5736 = vmatpush1.bf16.msra.mxu0 %v5722
        %5737 = vmatprep.subr.bf16.mxu0 0
        %5738 = vmatpush1.bf16.msra.mxu0 %v5733
        %5739 = vmatprep.subr.bf16.mxu0 0
        %5740 = vmatpush1.bf16.msra.mxu0 0
        %5741 = vmatprep.subr.bf16.mxu0 0
        %5742 = vmatpush1.bf16.msra.mxu0 0
        %5743 = vmatprep.subr.bf16.mxu0 0
        %5744 = vmatpush1.bf16.msra.mxu0 0
        %5745 = vmatprep.subr.bf16.mxu0 0
        %5746 = vmatpush1.bf16.msra.mxu0 0
        %5747 = vmatprep.subr.bf16.mxu0 0
        %5748 = vmatpush1.bf16.msra.mxu0 0
        %5749 = vmatprep.subr.bf16.mxu0 0
        %5750 = vmatpush1.bf16.msra.mxu0 0
        %5751 = vmatprep.subr.bf16.mxu0 0
        %5752 = vmatpush1.bf16.msra.mxu0 0
        %5753 = vmatprep.subr.bf16.mxu0 0
        %5754 = vmatpush1.bf16.msra.mxu0 0
        %5755 = vmatprep.subr.bf16.mxu0 0
        %5756 = vmatpush1.bf16.msra.mxu0 0
        %5757 = vmatprep.subr.bf16.mxu0 0
        %5758 = vmatpush1.bf16.msra.mxu0 0
        %5759 = vmatprep.subr.bf16.mxu0 0
        %5760 = vmatpush1.bf16.msra.mxu0 0
        %5761 = vmatprep.subr.bf16.mxu0 0
        %5762 = vmatpush1.bf16.msra.mxu0 0
        %5763 = vmatprep.subr.bf16.mxu0 0
        %5764 = vmatpush1.bf16.msra.mxu0 0
        %5765 = vmatprep.subr.bf16.mxu0 0
        %5766 = vmatpush1.bf16.msra.mxu0 0
        %5767 = vmatprep.mubr.bf16.mxu0 0
        %5768 = vmatmul.mubr.bf16.gmra.mrb[0].mxu0 %v5727
        %v5769 = vpop.f32.mrb[0].mxu0
        %v5770 = vadd.f32 0.0, %v5769
        %v5771 = vpop.f32.mrb[0].mxu0
        %v5772 = vpop.f32.mrb[0].mxu0
        %v5773 = vadd.f32 0.0, %v5772
        %v5774 = vpop.f32.mrb[0].mxu0
        %5775 = vmatprep.mubr.bf16.mxu0 0
        %5776 = vmatmul.mubr.bf16.gmra.mrb[0].mxu0 %v5730
        %v5777 = vpop.f32.mrb[0].mxu0
        %v5778 = vadd.f32 0.0, %v5777
        %v5779 = vpop.f32.mrb[0].mxu0
        %v5780 = vpop.f32.mrb[0].mxu0
        %v5781 = vpop.f32.mrb[0].mxu0
        %5782 = vdwg.mxu0
        %v5783 = vpack.c.bf16 %v5339, %v5336
        %v5784 = vpack.c.bf16 %v5398, %v5344
        %v5785 = vpack.c.bf16 %v5406, %v5401
        %v5786 = vpack.c.bf16 %v5463, %v5460
        %v5787 = vpack.c.bf16 %v5522, %v5468
        %v5788 = vpack.c.bf16 %v5530, %v5525
        %v5789 = vpack.c.bf16 %v5587, %v5584
        %v5790 = vpack.c.bf16 %v5646, %v5592
        %v5791 = vpack.c.bf16 %v5654, %v5649
        %v5792 = vpack.c.bf16 %v5711, %v5708
        %v5793 = vpack.c.bf16 %v5770, %v5716
        %v5794 = vpack.c.bf16 %v5778, %v5773
        %v5795 = vld [vmem:[%s669 + $0x8] sm:$0xf]
        %v5797 = vsel %vm1406, %v5783, 0
        %v5800 = vsel %vm1406, %v5784, 0
        %v5803 = vsel %vm1406, %v5785, 0
        %v5806 = vsel %vm1406, %v5786, 0
        %v5809 = vsel %vm1406, %v5787, 0
        %v5812 = vsel %vm1406, %v5788, 0
        %v5815 = vsel %vm1406, %v5789, 0
        %v5818 = vsel %vm1406, %v5790, 0
        %v5821 = vsel %vm1406, %v5791, 0
        %v5824 = vsel %vm1406, %v5792, 0
        %v5827 = vsel %vm1406, %v5793, 0
        %v5830 = vsel %vm1406, %v5794, 0
        %v5833 = vsel %vm2247, %v5795, 0
        %5835 = vmatprep.subr.bf16.mxu0 0
        %5836 = vmatpush1.bf16.msra.mxu0 %v5833
        %5837 = vmatprep.subr.bf16.mxu0 0
        %5838 = vmatpush1.bf16.msra.mxu0 0
        %5839 = vmatprep.subr.bf16.mxu0 0
        %5840 = vmatpush1.bf16.msra.mxu0 0
        %5841 = vmatprep.subr.bf16.mxu0 0
        %5842 = vmatpush1.bf16.msra.mxu0 0
        %5843 = vmatprep.subr.bf16.mxu0 0
        %5844 = vmatpush1.bf16.msra.mxu0 0
        %5845 = vmatprep.subr.bf16.mxu0 0
        %5846 = vmatpush1.bf16.msra.mxu0 0
        %5847 = vmatprep.subr.bf16.mxu0 0
        %5848 = vmatpush1.bf16.msra.mxu0 0
        %5849 = vmatprep.subr.bf16.mxu0 0
        %5850 = vmatpush1.bf16.msra.mxu0 0
        %5851 = vmatprep.subr.bf16.mxu0 0
        %5852 = vmatpush1.bf16.msra.mxu0 0
        %5853 = vmatprep.subr.bf16.mxu0 0
        %5854 = vmatpush1.bf16.msra.mxu0 0
        %5855 = vmatprep.subr.bf16.mxu0 0
        %5856 = vmatpush1.bf16.msra.mxu0 0
        %5857 = vmatprep.subr.bf16.mxu0 0
        %5858 = vmatpush1.bf16.msra.mxu0 0
        %5859 = vmatprep.subr.bf16.mxu0 0
        %5860 = vmatpush1.bf16.msra.mxu0 0
        %5861 = vmatprep.subr.bf16.mxu0 0
        %5862 = vmatpush1.bf16.msra.mxu0 0
        %5863 = vmatprep.subr.bf16.mxu0 0
        %5864 = vmatpush1.bf16.msra.mxu0 0
        %5865 = vmatprep.subr.bf16.mxu0 0
        %5866 = vmatpush1.bf16.msra.mxu0 0
        %5867 = vmatprep.mubr.bf16.mxu0 0
        %5868 = vmatmul.mubr.bf16.gmra.mrb[0].mxu0 %v5797
        %v5869 = vpop.f32.mrb[0].mxu0
        %v5870 = vadd.f32 0.0, %v5869
        %v5871 = vpop.f32.mrb[0].mxu0
        %v5872 = vpop.f32.mrb[0].mxu0
        %v5873 = vadd.f32 0.0, %v5872
        %v5874 = vpop.f32.mrb[0].mxu0
        %5875 = vmatprep.mubr.bf16.mxu0 0
        %5876 = vmatmul.mubr.bf16.gmra.mrb[0].mxu0 %v5800
        %v5877 = vpop.f32.mrb[0].mxu0
        %v5878 = vadd.f32 0.0, %v5877
        %v5879 = vpop.f32.mrb[0].mxu0
        %v5880 = vpop.f32.mrb[0].mxu0
        %v5881 = vadd.f32 0.0, %v5880
        %v5882 = vpop.f32.mrb[0].mxu0
        %5883 = vmatprep.mubr.bf16.mxu0 0
        %5884 = vmatmul.mubr.bf16.gmra.mrb[0].mxu0 %v5803
        %v5885 = vpop.f32.mrb[0].mxu0
        %v5886 = vadd.f32 0.0, %v5885
        %v5887 = vpop.f32.mrb[0].mxu0
        %v5888 = vpop.f32.mrb[0].mxu0
        %v5889 = vadd.f32 0.0, %v5888
        %v5890 = vpop.f32.mrb[0].mxu0
        %5891 = vmatprep.mubr.bf16.mxu0 0
        %5892 = vmatmul.mubr.bf16.gmra.mrb[0].mxu0 %v5806
        %v5893 = vpop.f32.mrb[0].mxu0
        %v5894 = vadd.f32 0.0, %v5893
        %v5895 = vpop.f32.mrb[0].mxu0
        %v5896 = vpop.f32.mrb[0].mxu0
        %v5897 = vadd.f32 0.0, %v5896
        %v5898 = vpop.f32.mrb[0].mxu0
        %5899 = vmatprep.mubr.bf16.mxu0 0
        %5900 = vmatmul.mubr.bf16.gmra.mrb[0].mxu0 %v5809
        %v5901 = vpop.f32.mrb[0].mxu0
        %v5902 = vadd.f32 0.0, %v5901
        %v5903 = vpop.f32.mrb[0].mxu0
        %v5904 = vpop.f32.mrb[0].mxu0
        %v5905 = vadd.f32 0.0, %v5904
        %v5906 = vpop.f32.mrb[0].mxu0
        %5907 = vmatprep.mubr.bf16.mxu0 0
        %5908 = vmatmul.mubr.bf16.gmra.mrb[0].mxu0 %v5812
        %v5909 = vpop.f32.mrb[0].mxu0
        %v5910 = vadd.f32 0.0, %v5909
        %v5911 = vpop.f32.mrb[0].mxu0
        %v5912 = vpop.f32.mrb[0].mxu0
        %v5913 = vadd.f32 0.0, %v5912
        %v5914 = vpop.f32.mrb[0].mxu0
        %5915 = vmatprep.mubr.bf16.mxu0 0
        %5916 = vmatmul.mubr.bf16.gmra.mrb[0].mxu0 %v5815
        %v5917 = vpop.f32.mrb[0].mxu0
        %v5918 = vadd.f32 0.0, %v5917
        %v5919 = vpop.f32.mrb[0].mxu0
        %v5920 = vpop.f32.mrb[0].mxu0
        %v5921 = vadd.f32 0.0, %v5920
        %v5922 = vpop.f32.mrb[0].mxu0
        %5923 = vmatprep.mubr.bf16.mxu0 0
        %5924 = vmatmul.mubr.bf16.gmra.mrb[0].mxu0 %v5818
        %v5925 = vpop.f32.mrb[0].mxu0
        %v5926 = vadd.f32 0.0, %v5925
        %v5927 = vpop.f32.mrb[0].mxu0
        %v5928 = vpop.f32.mrb[0].mxu0
        %v5929 = vadd.f32 0.0, %v5928
        %v5930 = vpop.f32.mrb[0].mxu0
        %5931 = vmatprep.mubr.bf16.mxu0 0
        %5932 = vmatmul.mubr.bf16.gmra.mrb[0].mxu0 %v5821
        %v5933 = vpop.f32.mrb[0].mxu0
        %v5934 = vadd.f32 0.0, %v5933
        %v5935 = vpop.f32.mrb[0].mxu0
        %v5936 = vpop.f32.mrb[0].mxu0
        %v5937 = vadd.f32 0.0, %v5936
        %v5938 = vpop.f32.mrb[0].mxu0
        %5939 = vmatprep.mubr.bf16.mxu0 0
        %5940 = vmatmul.mubr.bf16.gmra.mrb[0].mxu0 %v5824
        %v5941 = vpop.f32.mrb[0].mxu0
        %v5942 = vadd.f32 0.0, %v5941
        %v5943 = vpop.f32.mrb[0].mxu0
        %v5944 = vpop.f32.mrb[0].mxu0
        %v5945 = vadd.f32 0.0, %v5944
        %v5946 = vpop.f32.mrb[0].mxu0
        %5947 = vmatprep.mubr.bf16.mxu0 0
        %5948 = vmatmul.mubr.bf16.gmra.mrb[0].mxu0 %v5827
        %v5949 = vpop.f32.mrb[0].mxu0
        %v5950 = vadd.f32 0.0, %v5949
        %v5951 = vpop.f32.mrb[0].mxu0
        %v5952 = vpop.f32.mrb[0].mxu0
        %v5953 = vadd.f32 0.0, %v5952
        %v5954 = vpop.f32.mrb[0].mxu0
        %5955 = vmatprep.mubr.bf16.mxu0 0
        %5956 = vmatmul.mubr.bf16.gmra.mrb[0].mxu0 %v5830
        %v5957 = vpop.f32.mrb[0].mxu0
        %v5958 = vadd.f32 0.0, %v5957
        %v5959 = vpop.f32.mrb[0].mxu0
        %v5960 = vpop.f32.mrb[0].mxu0
        %v5961 = vadd.f32 0.0, %v5960
        %v5962 = vpop.f32.mrb[0].mxu0
        %5963 = vdwg.mxu0
        %v5964 = vadd.f32 %v4345, %v5870
        %v5965 = vadd.f32 %v4348, %v5873
        %v5966 = vadd.f32 %v4353, %v5878
        %v5967 = vadd.f32 %v4356, %v5881
        %v5968 = vadd.f32 %v4361, %v5886
        %v5969 = vadd.f32 %v4364, %v5889
        %v5970 = vadd.f32 %v4369, %v5894
        %v5971 = vadd.f32 %v4372, %v5897
        %v5972 = vadd.f32 %v4377, %v5902
        %v5973 = vadd.f32 %v4380, %v5905
        %v5974 = vadd.f32 %v4385, %v5910
        %v5975 = vadd.f32 %v4388, %v5913
        %v5976 = vadd.f32 %v4393, %v5918
        %v5977 = vadd.f32 %v4396, %v5921
        %v5978 = vadd.f32 %v4401, %v5926
        %v5979 = vadd.f32 %v4404, %v5929
        %v5980 = vadd.f32 %v4409, %v5934
        %v5981 = vadd.f32 %v4412, %v5937
        %v5982 = vadd.f32 %v4417, %v5942
        %v5983 = vadd.f32 %v4420, %v5945
        %v5984 = vadd.f32 %v4425, %v5950
        %v5985 = vadd.f32 %v4428, %v5953
        %v5986 = vadd.f32 %v4433, %v5958
        %v5987 = vadd.f32 %v4436, %v5961
        %5988 = vrot.lane.b32.xlu0 %v1400, 104
        %v5989 = vpop.permute.xlu0 %5988
        %5990 = vrot.lane.b32.xlu0 %v1401, 104
        %v5991 = vpop.permute.xlu0 %5990
        %5992 = vrot.lane.b32.xlu0 %v1400, 72
        %v5993 = vpop.permute.xlu0 %5992
        %5994 = vrot.lane.b32.xlu0 %v1401, 72
        %v5995 = vpop.permute.xlu0 %5994
        %v5997 = vsel %vm1406, %v5989, 0
        %v6000 = vsel %vm1406, %v5991, 0
        %v6003 = vsel %vm1406, %v5993, 0
        %v6006 = vsel %vm1406, %v5995, 0
        %6008 = vmatprep.subr.bf16.mxu0 0
        %6009 = vmatpush1.bf16.xpose.msra.mxu0 %v6003
        %6010 = vmatprep.subr.bf16.mxu0 0
        %6011 = vmatpush1.bf16.xpose.msra.mxu0 %v6006
        %6012 = vmatprep.subr.bf16.mxu0 0
        %6013 = vmatpush1.bf16.xpose.msra.mxu0 0
        %6014 = vmatprep.subr.bf16.mxu0 0
        %6015 = vmatpush1.bf16.xpose.msra.mxu0 0
        %6016 = vmatprep.subr.bf16.mxu0 0
        %6017 = vmatpush1.bf16.xpose.msra.mxu0 0
        %6018 = vmatprep.subr.bf16.mxu0 0
        %6019 = vmatpush1.bf16.xpose.msra.mxu0 0
        %6020 = vmatprep.subr.bf16.mxu0 0
        %6021 = vmatpush1.bf16.xpose.msra.mxu0 0
        %6022 = vmatprep.subr.bf16.mxu0 0
        %6023 = vmatpush1.bf16.xpose.msra.mxu0 0
        %6024 = vmatprep.subr.bf16.mxu0 0
        %6025 = vmatpush1.bf16.xpose.msra.mxu0 0
        %6026 = vmatprep.subr.bf16.mxu0 0
        %6027 = vmatpush1.bf16.xpose.msra.mxu0 0
        %6028 = vmatprep.subr.bf16.mxu0 0
        %6029 = vmatpush1.bf16.xpose.msra.mxu0 0
        %6030 = vmatprep.subr.bf16.mxu0 0
        %6031 = vmatpush1.bf16.xpose.msra.mxu0 0
        %6032 = vmatprep.subr.bf16.mxu0 0
        %6033 = vmatpush1.bf16.xpose.msra.mxu0 0
        %6034 = vmatprep.subr.bf16.mxu0 0
        %6035 = vmatpush1.bf16.xpose.msra.mxu0 0
        %6036 = vmatprep.subr.bf16.mxu0 0
        %6037 = vmatpush1.bf16.xpose.msra.mxu0 0
        %6038 = vmatprep.subr.bf16.mxu0 0
        %6039 = vmatpush1.bf16.xpose.msra.mxu0 0
        %6040 = vmatprep.mubr.bf16.mxu0 0
        %6041 = vmatmul.mubr.bf16.gmra.mrb[0].mxu0 %v5997
        %v6042 = vpop.f32.mrb[0].mxu0
        %v6043 = vadd.f32 0.0, %v6042
        %v6044 = vpop.f32.mrb[0].mxu0
        %v6045 = vpop.f32.mrb[0].mxu0
        %v6046 = vadd.f32 0.0, %v6045
        %v6047 = vpop.f32.mrb[0].mxu0
        %6048 = vmatprep.mubr.bf16.mxu0 0
        %6049 = vmatmul.mubr.bf16.gmra.mrb[0].mxu0 %v6000
        %v6050 = vpop.f32.mrb[0].mxu0
        %v6051 = vadd.f32 0.0, %v6050
        %v6052 = vpop.f32.mrb[0].mxu0
        %v6053 = vpop.f32.mrb[0].mxu0
        %v6054 = vpop.f32.mrb[0].mxu0
        %6055 = vdwg.mxu0
        %6056 = vrot.lane.b32.xlu0 %v1467, 104
        %v6057 = vpop.permute.xlu0 %6056
        %6058 = vrot.lane.b32.xlu0 %v1468, 104
        %v6059 = vpop.permute.xlu0 %6058
        %6060 = vrot.lane.b32.xlu0 %v1467, 72
        %v6061 = vpop.permute.xlu0 %6060
        %6062 = vrot.lane.b32.xlu0 %v1468, 72
        %v6063 = vpop.permute.xlu0 %6062
        %v6065 = vsel %vm1406, %v6057, 0
        %v6068 = vsel %vm1406, %v6059, 0
        %v6071 = vsel %vm1406, %v6061, 0
        %v6074 = vsel %vm1406, %v6063, 0
        %6076 = vmatprep.subr.bf16.mxu0 0
        %6077 = vmatpush1.bf16.xpose.msra.mxu0 %v6071
        %6078 = vmatprep.subr.bf16.mxu0 0
        %6079 = vmatpush1.bf16.xpose.msra.mxu0 %v6074
        %6080 = vmatprep.subr.bf16.mxu0 0
        %6081 = vmatpush1.bf16.xpose.msra.mxu0 0
        %6082 = vmatprep.subr.bf16.mxu0 0
        %6083 = vmatpush1.bf16.xpose.msra.mxu0 0
        %6084 = vmatprep.subr.bf16.mxu0 0
        %6085 = vmatpush1.bf16.xpose.msra.mxu0 0
        %6086 = vmatprep.subr.bf16.mxu0 0
        %6087 = vmatpush1.bf16.xpose.msra.mxu0 0
        %6088 = vmatprep.subr.bf16.mxu0 0
        %6089 = vmatpush1.bf16.xpose.msra.mxu0 0
        %6090 = vmatprep.subr.bf16.mxu0 0
        %6091 = vmatpush1.bf16.xpose.msra.mxu0 0
        %6092 = vmatprep.subr.bf16.mxu0 0
        %6093 = vmatpush1.bf16.xpose.msra.mxu0 0
        %6094 = vmatprep.subr.bf16.mxu0 0
        %6095 = vmatpush1.bf16.xpose.msra.mxu0 0
        %6096 = vmatprep.subr.bf16.mxu0 0
        %6097 = vmatpush1.bf16.xpose.msra.mxu0 0
        %6098 = vmatprep.subr.bf16.mxu0 0
        %6099 = vmatpush1.bf16.xpose.msra.mxu0 0
        %6100 = vmatprep.subr.bf16.mxu0 0
        %6101 = vmatpush1.bf16.xpose.msra.mxu0 0
        %6102 = vmatprep.subr.bf16.mxu0 0
        %6103 = vmatpush1.bf16.xpose.msra.mxu0 0
        %6104 = vmatprep.subr.bf16.mxu0 0
        %6105 = vmatpush1.bf16.xpose.msra.mxu0 0
        %6106 = vmatprep.subr.bf16.mxu0 0
        %6107 = vmatpush1.bf16.xpose.msra.mxu0 0
        %6108 = vmatprep.mubr.bf16.mxu0 0
        %6109 = vmatmul.mubr.bf16.gmra.mrb[0].mxu0 %v6065
        %v6110 = vpop.f32.mrb[0].mxu0
        %v6111 = vadd.f32 0.0, %v6110
        %v6112 = vpop.f32.mrb[0].mxu0
        %v6113 = vpop.f32.mrb[0].mxu0
        %v6114 = vadd.f32 0.0, %v6113
        %v6115 = vpop.f32.mrb[0].mxu0
        %6116 = vmatprep.mubr.bf16.mxu0 0
        %6117 = vmatmul.mubr.bf16.gmra.mrb[0].mxu0 %v6068
        %v6118 = vpop.f32.mrb[0].mxu0
        %v6119 = vadd.f32 0.0, %v6118
        %v6120 = vpop.f32.mrb[0].mxu0
        %v6121 = vpop.f32.mrb[0].mxu0
        %v6122 = vpop.f32.mrb[0].mxu0
        %6123 = vdwg.mxu0
        %6124 = vrot.lane.b32.xlu0 %v1533, 104
        %v6125 = vpop.permute.xlu0 %6124
        %6126 = vrot.lane.b32.xlu0 %v1534, 104
        %v6127 = vpop.permute.xlu0 %6126
        %6128 = vrot.lane.b32.xlu0 %v1533, 72
        %v6129 = vpop.permute.xlu0 %6128
        %6130 = vrot.lane.b32.xlu0 %v1534, 72
        %v6131 = vpop.permute.xlu0 %6130
        %v6133 = vsel %vm1406, %v6125, 0
        %v6136 = vsel %vm1406, %v6127, 0
        %v6139 = vsel %vm1406, %v6129, 0
        %v6142 = vsel %vm1406, %v6131, 0
        %6144 = vmatprep.subr.bf16.mxu0 0
        %6145 = vmatpush1.bf16.xpose.msra.mxu0 %v6139
        %6146 = vmatprep.subr.bf16.mxu0 0
        %6147 = vmatpush1.bf16.xpose.msra.mxu0 %v6142
        %6148 = vmatprep.subr.bf16.mxu0 0
        %6149 = vmatpush1.bf16.xpose.msra.mxu0 0
        %6150 = vmatprep.subr.bf16.mxu0 0
        %6151 = vmatpush1.bf16.xpose.msra.mxu0 0
        %6152 = vmatprep.subr.bf16.mxu0 0
        %6153 = vmatpush1.bf16.xpose.msra.mxu0 0
        %6154 = vmatprep.subr.bf16.mxu0 0
        %6155 = vmatpush1.bf16.xpose.msra.mxu0 0
        %6156 = vmatprep.subr.bf16.mxu0 0
        %6157 = vmatpush1.bf16.xpose.msra.mxu0 0
        %6158 = vmatprep.subr.bf16.mxu0 0
        %6159 = vmatpush1.bf16.xpose.msra.mxu0 0
        %6160 = vmatprep.subr.bf16.mxu0 0
        %6161 = vmatpush1.bf16.xpose.msra.mxu0 0
        %6162 = vmatprep.subr.bf16.mxu0 0
        %6163 = vmatpush1.bf16.xpose.msra.mxu0 0
        %6164 = vmatprep.subr.bf16.mxu0 0
        %6165 = vmatpush1.bf16.xpose.msra.mxu0 0
        %6166 = vmatprep.subr.bf16.mxu0 0
        %6167 = vmatpush1.bf16.xpose.msra.mxu0 0
        %6168 = vmatprep.subr.bf16.mxu0 0
        %6169 = vmatpush1.bf16.xpose.msra.mxu0 0
        %6170 = vmatprep.subr.bf16.mxu0 0
        %6171 = vmatpush1.bf16.xpose.msra.mxu0 0
        %6172 = vmatprep.subr.bf16.mxu0 0
        %6173 = vmatpush1.bf16.xpose.msra.mxu0 0
        %6174 = vmatprep.subr.bf16.mxu0 0
        %6175 = vmatpush1.bf16.xpose.msra.mxu0 0
        %6176 = vmatprep.mubr.bf16.mxu0 0
        %6177 = vmatmul.mubr.bf16.gmra.mrb[0].mxu0 %v6133
        %v6178 = vpop.f32.mrb[0].mxu0
        %v6179 = vadd.f32 0.0, %v6178
        %v6180 = vpop.f32.mrb[0].mxu0
        %v6181 = vpop.f32.mrb[0].mxu0
        %v6182 = vadd.f32 0.0, %v6181
        %v6183 = vpop.f32.mrb[0].mxu0
        %6184 = vmatprep.mubr.bf16.mxu0 0
        %6185 = vmatmul.mubr.bf16.gmra.mrb[0].mxu0 %v6136
        %v6186 = vpop.f32.mrb[0].mxu0
        %v6187 = vadd.f32 0.0, %v6186
        %v6188 = vpop.f32.mrb[0].mxu0
        %v6189 = vpop.f32.mrb[0].mxu0
        %v6190 = vpop.f32.mrb[0].mxu0
        %6191 = vdwg.mxu0
        %6192 = vrot.lane.b32.xlu0 %v1599, 104
        %v6193 = vpop.permute.xlu0 %6192
        %6194 = vrot.lane.b32.xlu0 %v1600, 104
        %v6195 = vpop.permute.xlu0 %6194
        %6196 = vrot.lane.b32.xlu0 %v1599, 72
        %v6197 = vpop.permute.xlu0 %6196
        %6198 = vrot.lane.b32.xlu0 %v1600, 72
        %v6199 = vpop.permute.xlu0 %6198
        %v6201 = vsel %vm1406, %v6193, 0
        %v6204 = vsel %vm1406, %v6195, 0
        %v6207 = vsel %vm1406, %v6197, 0
        %v6210 = vsel %vm1406, %v6199, 0
        %6212 = vmatprep.subr.bf16.mxu0 0
        %6213 = vmatpush1.bf16.xpose.msra.mxu0 %v6207
        %6214 = vmatprep.subr.bf16.mxu0 0
        %6215 = vmatpush1.bf16.xpose.msra.mxu0 %v6210
        %6216 = vmatprep.subr.bf16.mxu0 0
        %6217 = vmatpush1.bf16.xpose.msra.mxu0 0
        %6218 = vmatprep.subr.bf16.mxu0 0
        %6219 = vmatpush1.bf16.xpose.msra.mxu0 0
        %6220 = vmatprep.subr.bf16.mxu0 0
        %6221 = vmatpush1.bf16.xpose.msra.mxu0 0
        %6222 = vmatprep.subr.bf16.mxu0 0
        %6223 = vmatpush1.bf16.xpose.msra.mxu0 0
        %6224 = vmatprep.subr.bf16.mxu0 0
        %6225 = vmatpush1.bf16.xpose.msra.mxu0 0
        %6226 = vmatprep.subr.bf16.mxu0 0
        %6227 = vmatpush1.bf16.xpose.msra.mxu0 0
        %6228 = vmatprep.subr.bf16.mxu0 0
        %6229 = vmatpush1.bf16.xpose.msra.mxu0 0
        %6230 = vmatprep.subr.bf16.mxu0 0
        %6231 = vmatpush1.bf16.xpose.msra.mxu0 0
        %6232 = vmatprep.subr.bf16.mxu0 0
        %6233 = vmatpush1.bf16.xpose.msra.mxu0 0
        %6234 = vmatprep.subr.bf16.mxu0 0
        %6235 = vmatpush1.bf16.xpose.msra.mxu0 0
        %6236 = vmatprep.subr.bf16.mxu0 0
        %6237 = vmatpush1.bf16.xpose.msra.mxu0 0
        %6238 = vmatprep.subr.bf16.mxu0 0
        %6239 = vmatpush1.bf16.xpose.msra.mxu0 0
        %6240 = vmatprep.subr.bf16.mxu0 0
        %6241 = vmatpush1.bf16.xpose.msra.mxu0 0
        %6242 = vmatprep.subr.bf16.mxu0 0
        %6243 = vmatpush1.bf16.xpose.msra.mxu0 0
        %6244 = vmatprep.mubr.bf16.mxu0 0
        %6245 = vmatmul.mubr.bf16.gmra.mrb[0].mxu0 %v6201
        %v6246 = vpop.f32.mrb[0].mxu0
        %v6247 = vadd.f32 0.0, %v6246
        %v6248 = vpop.f32.mrb[0].mxu0
        %v6249 = vpop.f32.mrb[0].mxu0
        %v6250 = vadd.f32 0.0, %v6249
        %v6251 = vpop.f32.mrb[0].mxu0
        %6252 = vmatprep.mubr.bf16.mxu0 0
        %6253 = vmatmul.mubr.bf16.gmra.mrb[0].mxu0 %v6204
        %v6254 = vpop.f32.mrb[0].mxu0
        %v6255 = vadd.f32 0.0, %v6254
        %v6256 = vpop.f32.mrb[0].mxu0
        %v6257 = vpop.f32.mrb[0].mxu0
        %v6258 = vpop.f32.mrb[0].mxu0
        %6259 = vdwg.mxu0
        %6260 = vrot.lane.b32.xlu0 %v1665, 104
        %v6261 = vpop.permute.xlu0 %6260
        %6262 = vrot.lane.b32.xlu0 %v1666, 104
        %v6263 = vpop.permute.xlu0 %6262
        %6264 = vrot.lane.b32.xlu0 %v1665, 72
        %v6265 = vpop.permute.xlu0 %6264
        %6266 = vrot.lane.b32.xlu0 %v1666, 72
        %v6267 = vpop.permute.xlu0 %6266
        %v6269 = vsel %vm1406, %v6261, 0
        %v6272 = vsel %vm1406, %v6263, 0
        %v6275 = vsel %vm1406, %v6265, 0
        %v6278 = vsel %vm1406, %v6267, 0
        %6280 = vmatprep.subr.bf16.mxu0 0
        %6281 = vmatpush1.bf16.xpose.msra.mxu0 %v6275
        %6282 = vmatprep.subr.bf16.mxu0 0
        %6283 = vmatpush1.bf16.xpose.msra.mxu0 %v6278
        %6284 = vmatprep.subr.bf16.mxu0 0
        %6285 = vmatpush1.bf16.xpose.msra.mxu0 0
        %6286 = vmatprep.subr.bf16.mxu0 0
        %6287 = vmatpush1.bf16.xpose.msra.mxu0 0
        %6288 = vmatprep.subr.bf16.mxu0 0
        %6289 = vmatpush1.bf16.xpose.msra.mxu0 0
        %6290 = vmatprep.subr.bf16.mxu0 0
        %6291 = vmatpush1.bf16.xpose.msra.mxu0 0
        %6292 = vmatprep.subr.bf16.mxu0 0
        %6293 = vmatpush1.bf16.xpose.msra.mxu0 0
        %6294 = vmatprep.subr.bf16.mxu0 0
        %6295 = vmatpush1.bf16.xpose.msra.mxu0 0
        %6296 = vmatprep.subr.bf16.mxu0 0
        %6297 = vmatpush1.bf16.xpose.msra.mxu0 0
        %6298 = vmatprep.subr.bf16.mxu0 0
        %6299 = vmatpush1.bf16.xpose.msra.mxu0 0
        %6300 = vmatprep.subr.bf16.mxu0 0
        %6301 = vmatpush1.bf16.xpose.msra.mxu0 0
        %6302 = vmatprep.subr.bf16.mxu0 0
        %6303 = vmatpush1.bf16.xpose.msra.mxu0 0
        %6304 = vmatprep.subr.bf16.mxu0 0
        %6305 = vmatpush1.bf16.xpose.msra.mxu0 0
        %6306 = vmatprep.subr.bf16.mxu0 0
        %6307 = vmatpush1.bf16.xpose.msra.mxu0 0
        %6308 = vmatprep.subr.bf16.mxu0 0
        %6309 = vmatpush1.bf16.xpose.msra.mxu0 0
        %6310 = vmatprep.subr.bf16.mxu0 0
        %6311 = vmatpush1.bf16.xpose.msra.mxu0 0
        %6312 = vmatprep.mubr.bf16.mxu0 0
        %6313 = vmatmul.mubr.bf16.gmra.mrb[0].mxu0 %v6269
        %v6314 = vpop.f32.mrb[0].mxu0
        %v6315 = vadd.f32 0.0, %v6314
        %v6316 = vpop.f32.mrb[0].mxu0
        %v6317 = vpop.f32.mrb[0].mxu0
        %v6318 = vadd.f32 0.0, %v6317
        %v6319 = vpop.f32.mrb[0].mxu0
        %6320 = vmatprep.mubr.bf16.mxu0 0
        %6321 = vmatmul.mubr.bf16.gmra.mrb[0].mxu0 %v6272
        %v6322 = vpop.f32.mrb[0].mxu0
        %v6323 = vadd.f32 0.0, %v6322
        %v6324 = vpop.f32.mrb[0].mxu0
        %v6325 = vpop.f32.mrb[0].mxu0
        %v6326 = vpop.f32.mrb[0].mxu0
        %6327 = vdwg.mxu0
        %6328 = vrot.lane.b32.xlu0 %v1731, 104
        %v6329 = vpop.permute.xlu0 %6328
        %6330 = vrot.lane.b32.xlu0 %v1732, 104
        %v6331 = vpop.permute.xlu0 %6330
        %6332 = vrot.lane.b32.xlu0 %v1731, 72
        %v6333 = vpop.permute.xlu0 %6332
        %6334 = vrot.lane.b32.xlu0 %v1732, 72
        %v6335 = vpop.permute.xlu0 %6334
        %v6337 = vsel %vm1406, %v6329, 0
        %v6340 = vsel %vm1406, %v6331, 0
        %v6343 = vsel %vm1406, %v6333, 0
        %v6346 = vsel %vm1406, %v6335, 0
        %6348 = vmatprep.subr.bf16.mxu0 0
        %6349 = vmatpush1.bf16.xpose.msra.mxu0 %v6343
        %6350 = vmatprep.subr.bf16.mxu0 0
        %6351 = vmatpush1.bf16.xpose.msra.mxu0 %v6346
        %6352 = vmatprep.subr.bf16.mxu0 0
        %6353 = vmatpush1.bf16.xpose.msra.mxu0 0
        %6354 = vmatprep.subr.bf16.mxu0 0
        %6355 = vmatpush1.bf16.xpose.msra.mxu0 0
        %6356 = vmatprep.subr.bf16.mxu0 0
        %6357 = vmatpush1.bf16.xpose.msra.mxu0 0
        %6358 = vmatprep.subr.bf16.mxu0 0
        %6359 = vmatpush1.bf16.xpose.msra.mxu0 0
        %6360 = vmatprep.subr.bf16.mxu0 0
        %6361 = vmatpush1.bf16.xpose.msra.mxu0 0
        %6362 = vmatprep.subr.bf16.mxu0 0
        %6363 = vmatpush1.bf16.xpose.msra.mxu0 0
        %6364 = vmatprep.subr.bf16.mxu0 0
        %6365 = vmatpush1.bf16.xpose.msra.mxu0 0
        %6366 = vmatprep.subr.bf16.mxu0 0
        %6367 = vmatpush1.bf16.xpose.msra.mxu0 0
        %6368 = vmatprep.subr.bf16.mxu0 0
        %6369 = vmatpush1.bf16.xpose.msra.mxu0 0
        %6370 = vmatprep.subr.bf16.mxu0 0
        %6371 = vmatpush1.bf16.xpose.msra.mxu0 0
        %6372 = vmatprep.subr.bf16.mxu0 0
        %6373 = vmatpush1.bf16.xpose.msra.mxu0 0
        %6374 = vmatprep.subr.bf16.mxu0 0
        %6375 = vmatpush1.bf16.xpose.msra.mxu0 0
        %6376 = vmatprep.subr.bf16.mxu0 0
        %6377 = vmatpush1.bf16.xpose.msra.mxu0 0
        %6378 = vmatprep.subr.bf16.mxu0 0
        %6379 = vmatpush1.bf16.xpose.msra.mxu0 0
        %6380 = vmatprep.mubr.bf16.mxu0 0
        %6381 = vmatmul.mubr.bf16.gmra.mrb[0].mxu0 %v6337
        %v6382 = vpop.f32.mrb[0].mxu0
        %v6383 = vadd.f32 0.0, %v6382
        %v6384 = vpop.f32.mrb[0].mxu0
        %v6385 = vpop.f32.mrb[0].mxu0
        %v6386 = vadd.f32 0.0, %v6385
        %v6387 = vpop.f32.mrb[0].mxu0
        %6388 = vmatprep.mubr.bf16.mxu0 0
        %6389 = vmatmul.mubr.bf16.gmra.mrb[0].mxu0 %v6340
        %v6390 = vpop.f32.mrb[0].mxu0
        %v6391 = vadd.f32 0.0, %v6390
        %v6392 = vpop.f32.mrb[0].mxu0
        %v6393 = vpop.f32.mrb[0].mxu0
        %v6394 = vpop.f32.mrb[0].mxu0
        %6395 = vdwg.mxu0
        %6396 = vrot.lane.b32.xlu0 %v1797, 104
        %v6397 = vpop.permute.xlu0 %6396
        %6398 = vrot.lane.b32.xlu0 %v1798, 104
        %v6399 = vpop.permute.xlu0 %6398
        %6400 = vrot.lane.b32.xlu0 %v1797, 72
        %v6401 = vpop.permute.xlu0 %6400
        %6402 = vrot.lane.b32.xlu0 %v1798, 72
        %v6403 = vpop.permute.xlu0 %6402
        %v6405 = vsel %vm1406, %v6397, 0
        %v6408 = vsel %vm1406, %v6399, 0
        %v6411 = vsel %vm1406, %v6401, 0
        %v6414 = vsel %vm1406, %v6403, 0
        %6416 = vmatprep.subr.bf16.mxu0 0
        %6417 = vmatpush1.bf16.xpose.msra.mxu0 %v6411
        %6418 = vmatprep.subr.bf16.mxu0 0
        %6419 = vmatpush1.bf16.xpose.msra.mxu0 %v6414
        %6420 = vmatprep.subr.bf16.mxu0 0
        %6421 = vmatpush1.bf16.xpose.msra.mxu0 0
        %6422 = vmatprep.subr.bf16.mxu0 0
        %6423 = vmatpush1.bf16.xpose.msra.mxu0 0
        %6424 = vmatprep.subr.bf16.mxu0 0
        %6425 = vmatpush1.bf16.xpose.msra.mxu0 0
        %6426 = vmatprep.subr.bf16.mxu0 0
        %6427 = vmatpush1.bf16.xpose.msra.mxu0 0
        %6428 = vmatprep.subr.bf16.mxu0 0
        %6429 = vmatpush1.bf16.xpose.msra.mxu0 0
        %6430 = vmatprep.subr.bf16.mxu0 0
        %6431 = vmatpush1.bf16.xpose.msra.mxu0 0
        %6432 = vmatprep.subr.bf16.mxu0 0
        %6433 = vmatpush1.bf16.xpose.msra.mxu0 0
        %6434 = vmatprep.subr.bf16.mxu0 0
        %6435 = vmatpush1.bf16.xpose.msra.mxu0 0
        %6436 = vmatprep.subr.bf16.mxu0 0
        %6437 = vmatpush1.bf16.xpose.msra.mxu0 0
        %6438 = vmatprep.subr.bf16.mxu0 0
        %6439 = vmatpush1.bf16.xpose.msra.mxu0 0
        %6440 = vmatprep.subr.bf16.mxu0 0
        %6441 = vmatpush1.bf16.xpose.msra.mxu0 0
        %6442 = vmatprep.subr.bf16.mxu0 0
        %6443 = vmatpush1.bf16.xpose.msra.mxu0 0
        %6444 = vmatprep.subr.bf16.mxu0 0
        %6445 = vmatpush1.bf16.xpose.msra.mxu0 0
        %6446 = vmatprep.subr.bf16.mxu0 0
        %6447 = vmatpush1.bf16.xpose.msra.mxu0 0
        %6448 = vmatprep.mubr.bf16.mxu0 0
        %6449 = vmatmul.mubr.bf16.gmra.mrb[0].mxu0 %v6405
        %v6450 = vpop.f32.mrb[0].mxu0
        %v6451 = vadd.f32 0.0, %v6450
        %v6452 = vpop.f32.mrb[0].mxu0
        %v6453 = vpop.f32.mrb[0].mxu0
        %v6454 = vadd.f32 0.0, %v6453
        %v6455 = vpop.f32.mrb[0].mxu0
        %6456 = vmatprep.mubr.bf16.mxu0 0
        %6457 = vmatmul.mubr.bf16.gmra.mrb[0].mxu0 %v6408
        %v6458 = vpop.f32.mrb[0].mxu0
        %v6459 = vadd.f32 0.0, %v6458
        %v6460 = vpop.f32.mrb[0].mxu0
        %v6461 = vpop.f32.mrb[0].mxu0
        %v6462 = vpop.f32.mrb[0].mxu0
        %6463 = vdwg.mxu0
        %6464 = vrot.lane.b32.xlu0 %v1863, 104
        %v6465 = vpop.permute.xlu0 %6464
        %6466 = vrot.lane.b32.xlu0 %v1864, 104
        %v6467 = vpop.permute.xlu0 %6466
        %6468 = vrot.lane.b32.xlu0 %v1863, 72
        %v6469 = vpop.permute.xlu0 %6468
        %6470 = vrot.lane.b32.xlu0 %v1864, 72
        %v6471 = vpop.permute.xlu0 %6470
        %v6473 = vsel %vm1406, %v6465, 0
        %v6476 = vsel %vm1406, %v6467, 0
        %v6479 = vsel %vm1406, %v6469, 0
        %v6482 = vsel %vm1406, %v6471, 0
        %6484 = vmatprep.subr.bf16.mxu0 0
        %6485 = vmatpush1.bf16.xpose.msra.mxu0 %v6479
        %6486 = vmatprep.subr.bf16.mxu0 0
        %6487 = vmatpush1.bf16.xpose.msra.mxu0 %v6482
        %6488 = vmatprep.subr.bf16.mxu0 0
        %6489 = vmatpush1.bf16.xpose.msra.mxu0 0
        %6490 = vmatprep.subr.bf16.mxu0 0
        %6491 = vmatpush1.bf16.xpose.msra.mxu0 0
        %6492 = vmatprep.subr.bf16.mxu0 0
        %6493 = vmatpush1.bf16.xpose.msra.mxu0 0
        %6494 = vmatprep.subr.bf16.mxu0 0
        %6495 = vmatpush1.bf16.xpose.msra.mxu0 0
        %6496 = vmatprep.subr.bf16.mxu0 0
        %6497 = vmatpush1.bf16.xpose.msra.mxu0 0
        %6498 = vmatprep.subr.bf16.mxu0 0
        %6499 = vmatpush1.bf16.xpose.msra.mxu0 0
        %6500 = vmatprep.subr.bf16.mxu0 0
        %6501 = vmatpush1.bf16.xpose.msra.mxu0 0
        %6502 = vmatprep.subr.bf16.mxu0 0
        %6503 = vmatpush1.bf16.xpose.msra.mxu0 0
        %6504 = vmatprep.subr.bf16.mxu0 0
        %6505 = vmatpush1.bf16.xpose.msra.mxu0 0
        %6506 = vmatprep.subr.bf16.mxu0 0
        %6507 = vmatpush1.bf16.xpose.msra.mxu0 0
        %6508 = vmatprep.subr.bf16.mxu0 0
        %6509 = vmatpush1.bf16.xpose.msra.mxu0 0
        %6510 = vmatprep.subr.bf16.mxu0 0
        %6511 = vmatpush1.bf16.xpose.msra.mxu0 0
        %6512 = vmatprep.subr.bf16.mxu0 0
        %6513 = vmatpush1.bf16.xpose.msra.mxu0 0
        %6514 = vmatprep.subr.bf16.mxu0 0
        %6515 = vmatpush1.bf16.xpose.msra.mxu0 0
        %6516 = vmatprep.mubr.bf16.mxu0 0
        %6517 = vmatmul.mubr.bf16.gmra.mrb[0].mxu0 %v6473
        %v6518 = vpop.f32.mrb[0].mxu0
        %v6519 = vadd.f32 0.0, %v6518
        %v6520 = vpop.f32.mrb[0].mxu0
        %v6521 = vpop.f32.mrb[0].mxu0
        %v6522 = vadd.f32 0.0, %v6521
        %v6523 = vpop.f32.mrb[0].mxu0
        %6524 = vmatprep.mubr.bf16.mxu0 0
        %6525 = vmatmul.mubr.bf16.gmra.mrb[0].mxu0 %v6476
        %v6526 = vpop.f32.mrb[0].mxu0
        %v6527 = vadd.f32 0.0, %v6526
        %v6528 = vpop.f32.mrb[0].mxu0
        %v6529 = vpop.f32.mrb[0].mxu0
        %v6530 = vpop.f32.mrb[0].mxu0
        %6531 = vdwg.mxu0
        %v6532 = vsel %vm1930, %v6043, -1e+30
        %v6533 = vsel %vm1930, %v6046, -1e+30
        %v6534 = vsel %vm1930, %v6051, -1e+30
        %v6535 = vsel %vm1930, %v6111, -1e+30
        %v6536 = vsel %vm1930, %v6114, -1e+30
        %v6537 = vsel %vm1930, %v6119, -1e+30
        %v6538 = vsel %vm1930, %v6179, -1e+30
        %v6539 = vsel %vm1930, %v6182, -1e+30
        %v6540 = vsel %vm1930, %v6187, -1e+30
        %v6541 = vsel %vm1930, %v6247, -1e+30
        %v6542 = vsel %vm1930, %v6250, -1e+30
        %v6543 = vsel %vm1930, %v6255, -1e+30
        %v6544 = vsel %vm1930, %v6315, -1e+30
        %v6545 = vsel %vm1930, %v6318, -1e+30
        %v6546 = vsel %vm1930, %v6323, -1e+30
        %v6547 = vsel %vm1930, %v6383, -1e+30
        %v6548 = vsel %vm1930, %v6386, -1e+30
        %v6549 = vsel %vm1930, %v6391, -1e+30
        %v6550 = vsel %vm1930, %v6451, -1e+30
        %v6551 = vsel %vm1930, %v6454, -1e+30
        %v6552 = vsel %vm1930, %v6459, -1e+30
        %v6553 = vsel %vm1930, %v6519, -1e+30
        %v6554 = vsel %vm1930, %v6522, -1e+30
        %v6555 = vsel %vm1930, %v6527, -1e+30
        %v6556 = vsel %vm1955, %v6532, -inf
        %6557 = vmax.xlane.f32.xlu0 %v6556
        %v6558 = vpop.xlane.xlu0 %6557
        %v6559 = vsel %vm1955, %v6533, -inf
        %6560 = vmax.xlane.f32.xlu0 %v6559
        %v6561 = vpop.xlane.xlu0 %6560
        %v6562 = vsel %vm1955, %v6534, -inf
        %6563 = vmax.xlane.f32.xlu0 %v6562
        %v6564 = vpop.xlane.xlu0 %6563
        %v6565 = vsel %vm1955, %v6535, -inf
        %6566 = vmax.xlane.f32.xlu0 %v6565
        %v6567 = vpop.xlane.xlu0 %6566
        %v6568 = vsel %vm1955, %v6536, -inf
        %6569 = vmax.xlane.f32.xlu0 %v6568
        %v6570 = vpop.xlane.xlu0 %6569
        %v6571 = vsel %vm1955, %v6537, -inf
        %6572 = vmax.xlane.f32.xlu0 %v6571
        %v6573 = vpop.xlane.xlu0 %6572
        %v6574 = vsel %vm1955, %v6538, -inf
        %6575 = vmax.xlane.f32.xlu0 %v6574
        %v6576 = vpop.xlane.xlu0 %6575
        %v6577 = vsel %vm1955, %v6539, -inf
        %6578 = vmax.xlane.f32.xlu0 %v6577
        %v6579 = vpop.xlane.xlu0 %6578
        %v6580 = vsel %vm1955, %v6540, -inf
        %6581 = vmax.xlane.f32.xlu0 %v6580
        %v6582 = vpop.xlane.xlu0 %6581
        %v6583 = vsel %vm1955, %v6541, -inf
        %6584 = vmax.xlane.f32.xlu0 %v6583
        %v6585 = vpop.xlane.xlu0 %6584
        %v6586 = vsel %vm1955, %v6542, -inf
        %6587 = vmax.xlane.f32.xlu0 %v6586
        %v6588 = vpop.xlane.xlu0 %6587
        %v6589 = vsel %vm1955, %v6543, -inf
        %6590 = vmax.xlane.f32.xlu0 %v6589
        %v6591 = vpop.xlane.xlu0 %6590
        %v6592 = vsel %vm1955, %v6544, -inf
        %6593 = vmax.xlane.f32.xlu0 %v6592
        %v6594 = vpop.xlane.xlu0 %6593
        %v6595 = vsel %vm1955, %v6545, -inf
        %6596 = vmax.xlane.f32.xlu0 %v6595
        %v6597 = vpop.xlane.xlu0 %6596
        %v6598 = vsel %vm1955, %v6546, -inf
        %6599 = vmax.xlane.f32.xlu0 %v6598
        %v6600 = vpop.xlane.xlu0 %6599
        %v6601 = vsel %vm1955, %v6547, -inf
        %6602 = vmax.xlane.f32.xlu0 %v6601
        %v6603 = vpop.xlane.xlu0 %6602
        %v6604 = vsel %vm1955, %v6548, -inf
        %6605 = vmax.xlane.f32.xlu0 %v6604
        %v6606 = vpop.xlane.xlu0 %6605
        %v6607 = vsel %vm1955, %v6549, -inf
        %6608 = vmax.xlane.f32.xlu0 %v6607
        %v6609 = vpop.xlane.xlu0 %6608
        %v6610 = vsel %vm1955, %v6550, -inf
        %6611 = vmax.xlane.f32.xlu0 %v6610
        %v6612 = vpop.xlane.xlu0 %6611
        %v6613 = vsel %vm1955, %v6551, -inf
        %6614 = vmax.xlane.f32.xlu0 %v6613
        %v6615 = vpop.xlane.xlu0 %6614
        %v6616 = vsel %vm1955, %v6552, -inf
        %6617 = vmax.xlane.f32.xlu0 %v6616
        %v6618 = vpop.xlane.xlu0 %6617
        %v6619 = vsel %vm1955, %v6553, -inf
        %6620 = vmax.xlane.f32.xlu0 %v6619
        %v6621 = vpop.xlane.xlu0 %6620
        %v6622 = vsel %vm1955, %v6554, -inf
        %6623 = vmax.xlane.f32.xlu0 %v6622
        %v6624 = vpop.xlane.xlu0 %6623
        %v6625 = vsel %vm1955, %v6555, -inf
        %6626 = vmax.xlane.f32.xlu0 %v6625
        %v6627 = vpop.xlane.xlu0 %6626
        %v6628 = vsub.f32 %v6532, %v6558
        %v6629 = vsub.f32 %v6533, %v6561
        %v6630 = vsub.f32 %v6534, %v6564
        %v6631 = vsub.f32 %v6535, %v6567
        %v6632 = vsub.f32 %v6536, %v6570
        %v6633 = vsub.f32 %v6537, %v6573
        %v6634 = vsub.f32 %v6538, %v6576
        %v6635 = vsub.f32 %v6539, %v6579
        %v6636 = vsub.f32 %v6540, %v6582
        %v6637 = vsub.f32 %v6541, %v6585
        %v6638 = vsub.f32 %v6542, %v6588
        %v6639 = vsub.f32 %v6543, %v6591
        %v6640 = vsub.f32 %v6544, %v6594
        %v6641 = vsub.f32 %v6545, %v6597
        %v6642 = vsub.f32 %v6546, %v6600
        %v6643 = vsub.f32 %v6547, %v6603
        %v6644 = vsub.f32 %v6548, %v6606
        %v6645 = vsub.f32 %v6549, %v6609
        %v6646 = vsub.f32 %v6550, %v6612
        %v6647 = vsub.f32 %v6551, %v6615
        %v6648 = vsub.f32 %v6552, %v6618
        %v6649 = vsub.f32 %v6553, %v6621
        %v6650 = vsub.f32 %v6554, %v6624
        %v6651 = vsub.f32 %v6555, %v6627
        %v6652 = vmul.f32 %v6628, 1.442695
        %v6653 = vpow.pop %v6652
        %v6654 = vmul.f32 %v6629, 1.442695
        %v6655 = vpow.pop %v6654
        %v6656 = vmul.f32 %v6630, 1.442695
        %v6657 = vpow.pop %v6656
        %v6658 = vmul.f32 %v6631, 1.442695
        %v6659 = vpow.pop %v6658
        %v6660 = vmul.f32 %v6632, 1.442695
        %v6661 = vpow.pop %v6660
        %v6662 = vmul.f32 %v6633, 1.442695
        %v6663 = vpow.pop %v6662
        %v6664 = vmul.f32 %v6634, 1.442695
        %v6665 = vpow.pop %v6664
        %v6666 = vmul.f32 %v6635, 1.442695
        %v6667 = vpow.pop %v6666
        %v6668 = vmul.f32 %v6636, 1.442695
        %v6669 = vpow.pop %v6668
        %v6670 = vmul.f32 %v6637, 1.442695
        %v6671 = vpow.pop %v6670
        %v6672 = vmul.f32 %v6638, 1.442695
        %v6673 = vpow.pop %v6672
        %v6674 = vmul.f32 %v6639, 1.442695
        %v6675 = vpow.pop %v6674
        %v6676 = vmul.f32 %v6640, 1.442695
        %v6677 = vpow.pop %v6676
        %v6678 = vmul.f32 %v6641, 1.442695
        %v6679 = vpow.pop %v6678
        %v6680 = vmul.f32 %v6642, 1.442695
        %v6681 = vpow.pop %v6680
        %v6682 = vmul.f32 %v6643, 1.442695
        %v6683 = vpow.pop %v6682
        %v6684 = vmul.f32 %v6644, 1.442695
        %v6685 = vpow.pop %v6684
        %v6686 = vmul.f32 %v6645, 1.442695
        %v6687 = vpow.pop %v6686
        %v6688 = vmul.f32 %v6646, 1.442695
        %v6689 = vpow.pop %v6688
        %v6690 = vmul.f32 %v6647, 1.442695
        %v6691 = vpow.pop %v6690
        %v6692 = vmul.f32 %v6648, 1.442695
        %v6693 = vpow.pop %v6692
        %v6694 = vmul.f32 %v6649, 1.442695
        %v6695 = vpow.pop %v6694
        %v6696 = vmul.f32 %v6650, 1.442695
        %v6697 = vpow.pop %v6696
        %v6698 = vmul.f32 %v6651, 1.442695
        %v6699 = vpow.pop %v6698
        %v6700 = vsel %vm1955, %v6653, 0.0
        %6701 = vadd.xlane.f32.xlu0 %v6700
        %v6702 = vpop.xlane.xlu0 %6701
        %v6703 = vsel %vm1955, %v6655, 0.0
        %6704 = vadd.xlane.f32.xlu0 %v6703
        %v6705 = vpop.xlane.xlu0 %6704
        %v6706 = vsel %vm1955, %v6657, 0.0
        %6707 = vadd.xlane.f32.xlu0 %v6706
        %v6708 = vpop.xlane.xlu0 %6707
        %v6709 = vsel %vm1955, %v6659, 0.0
        %6710 = vadd.xlane.f32.xlu0 %v6709
        %v6711 = vpop.xlane.xlu0 %6710
        %v6712 = vsel %vm1955, %v6661, 0.0
        %6713 = vadd.xlane.f32.xlu0 %v6712
        %v6714 = vpop.xlane.xlu0 %6713
        %v6715 = vsel %vm1955, %v6663, 0.0
        %6716 = vadd.xlane.f32.xlu0 %v6715
        %v6717 = vpop.xlane.xlu0 %6716
        %v6718 = vsel %vm1955, %v6665, 0.0
        %6719 = vadd.xlane.f32.xlu0 %v6718
        %v6720 = vpop.xlane.xlu0 %6719
        %v6721 = vsel %vm1955, %v6667, 0.0
        %6722 = vadd.xlane.f32.xlu0 %v6721
        %v6723 = vpop.xlane.xlu0 %6722
        %v6724 = vsel %vm1955, %v6669, 0.0
        %6725 = vadd.xlane.f32.xlu0 %v6724
        %v6726 = vpop.xlane.xlu0 %6725
        %v6727 = vsel %vm1955, %v6671, 0.0
        %6728 = vadd.xlane.f32.xlu0 %v6727
        %v6729 = vpop.xlane.xlu0 %6728
        %v6730 = vsel %vm1955, %v6673, 0.0
        %6731 = vadd.xlane.f32.xlu0 %v6730
        %v6732 = vpop.xlane.xlu0 %6731
        %v6733 = vsel %vm1955, %v6675, 0.0
        %6734 = vadd.xlane.f32.xlu0 %v6733
        %v6735 = vpop.xlane.xlu0 %6734
        %v6736 = vsel %vm1955, %v6677, 0.0
        %6737 = vadd.xlane.f32.xlu0 %v6736
        %v6738 = vpop.xlane.xlu0 %6737
        %v6739 = vsel %vm1955, %v6679, 0.0
        %6740 = vadd.xlane.f32.xlu0 %v6739
        %v6741 = vpop.xlane.xlu0 %6740
        %v6742 = vsel %vm1955, %v6681, 0.0
        %6743 = vadd.xlane.f32.xlu0 %v6742
        %v6744 = vpop.xlane.xlu0 %6743
        %v6745 = vsel %vm1955, %v6683, 0.0
        %6746 = vadd.xlane.f32.xlu0 %v6745
        %v6747 = vpop.xlane.xlu0 %6746
        %v6748 = vsel %vm1955, %v6685, 0.0
        %6749 = vadd.xlane.f32.xlu0 %v6748
        %v6750 = vpop.xlane.xlu0 %6749
        %v6751 = vsel %vm1955, %v6687, 0.0
        %6752 = vadd.xlane.f32.xlu0 %v6751
        %v6753 = vpop.xlane.xlu0 %6752
        %v6754 = vsel %vm1955, %v6689, 0.0
        %6755 = vadd.xlane.f32.xlu0 %v6754
        %v6756 = vpop.xlane.xlu0 %6755
        %v6757 = vsel %vm1955, %v6691, 0.0
        %6758 = vadd.xlane.f32.xlu0 %v6757
        %v6759 = vpop.xlane.xlu0 %6758
        %v6760 = vsel %vm1955, %v6693, 0.0
        %6761 = vadd.xlane.f32.xlu0 %v6760
        %v6762 = vpop.xlane.xlu0 %6761
        %v6763 = vsel %vm1955, %v6695, 0.0
        %6764 = vadd.xlane.f32.xlu0 %v6763
        %v6765 = vpop.xlane.xlu0 %6764
        %v6766 = vsel %vm1955, %v6697, 0.0
        %6767 = vadd.xlane.f32.xlu0 %v6766
        %v6768 = vpop.xlane.xlu0 %6767
        %v6769 = vsel %vm1955, %v6699, 0.0
        %6770 = vadd.xlane.f32.xlu0 %v6769
        %v6771 = vpop.xlane.xlu0 %6770
        %v6772 = vrcp.pop %v6702
        %v6773 = vrcp.pop %v6705
        %v6774 = vrcp.pop %v6708
        %v6775 = vrcp.pop %v6711
        %v6776 = vrcp.pop %v6714
        %v6777 = vrcp.pop %v6717
        %v6778 = vrcp.pop %v6720
        %v6779 = vrcp.pop %v6723
        %v6780 = vrcp.pop %v6726
        %v6781 = vrcp.pop %v6729
        %v6782 = vrcp.pop %v6732
        %v6783 = vrcp.pop %v6735
        %v6784 = vrcp.pop %v6738
        %v6785 = vrcp.pop %v6741
        %v6786 = vrcp.pop %v6744
        %v6787 = vrcp.pop %v6747
        %v6788 = vrcp.pop %v6750
        %v6789 = vrcp.pop %v6753
        %v6790 = vrcp.pop %v6756
        %v6791 = vrcp.pop %v6759
        %v6792 = vrcp.pop %v6762
        %v6793 = vrcp.pop %v6765
        %v6794 = vrcp.pop %v6768
        %v6795 = vrcp.pop %v6771
        %v6796 = vmul.f32 %v6653, %v6772
        %v6797 = vmul.f32 %v6655, %v6773
        %v6798 = vmul.f32 %v6657, %v6774
        %v6799 = vmul.f32 %v6659, %v6775
        %v6800 = vmul.f32 %v6661, %v6776
        %v6801 = vmul.f32 %v6663, %v6777
        %v6802 = vmul.f32 %v6665, %v6778
        %v6803 = vmul.f32 %v6667, %v6779
        %v6804 = vmul.f32 %v6669, %v6780
        %v6805 = vmul.f32 %v6671, %v6781
        %v6806 = vmul.f32 %v6673, %v6782
        %v6807 = vmul.f32 %v6675, %v6783
        %v6808 = vmul.f32 %v6677, %v6784
        %v6809 = vmul.f32 %v6679, %v6785
        %v6810 = vmul.f32 %v6681, %v6786
        %v6811 = vmul.f32 %v6683, %v6787
        %v6812 = vmul.f32 %v6685, %v6788
        %v6813 = vmul.f32 %v6687, %v6789
        %v6814 = vmul.f32 %v6689, %v6790
        %v6815 = vmul.f32 %v6691, %v6791
        %v6816 = vmul.f32 %v6693, %v6792
        %v6817 = vmul.f32 %v6695, %v6793
        %v6818 = vmul.f32 %v6697, %v6794
        %v6819 = vmul.f32 %v6699, %v6795
        %v6820 = vpack.c.bf16 %v6797, %v6796
        %v6821 = vpack.c.bf16 %v6798, %v6798
        %v6822 = vpack.c.bf16 %v6800, %v6799
        %v6823 = vpack.c.bf16 %v6801, %v6801
        %v6824 = vpack.c.bf16 %v6803, %v6802
        %v6825 = vpack.c.bf16 %v6804, %v6804
        %v6826 = vpack.c.bf16 %v6806, %v6805
        %v6827 = vpack.c.bf16 %v6807, %v6807
        %v6828 = vpack.c.bf16 %v6809, %v6808
        %v6829 = vpack.c.bf16 %v6810, %v6810
        %v6830 = vpack.c.bf16 %v6812, %v6811
        %v6831 = vpack.c.bf16 %v6813, %v6813
        %v6832 = vpack.c.bf16 %v6815, %v6814
        %v6833 = vpack.c.bf16 %v6816, %v6816
        %v6834 = vpack.c.bf16 %v6818, %v6817
        %v6835 = vpack.c.bf16 %v6819, %v6819
        %6836 = vrot.lane.b32.xlu0 %v1400, 40
        %v6837 = vpop.permute.xlu0 %6836
        %6838 = vrot.lane.b32.xlu0 %v1401, 40
        %v6839 = vpop.permute.xlu0 %6838
        %v6842 = vsel %vm1955, %v6820, 0
        %v6845 = vsel %vm1955, %v6821, 0
        %v6848 = vsel %vm2247, %v6839, 0
        %6850 = vmatprep.subr.bf16.mxu0 0
        %6851 = vmatpush1.bf16.msra.mxu0 %v6837
        %6852 = vmatprep.subr.bf16.mxu0 0
        %6853 = vmatpush1.bf16.msra.mxu0 %v6848
        %6854 = vmatprep.subr.bf16.mxu0 0
        %6855 = vmatpush1.bf16.msra.mxu0 0
        %6856 = vmatprep.subr.bf16.mxu0 0
        %6857 = vmatpush1.bf16.msra.mxu0 0
        %6858 = vmatprep.subr.bf16.mxu0 0
        %6859 = vmatpush1.bf16.msra.mxu0 0
        %6860 = vmatprep.subr.bf16.mxu0 0
        %6861 = vmatpush1.bf16.msra.mxu0 0
        %6862 = vmatprep.subr.bf16.mxu0 0
        %6863 = vmatpush1.bf16.msra.mxu0 0
        %6864 = vmatprep.subr.bf16.mxu0 0
        %6865 = vmatpush1.bf16.msra.mxu0 0
        %6866 = vmatprep.subr.bf16.mxu0 0
        %6867 = vmatpush1.bf16.msra.mxu0 0
        %6868 = vmatprep.subr.bf16.mxu0 0
        %6869 = vmatpush1.bf16.msra.mxu0 0
        %6870 = vmatprep.subr.bf16.mxu0 0
        %6871 = vmatpush1.bf16.msra.mxu0 0
        %6872 = vmatprep.subr.bf16.mxu0 0
        %6873 = vmatpush1.bf16.msra.mxu0 0
        %6874 = vmatprep.subr.bf16.mxu0 0
        %6875 = vmatpush1.bf16.msra.mxu0 0
        %6876 = vmatprep.subr.bf16.mxu0 0
        %6877 = vmatpush1.bf16.msra.mxu0 0
        %6878 = vmatprep.subr.bf16.mxu0 0
        %6879 = vmatpush1.bf16.msra.mxu0 0
        %6880 = vmatprep.subr.bf16.mxu0 0
        %6881 = vmatpush1.bf16.msra.mxu0 0
        %6882 = vmatprep.mubr.bf16.mxu0 0
        %6883 = vmatmul.mubr.bf16.gmra.mrb[0].mxu0 %v6842
        %v6884 = vpop.f32.mrb[0].mxu0
        %v6885 = vadd.f32 0.0, %v6884
        %v6886 = vpop.f32.mrb[0].mxu0
        %v6887 = vpop.f32.mrb[0].mxu0
        %v6888 = vadd.f32 0.0, %v6887
        %v6889 = vpop.f32.mrb[0].mxu0
        %6890 = vmatprep.mubr.bf16.mxu0 0
        %6891 = vmatmul.mubr.bf16.gmra.mrb[0].mxu0 %v6845
        %v6892 = vpop.f32.mrb[0].mxu0
        %v6893 = vadd.f32 0.0, %v6892
        %v6894 = vpop.f32.mrb[0].mxu0
        %v6895 = vpop.f32.mrb[0].mxu0
        %v6896 = vpop.f32.mrb[0].mxu0
        %6897 = vdwg.mxu0
        %6898 = vrot.lane.b32.xlu0 %v1467, 40
        %v6899 = vpop.permute.xlu0 %6898
        %6900 = vrot.lane.b32.xlu0 %v1468, 40
        %v6901 = vpop.permute.xlu0 %6900
        %v6904 = vsel %vm1955, %v6822, 0
        %v6907 = vsel %vm1955, %v6823, 0
        %v6910 = vsel %vm2247, %v6901, 0
        %6912 = vmatprep.subr.bf16.mxu0 0
        %6913 = vmatpush1.bf16.msra.mxu0 %v6899
        %6914 = vmatprep.subr.bf16.mxu0 0
        %6915 = vmatpush1.bf16.msra.mxu0 %v6910
        %6916 = vmatprep.subr.bf16.mxu0 0
        %6917 = vmatpush1.bf16.msra.mxu0 0
        %6918 = vmatprep.subr.bf16.mxu0 0
        %6919 = vmatpush1.bf16.msra.mxu0 0
        %6920 = vmatprep.subr.bf16.mxu0 0
        %6921 = vmatpush1.bf16.msra.mxu0 0
        %6922 = vmatprep.subr.bf16.mxu0 0
        %6923 = vmatpush1.bf16.msra.mxu0 0
        %6924 = vmatprep.subr.bf16.mxu0 0
        %6925 = vmatpush1.bf16.msra.mxu0 0
        %6926 = vmatprep.subr.bf16.mxu0 0
        %6927 = vmatpush1.bf16.msra.mxu0 0
        %6928 = vmatprep.subr.bf16.mxu0 0
        %6929 = vmatpush1.bf16.msra.mxu0 0
        %6930 = vmatprep.subr.bf16.mxu0 0
        %6931 = vmatpush1.bf16.msra.mxu0 0
        %6932 = vmatprep.subr.bf16.mxu0 0
        %6933 = vmatpush1.bf16.msra.mxu0 0
        %6934 = vmatprep.subr.bf16.mxu0 0
        %6935 = vmatpush1.bf16.msra.mxu0 0
        %6936 = vmatprep.subr.bf16.mxu0 0
        %6937 = vmatpush1.bf16.msra.mxu0 0
        %6938 = vmatprep.subr.bf16.mxu0 0
        %6939 = vmatpush1.bf16.msra.mxu0 0
        %6940 = vmatprep.subr.bf16.mxu0 0
        %6941 = vmatpush1.bf16.msra.mxu0 0
        %6942 = vmatprep.subr.bf16.mxu0 0
        %6943 = vmatpush1.bf16.msra.mxu0 0
        %6944 = vmatprep.mubr.bf16.mxu0 0
        %6945 = vmatmul.mubr.bf16.gmra.mrb[0].mxu0 %v6904
        %v6946 = vpop.f32.mrb[0].mxu0
        %v6947 = vadd.f32 0.0, %v6946
        %v6948 = vpop.f32.mrb[0].mxu0
        %v6949 = vpop.f32.mrb[0].mxu0
        %v6950 = vadd.f32 0.0, %v6949
        %v6951 = vpop.f32.mrb[0].mxu0
        %6952 = vmatprep.mubr.bf16.mxu0 0
        %6953 = vmatmul.mubr.bf16.gmra.mrb[0].mxu0 %v6907
        %v6954 = vpop.f32.mrb[0].mxu0
        %v6955 = vadd.f32 0.0, %v6954
        %v6956 = vpop.f32.mrb[0].mxu0
        %v6957 = vpop.f32.mrb[0].mxu0
        %v6958 = vpop.f32.mrb[0].mxu0
        %6959 = vdwg.mxu0
        %6960 = vrot.lane.b32.xlu0 %v1533, 40
        %v6961 = vpop.permute.xlu0 %6960
        %6962 = vrot.lane.b32.xlu0 %v1534, 40
        %v6963 = vpop.permute.xlu0 %6962
        %v6966 = vsel %vm1955, %v6824, 0
        %v6969 = vsel %vm1955, %v6825, 0
        %v6972 = vsel %vm2247, %v6963, 0
        %6974 = vmatprep.subr.bf16.mxu0 0
        %6975 = vmatpush1.bf16.msra.mxu0 %v6961
        %6976 = vmatprep.subr.bf16.mxu0 0
        %6977 = vmatpush1.bf16.msra.mxu0 %v6972
        %6978 = vmatprep.subr.bf16.mxu0 0
        %6979 = vmatpush1.bf16.msra.mxu0 0
        %6980 = vmatprep.subr.bf16.mxu0 0
        %6981 = vmatpush1.bf16.msra.mxu0 0
        %6982 = vmatprep.subr.bf16.mxu0 0
        %6983 = vmatpush1.bf16.msra.mxu0 0
        %6984 = vmatprep.subr.bf16.mxu0 0
        %6985 = vmatpush1.bf16.msra.mxu0 0
        %6986 = vmatprep.subr.bf16.mxu0 0
        %6987 = vmatpush1.bf16.msra.mxu0 0
        %6988 = vmatprep.subr.bf16.mxu0 0
        %6989 = vmatpush1.bf16.msra.mxu0 0
        %6990 = vmatprep.subr.bf16.mxu0 0
        %6991 = vmatpush1.bf16.msra.mxu0 0
        %6992 = vmatprep.subr.bf16.mxu0 0
        %6993 = vmatpush1.bf16.msra.mxu0 0
        %6994 = vmatprep.subr.bf16.mxu0 0
        %6995 = vmatpush1.bf16.msra.mxu0 0
        %6996 = vmatprep.subr.bf16.mxu0 0
        %6997 = vmatpush1.bf16.msra.mxu0 0
        %6998 = vmatprep.subr.bf16.mxu0 0
        %6999 = vmatpush1.bf16.msra.mxu0 0
        %7000 = vmatprep.subr.bf16.mxu0 0
        %7001 = vmatpush1.bf16.msra.mxu0 0
        %7002 = vmatprep.subr.bf16.mxu0 0
        %7003 = vmatpush1.bf16.msra.mxu0 0
        %7004 = vmatprep.subr.bf16.mxu0 0
        %7005 = vmatpush1.bf16.msra.mxu0 0
        %7006 = vmatprep.mubr.bf16.mxu0 0
        %7007 = vmatmul.mubr.bf16.gmra.mrb[0].mxu0 %v6966
        %v7008 = vpop.f32.mrb[0].mxu0
        %v7009 = vadd.f32 0.0, %v7008
        %v7010 = vpop.f32.mrb[0].mxu0
        %v7011 = vpop.f32.mrb[0].mxu0
        %v7012 = vadd.f32 0.0, %v7011
        %v7013 = vpop.f32.mrb[0].mxu0
        %7014 = vmatprep.mubr.bf16.mxu0 0
        %7015 = vmatmul.mubr.bf16.gmra.mrb[0].mxu0 %v6969
        %v7016 = vpop.f32.mrb[0].mxu0
        %v7017 = vadd.f32 0.0, %v7016
        %v7018 = vpop.f32.mrb[0].mxu0
        %v7019 = vpop.f32.mrb[0].mxu0
        %v7020 = vpop.f32.mrb[0].mxu0
        %7021 = vdwg.mxu0
        %7022 = vrot.lane.b32.xlu0 %v1599, 40
        %v7023 = vpop.permute.xlu0 %7022
        %7024 = vrot.lane.b32.xlu0 %v1600, 40
        %v7025 = vpop.permute.xlu0 %7024
        %v7028 = vsel %vm1955, %v6826, 0
        %v7031 = vsel %vm1955, %v6827, 0
        %v7034 = vsel %vm2247, %v7025, 0
        %7036 = vmatprep.subr.bf16.mxu0 0
        %7037 = vmatpush1.bf16.msra.mxu0 %v7023
        %7038 = vmatprep.subr.bf16.mxu0 0
        %7039 = vmatpush1.bf16.msra.mxu0 %v7034
        %7040 = vmatprep.subr.bf16.mxu0 0
        %7041 = vmatpush1.bf16.msra.mxu0 0
        %7042 = vmatprep.subr.bf16.mxu0 0
        %7043 = vmatpush1.bf16.msra.mxu0 0
        %7044 = vmatprep.subr.bf16.mxu0 0
        %7045 = vmatpush1.bf16.msra.mxu0 0
        %7046 = vmatprep.subr.bf16.mxu0 0
        %7047 = vmatpush1.bf16.msra.mxu0 0
        %7048 = vmatprep.subr.bf16.mxu0 0
        %7049 = vmatpush1.bf16.msra.mxu0 0
        %7050 = vmatprep.subr.bf16.mxu0 0
        %7051 = vmatpush1.bf16.msra.mxu0 0
        %7052 = vmatprep.subr.bf16.mxu0 0
        %7053 = vmatpush1.bf16.msra.mxu0 0
        %7054 = vmatprep.subr.bf16.mxu0 0
        %7055 = vmatpush1.bf16.msra.mxu0 0
        %7056 = vmatprep.subr.bf16.mxu0 0
        %7057 = vmatpush1.bf16.msra.mxu0 0
        %7058 = vmatprep.subr.bf16.mxu0 0
        %7059 = vmatpush1.bf16.msra.mxu0 0
        %7060 = vmatprep.subr.bf16.mxu0 0
        %7061 = vmatpush1.bf16.msra.mxu0 0
        %7062 = vmatprep.subr.bf16.mxu0 0
        %7063 = vmatpush1.bf16.msra.mxu0 0
        %7064 = vmatprep.subr.bf16.mxu0 0
        %7065 = vmatpush1.bf16.msra.mxu0 0
        %7066 = vmatprep.subr.bf16.mxu0 0
        %7067 = vmatpush1.bf16.msra.mxu0 0
        %7068 = vmatprep.mubr.bf16.mxu0 0
        %7069 = vmatmul.mubr.bf16.gmra.mrb[0].mxu0 %v7028
        %v7070 = vpop.f32.mrb[0].mxu0
        %v7071 = vadd.f32 0.0, %v7070
        %v7072 = vpop.f32.mrb[0].mxu0
        %v7073 = vpop.f32.mrb[0].mxu0
        %v7074 = vadd.f32 0.0, %v7073
        %v7075 = vpop.f32.mrb[0].mxu0
        %7076 = vmatprep.mubr.bf16.mxu0 0
        %7077 = vmatmul.mubr.bf16.gmra.mrb[0].mxu0 %v7031
        %v7078 = vpop.f32.mrb[0].mxu0
        %v7079 = vadd.f32 0.0, %v7078
        %v7080 = vpop.f32.mrb[0].mxu0
        %v7081 = vpop.f32.mrb[0].mxu0
        %v7082 = vpop.f32.mrb[0].mxu0
        %7083 = vdwg.mxu0
        %7084 = vrot.lane.b32.xlu0 %v1665, 40
        %v7085 = vpop.permute.xlu0 %7084
        %7086 = vrot.lane.b32.xlu0 %v1666, 40
        %v7087 = vpop.permute.xlu0 %7086
        %v7090 = vsel %vm1955, %v6828, 0
        %v7093 = vsel %vm1955, %v6829, 0
        %v7096 = vsel %vm2247, %v7087, 0
        %7098 = vmatprep.subr.bf16.mxu0 0
        %7099 = vmatpush1.bf16.msra.mxu0 %v7085
        %7100 = vmatprep.subr.bf16.mxu0 0
        %7101 = vmatpush1.bf16.msra.mxu0 %v7096
        %7102 = vmatprep.subr.bf16.mxu0 0
        %7103 = vmatpush1.bf16.msra.mxu0 0
        %7104 = vmatprep.subr.bf16.mxu0 0
        %7105 = vmatpush1.bf16.msra.mxu0 0
        %7106 = vmatprep.subr.bf16.mxu0 0
        %7107 = vmatpush1.bf16.msra.mxu0 0
        %7108 = vmatprep.subr.bf16.mxu0 0
        %7109 = vmatpush1.bf16.msra.mxu0 0
        %7110 = vmatprep.subr.bf16.mxu0 0
        %7111 = vmatpush1.bf16.msra.mxu0 0
        %7112 = vmatprep.subr.bf16.mxu0 0
        %7113 = vmatpush1.bf16.msra.mxu0 0
        %7114 = vmatprep.subr.bf16.mxu0 0
        %7115 = vmatpush1.bf16.msra.mxu0 0
        %7116 = vmatprep.subr.bf16.mxu0 0
        %7117 = vmatpush1.bf16.msra.mxu0 0
        %7118 = vmatprep.subr.bf16.mxu0 0
        %7119 = vmatpush1.bf16.msra.mxu0 0
        %7120 = vmatprep.subr.bf16.mxu0 0
        %7121 = vmatpush1.bf16.msra.mxu0 0
        %7122 = vmatprep.subr.bf16.mxu0 0
        %7123 = vmatpush1.bf16.msra.mxu0 0
        %7124 = vmatprep.subr.bf16.mxu0 0
        %7125 = vmatpush1.bf16.msra.mxu0 0
        %7126 = vmatprep.subr.bf16.mxu0 0
        %7127 = vmatpush1.bf16.msra.mxu0 0
        %7128 = vmatprep.subr.bf16.mxu0 0
        %7129 = vmatpush1.bf16.msra.mxu0 0
        %7130 = vmatprep.mubr.bf16.mxu0 0
        %7131 = vmatmul.mubr.bf16.gmra.mrb[0].mxu0 %v7090
        %v7132 = vpop.f32.mrb[0].mxu0
        %v7133 = vadd.f32 0.0, %v7132
        %v7134 = vpop.f32.mrb[0].mxu0
        %v7135 = vpop.f32.mrb[0].mxu0
        %v7136 = vadd.f32 0.0, %v7135
        %v7137 = vpop.f32.mrb[0].mxu0
        %7138 = vmatprep.mubr.bf16.mxu0 0
        %7139 = vmatmul.mubr.bf16.gmra.mrb[0].mxu0 %v7093
        %v7140 = vpop.f32.mrb[0].mxu0
        %v7141 = vadd.f32 0.0, %v7140
        %v7142 = vpop.f32.mrb[0].mxu0
        %v7143 = vpop.f32.mrb[0].mxu0
        %v7144 = vpop.f32.mrb[0].mxu0
        %7145 = vdwg.mxu0
        %7146 = vrot.lane.b32.xlu0 %v1731, 40
        %v7147 = vpop.permute.xlu0 %7146
        %7148 = vrot.lane.b32.xlu0 %v1732, 40
        %v7149 = vpop.permute.xlu0 %7148
        %v7152 = vsel %vm1955, %v6830, 0
        %v7155 = vsel %vm1955, %v6831, 0
        %v7158 = vsel %vm2247, %v7149, 0
        %7160 = vmatprep.subr.bf16.mxu0 0
        %7161 = vmatpush1.bf16.msra.mxu0 %v7147
        %7162 = vmatprep.subr.bf16.mxu0 0
        %7163 = vmatpush1.bf16.msra.mxu0 %v7158
        %7164 = vmatprep.subr.bf16.mxu0 0
        %7165 = vmatpush1.bf16.msra.mxu0 0
        %7166 = vmatprep.subr.bf16.mxu0 0
        %7167 = vmatpush1.bf16.msra.mxu0 0
        %7168 = vmatprep.subr.bf16.mxu0 0
        %7169 = vmatpush1.bf16.msra.mxu0 0
        %7170 = vmatprep.subr.bf16.mxu0 0
        %7171 = vmatpush1.bf16.msra.mxu0 0
        %7172 = vmatprep.subr.bf16.mxu0 0
        %7173 = vmatpush1.bf16.msra.mxu0 0
        %7174 = vmatprep.subr.bf16.mxu0 0
        %7175 = vmatpush1.bf16.msra.mxu0 0
        %7176 = vmatprep.subr.bf16.mxu0 0
        %7177 = vmatpush1.bf16.msra.mxu0 0
        %7178 = vmatprep.subr.bf16.mxu0 0
        %7179 = vmatpush1.bf16.msra.mxu0 0
        %7180 = vmatprep.subr.bf16.mxu0 0
        %7181 = vmatpush1.bf16.msra.mxu0 0
        %7182 = vmatprep.subr.bf16.mxu0 0
        %7183 = vmatpush1.bf16.msra.mxu0 0
        %7184 = vmatprep.subr.bf16.mxu0 0
        %7185 = vmatpush1.bf16.msra.mxu0 0
        %7186 = vmatprep.subr.bf16.mxu0 0
        %7187 = vmatpush1.bf16.msra.mxu0 0
        %7188 = vmatprep.subr.bf16.mxu0 0
        %7189 = vmatpush1.bf16.msra.mxu0 0
        %7190 = vmatprep.subr.bf16.mxu0 0
        %7191 = vmatpush1.bf16.msra.mxu0 0
        %7192 = vmatprep.mubr.bf16.mxu0 0
        %7193 = vmatmul.mubr.bf16.gmra.mrb[0].mxu0 %v7152
        %v7194 = vpop.f32.mrb[0].mxu0
        %v7195 = vadd.f32 0.0, %v7194
        %v7196 = vpop.f32.mrb[0].mxu0
        %v7197 = vpop.f32.mrb[0].mxu0
        %v7198 = vadd.f32 0.0, %v7197
        %v7199 = vpop.f32.mrb[0].mxu0
        %7200 = vmatprep.mubr.bf16.mxu0 0
        %7201 = vmatmul.mubr.bf16.gmra.mrb[0].mxu0 %v7155
        %v7202 = vpop.f32.mrb[0].mxu0
        %v7203 = vadd.f32 0.0, %v7202
        %v7204 = vpop.f32.mrb[0].mxu0
        %v7205 = vpop.f32.mrb[0].mxu0
        %v7206 = vpop.f32.mrb[0].mxu0
        %7207 = vdwg.mxu0
        %7208 = vrot.lane.b32.xlu0 %v1797, 40
        %v7209 = vpop.permute.xlu0 %7208
        %7210 = vrot.lane.b32.xlu0 %v1798, 40
        %v7211 = vpop.permute.xlu0 %7210
        %v7214 = vsel %vm1955, %v6832, 0
        %v7217 = vsel %vm1955, %v6833, 0
        %v7220 = vsel %vm2247, %v7211, 0
        %7222 = vmatprep.subr.bf16.mxu0 0
        %7223 = vmatpush1.bf16.msra.mxu0 %v7209
        %7224 = vmatprep.subr.bf16.mxu0 0
        %7225 = vmatpush1.bf16.msra.mxu0 %v7220
        %7226 = vmatprep.subr.bf16.mxu0 0
        %7227 = vmatpush1.bf16.msra.mxu0 0
        %7228 = vmatprep.subr.bf16.mxu0 0
        %7229 = vmatpush1.bf16.msra.mxu0 0
        %7230 = vmatprep.subr.bf16.mxu0 0
        %7231 = vmatpush1.bf16.msra.mxu0 0
        %7232 = vmatprep.subr.bf16.mxu0 0
        %7233 = vmatpush1.bf16.msra.mxu0 0
        %7234 = vmatprep.subr.bf16.mxu0 0
        %7235 = vmatpush1.bf16.msra.mxu0 0
        %7236 = vmatprep.subr.bf16.mxu0 0
        %7237 = vmatpush1.bf16.msra.mxu0 0
        %7238 = vmatprep.subr.bf16.mxu0 0
        %7239 = vmatpush1.bf16.msra.mxu0 0
        %7240 = vmatprep.subr.bf16.mxu0 0
        %7241 = vmatpush1.bf16.msra.mxu0 0
        %7242 = vmatprep.subr.bf16.mxu0 0
        %7243 = vmatpush1.bf16.msra.mxu0 0
        %7244 = vmatprep.subr.bf16.mxu0 0
        %7245 = vmatpush1.bf16.msra.mxu0 0
        %7246 = vmatprep.subr.bf16.mxu0 0
        %7247 = vmatpush1.bf16.msra.mxu0 0
        %7248 = vmatprep.subr.bf16.mxu0 0
        %7249 = vmatpush1.bf16.msra.mxu0 0
        %7250 = vmatprep.subr.bf16.mxu0 0
        %7251 = vmatpush1.bf16.msra.mxu0 0
        %7252 = vmatprep.subr.bf16.mxu0 0
        %7253 = vmatpush1.bf16.msra.mxu0 0
        %7254 = vmatprep.mubr.bf16.mxu0 0
        %7255 = vmatmul.mubr.bf16.gmra.mrb[0].mxu0 %v7214
        %v7256 = vpop.f32.mrb[0].mxu0
        %v7257 = vadd.f32 0.0, %v7256
        %v7258 = vpop.f32.mrb[0].mxu0
        %v7259 = vpop.f32.mrb[0].mxu0
        %v7260 = vadd.f32 0.0, %v7259
        %v7261 = vpop.f32.mrb[0].mxu0
        %7262 = vmatprep.mubr.bf16.mxu0 0
        %7263 = vmatmul.mubr.bf16.gmra.mrb[0].mxu0 %v7217
        %v7264 = vpop.f32.mrb[0].mxu0
        %v7265 = vadd.f32 0.0, %v7264
        %v7266 = vpop.f32.mrb[0].mxu0
        %v7267 = vpop.f32.mrb[0].mxu0
        %v7268 = vpop.f32.mrb[0].mxu0
        %7269 = vdwg.mxu0
        %7270 = vrot.lane.b32.xlu0 %v1863, 40
        %v7271 = vpop.permute.xlu0 %7270
        %7272 = vrot.lane.b32.xlu0 %v1864, 40
        %v7273 = vpop.permute.xlu0 %7272
        %v7276 = vsel %vm1955, %v6834, 0
        %v7279 = vsel %vm1955, %v6835, 0
        %v7282 = vsel %vm2247, %v7273, 0
        %7284 = vmatprep.subr.bf16.mxu0 0
        %7285 = vmatpush1.bf16.msra.mxu0 %v7271
        %7286 = vmatprep.subr.bf16.mxu0 0
        %7287 = vmatpush1.bf16.msra.mxu0 %v7282
        %7288 = vmatprep.subr.bf16.mxu0 0
        %7289 = vmatpush1.bf16.msra.mxu0 0
        %7290 = vmatprep.subr.bf16.mxu0 0
        %7291 = vmatpush1.bf16.msra.mxu0 0
        %7292 = vmatprep.subr.bf16.mxu0 0
        %7293 = vmatpush1.bf16.msra.mxu0 0
        %7294 = vmatprep.subr.bf16.mxu0 0
        %7295 = vmatpush1.bf16.msra.mxu0 0
        %7296 = vmatprep.subr.bf16.mxu0 0
        %7297 = vmatpush1.bf16.msra.mxu0 0
        %7298 = vmatprep.subr.bf16.mxu0 0
        %7299 = vmatpush1.bf16.msra.mxu0 0
        %7300 = vmatprep.subr.bf16.mxu0 0
        %7301 = vmatpush1.bf16.msra.mxu0 0
        %7302 = vmatprep.subr.bf16.mxu0 0
        %7303 = vmatpush1.bf16.msra.mxu0 0
        %7304 = vmatprep.subr.bf16.mxu0 0
        %7305 = vmatpush1.bf16.msra.mxu0 0
        %7306 = vmatprep.subr.bf16.mxu0 0
        %7307 = vmatpush1.bf16.msra.mxu0 0
        %7308 = vmatprep.subr.bf16.mxu0 0
        %7309 = vmatpush1.bf16.msra.mxu0 0
        %7310 = vmatprep.subr.bf16.mxu0 0
        %7311 = vmatpush1.bf16.msra.mxu0 0
        %7312 = vmatprep.subr.bf16.mxu0 0
        %7313 = vmatpush1.bf16.msra.mxu0 0
        %7314 = vmatprep.subr.bf16.mxu0 0
        %7315 = vmatpush1.bf16.msra.mxu0 0
        %7316 = vmatprep.mubr.bf16.mxu0 0
        %7317 = vmatmul.mubr.bf16.gmra.mrb[0].mxu0 %v7276
        %v7318 = vpop.f32.mrb[0].mxu0
        %v7319 = vadd.f32 0.0, %v7318
        %v7320 = vpop.f32.mrb[0].mxu0
        %v7321 = vpop.f32.mrb[0].mxu0
        %v7322 = vadd.f32 0.0, %v7321
        %v7323 = vpop.f32.mrb[0].mxu0
        %7324 = vmatprep.mubr.bf16.mxu0 0
        %7325 = vmatmul.mubr.bf16.gmra.mrb[0].mxu0 %v7279
        %v7326 = vpop.f32.mrb[0].mxu0
        %v7327 = vadd.f32 0.0, %v7326
        %v7328 = vpop.f32.mrb[0].mxu0
        %v7329 = vpop.f32.mrb[0].mxu0
        %v7330 = vpop.f32.mrb[0].mxu0
        %7331 = vdwg.mxu0
        %v7332 = vpack.c.bf16 %v6888, %v6885
        %v7333 = vpack.c.bf16 %v6947, %v6893
        %v7334 = vpack.c.bf16 %v6955, %v6950
        %v7335 = vpack.c.bf16 %v7012, %v7009
        %v7336 = vpack.c.bf16 %v7071, %v7017
        %v7337 = vpack.c.bf16 %v7079, %v7074
        %v7338 = vpack.c.bf16 %v7136, %v7133
        %v7339 = vpack.c.bf16 %v7195, %v7141
        %v7340 = vpack.c.bf16 %v7203, %v7198
        %v7341 = vpack.c.bf16 %v7260, %v7257
        %v7342 = vpack.c.bf16 %v7319, %v7265
        %v7343 = vpack.c.bf16 %v7327, %v7322
        %v7344 = vld [vmem:[%s669 + $0xc] sm:$0xf]
        %v7346 = vsel %vm1406, %v7332, 0
        %v7349 = vsel %vm1406, %v7333, 0
        %v7352 = vsel %vm1406, %v7334, 0
        %v7355 = vsel %vm1406, %v7335, 0
        %v7358 = vsel %vm1406, %v7336, 0
        %v7361 = vsel %vm1406, %v7337, 0
        %v7364 = vsel %vm1406, %v7338, 0
        %v7367 = vsel %vm1406, %v7339, 0
        %v7370 = vsel %vm1406, %v7340, 0
        %v7373 = vsel %vm1406, %v7341, 0
        %v7376 = vsel %vm1406, %v7342, 0
        %v7379 = vsel %vm1406, %v7343, 0
        %v7382 = vsel %vm2247, %v7344, 0
        %7384 = vmatprep.subr.bf16.mxu0 0
        %7385 = vmatpush1.bf16.msra.mxu0 %v7382
        %7386 = vmatprep.subr.bf16.mxu0 0
        %7387 = vmatpush1.bf16.msra.mxu0 0
        %7388 = vmatprep.subr.bf16.mxu0 0
        %7389 = vmatpush1.bf16.msra.mxu0 0
        %7390 = vmatprep.subr.bf16.mxu0 0
        %7391 = vmatpush1.bf16.msra.mxu0 0
        %7392 = vmatprep.subr.bf16.mxu0 0
        %7393 = vmatpush1.bf16.msra.mxu0 0
        %7394 = vmatprep.subr.bf16.mxu0 0
        %7395 = vmatpush1.bf16.msra.mxu0 0
        %7396 = vmatprep.subr.bf16.mxu0 0
        %7397 = vmatpush1.bf16.msra.mxu0 0
        %7398 = vmatprep.subr.bf16.mxu0 0
        %7399 = vmatpush1.bf16.msra.mxu0 0
        %7400 = vmatprep.subr.bf16.mxu0 0
        %7401 = vmatpush1.bf16.msra.mxu0 0
        %7402 = vmatprep.subr.bf16.mxu0 0
        %7403 = vmatpush1.bf16.msra.mxu0 0
        %7404 = vmatprep.subr.bf16.mxu0 0
        %7405 = vmatpush1.bf16.msra.mxu0 0
        %7406 = vmatprep.subr.bf16.mxu0 0
        %7407 = vmatpush1.bf16.msra.mxu0 0
        %7408 = vmatprep.subr.bf16.mxu0 0
        %7409 = vmatpush1.bf16.msra.mxu0 0
        %7410 = vmatprep.subr.bf16.mxu0 0
        %7411 = vmatpush1.bf16.msra.mxu0 0
        %7412 = vmatprep.subr.bf16.mxu0 0
        %7413 = vmatpush1.bf16.msra.mxu0 0
        %7414 = vmatprep.subr.bf16.mxu0 0
        %7415 = vmatpush1.bf16.msra.mxu0 0
        %7416 = vmatprep.mubr.bf16.mxu0 0
        %7417 = vmatmul.mubr.bf16.gmra.mrb[0].mxu0 %v7346
        %v7418 = vpop.f32.mrb[0].mxu0
        %v7419 = vadd.f32 0.0, %v7418
        %v7420 = vpop.f32.mrb[0].mxu0
        %v7421 = vpop.f32.mrb[0].mxu0
        %v7422 = vadd.f32 0.0, %v7421
        %v7423 = vpop.f32.mrb[0].mxu0
        %7424 = vmatprep.mubr.bf16.mxu0 0
        %7425 = vmatmul.mubr.bf16.gmra.mrb[0].mxu0 %v7349
        %v7426 = vpop.f32.mrb[0].mxu0
        %v7427 = vadd.f32 0.0, %v7426
        %v7428 = vpop.f32.mrb[0].mxu0
        %v7429 = vpop.f32.mrb[0].mxu0
        %v7430 = vadd.f32 0.0, %v7429
        %v7431 = vpop.f32.mrb[0].mxu0
        %7432 = vmatprep.mubr.bf16.mxu0 0
        %7433 = vmatmul.mubr.bf16.gmra.mrb[0].mxu0 %v7352
        %v7434 = vpop.f32.mrb[0].mxu0
        %v7435 = vadd.f32 0.0, %v7434
        %v7436 = vpop.f32.mrb[0].mxu0
        %v7437 = vpop.f32.mrb[0].mxu0
        %v7438 = vadd.f32 0.0, %v7437
        %v7439 = vpop.f32.mrb[0].mxu0
        %7440 = vmatprep.mubr.bf16.mxu0 0
        %7441 = vmatmul.mubr.bf16.gmra.mrb[0].mxu0 %v7355
        %v7442 = vpop.f32.mrb[0].mxu0
        %v7443 = vadd.f32 0.0, %v7442
        %v7444 = vpop.f32.mrb[0].mxu0
        %v7445 = vpop.f32.mrb[0].mxu0
        %v7446 = vadd.f32 0.0, %v7445
        %v7447 = vpop.f32.mrb[0].mxu0
        %7448 = vmatprep.mubr.bf16.mxu0 0
        %7449 = vmatmul.mubr.bf16.gmra.mrb[0].mxu0 %v7358
        %v7450 = vpop.f32.mrb[0].mxu0
        %v7451 = vadd.f32 0.0, %v7450
        %v7452 = vpop.f32.mrb[0].mxu0
        %v7453 = vpop.f32.mrb[0].mxu0
        %v7454 = vadd.f32 0.0, %v7453
        %v7455 = vpop.f32.mrb[0].mxu0
        %7456 = vmatprep.mubr.bf16.mxu0 0
        %7457 = vmatmul.mubr.bf16.gmra.mrb[0].mxu0 %v7361
        %v7458 = vpop.f32.mrb[0].mxu0
        %v7459 = vadd.f32 0.0, %v7458
        %v7460 = vpop.f32.mrb[0].mxu0
        %v7461 = vpop.f32.mrb[0].mxu0
        %v7462 = vadd.f32 0.0, %v7461
        %v7463 = vpop.f32.mrb[0].mxu0
        %7464 = vmatprep.mubr.bf16.mxu0 0
        %7465 = vmatmul.mubr.bf16.gmra.mrb[0].mxu0 %v7364
        %v7466 = vpop.f32.mrb[0].mxu0
        %v7467 = vadd.f32 0.0, %v7466
        %v7468 = vpop.f32.mrb[0].mxu0
        %v7469 = vpop.f32.mrb[0].mxu0
        %v7470 = vadd.f32 0.0, %v7469
        %v7471 = vpop.f32.mrb[0].mxu0
        %7472 = vmatprep.mubr.bf16.mxu0 0
        %7473 = vmatmul.mubr.bf16.gmra.mrb[0].mxu0 %v7367
        %v7474 = vpop.f32.mrb[0].mxu0
        %v7475 = vadd.f32 0.0, %v7474
        %v7476 = vpop.f32.mrb[0].mxu0
        %v7477 = vpop.f32.mrb[0].mxu0
        %v7478 = vadd.f32 0.0, %v7477
        %v7479 = vpop.f32.mrb[0].mxu0
        %7480 = vmatprep.mubr.bf16.mxu0 0
        %7481 = vmatmul.mubr.bf16.gmra.mrb[0].mxu0 %v7370
        %v7482 = vpop.f32.mrb[0].mxu0
        %v7483 = vadd.f32 0.0, %v7482
        %v7484 = vpop.f32.mrb[0].mxu0
        %v7485 = vpop.f32.mrb[0].mxu0
        %v7486 = vadd.f32 0.0, %v7485
        %v7487 = vpop.f32.mrb[0].mxu0
        %7488 = vmatprep.mubr.bf16.mxu0 0
        %7489 = vmatmul.mubr.bf16.gmra.mrb[0].mxu0 %v7373
        %v7490 = vpop.f32.mrb[0].mxu0
        %v7491 = vadd.f32 0.0, %v7490
        %v7492 = vpop.f32.mrb[0].mxu0
        %v7493 = vpop.f32.mrb[0].mxu0
        %v7494 = vadd.f32 0.0, %v7493
        %v7495 = vpop.f32.mrb[0].mxu0
        %7496 = vmatprep.mubr.bf16.mxu0 0
        %7497 = vmatmul.mubr.bf16.gmra.mrb[0].mxu0 %v7376
        %v7498 = vpop.f32.mrb[0].mxu0
        %v7499 = vadd.f32 0.0, %v7498
        %v7500 = vpop.f32.mrb[0].mxu0
        %v7501 = vpop.f32.mrb[0].mxu0
        %v7502 = vadd.f32 0.0, %v7501
        %v7503 = vpop.f32.mrb[0].mxu0
        %7504 = vmatprep.mubr.bf16.mxu0 0
        %7505 = vmatmul.mubr.bf16.gmra.mrb[0].mxu0 %v7379
        %v7506 = vpop.f32.mrb[0].mxu0
        %v7507 = vadd.f32 0.0, %v7506
        %v7508 = vpop.f32.mrb[0].mxu0
        %v7509 = vpop.f32.mrb[0].mxu0
        %v7510 = vadd.f32 0.0, %v7509
        %v7511 = vpop.f32.mrb[0].mxu0
        %7512 = vdwg.mxu0
        %v7513 = vadd.f32 %v5964, %v7419
        %v7514 = vadd.f32 %v5965, %v7422
        %v7515 = vadd.f32 %v5966, %v7427
        %v7516 = vadd.f32 %v5967, %v7430
        %v7517 = vadd.f32 %v5968, %v7435
        %v7518 = vadd.f32 %v5969, %v7438
        %v7519 = vadd.f32 %v5970, %v7443
        %v7520 = vadd.f32 %v5971, %v7446
        %v7521 = vadd.f32 %v5972, %v7451
        %v7522 = vadd.f32 %v5973, %v7454
        %v7523 = vadd.f32 %v5974, %v7459
        %v7524 = vadd.f32 %v5975, %v7462
        %v7525 = vadd.f32 %v5976, %v7467
        %v7526 = vadd.f32 %v5977, %v7470
        %v7527 = vadd.f32 %v5978, %v7475
        %v7528 = vadd.f32 %v5979, %v7478
        %v7529 = vadd.f32 %v5980, %v7483
        %v7530 = vadd.f32 %v5981, %v7486
        %v7531 = vadd.f32 %v5982, %v7491
        %v7532 = vadd.f32 %v5983, %v7494
        %v7533 = vadd.f32 %v5984, %v7499
        %v7534 = vadd.f32 %v5985, %v7502
        %v7535 = vadd.f32 %v5986, %v7507
        %v7536 = vadd.f32 %v5987, %v7510
        %v7537 = vadd.f32 %v749, %v7513
        %v7538 = vadd.f32 %v750, %v7514
        %v7539 = vadd.f32 %v751, %v7515
        %v7540 = vadd.f32 %v752, %v7516
        %v7541 = vadd.f32 %v753, %v7517
        %v7542 = vadd.f32 %v754, %v7518
        %v7543 = vadd.f32 %v755, %v7519
        %v7544 = vadd.f32 %v756, %v7520
        %v7545 = vadd.f32 %v757, %v7521
        %v7546 = vadd.f32 %v758, %v7522
        %v7547 = vadd.f32 %v759, %v7523
        %v7548 = vadd.f32 %v760, %v7524
        %v7549 = vadd.f32 %v761, %v7525
        %v7550 = vadd.f32 %v762, %v7526
        %v7551 = vadd.f32 %v763, %v7527
        %v7552 = vadd.f32 %v764, %v7528
        %v7553 = vadd.f32 %v765, %v7529
        %v7554 = vadd.f32 %v766, %v7530
        %v7555 = vadd.f32 %v767, %v7531
        %v7556 = vadd.f32 %v768, %v7532
        %v7557 = vadd.f32 %v769, %v7533
        %v7558 = vadd.f32 %v770, %v7534
        %v7559 = vadd.f32 %v771, %v7535
        %v7560 = vadd.f32 %v772, %v7536
        %v7561 = vld [vmem:[%s672] sm:$0x1]
        %v7563 = vlaneseq
        %v7564 = vshrl.u32 %v7563, 7
        %v7565 = vsub.s32 0, %v7564
        %v7566 = vrot.slane %v7561, %v7565
        %v7568 = vadd.f32 %v7537, %v7566
        %v7569 = vadd.f32 %v7538, %v7566
        %v7570 = vadd.f32 %v7539, %v7566
        %v7571 = vadd.f32 %v7540, %v7566
        %v7572 = vadd.f32 %v7541, %v7566
        %v7573 = vadd.f32 %v7542, %v7566
        %v7574 = vadd.f32 %v7543, %v7566
        %v7575 = vadd.f32 %v7544, %v7566
        %v7576 = vadd.f32 %v7545, %v7566
        %v7577 = vadd.f32 %v7546, %v7566
        %v7578 = vadd.f32 %v7547, %v7566
        %v7579 = vadd.f32 %v7548, %v7566
        %v7580 = vadd.f32 %v7549, %v7566
        %v7581 = vadd.f32 %v7550, %v7566
        %v7582 = vadd.f32 %v7551, %v7566
        %v7583 = vadd.f32 %v7552, %v7566
        %v7584 = vadd.f32 %v7553, %v7566
        %v7585 = vadd.f32 %v7554, %v7566
        %v7586 = vadd.f32 %v7555, %v7566
        %v7587 = vadd.f32 %v7556, %v7566
        %v7588 = vadd.f32 %v7557, %v7566
        %v7589 = vadd.f32 %v7558, %v7566
        %v7590 = vadd.f32 %v7559, %v7566
        %v7591 = vadd.f32 %v7560, %v7566
        %v7592 = vld [vmem:[%s675] sm:$0x1]
        %v7593 = vld [vmem:[%s678] sm:$0x1]
        %v7594 = vsel %vm775, %v7568, 0.0
        %7595 = vadd.xlane.f32.xlu0 %v7594
        %v7596 = vpop.xlane.xlu0 %7595
        %v7597 = vsel %vm775, %v7569, 0.0
        %7598 = vadd.xlane.f32.xlu0 %v7597
        %v7599 = vpop.xlane.xlu0 %7598
        %v7600 = vsel %vm775, %v7570, 0.0
        %7601 = vadd.xlane.f32.xlu0 %v7600
        %v7602 = vpop.xlane.xlu0 %7601
        %v7603 = vsel %vm775, %v7571, 0.0
        %7604 = vadd.xlane.f32.xlu0 %v7603
        %v7605 = vpop.xlane.xlu0 %7604
        %v7606 = vsel %vm775, %v7572, 0.0
        %7607 = vadd.xlane.f32.xlu0 %v7606
        %v7608 = vpop.xlane.xlu0 %7607
        %v7609 = vsel %vm775, %v7573, 0.0
        %7610 = vadd.xlane.f32.xlu0 %v7609
        %v7611 = vpop.xlane.xlu0 %7610
        %v7612 = vsel %vm775, %v7574, 0.0
        %7613 = vadd.xlane.f32.xlu0 %v7612
        %v7614 = vpop.xlane.xlu0 %7613
        %v7615 = vsel %vm775, %v7575, 0.0
        %7616 = vadd.xlane.f32.xlu0 %v7615
        %v7617 = vpop.xlane.xlu0 %7616
        %v7618 = vsel %vm775, %v7576, 0.0
        %7619 = vadd.xlane.f32.xlu0 %v7618
        %v7620 = vpop.xlane.xlu0 %7619
        %v7621 = vsel %vm775, %v7577, 0.0
        %7622 = vadd.xlane.f32.xlu0 %v7621
        %v7623 = vpop.xlane.xlu0 %7622
        %v7624 = vsel %vm775, %v7578, 0.0
        %7625 = vadd.xlane.f32.xlu0 %v7624
        %v7626 = vpop.xlane.xlu0 %7625
        %v7627 = vsel %vm775, %v7579, 0.0
        %7628 = vadd.xlane.f32.xlu0 %v7627
        %v7629 = vpop.xlane.xlu0 %7628
        %v7630 = vsel %vm775, %v7580, 0.0
        %7631 = vadd.xlane.f32.xlu0 %v7630
        %v7632 = vpop.xlane.xlu0 %7631
        %v7633 = vsel %vm775, %v7581, 0.0
        %7634 = vadd.xlane.f32.xlu0 %v7633
        %v7635 = vpop.xlane.xlu0 %7634
        %v7636 = vsel %vm775, %v7582, 0.0
        %7637 = vadd.xlane.f32.xlu0 %v7636
        %v7638 = vpop.xlane.xlu0 %7637
        %v7639 = vsel %vm775, %v7583, 0.0
        %7640 = vadd.xlane.f32.xlu0 %v7639
        %v7641 = vpop.xlane.xlu0 %7640
        %v7642 = vsel %vm775, %v7584, 0.0
        %7643 = vadd.xlane.f32.xlu0 %v7642
        %v7644 = vpop.xlane.xlu0 %7643
        %v7645 = vsel %vm775, %v7585, 0.0
        %7646 = vadd.xlane.f32.xlu0 %v7645
        %v7647 = vpop.xlane.xlu0 %7646
        %v7648 = vsel %vm775, %v7586, 0.0
        %7649 = vadd.xlane.f32.xlu0 %v7648
        %v7650 = vpop.xlane.xlu0 %7649
        %v7651 = vsel %vm775, %v7587, 0.0
        %7652 = vadd.xlane.f32.xlu0 %v7651
        %v7653 = vpop.xlane.xlu0 %7652
        %v7654 = vsel %vm775, %v7588, 0.0
        %7655 = vadd.xlane.f32.xlu0 %v7654
        %v7656 = vpop.xlane.xlu0 %7655
        %v7657 = vsel %vm775, %v7589, 0.0
        %7658 = vadd.xlane.f32.xlu0 %v7657
        %v7659 = vpop.xlane.xlu0 %7658
        %v7660 = vsel %vm775, %v7590, 0.0
        %7661 = vadd.xlane.f32.xlu0 %v7660
        %v7662 = vpop.xlane.xlu0 %7661
        %v7663 = vsel %vm775, %v7591, 0.0
        %7664 = vadd.xlane.f32.xlu0 %v7663
        %v7665 = vpop.xlane.xlu0 %7664
        %v7666 = vmul.f32 %v7596, %v848
        %v7667 = vmul.f32 %v7599, %v848
        %v7668 = vmul.f32 %v7602, %v848
        %v7669 = vmul.f32 %v7605, %v848
        %v7670 = vmul.f32 %v7608, %v848
        %v7671 = vmul.f32 %v7611, %v848
        %v7672 = vmul.f32 %v7614, %v848
        %v7673 = vmul.f32 %v7617, %v848
        %v7674 = vmul.f32 %v7620, %v848
        %v7675 = vmul.f32 %v7623, %v848
        %v7676 = vmul.f32 %v7626, %v848
        %v7677 = vmul.f32 %v7629, %v848
        %v7678 = vmul.f32 %v7632, %v848
        %v7679 = vmul.f32 %v7635, %v848
        %v7680 = vmul.f32 %v7638, %v848
        %v7681 = vmul.f32 %v7641, %v848
        %v7682 = vmul.f32 %v7644, %v848
        %v7683 = vmul.f32 %v7647, %v848
        %v7684 = vmul.f32 %v7650, %v848
        %v7685 = vmul.f32 %v7653, %v848
        %v7686 = vmul.f32 %v7656, %v848
        %v7687 = vmul.f32 %v7659, %v848
        %v7688 = vmul.f32 %v7662, %v848
        %v7689 = vmul.f32 %v7665, %v848
        %v7690 = vsub.f32 %v7568, %v7666
        %v7691 = vsub.f32 %v7569, %v7667
        %v7692 = vsub.f32 %v7570, %v7668
        %v7693 = vsub.f32 %v7571, %v7669
        %v7694 = vsub.f32 %v7572, %v7670
        %v7695 = vsub.f32 %v7573, %v7671
        %v7696 = vsub.f32 %v7574, %v7672
        %v7697 = vsub.f32 %v7575, %v7673
        %v7698 = vsub.f32 %v7576, %v7674
        %v7699 = vsub.f32 %v7577, %v7675
        %v7700 = vsub.f32 %v7578, %v7676
        %v7701 = vsub.f32 %v7579, %v7677
        %v7702 = vsub.f32 %v7580, %v7678
        %v7703 = vsub.f32 %v7581, %v7679
        %v7704 = vsub.f32 %v7582, %v7680
        %v7705 = vsub.f32 %v7583, %v7681
        %v7706 = vsub.f32 %v7584, %v7682
        %v7707 = vsub.f32 %v7585, %v7683
        %v7708 = vsub.f32 %v7586, %v7684
        %v7709 = vsub.f32 %v7587, %v7685
        %v7710 = vsub.f32 %v7588, %v7686
        %v7711 = vsub.f32 %v7589, %v7687
        %v7712 = vsub.f32 %v7590, %v7688
        %v7713 = vsub.f32 %v7591, %v7689
        %v7714 = vmul.f32 %v7690, %v7690
        %v7715 = vmul.f32 %v7691, %v7691
        %v7716 = vmul.f32 %v7692, %v7692
        %v7717 = vmul.f32 %v7693, %v7693
        %v7718 = vmul.f32 %v7694, %v7694
        %v7719 = vmul.f32 %v7695, %v7695
        %v7720 = vmul.f32 %v7696, %v7696
        %v7721 = vmul.f32 %v7697, %v7697
        %v7722 = vmul.f32 %v7698, %v7698
        %v7723 = vmul.f32 %v7699, %v7699
        %v7724 = vmul.f32 %v7700, %v7700
        %v7725 = vmul.f32 %v7701, %v7701
        %v7726 = vmul.f32 %v7702, %v7702
        %v7727 = vmul.f32 %v7703, %v7703
        %v7728 = vmul.f32 %v7704, %v7704
        %v7729 = vmul.f32 %v7705, %v7705
        %v7730 = vmul.f32 %v7706, %v7706
        %v7731 = vmul.f32 %v7707, %v7707
        %v7732 = vmul.f32 %v7708, %v7708
        %v7733 = vmul.f32 %v7709, %v7709
        %v7734 = vmul.f32 %v7710, %v7710
        %v7735 = vmul.f32 %v7711, %v7711
        %v7736 = vmul.f32 %v7712, %v7712
        %v7737 = vmul.f32 %v7713, %v7713
        %v7738 = vsel %vm775, %v7714, 0.0
        %7739 = vadd.xlane.f32.xlu0 %v7738
        %v7740 = vpop.xlane.xlu0 %7739
        %v7741 = vsel %vm775, %v7715, 0.0
        %7742 = vadd.xlane.f32.xlu0 %v7741
        %v7743 = vpop.xlane.xlu0 %7742
        %v7744 = vsel %vm775, %v7716, 0.0
        %7745 = vadd.xlane.f32.xlu0 %v7744
        %v7746 = vpop.xlane.xlu0 %7745
        %v7747 = vsel %vm775, %v7717, 0.0
        %7748 = vadd.xlane.f32.xlu0 %v7747
        %v7749 = vpop.xlane.xlu0 %7748
        %v7750 = vsel %vm775, %v7718, 0.0
        %7751 = vadd.xlane.f32.xlu0 %v7750
        %v7752 = vpop.xlane.xlu0 %7751
        %v7753 = vsel %vm775, %v7719, 0.0
        %7754 = vadd.xlane.f32.xlu0 %v7753
        %v7755 = vpop.xlane.xlu0 %7754
        %v7756 = vsel %vm775, %v7720, 0.0
        %7757 = vadd.xlane.f32.xlu0 %v7756
        %v7758 = vpop.xlane.xlu0 %7757
        %v7759 = vsel %vm775, %v7721, 0.0
        %7760 = vadd.xlane.f32.xlu0 %v7759
        %v7761 = vpop.xlane.xlu0 %7760
        %v7762 = vsel %vm775, %v7722, 0.0
        %7763 = vadd.xlane.f32.xlu0 %v7762
        %v7764 = vpop.xlane.xlu0 %7763
        %v7765 = vsel %vm775, %v7723, 0.0
        %7766 = vadd.xlane.f32.xlu0 %v7765
        %v7767 = vpop.xlane.xlu0 %7766
        %v7768 = vsel %vm775, %v7724, 0.0
        %7769 = vadd.xlane.f32.xlu0 %v7768
        %v7770 = vpop.xlane.xlu0 %7769
        %v7771 = vsel %vm775, %v7725, 0.0
        %7772 = vadd.xlane.f32.xlu0 %v7771
        %v7773 = vpop.xlane.xlu0 %7772
        %v7774 = vsel %vm775, %v7726, 0.0
        %7775 = vadd.xlane.f32.xlu0 %v7774
        %v7776 = vpop.xlane.xlu0 %7775
        %v7777 = vsel %vm775, %v7727, 0.0
        %7778 = vadd.xlane.f32.xlu0 %v7777
        %v7779 = vpop.xlane.xlu0 %7778
        %v7780 = vsel %vm775, %v7728, 0.0
        %7781 = vadd.xlane.f32.xlu0 %v7780
        %v7782 = vpop.xlane.xlu0 %7781
        %v7783 = vsel %vm775, %v7729, 0.0
        %7784 = vadd.xlane.f32.xlu0 %v7783
        %v7785 = vpop.xlane.xlu0 %7784
        %v7786 = vsel %vm775, %v7730, 0.0
        %7787 = vadd.xlane.f32.xlu0 %v7786
        %v7788 = vpop.xlane.xlu0 %7787
        %v7789 = vsel %vm775, %v7731, 0.0
        %7790 = vadd.xlane.f32.xlu0 %v7789
        %v7791 = vpop.xlane.xlu0 %7790
        %v7792 = vsel %vm775, %v7732, 0.0
        %7793 = vadd.xlane.f32.xlu0 %v7792
        %v7794 = vpop.xlane.xlu0 %7793
        %v7795 = vsel %vm775, %v7733, 0.0
        %7796 = vadd.xlane.f32.xlu0 %v7795
        %v7797 = vpop.xlane.xlu0 %7796
        %v7798 = vsel %vm775, %v7734, 0.0
        %7799 = vadd.xlane.f32.xlu0 %v7798
        %v7800 = vpop.xlane.xlu0 %7799
        %v7801 = vsel %vm775, %v7735, 0.0
        %7802 = vadd.xlane.f32.xlu0 %v7801
        %v7803 = vpop.xlane.xlu0 %7802
        %v7804 = vsel %vm775, %v7736, 0.0
        %7805 = vadd.xlane.f32.xlu0 %v7804
        %v7806 = vpop.xlane.xlu0 %7805
        %v7807 = vsel %vm775, %v7737, 0.0
        %7808 = vadd.xlane.f32.xlu0 %v7807
        %v7809 = vpop.xlane.xlu0 %7808
        %v7810 = vmul.f32 %v7740, %v848
        %v7811 = vmul.f32 %v7743, %v848
        %v7812 = vmul.f32 %v7746, %v848
        %v7813 = vmul.f32 %v7749, %v848
        %v7814 = vmul.f32 %v7752, %v848
        %v7815 = vmul.f32 %v7755, %v848
        %v7816 = vmul.f32 %v7758, %v848
        %v7817 = vmul.f32 %v7761, %v848
        %v7818 = vmul.f32 %v7764, %v848
        %v7819 = vmul.f32 %v7767, %v848
        %v7820 = vmul.f32 %v7770, %v848
        %v7821 = vmul.f32 %v7773, %v848
        %v7822 = vmul.f32 %v7776, %v848
        %v7823 = vmul.f32 %v7779, %v848
        %v7824 = vmul.f32 %v7782, %v848
        %v7825 = vmul.f32 %v7785, %v848
        %v7826 = vmul.f32 %v7788, %v848
        %v7827 = vmul.f32 %v7791, %v848
        %v7828 = vmul.f32 %v7794, %v848
        %v7829 = vmul.f32 %v7797, %v848
        %v7830 = vmul.f32 %v7800, %v848
        %v7831 = vmul.f32 %v7803, %v848
        %v7832 = vmul.f32 %v7806, %v848
        %v7833 = vmul.f32 %v7809, %v848
        %v7834 = vadd.f32 %v7810, 1e-05
        %v7835 = vadd.f32 %v7811, 1e-05
        %v7836 = vadd.f32 %v7812, 1e-05
        %v7837 = vadd.f32 %v7813, 1e-05
        %v7838 = vadd.f32 %v7814, 1e-05
        %v7839 = vadd.f32 %v7815, 1e-05
        %v7840 = vadd.f32 %v7816, 1e-05
        %v7841 = vadd.f32 %v7817, 1e-05
        %v7842 = vadd.f32 %v7818, 1e-05
        %v7843 = vadd.f32 %v7819, 1e-05
        %v7844 = vadd.f32 %v7820, 1e-05
        %v7845 = vadd.f32 %v7821, 1e-05
        %v7846 = vadd.f32 %v7822, 1e-05
        %v7847 = vadd.f32 %v7823, 1e-05
        %v7848 = vadd.f32 %v7824, 1e-05
        %v7849 = vadd.f32 %v7825, 1e-05
        %v7850 = vadd.f32 %v7826, 1e-05
        %v7851 = vadd.f32 %v7827, 1e-05
        %v7852 = vadd.f32 %v7828, 1e-05
        %v7853 = vadd.f32 %v7829, 1e-05
        %v7854 = vadd.f32 %v7830, 1e-05
        %v7855 = vadd.f32 %v7831, 1e-05
        %v7856 = vadd.f32 %v7832, 1e-05
        %v7857 = vadd.f32 %v7833, 1e-05
        %v7858 = vrsqrt.pop %v7834
        %v7859 = vrsqrt.pop %v7835
        %v7860 = vrsqrt.pop %v7836
        %v7861 = vrsqrt.pop %v7837
        %v7862 = vrsqrt.pop %v7838
        %v7863 = vrsqrt.pop %v7839
        %v7864 = vrsqrt.pop %v7840
        %v7865 = vrsqrt.pop %v7841
        %v7866 = vrsqrt.pop %v7842
        %v7867 = vrsqrt.pop %v7843
        %v7868 = vrsqrt.pop %v7844
        %v7869 = vrsqrt.pop %v7845
        %v7870 = vrsqrt.pop %v7846
        %v7871 = vrsqrt.pop %v7847
        %v7872 = vrsqrt.pop %v7848
        %v7873 = vrsqrt.pop %v7849
        %v7874 = vrsqrt.pop %v7850
        %v7875 = vrsqrt.pop %v7851
        %v7876 = vrsqrt.pop %v7852
        %v7877 = vrsqrt.pop %v7853
        %v7878 = vrsqrt.pop %v7854
        %v7879 = vrsqrt.pop %v7855
        %v7880 = vrsqrt.pop %v7856
        %v7881 = vrsqrt.pop %v7857
        %v7882 = vmul.f32 %v7690, %v7858
        %v7883 = vmul.f32 %v7691, %v7859
        %v7884 = vmul.f32 %v7692, %v7860
        %v7885 = vmul.f32 %v7693, %v7861
        %v7886 = vmul.f32 %v7694, %v7862
        %v7887 = vmul.f32 %v7695, %v7863
        %v7888 = vmul.f32 %v7696, %v7864
        %v7889 = vmul.f32 %v7697, %v7865
        %v7890 = vmul.f32 %v7698, %v7866
        %v7891 = vmul.f32 %v7699, %v7867
        %v7892 = vmul.f32 %v7700, %v7868
        %v7893 = vmul.f32 %v7701, %v7869
        %v7894 = vmul.f32 %v7702, %v7870
        %v7895 = vmul.f32 %v7703, %v7871
        %v7896 = vmul.f32 %v7704, %v7872
        %v7897 = vmul.f32 %v7705, %v7873
        %v7898 = vmul.f32 %v7706, %v7874
        %v7899 = vmul.f32 %v7707, %v7875
        %v7900 = vmul.f32 %v7708, %v7876
        %v7901 = vmul.f32 %v7709, %v7877
        %v7902 = vmul.f32 %v7710, %v7878
        %v7903 = vmul.f32 %v7711, %v7879
        %v7904 = vmul.f32 %v7712, %v7880
        %v7905 = vmul.f32 %v7713, %v7881
        %v7907 = vlaneseq
        %v7908 = vshrl.u32 %v7907, 7
        %v7909 = vsub.s32 0, %v7908
        %v7910 = vrot.slane %v7592, %v7909
        %v7912 = vmul.f32 %v7882, %v7910
        %v7913 = vmul.f32 %v7883, %v7910
        %v7914 = vmul.f32 %v7884, %v7910
        %v7915 = vmul.f32 %v7885, %v7910
        %v7916 = vmul.f32 %v7886, %v7910
        %v7917 = vmul.f32 %v7887, %v7910
        %v7918 = vmul.f32 %v7888, %v7910
        %v7919 = vmul.f32 %v7889, %v7910
        %v7920 = vmul.f32 %v7890, %v7910
        %v7921 = vmul.f32 %v7891, %v7910
        %v7922 = vmul.f32 %v7892, %v7910
        %v7923 = vmul.f32 %v7893, %v7910
        %v7924 = vmul.f32 %v7894, %v7910
        %v7925 = vmul.f32 %v7895, %v7910
        %v7926 = vmul.f32 %v7896, %v7910
        %v7927 = vmul.f32 %v7897, %v7910
        %v7928 = vmul.f32 %v7898, %v7910
        %v7929 = vmul.f32 %v7899, %v7910
        %v7930 = vmul.f32 %v7900, %v7910
        %v7931 = vmul.f32 %v7901, %v7910
        %v7932 = vmul.f32 %v7902, %v7910
        %v7933 = vmul.f32 %v7903, %v7910
        %v7934 = vmul.f32 %v7904, %v7910
        %v7935 = vmul.f32 %v7905, %v7910
        %v7937 = vlaneseq
        %v7938 = vshrl.u32 %v7937, 7
        %v7939 = vsub.s32 0, %v7938
        %v7940 = vrot.slane %v7593, %v7939
        %v7942 = vadd.f32 %v7912, %v7940
        %v7943 = vadd.f32 %v7913, %v7940
        %v7944 = vadd.f32 %v7914, %v7940
        %v7945 = vadd.f32 %v7915, %v7940
        %v7946 = vadd.f32 %v7916, %v7940
        %v7947 = vadd.f32 %v7917, %v7940
        %v7948 = vadd.f32 %v7918, %v7940
        %v7949 = vadd.f32 %v7919, %v7940
        %v7950 = vadd.f32 %v7920, %v7940
        %v7951 = vadd.f32 %v7921, %v7940
        %v7952 = vadd.f32 %v7922, %v7940
        %v7953 = vadd.f32 %v7923, %v7940
        %v7954 = vadd.f32 %v7924, %v7940
        %v7955 = vadd.f32 %v7925, %v7940
        %v7956 = vadd.f32 %v7926, %v7940
        %v7957 = vadd.f32 %v7927, %v7940
        %v7958 = vadd.f32 %v7928, %v7940
        %v7959 = vadd.f32 %v7929, %v7940
        %v7960 = vadd.f32 %v7930, %v7940
        %v7961 = vadd.f32 %v7931, %v7940
        %v7962 = vadd.f32 %v7932, %v7940
        %v7963 = vadd.f32 %v7933, %v7940
        %v7964 = vadd.f32 %v7934, %v7940
        %v7965 = vadd.f32 %v7935, %v7940
        %v7966 = vpack.c.bf16 %v7943, %v7942
        %v7967 = vpack.c.bf16 %v7945, %v7944
        %v7968 = vpack.c.bf16 %v7947, %v7946
        %v7969 = vpack.c.bf16 %v7949, %v7948
        %v7970 = vpack.c.bf16 %v7951, %v7950
        %v7971 = vpack.c.bf16 %v7953, %v7952
        %v7972 = vpack.c.bf16 %v7955, %v7954
        %v7973 = vpack.c.bf16 %v7957, %v7956
        %v7974 = vpack.c.bf16 %v7959, %v7958
        %v7975 = vpack.c.bf16 %v7961, %v7960
        %v7976 = vpack.c.bf16 %v7963, %v7962
        %v7977 = vpack.c.bf16 %v7965, %v7964
        %v7978 = vld [vmem:[%s683] sm:$0xf]
        %v7979 = vld [vmem:[%s683 + $0x4] sm:$0xf]
        %v7980 = vld [vmem:[%s683 + $0x8] sm:$0xf]
        %v7981 = vld [vmem:[%s683 + $0xc] sm:$0xf]
        %v7982 = vld [vmem:[%s686] sm:$0x1]
        %v7984 = vlaneseq
        %v7985 = vshrl.u32 %v7984, 7
        %v7986 = vsub.s32 0, %v7985
        %v7987 = vrot.slane %v7982, %v7986
        %v7993 = vunpack.c.l.b16 %v7978
        %v7994 = vunpack.c.l.b16 %v7979
        %v7995 = vunpack.c.l.b16 %v7980
        %v7996 = vunpack.c.l.b16 %v7981
        %v7997 = vpack.c.b16 %v7994, %v7993
        %v7998 = vpack.c.b16 %v7996, %v7995
        %v8002 = vsel %vm775, %v7966, 0
        %v8005 = vsel %vm775, %v7967, 0
        %v8008 = vsel %vm775, %v7968, 0
        %v8011 = vsel %vm775, %v7969, 0
        %v8014 = vsel %vm775, %v7970, 0
        %v8017 = vsel %vm775, %v7971, 0
        %v8020 = vsel %vm775, %v7972, 0
        %v8023 = vsel %vm775, %v7973, 0
        %v8026 = vsel %vm775, %v7974, 0
        %v8029 = vsel %vm775, %v7975, 0
        %v8032 = vsel %vm775, %v7976, 0
        %v8035 = vsel %vm775, %v7977, 0
        %8037 = vmatprep.subr.bf16.mxu0 0
        %8038 = vmatpush1.bf16.msra.mxu0 %v7997
        %8039 = vmatprep.subr.bf16.mxu0 0
        %8040 = vmatpush1.bf16.msra.mxu0 %v7998
        %8041 = vmatprep.subr.bf16.mxu0 0
        %8042 = vmatpush1.bf16.msra.mxu0 0
        %8043 = vmatprep.subr.bf16.mxu0 0
        %8044 = vmatpush1.bf16.msra.mxu0 0
        %8045 = vmatprep.subr.bf16.mxu0 0
        %8046 = vmatpush1.bf16.msra.mxu0 0
        %8047 = vmatprep.subr.bf16.mxu0 0
        %8048 = vmatpush1.bf16.msra.mxu0 0
        %8049 = vmatprep.subr.bf16.mxu0 0
        %8050 = vmatpush1.bf16.msra.mxu0 0
        %8051 = vmatprep.subr.bf16.mxu0 0
        %8052 = vmatpush1.bf16.msra.mxu0 0
        %8053 = vmatprep.subr.bf16.mxu0 0
        %8054 = vmatpush1.bf16.msra.mxu0 0
        %8055 = vmatprep.subr.bf16.mxu0 0
        %8056 = vmatpush1.bf16.msra.mxu0 0
        %8057 = vmatprep.subr.bf16.mxu0 0
        %8058 = vmatpush1.bf16.msra.mxu0 0
        %8059 = vmatprep.subr.bf16.mxu0 0
        %8060 = vmatpush1.bf16.msra.mxu0 0
        %8061 = vmatprep.subr.bf16.mxu0 0
        %8062 = vmatpush1.bf16.msra.mxu0 0
        %8063 = vmatprep.subr.bf16.mxu0 0
        %8064 = vmatpush1.bf16.msra.mxu0 0
        %8065 = vmatprep.subr.bf16.mxu0 0
        %8066 = vmatpush1.bf16.msra.mxu0 0
        %8067 = vmatprep.subr.bf16.mxu0 0
        %8068 = vmatpush1.bf16.msra.mxu0 0
        %8069 = vmatprep.mubr.bf16.mxu0 0
        %8070 = vmatmul.mubr.bf16.gmra.mrb[0].mxu0 %v8002
        %v8071 = vpop.f32.mrb[0].mxu0
        %v8072 = vadd.f32 %v7987, %v8071
        %v8073 = vpop.f32.mrb[0].mxu0
        %v8074 = vpop.f32.mrb[0].mxu0
        %v8075 = vadd.f32 %v7987, %v8074
        %v8076 = vpop.f32.mrb[0].mxu0
        %8077 = vmatprep.mubr.bf16.mxu0 0
        %8078 = vmatmul.mubr.bf16.gmra.mrb[0].mxu0 %v8005
        %v8079 = vpop.f32.mrb[0].mxu0
        %v8080 = vadd.f32 %v7987, %v8079
        %v8081 = vpop.f32.mrb[0].mxu0
        %v8082 = vpop.f32.mrb[0].mxu0
        %v8083 = vadd.f32 %v7987, %v8082
        %v8084 = vpop.f32.mrb[0].mxu0
        %8085 = vmatprep.mubr.bf16.mxu0 0
        %8086 = vmatmul.mubr.bf16.gmra.mrb[0].mxu0 %v8008
        %v8087 = vpop.f32.mrb[0].mxu0
        %v8088 = vadd.f32 %v7987, %v8087
        %v8089 = vpop.f32.mrb[0].mxu0
        %v8090 = vpop.f32.mrb[0].mxu0
        %v8091 = vadd.f32 %v7987, %v8090
        %v8092 = vpop.f32.mrb[0].mxu0
        %8093 = vmatprep.mubr.bf16.mxu0 0
        %8094 = vmatmul.mubr.bf16.gmra.mrb[0].mxu0 %v8011
        %v8095 = vpop.f32.mrb[0].mxu0
        %v8096 = vadd.f32 %v7987, %v8095
        %v8097 = vpop.f32.mrb[0].mxu0
        %v8098 = vpop.f32.mrb[0].mxu0
        %v8099 = vadd.f32 %v7987, %v8098
        %v8100 = vpop.f32.mrb[0].mxu0
        %8101 = vmatprep.mubr.bf16.mxu0 0
        %8102 = vmatmul.mubr.bf16.gmra.mrb[0].mxu0 %v8014
        %v8103 = vpop.f32.mrb[0].mxu0
        %v8104 = vadd.f32 %v7987, %v8103
        %v8105 = vpop.f32.mrb[0].mxu0
        %v8106 = vpop.f32.mrb[0].mxu0
        %v8107 = vadd.f32 %v7987, %v8106
        %v8108 = vpop.f32.mrb[0].mxu0
        %8109 = vmatprep.mubr.bf16.mxu0 0
        %8110 = vmatmul.mubr.bf16.gmra.mrb[0].mxu0 %v8017
        %v8111 = vpop.f32.mrb[0].mxu0
        %v8112 = vadd.f32 %v7987, %v8111
        %v8113 = vpop.f32.mrb[0].mxu0
        %v8114 = vpop.f32.mrb[0].mxu0
        %v8115 = vadd.f32 %v7987, %v8114
        %v8116 = vpop.f32.mrb[0].mxu0
        %8117 = vmatprep.mubr.bf16.mxu0 0
        %8118 = vmatmul.mubr.bf16.gmra.mrb[0].mxu0 %v8020
        %v8119 = vpop.f32.mrb[0].mxu0
        %v8120 = vadd.f32 %v7987, %v8119
        %v8121 = vpop.f32.mrb[0].mxu0
        %v8122 = vpop.f32.mrb[0].mxu0
        %v8123 = vadd.f32 %v7987, %v8122
        %v8124 = vpop.f32.mrb[0].mxu0
        %8125 = vmatprep.mubr.bf16.mxu0 0
        %8126 = vmatmul.mubr.bf16.gmra.mrb[0].mxu0 %v8023
        %v8127 = vpop.f32.mrb[0].mxu0
        %v8128 = vadd.f32 %v7987, %v8127
        %v8129 = vpop.f32.mrb[0].mxu0
        %v8130 = vpop.f32.mrb[0].mxu0
        %v8131 = vadd.f32 %v7987, %v8130
        %v8132 = vpop.f32.mrb[0].mxu0
        %8133 = vmatprep.mubr.bf16.mxu0 0
        %8134 = vmatmul.mubr.bf16.gmra.mrb[0].mxu0 %v8026
        %v8135 = vpop.f32.mrb[0].mxu0
        %v8136 = vadd.f32 %v7987, %v8135
        %v8137 = vpop.f32.mrb[0].mxu0
        %v8138 = vpop.f32.mrb[0].mxu0
        %v8139 = vadd.f32 %v7987, %v8138
        %v8140 = vpop.f32.mrb[0].mxu0
        %8141 = vmatprep.mubr.bf16.mxu0 0
        %8142 = vmatmul.mubr.bf16.gmra.mrb[0].mxu0 %v8029
        %v8143 = vpop.f32.mrb[0].mxu0
        %v8144 = vadd.f32 %v7987, %v8143
        %v8145 = vpop.f32.mrb[0].mxu0
        %v8146 = vpop.f32.mrb[0].mxu0
        %v8147 = vadd.f32 %v7987, %v8146
        %v8148 = vpop.f32.mrb[0].mxu0
        %8149 = vmatprep.mubr.bf16.mxu0 0
        %8150 = vmatmul.mubr.bf16.gmra.mrb[0].mxu0 %v8032
        %v8151 = vpop.f32.mrb[0].mxu0
        %v8152 = vadd.f32 %v7987, %v8151
        %v8153 = vpop.f32.mrb[0].mxu0
        %v8154 = vpop.f32.mrb[0].mxu0
        %v8155 = vadd.f32 %v7987, %v8154
        %v8156 = vpop.f32.mrb[0].mxu0
        %8157 = vmatprep.mubr.bf16.mxu0 0
        %8158 = vmatmul.mubr.bf16.gmra.mrb[0].mxu0 %v8035
        %v8159 = vpop.f32.mrb[0].mxu0
        %v8160 = vadd.f32 %v7987, %v8159
        %v8161 = vpop.f32.mrb[0].mxu0
        %v8162 = vpop.f32.mrb[0].mxu0
        %v8163 = vadd.f32 %v7987, %v8162
        %v8164 = vpop.f32.mrb[0].mxu0
        %8165 = vdwg.mxu0
        %v8166 = vmul.f32 %v8072, 1.702
        %v8167 = vmul.f32 %v8075, 1.702
        %v8168 = vmul.f32 %v8080, 1.702
        %v8169 = vmul.f32 %v8083, 1.702
        %v8170 = vmul.f32 %v8088, 1.702
        %v8171 = vmul.f32 %v8091, 1.702
        %v8172 = vmul.f32 %v8096, 1.702
        %v8173 = vmul.f32 %v8099, 1.702
        %v8174 = vmul.f32 %v8104, 1.702
        %v8175 = vmul.f32 %v8107, 1.702
        %v8176 = vmul.f32 %v8112, 1.702
        %v8177 = vmul.f32 %v8115, 1.702
        %v8178 = vmul.f32 %v8120, 1.702
        %v8179 = vmul.f32 %v8123, 1.702
        %v8180 = vmul.f32 %v8128, 1.702
        %v8181 = vmul.f32 %v8131, 1.702
        %v8182 = vmul.f32 %v8136, 1.702
        %v8183 = vmul.f32 %v8139, 1.702
        %v8184 = vmul.f32 %v8144, 1.702
        %v8185 = vmul.f32 %v8147, 1.702
        %v8186 = vmul.f32 %v8152, 1.702
        %v8187 = vmul.f32 %v8155, 1.702
        %v8188 = vmul.f32 %v8160, 1.702
        %v8189 = vmul.f32 %v8163, 1.702
        %v8190 = vxor.u32 %v8166, 2147483648
        %v8191 = vxor.u32 %v8167, 2147483648
        %v8192 = vxor.u32 %v8168, 2147483648
        %v8193 = vxor.u32 %v8169, 2147483648
        %v8194 = vxor.u32 %v8170, 2147483648
        %v8195 = vxor.u32 %v8171, 2147483648
        %v8196 = vxor.u32 %v8172, 2147483648
        %v8197 = vxor.u32 %v8173, 2147483648
        %v8198 = vxor.u32 %v8174, 2147483648
        %v8199 = vxor.u32 %v8175, 2147483648
        %v8200 = vxor.u32 %v8176, 2147483648
        %v8201 = vxor.u32 %v8177, 2147483648
        %v8202 = vxor.u32 %v8178, 2147483648
        %v8203 = vxor.u32 %v8179, 2147483648
        %v8204 = vxor.u32 %v8180, 2147483648
        %v8205 = vxor.u32 %v8181, 2147483648
        %v8206 = vxor.u32 %v8182, 2147483648
        %v8207 = vxor.u32 %v8183, 2147483648
        %v8208 = vxor.u32 %v8184, 2147483648
        %v8209 = vxor.u32 %v8185, 2147483648
        %v8210 = vxor.u32 %v8186, 2147483648
        %v8211 = vxor.u32 %v8187, 2147483648
        %v8212 = vxor.u32 %v8188, 2147483648
        %v8213 = vxor.u32 %v8189, 2147483648
        %v8214 = vmul.f32 %v8190, 1.442695
        %v8215 = vpow.pop %v8214
        %v8216 = vmul.f32 %v8191, 1.442695
        %v8217 = vpow.pop %v8216
        %v8218 = vmul.f32 %v8192, 1.442695
        %v8219 = vpow.pop %v8218
        %v8220 = vmul.f32 %v8193, 1.442695
        %v8221 = vpow.pop %v8220
        %v8222 = vmul.f32 %v8194, 1.442695
        %v8223 = vpow.pop %v8222
        %v8224 = vmul.f32 %v8195, 1.442695
        %v8225 = vpow.pop %v8224
        %v8226 = vmul.f32 %v8196, 1.442695
        %v8227 = vpow.pop %v8226
        %v8228 = vmul.f32 %v8197, 1.442695
        %v8229 = vpow.pop %v8228
        %v8230 = vmul.f32 %v8198, 1.442695
        %v8231 = vpow.pop %v8230
        %v8232 = vmul.f32 %v8199, 1.442695
        %v8233 = vpow.pop %v8232
        %v8234 = vmul.f32 %v8200, 1.442695
        %v8235 = vpow.pop %v8234
        %v8236 = vmul.f32 %v8201, 1.442695
        %v8237 = vpow.pop %v8236
        %v8238 = vmul.f32 %v8202, 1.442695
        %v8239 = vpow.pop %v8238
        %v8240 = vmul.f32 %v8203, 1.442695
        %v8241 = vpow.pop %v8240
        %v8242 = vmul.f32 %v8204, 1.442695
        %v8243 = vpow.pop %v8242
        %v8244 = vmul.f32 %v8205, 1.442695
        %v8245 = vpow.pop %v8244
        %v8246 = vmul.f32 %v8206, 1.442695
        %v8247 = vpow.pop %v8246
        %v8248 = vmul.f32 %v8207, 1.442695
        %v8249 = vpow.pop %v8248
        %v8250 = vmul.f32 %v8208, 1.442695
        %v8251 = vpow.pop %v8250
        %v8252 = vmul.f32 %v8209, 1.442695
        %v8253 = vpow.pop %v8252
        %v8254 = vmul.f32 %v8210, 1.442695
        %v8255 = vpow.pop %v8254
        %v8256 = vmul.f32 %v8211, 1.442695
        %v8257 = vpow.pop %v8256
        %v8258 = vmul.f32 %v8212, 1.442695
        %v8259 = vpow.pop %v8258
        %v8260 = vmul.f32 %v8213, 1.442695
        %v8261 = vpow.pop %v8260
        %v8262 = vadd.f32 %v8215, 1.0
        %v8263 = vadd.f32 %v8217, 1.0
        %v8264 = vadd.f32 %v8219, 1.0
        %v8265 = vadd.f32 %v8221, 1.0
        %v8266 = vadd.f32 %v8223, 1.0
        %v8267 = vadd.f32 %v8225, 1.0
        %v8268 = vadd.f32 %v8227, 1.0
        %v8269 = vadd.f32 %v8229, 1.0
        %v8270 = vadd.f32 %v8231, 1.0
        %v8271 = vadd.f32 %v8233, 1.0
        %v8272 = vadd.f32 %v8235, 1.0
        %v8273 = vadd.f32 %v8237, 1.0
        %v8274 = vadd.f32 %v8239, 1.0
        %v8275 = vadd.f32 %v8241, 1.0
        %v8276 = vadd.f32 %v8243, 1.0
        %v8277 = vadd.f32 %v8245, 1.0
        %v8278 = vadd.f32 %v8247, 1.0
        %v8279 = vadd.f32 %v8249, 1.0
        %v8280 = vadd.f32 %v8251, 1.0
        %v8281 = vadd.f32 %v8253, 1.0
        %v8282 = vadd.f32 %v8255, 1.0
        %v8283 = vadd.f32 %v8257, 1.0
        %v8284 = vadd.f32 %v8259, 1.0
        %v8285 = vadd.f32 %v8261, 1.0
        %v8286 = vrcp.pop %v8262
        %v8287 = vmul.f32 1.0, %v8286
        %v8288 = vrcp.pop %v8263
        %v8289 = vmul.f32 1.0, %v8288
        %v8290 = vrcp.pop %v8264
        %v8291 = vmul.f32 1.0, %v8290
        %v8292 = vrcp.pop %v8265
        %v8293 = vmul.f32 1.0, %v8292
        %v8294 = vrcp.pop %v8266
        %v8295 = vmul.f32 1.0, %v8294
        %v8296 = vrcp.pop %v8267
        %v8297 = vmul.f32 1.0, %v8296
        %v8298 = vrcp.pop %v8268
        %v8299 = vmul.f32 1.0, %v8298
        %v8300 = vrcp.pop %v8269
        %v8301 = vmul.f32 1.0, %v8300
        %v8302 = vrcp.pop %v8270
        %v8303 = vmul.f32 1.0, %v8302
        %v8304 = vrcp.pop %v8271
        %v8305 = vmul.f32 1.0, %v8304
        %v8306 = vrcp.pop %v8272
        %v8307 = vmul.f32 1.0, %v8306
        %v8308 = vrcp.pop %v8273
        %v8309 = vmul.f32 1.0, %v8308
        %v8310 = vrcp.pop %v8274
        %v8311 = vmul.f32 1.0, %v8310
        %v8312 = vrcp.pop %v8275
        %v8313 = vmul.f32 1.0, %v8312
        %v8314 = vrcp.pop %v8276
        %v8315 = vmul.f32 1.0, %v8314
        %v8316 = vrcp.pop %v8277
        %v8317 = vmul.f32 1.0, %v8316
        %v8318 = vrcp.pop %v8278
        %v8319 = vmul.f32 1.0, %v8318
        %v8320 = vrcp.pop %v8279
        %v8321 = vmul.f32 1.0, %v8320
        %v8322 = vrcp.pop %v8280
        %v8323 = vmul.f32 1.0, %v8322
        %v8324 = vrcp.pop %v8281
        %v8325 = vmul.f32 1.0, %v8324
        %v8326 = vrcp.pop %v8282
        %v8327 = vmul.f32 1.0, %v8326
        %v8328 = vrcp.pop %v8283
        %v8329 = vmul.f32 1.0, %v8328
        %v8330 = vrcp.pop %v8284
        %v8331 = vmul.f32 1.0, %v8330
        %v8332 = vrcp.pop %v8285
        %v8333 = vmul.f32 1.0, %v8332
        %v8334 = vmul.f32 %v8072, %v8287
        %v8335 = vmul.f32 %v8075, %v8289
        %v8336 = vmul.f32 %v8080, %v8291
        %v8337 = vmul.f32 %v8083, %v8293
        %v8338 = vmul.f32 %v8088, %v8295
        %v8339 = vmul.f32 %v8091, %v8297
        %v8340 = vmul.f32 %v8096, %v8299
        %v8341 = vmul.f32 %v8099, %v8301
        %v8342 = vmul.f32 %v8104, %v8303
        %v8343 = vmul.f32 %v8107, %v8305
        %v8344 = vmul.f32 %v8112, %v8307
        %v8345 = vmul.f32 %v8115, %v8309
        %v8346 = vmul.f32 %v8120, %v8311
        %v8347 = vmul.f32 %v8123, %v8313
        %v8348 = vmul.f32 %v8128, %v8315
        %v8349 = vmul.f32 %v8131, %v8317
        %v8350 = vmul.f32 %v8136, %v8319
        %v8351 = vmul.f32 %v8139, %v8321
        %v8352 = vmul.f32 %v8144, %v8323
        %v8353 = vmul.f32 %v8147, %v8325
        %v8354 = vmul.f32 %v8152, %v8327
        %v8355 = vmul.f32 %v8155, %v8329
        %v8356 = vmul.f32 %v8160, %v8331
        %v8357 = vmul.f32 %v8163, %v8333
        %v8358 = vpack.c.bf16 %v8335, %v8334
        %v8359 = vpack.c.bf16 %v8337, %v8336
        %v8360 = vpack.c.bf16 %v8339, %v8338
        %v8361 = vpack.c.bf16 %v8341, %v8340
        %v8362 = vpack.c.bf16 %v8343, %v8342
        %v8363 = vpack.c.bf16 %v8345, %v8344
        %v8364 = vpack.c.bf16 %v8347, %v8346
        %v8365 = vpack.c.bf16 %v8349, %v8348
        %v8366 = vpack.c.bf16 %v8351, %v8350
        %v8367 = vpack.c.bf16 %v8353, %v8352
        %v8368 = vpack.c.bf16 %v8355, %v8354
        %v8369 = vpack.c.bf16 %v8357, %v8356
        %v8370 = vld [vmem:[%s691] sm:$0xf]
        %v8371 = vld [vmem:[%s691 + $0x4] sm:$0xf]
        %v8372 = vld [vmem:[%s691 + $0x8] sm:$0xf]
        %v8373 = vld [vmem:[%s691 + $0xc] sm:$0xf]
        %v8374 = vld [vmem:[%s691 + $0x10] sm:$0xf]
        %v8375 = vld [vmem:[%s691 + $0x14] sm:$0xf]
        %v8376 = vld [vmem:[%s691 + $0x18] sm:$0xf]
        %v8377 = vld [vmem:[%s691 + $0x1c] sm:$0xf]
        %v8378 = vld [vmem:[%s691 + $0x20] sm:$0xf]
        %v8379 = vld [vmem:[%s691 + $0x24] sm:$0xf]
        %v8380 = vld [vmem:[%s691 + $0x28] sm:$0xf]
        %v8381 = vld [vmem:[%s691 + $0x2c] sm:$0xf]
        %v8382 = vld [vmem:[%s691 + $0x30] sm:$0xf]
        %v8383 = vld [vmem:[%s691 + $0x34] sm:$0xf]
        %v8384 = vld [vmem:[%s691 + $0x38] sm:$0xf]
        %v8385 = vld [vmem:[%s691 + $0x3c] sm:$0xf]
        %v8402 = vunpack.c.l.b16 %v8370
        %v8403 = vunpack.c.l.b16 %v8371
        %v8404 = vunpack.c.l.b16 %v8372
        %v8405 = vunpack.c.l.b16 %v8373
        %v8406 = vunpack.c.l.b16 %v8374
        %v8407 = vunpack.c.l.b16 %v8375
        %v8408 = vunpack.c.l.b16 %v8376
        %v8409 = vunpack.c.l.b16 %v8377
        %v8410 = vunpack.c.l.b16 %v8378
        %v8411 = vunpack.c.l.b16 %v8379
        %v8412 = vunpack.c.l.b16 %v8380
        %v8413 = vunpack.c.l.b16 %v8381
        %v8414 = vunpack.c.l.b16 %v8382
        %v8415 = vunpack.c.l.b16 %v8383
        %v8416 = vunpack.c.l.b16 %v8384
        %v8417 = vunpack.c.l.b16 %v8385
        %v8418 = vpack.c.b16 %v8403, %v8402
        %v8419 = vpack.c.b16 %v8405, %v8404
        %v8420 = vpack.c.b16 %v8407, %v8406
        %v8421 = vpack.c.b16 %v8409, %v8408
        %v8422 = vpack.c.b16 %v8411, %v8410
        %v8423 = vpack.c.b16 %v8413, %v8412
        %v8424 = vpack.c.b16 %v8415, %v8414
        %v8425 = vpack.c.b16 %v8417, %v8416
        %8434 = vmatprep.subr.bf16.mxu0 0
        %8435 = vmatpush1.bf16.msra.mxu0 %v8418
        %8436 = vmatprep.subr.bf16.mxu0 0
        %8437 = vmatpush1.bf16.msra.mxu0 %v8419
        %8438 = vmatprep.subr.bf16.mxu0 0
        %8439 = vmatpush1.bf16.msra.mxu0 %v8420
        %8440 = vmatprep.subr.bf16.mxu0 0
        %8441 = vmatpush1.bf16.msra.mxu0 %v8421
        %8442 = vmatprep.subr.bf16.mxu0 0
        %8443 = vmatpush1.bf16.msra.mxu0 %v8422
        %8444 = vmatprep.subr.bf16.mxu0 0
        %8445 = vmatpush1.bf16.msra.mxu0 %v8423
        %8446 = vmatprep.subr.bf16.mxu0 0
        %8447 = vmatpush1.bf16.msra.mxu0 %v8424
        %8448 = vmatprep.subr.bf16.mxu0 0
        %8449 = vmatpush1.bf16.msra.mxu0 %v8425
        %8450 = vmatprep.subr.bf16.mxu0 0
        %8451 = vmatpush1.bf16.msra.mxu0 0
        %8452 = vmatprep.subr.bf16.mxu0 0
        %8453 = vmatpush1.bf16.msra.mxu0 0
        %8454 = vmatprep.subr.bf16.mxu0 0
        %8455 = vmatpush1.bf16.msra.mxu0 0
        %8456 = vmatprep.subr.bf16.mxu0 0
        %8457 = vmatpush1.bf16.msra.mxu0 0
        %8458 = vmatprep.subr.bf16.mxu0 0
        %8459 = vmatpush1.bf16.msra.mxu0 0
        %8460 = vmatprep.subr.bf16.mxu0 0
        %8461 = vmatpush1.bf16.msra.mxu0 0
        %8462 = vmatprep.subr.bf16.mxu0 0
        %8463 = vmatpush1.bf16.msra.mxu0 0
        %8464 = vmatprep.subr.bf16.mxu0 0
        %8465 = vmatpush1.bf16.msra.mxu0 0
        %8466 = vmatprep.mubr.bf16.mxu0 0
        %8467 = vmatmul.mubr.bf16.gmra.mrb[0].mxu0 %v8358
        %v8468 = vpop.f32.mrb[0].mxu0
        %v8469 = vadd.f32 0.0, %v8468
        %v8470 = vpop.f32.mrb[0].mxu0
        %v8471 = vpop.f32.mrb[0].mxu0
        %v8472 = vadd.f32 0.0, %v8471
        %v8473 = vpop.f32.mrb[0].mxu0
        %8474 = vmatprep.mubr.bf16.mxu0 0
        %8475 = vmatmul.mubr.bf16.gmra.mrb[0].mxu0 %v8359
        %v8476 = vpop.f32.mrb[0].mxu0
        %v8477 = vadd.f32 0.0, %v8476
        %v8478 = vpop.f32.mrb[0].mxu0
        %v8479 = vpop.f32.mrb[0].mxu0
        %v8480 = vadd.f32 0.0, %v8479
        %v8481 = vpop.f32.mrb[0].mxu0
        %8482 = vmatprep.mubr.bf16.mxu0 0
        %8483 = vmatmul.mubr.bf16.gmra.mrb[0].mxu0 %v8360
        %v8484 = vpop.f32.mrb[0].mxu0
        %v8485 = vadd.f32 0.0, %v8484
        %v8486 = vpop.f32.mrb[0].mxu0
        %v8487 = vpop.f32.mrb[0].mxu0
        %v8488 = vadd.f32 0.0, %v8487
        %v8489 = vpop.f32.mrb[0].mxu0
        %8490 = vmatprep.mubr.bf16.mxu0 0
        %8491 = vmatmul.mubr.bf16.gmra.mrb[0].mxu0 %v8361
        %v8492 = vpop.f32.mrb[0].mxu0
        %v8493 = vadd.f32 0.0, %v8492
        %v8494 = vpop.f32.mrb[0].mxu0
        %v8495 = vpop.f32.mrb[0].mxu0
        %v8496 = vadd.f32 0.0, %v8495
        %v8497 = vpop.f32.mrb[0].mxu0
        %8498 = vmatprep.mubr.bf16.mxu0 0
        %8499 = vmatmul.mubr.bf16.gmra.mrb[0].mxu0 %v8362
        %v8500 = vpop.f32.mrb[0].mxu0
        %v8501 = vadd.f32 0.0, %v8500
        %v8502 = vpop.f32.mrb[0].mxu0
        %v8503 = vpop.f32.mrb[0].mxu0
        %v8504 = vadd.f32 0.0, %v8503
        %v8505 = vpop.f32.mrb[0].mxu0
        %8506 = vmatprep.mubr.bf16.mxu0 0
        %8507 = vmatmul.mubr.bf16.gmra.mrb[0].mxu0 %v8363
        %v8508 = vpop.f32.mrb[0].mxu0
        %v8509 = vadd.f32 0.0, %v8508
        %v8510 = vpop.f32.mrb[0].mxu0
        %v8511 = vpop.f32.mrb[0].mxu0
        %v8512 = vadd.f32 0.0, %v8511
        %v8513 = vpop.f32.mrb[0].mxu0
        %8514 = vmatprep.mubr.bf16.mxu0 0
        %8515 = vmatmul.mubr.bf16.gmra.mrb[0].mxu0 %v8364
        %v8516 = vpop.f32.mrb[0].mxu0
        %v8517 = vadd.f32 0.0, %v8516
        %v8518 = vpop.f32.mrb[0].mxu0
        %v8519 = vpop.f32.mrb[0].mxu0
        %v8520 = vadd.f32 0.0, %v8519
        %v8521 = vpop.f32.mrb[0].mxu0
        %8522 = vmatprep.mubr.bf16.mxu0 0
        %8523 = vmatmul.mubr.bf16.gmra.mrb[0].mxu0 %v8365
        %v8524 = vpop.f32.mrb[0].mxu0
        %v8525 = vadd.f32 0.0, %v8524
        %v8526 = vpop.f32.mrb[0].mxu0
        %v8527 = vpop.f32.mrb[0].mxu0
        %v8528 = vadd.f32 0.0, %v8527
        %v8529 = vpop.f32.mrb[0].mxu0
        %8530 = vmatprep.mubr.bf16.mxu0 0
        %8531 = vmatmul.mubr.bf16.gmra.mrb[0].mxu0 %v8366
        %v8532 = vpop.f32.mrb[0].mxu0
        %v8533 = vadd.f32 0.0, %v8532
        %v8534 = vpop.f32.mrb[0].mxu0
        %v8535 = vpop.f32.mrb[0].mxu0
        %v8536 = vadd.f32 0.0, %v8535
        %v8537 = vpop.f32.mrb[0].mxu0
        %8538 = vmatprep.mubr.bf16.mxu0 0
        %8539 = vmatmul.mubr.bf16.gmra.mrb[0].mxu0 %v8367
        %v8540 = vpop.f32.mrb[0].mxu0
        %v8541 = vadd.f32 0.0, %v8540
        %v8542 = vpop.f32.mrb[0].mxu0
        %v8543 = vpop.f32.mrb[0].mxu0
        %v8544 = vadd.f32 0.0, %v8543
        %v8545 = vpop.f32.mrb[0].mxu0
        %8546 = vmatprep.mubr.bf16.mxu0 0
        %8547 = vmatmul.mubr.bf16.gmra.mrb[0].mxu0 %v8368
        %v8548 = vpop.f32.mrb[0].mxu0
        %v8549 = vadd.f32 0.0, %v8548
        %v8550 = vpop.f32.mrb[0].mxu0
        %v8551 = vpop.f32.mrb[0].mxu0
        %v8552 = vadd.f32 0.0, %v8551
        %v8553 = vpop.f32.mrb[0].mxu0
        %8554 = vmatprep.mubr.bf16.mxu0 0
        %8555 = vmatmul.mubr.bf16.gmra.mrb[0].mxu0 %v8369
        %v8556 = vpop.f32.mrb[0].mxu0
        %v8557 = vadd.f32 0.0, %v8556
        %v8558 = vpop.f32.mrb[0].mxu0
        %v8559 = vpop.f32.mrb[0].mxu0
        %v8560 = vadd.f32 0.0, %v8559
        %v8561 = vpop.f32.mrb[0].mxu0
        %8562 = vdwg.mxu0
        %v8563 = vadd.f32 %v7568, %v8469
        %v8564 = vadd.f32 %v7569, %v8472
        %v8565 = vadd.f32 %v7570, %v8477
        %v8566 = vadd.f32 %v7571, %v8480
        %v8567 = vadd.f32 %v7572, %v8485
        %v8568 = vadd.f32 %v7573, %v8488
        %v8569 = vadd.f32 %v7574, %v8493
        %v8570 = vadd.f32 %v7575, %v8496
        %v8571 = vadd.f32 %v7576, %v8501
        %v8572 = vadd.f32 %v7577, %v8504
        %v8573 = vadd.f32 %v7578, %v8509
        %v8574 = vadd.f32 %v7579, %v8512
        %v8575 = vadd.f32 %v7580, %v8517
        %v8576 = vadd.f32 %v7581, %v8520
        %v8577 = vadd.f32 %v7582, %v8525
        %v8578 = vadd.f32 %v7583, %v8528
        %v8579 = vadd.f32 %v7584, %v8533
        %v8580 = vadd.f32 %v7585, %v8536
        %v8581 = vadd.f32 %v7586, %v8541
        %v8582 = vadd.f32 %v7587, %v8544
        %v8583 = vadd.f32 %v7588, %v8549
        %v8584 = vadd.f32 %v7589, %v8552
        %v8585 = vadd.f32 %v7590, %v8557
        %v8586 = vadd.f32 %v7591, %v8560
        %v8587 = vld [vmem:[%s694] sm:$0x1]
        %v8589 = vlaneseq
        %v8590 = vshrl.u32 %v8589, 7
        %v8591 = vsub.s32 0, %v8590
        %v8592 = vrot.slane %v8587, %v8591
        %v8594 = vadd.f32 %v8563, %v8592
        %v8595 = vadd.f32 %v8564, %v8592
        %v8596 = vadd.f32 %v8565, %v8592
        %v8597 = vadd.f32 %v8566, %v8592
        %v8598 = vadd.f32 %v8567, %v8592
        %v8599 = vadd.f32 %v8568, %v8592
        %v8600 = vadd.f32 %v8569, %v8592
        %v8601 = vadd.f32 %v8570, %v8592
        %v8602 = vadd.f32 %v8571, %v8592
        %v8603 = vadd.f32 %v8572, %v8592
        %v8604 = vadd.f32 %v8573, %v8592
        %v8605 = vadd.f32 %v8574, %v8592
        %v8606 = vadd.f32 %v8575, %v8592
        %v8607 = vadd.f32 %v8576, %v8592
        %v8608 = vadd.f32 %v8577, %v8592
        %v8609 = vadd.f32 %v8578, %v8592
        %v8610 = vadd.f32 %v8579, %v8592
        %v8611 = vadd.f32 %v8580, %v8592
        %v8612 = vadd.f32 %v8581, %v8592
        %v8613 = vadd.f32 %v8582, %v8592
        %v8614 = vadd.f32 %v8583, %v8592
        %v8615 = vadd.f32 %v8584, %v8592
        %v8616 = vadd.f32 %v8585, %v8592
        %v8617 = vadd.f32 %v8586, %v8592
        %8618 = vst.msk [vmem:[#allocation2] sm:$0xff] %vm775, %v8594
        %8619 = vst.msk [vmem:[#allocation2 + $0x8] sm:$0xff] %vm775, %v8595
        %8620 = vst.msk [vmem:[#allocation2 + $0x10] sm:$0xff] %vm775, %v8596
        %8621 = vst.msk [vmem:[#allocation2 + $0x18] sm:$0xff] %vm775, %v8597
        %8622 = vst.msk [vmem:[#allocation2 + $0x20] sm:$0xff] %vm775, %v8598
        %8623 = vst.msk [vmem:[#allocation2 + $0x28] sm:$0xff] %vm775, %v8599
        %8624 = vst.msk [vmem:[#allocation2 + $0x30] sm:$0xff] %vm775, %v8600
        %8625 = vst.msk [vmem:[#allocation2 + $0x38] sm:$0xff] %vm775, %v8601
        %8626 = vst.msk [vmem:[#allocation2 + $0x40] sm:$0xff] %vm775, %v8602
        %8627 = vst.msk [vmem:[#allocation2 + $0x48] sm:$0xff] %vm775, %v8603
        %8628 = vst.msk [vmem:[#allocation2 + $0x50] sm:$0xff] %vm775, %v8604
        %8629 = vst.msk [vmem:[#allocation2 + $0x58] sm:$0xff] %vm775, %v8605
        %8630 = vst.msk [vmem:[#allocation2 + $0x60] sm:$0xff] %vm775, %v8606
        %8631 = vst.msk [vmem:[#allocation2 + $0x68] sm:$0xff] %vm775, %v8607
        %8632 = vst.msk [vmem:[#allocation2 + $0x70] sm:$0xff] %vm775, %v8608
        %8633 = vst.msk [vmem:[#allocation2 + $0x78] sm:$0xff] %vm775, %v8609
        %8634 = vst.msk [vmem:[#allocation2 + $0x80] sm:$0xff] %vm775, %v8610
        %8635 = vst.msk [vmem:[#allocation2 + $0x88] sm:$0xff] %vm775, %v8611
        %8636 = vst.msk [vmem:[#allocation2 + $0x90] sm:$0xff] %vm775, %v8612
        %8637 = vst.msk [vmem:[#allocation2 + $0x98] sm:$0xff] %vm775, %v8613
        %8638 = vst.msk [vmem:[#allocation2 + $0xa0] sm:$0xff] %vm775, %v8614
        %8639 = vst.msk [vmem:[#allocation2 + $0xa8] sm:$0xff] %vm775, %v8615
        %8640 = vst.msk [vmem:[#allocation2 + $0xb0] sm:$0xff] %vm775, %v8616
        %8641 = vst.msk [vmem:[#allocation2 + $0xb8] sm:$0xff] %vm775, %v8617
        %p8642 = scmp.eq.s32.totalorder %s33, 1
        // Predicated region
        $region89: #{tpu_custom_call.1} parent=79 // pred_check
          %p8643 = pneg %p8642
        $region90: #{tpu_custom_call.1} parent=79 // pred_check_branch
          %8645 = sbr.rel (%p8643) target = $region92
        $region91: #{tpu_custom_call.1} parent=79 // pred_region
          %v8646 = vld [vmem:[%s13] sm:$0x1]
          %v8647 = vld [vmem:[%s14] sm:$0x1]
          %v8656 = vrot.slane %v8597, 7
          %vm8657 = vcmask 1041409
          %v8658 = vsel %vm8657, %v8656, %v8594
          %v8659 = vrot.slane %v8600, 6
          %vm8660 = vcmask 1042434
          %v8661 = vsel %vm8660, %v8659, %v8658
          %v8662 = vrot.slane %v8603, 5
          %vm8663 = vcmask 1043459
          %v8664 = vsel %vm8663, %v8662, %v8661
          %v8665 = vrot.slane %v8606, 4
          %vm8666 = vcmask 1044484
          %v8667 = vsel %vm8666, %v8665, %v8664
          %v8668 = vrot.slane %v8609, 3
          %vm8669 = vcmask 1045509
          %v8670 = vsel %vm8669, %v8668, %v8667
          %v8671 = vrot.slane %v8612, 2
          %vm8672 = vcmask 1046534
          %v8673 = vsel %vm8672, %v8671, %v8670
          %v8674 = vrot.slane %v8615, 1
          %vm8675 = vcmask 1047559
          %v8676 = vsel %vm8675, %v8674, %v8673
          %v8678 = vsel %vm775, %v8676, 0.0
          %8679 = vadd.xlane.f32.xlu0 %v8678
          %v8680 = vpop.xlane.xlu0 %8679
          %v8681 = vmul.f32 %v8680, %v848
          %v8683 = vrot.slane %v8681, 1
          %v8684 = vrot.slane %v8681, 2
          %v8685 = vrot.slane %v8681, 3
          %v8686 = vrot.slane %v8681, 4
          %v8687 = vrot.slane %v8681, 5
          %v8688 = vrot.slane %v8681, 6
          %v8689 = vrot.slane %v8681, 7
          %v8698 = vsub.f32 %v8594, %v8681
          %v8699 = vsub.f32 %v8597, %v8683
          %v8700 = vsub.f32 %v8600, %v8684
          %v8701 = vsub.f32 %v8603, %v8685
          %v8702 = vsub.f32 %v8606, %v8686
          %v8703 = vsub.f32 %v8609, %v8687
          %v8704 = vsub.f32 %v8612, %v8688
          %v8705 = vsub.f32 %v8615, %v8689
          %v8706 = vmul.f32 %v8698, %v8698
          %v8707 = vmul.f32 %v8699, %v8699
          %v8708 = vmul.f32 %v8700, %v8700
          %v8709 = vmul.f32 %v8701, %v8701
          %v8710 = vmul.f32 %v8702, %v8702
          %v8711 = vmul.f32 %v8703, %v8703
          %v8712 = vmul.f32 %v8704, %v8704
          %v8713 = vmul.f32 %v8705, %v8705
          %v8722 = vrot.slane %v8707, 7
          %v8723 = vsel %vm8657, %v8722, %v8706
          %v8724 = vrot.slane %v8708, 6
          %v8725 = vsel %vm8660, %v8724, %v8723
          %v8726 = vrot.slane %v8709, 5
          %v8727 = vsel %vm8663, %v8726, %v8725
          %v8728 = vrot.slane %v8710, 4
          %v8729 = vsel %vm8666, %v8728, %v8727
          %v8730 = vrot.slane %v8711, 3
          %v8731 = vsel %vm8669, %v8730, %v8729
          %v8732 = vrot.slane %v8712, 2
          %v8733 = vsel %vm8672, %v8732, %v8731
          %v8734 = vrot.slane %v8713, 1
          %v8735 = vsel %vm8675, %v8734, %v8733
          %v8737 = vsel %vm775, %v8735, 0.0
          %8738 = vadd.xlane.f32.xlu0 %v8737
          %v8739 = vpop.xlane.xlu0 %8738
          %v8740 = vmul.f32 %v8739, %v848
          %v8741 = vadd.f32 %v8740, 1e-05
          %v8742 = vrsqrt.pop %v8741
          %v8744 = vrot.slane %v8742, 1
          %v8745 = vrot.slane %v8742, 2
          %v8746 = vrot.slane %v8742, 3
          %v8747 = vrot.slane %v8742, 4
          %v8748 = vrot.slane %v8742, 5
          %v8749 = vrot.slane %v8742, 6
          %v8750 = vrot.slane %v8742, 7
          %v8759 = vmul.f32 %v8698, %v8742
          %v8760 = vmul.f32 %v8699, %v8744
          %v8761 = vmul.f32 %v8700, %v8745
          %v8762 = vmul.f32 %v8701, %v8746
          %v8763 = vmul.f32 %v8702, %v8747
          %v8764 = vmul.f32 %v8703, %v8748
          %v8765 = vmul.f32 %v8704, %v8749
          %v8766 = vmul.f32 %v8705, %v8750
          %v8768 = vlaneseq
          %v8769 = vshrl.u32 %v8768, 7
          %v8770 = vsub.s32 0, %v8769
          %v8771 = vrot.slane %v8646, %v8770
          %v8773 = vmul.f32 %v8759, %v8771
          %v8774 = vmul.f32 %v8760, %v8771
          %v8775 = vmul.f32 %v8761, %v8771
          %v8776 = vmul.f32 %v8762, %v8771
          %v8777 = vmul.f32 %v8763, %v8771
          %v8778 = vmul.f32 %v8764, %v8771
          %v8779 = vmul.f32 %v8765, %v8771
          %v8780 = vmul.f32 %v8766, %v8771
          %v8782 = vlaneseq
          %v8783 = vshrl.u32 %v8782, 7
          %v8784 = vsub.s32 0, %v8783
          %v8785 = vrot.slane %v8647, %v8784
          %v8787 = vadd.f32 %v8773, %v8785
          %v8788 = vadd.f32 %v8774, %v8785
          %v8789 = vadd.f32 %v8775, %v8785
          %v8790 = vadd.f32 %v8776, %v8785
          %v8791 = vadd.f32 %v8777, %v8785
          %v8792 = vadd.f32 %v8778, %v8785
          %v8793 = vadd.f32 %v8779, %v8785
          %v8794 = vadd.f32 %v8780, %v8785
          %v8803 = vrot.slane %v8788, 7
          %v8804 = vsel %vm8657, %v8803, %v8787
          %v8805 = vrot.slane %v8789, 6
          %v8806 = vsel %vm8660, %v8805, %v8804
          %v8807 = vrot.slane %v8790, 5
          %v8808 = vsel %vm8663, %v8807, %v8806
          %v8809 = vrot.slane %v8791, 4
          %v8810 = vsel %vm8666, %v8809, %v8808
          %v8811 = vrot.slane %v8792, 3
          %v8812 = vsel %vm8669, %v8811, %v8810
          %v8813 = vrot.slane %v8793, 2
          %v8814 = vsel %vm8672, %v8813, %v8812
          %v8815 = vrot.slane %v8794, 1
          %v8816 = vsel %vm8675, %v8815, %v8814
          %8818 = vst.msk [vmem:[#allocation6] sm:$0xff] %vm775, %v8816
        $region92: #{tpu_custom_call.1} parent=79 // pred_fallthru
          _
        // Predicated region
        $region93: #{tpu_custom_call.1} parent=79 // pred_check
          %p8819 = pneg %p438
        $region94: #{tpu_custom_call.1} parent=79 // pred_check_branch
          %8821 = sbr.rel (%p8819) target = $region96
        $region95: #{tpu_custom_call.1} parent=79 // pred_region
          %s8823 = ssub.s32 128, 128
          %8824 = vsyncadd [#allocation5], %s8823
          %s8825 = smul.addr %s32, 128
          %s8826 = scalar_lea.hbm %s15, %s8825
          %s8828 = sshll.u32 [#allocation6], 4
          %s8829 = int_to_ptr.vmem [resolvable:$true] %s8828
          %8831 = dma.vmem_to_hbm [thread:$0]  %s8829, 128, %s8826, [#allocation5]
        $region96: #{tpu_custom_call.1} parent=79 // pred_fallthru
          _
        // Predicated region
        $region97: #{tpu_custom_call.1} parent=79 // pred_check
          %p8832 = pneg %p438
        $region98: #{tpu_custom_call.1} parent=79 // pred_check_branch
          %8834 = sbr.rel (%p8832) target = $region100
        $region99: #{tpu_custom_call.1} parent=79 // pred_region
          %8835 = dma.done [#allocation5], 128
        $region100: #{tpu_custom_call.1} parent=79 // pred_fallthru
          _
      $region80: #{tpu_custom_call.1} parent=5 // pred_fallthru
        _
      %p8836 = scmp.le.s32.totalorder 2, %s23
      // Predicated region
      $region101: #{tpu_custom_call.1} parent=5 // pred_check
        %p8837 = pneg %p8836
      $region102: #{tpu_custom_call.1} parent=5 // pred_check_branch
        %8839 = sbr.rel (%p8837) target = $region104
      $region103: #{tpu_custom_call.1} parent=5 // pred_region
        %s8840 = ssub.s32 %s23, 2
      $region104: #{tpu_custom_call.1} parent=5 // pred_fallthru
        _
    $region6: #{tpu_custom_call.1} parent=1 // loop_footer
      %s27 = sadd.s32 1, %s23
    $region7: #{tpu_custom_call.1} parent=1 // loop_footer_branch
      %22 = sbr.rel target = $region3
    $region8: #{tpu_custom_call.1} parent=1 // loop_exit
      _
    %8841 = vsyncpa [#allocation4], 1
    %s8842 = scalar_lea.sflag [#allocation4], 1
    %8843 = vsyncpa %s8842, 1
    %8844 = vsyncpa [#allocation5], 1
    %s8845 = scalar_lea.sflag [#allocation5], 1
    %8846 = vsyncpa %s8845, 1

</llo_original>
